<compile_context>
chip_gen: v7x
topology: tpu7x:2x2x1
jax: 0.10.0
libtpu: 0.0.40
codegen_flags: <defaults>
</compile_context>

<pallas_src>
import functools

import jax
import jax.numpy as jnp
from jax.experimental import pallas as pl
from jax.experimental.pallas import tpu as pltpu

# Pin the f32 MXU pass count so kernel and pure-JAX reference agree to 1e-4
# regardless of the ambient default_matmul_precision setting.
jax.config.update("jax_default_matmul_precision", "highest")

K = 2          # TAGConv hop count (DGL default)
LANE = 128     # channel dims padded to a multiple of the TPU lane width
SUBLANE = 8    # f32 sublane granularity: node count padded to a multiple of 8

_VMEM = pl.BlockSpec(memory_space=pltpu.MemorySpace.VMEM)

# dot_general dims contracting over the FIRST axis of both operands:
#   result[i, k] = sum_u lhs[u, i] * rhs[u, k]  ==  (lhs^T @ rhs)[i, k]
# i.e. a transposed-LHS matmul without materializing the transpose.
_CONTRACT_DIM0 = (((0,), (0,)), ((), ()))


def _round_up(x, m):
    return (x + m - 1) // m * m


# ---------------------------------------------------------------------------
# fused kernel: TAGConv -> relu -> TAGConv -> relu [-> max-pool readout]
# ---------------------------------------------------------------------------
def _encoder_kernel(adj_ref, x_ref, w1_ref, b1_ref, w2_ref, b2_ref, o_ref,
                    *, c, n_real, n_pad, pool):
    adj = adj_ref[...]          # (n_pad, n_pad); f32 or bf16 (0/1 values exact)

    # In-degree = column sums of adj, clamped to >= 1 (DGL TAGConv convention),
    # computed on the VMEM-resident adjacency (no extra HBM pass, no host-side
    # reduce).  A width-1 matmul keeps the result as an (n_pad, 1) column
    # vector with no cross-lane transpose.
    ones = jnp.ones((n_pad, 1), dtype=adj.dtype)
    in_deg = jax.lax.dot_general(adj, ones, _CONTRACT_DIM0,
                                 preferred_element_type=jnp.float32)
    norm = jax.lax.rsqrt(jnp.maximum(in_deg, 1.0))       # (n_pad, 1) f32

    def propagate(x):
        # A_hat @ x = norm * (adj^T @ (norm * x)).  adj^T is never built:
        # contract over adj's dim 0.  Scale in f32, cast only the dot operand
        # (bf16 on the fast path), accumulate in f32.
        scaled = (norm * x).astype(adj.dtype)
        y = jax.lax.dot_general(adj, scaled, _CONTRACT_DIM0,
                                preferred_element_type=jnp.float32)
        return norm * y

    def tag_layer(x, w_ref, b_ref):
        x1 = propagate(x)       # A_hat   x
        x2 = propagate(x1)      # A_hat^2 x
        # concat([x, x1, x2], -1) @ W  ==  sum of three accumulating matmuls
        # against lane-aligned 128-row slices of W (no (N, 3c) staging scratch,
        # no extra vst/vld traffic).
        y = jnp.dot(x, w_ref[0 * c:1 * c, :],
                    preferred_element_type=jnp.float32)
        y = y + jnp.dot(x1, w_ref[1 * c:2 * c, :],
                        preferred_element_type=jnp.float32)
        y = y + jnp.dot(x2, w_ref[2 * c:3 * c, :],
                        preferred_element_type=jnp.float32)
        y = y + b_ref[...]
        return jnp.maximum(y, 0.0)      # torch.relu activation

    h1 = tag_layer(x_ref[...], w1_ref, b1_ref)
    h2 = tag_layer(h1, w2_ref, b2_ref)

    if pool:
        # dgl MaxPooling readout over real nodes only.  relu output >= 0, so a
        # 0 mask for padded rows is exact; skip the mask entirely when there is
        # no row padding (n_real is a compile-time constant), otherwise mask
        # only the final sublane group of rows.
        if n_real == n_pad:
            o_ref[...] = jnp.max(h2, axis=0, keepdims=True)
        else:
            n_base = (n_real // SUBLANE) * SUBLANE
            tail = h2[n_base:, :]
            rows = jax.lax.broadcasted_iota(jnp.int32, tail.shape, 0)
            tail = jnp.where(rows < (n_real - n_base), tail, 0.0)
            m = jnp.max(tail, axis=0, keepdims=True)
            if n_base > 0:
                m = jnp.maximum(m, jnp.max(h2[:n_base, :], axis=0,
                                           keepdims=True))
            o_ref[...] = m
    else:
        o_ref[...] = h2


# ---------------------------------------------------------------------------
# wrapper
# ---------------------------------------------------------------------------
def _pad_tag_params(w, b, f_in, c):
    """Pad TAGConv weight ((K+1)*f_in, f_out) / bias (1, f_out) to lane-dense
    ((K+1)*c, c) / (1, c), padding each per-hop block independently."""
    f_out = w.shape[1]
    w3 = w.reshape(K + 1, f_in, f_out)
    w3 = jnp.pad(w3, ((0, 0), (0, c - f_in), (0, c - f_out)))
    b_p = jnp.pad(b, ((0, 0), (0, c - f_out)))
    return (w3.reshape((K + 1) * c, c).astype(jnp.float32),
            b_p.astype(jnp.float32))


def _physical_vmem_bytes():
    try:
        return int(pltpu.get_tpu_info().vmem_capacity_bytes)
    except Exception:
        return 64 * 1024 * 1024     # conservative: v7x per-TensorCore VMEM


def encoder_forward(adj, h, params, pool=False, propagate_in_bf16=False):
    """Forward pass of `Encoder` on a dense adjacency.

    propagate_in_bf16: use bf16 for the 4 graph-propagation matmuls (the 0/1
    adjacency is exact in bf16; the feature operand loses mantissa while
    accumulation stays f32).  ~2-4x MXU throughput, half the adjacency
    VMEM/HBM bytes; validate tolerance before enabling in strict settings.
    """
    (w1, b1), (w2, b2) = params
    n, in_dim = h.shape
    hiddens = w1.shape[1]
    out_dim = w2.shape[1]

    n_pad = _round_up(n, SUBLANE)
    c = _round_up(max(in_dim, hiddens, out_dim), LANE)   # lane-dense width

    adj_dtype = jnp.bfloat16 if propagate_in_bf16 else jnp.float32
    adj_p = adj.astype(adj_dtype)
    if n_pad != n:                       # skip the host-side N x N pad copy
        adj_p = jnp.pad(adj_p, ((0, n_pad - n), (0, n_pad - n)))
    h_p = h.astype(jnp.float32)
    if n_pad != n or c != in_dim:
        h_p = jnp.pad(h_p, ((0, n_pad - n), (0, c - in_dim)))
    w1_p, b1_p = _pad_tag_params(w1, b1, in_dim, c)
    w2_p, b2_p = _pad_tag_params(w2, b2, hiddens, c)

    # Scoped-VMEM limit sized to the actual resident footprint (the default
    # 16/32 MiB scoped limit -- not physical VMEM -- is what caps N otherwise).
    adj_bytes = n_pad * n_pad * jnp.dtype(adj_dtype).itemsize
    feat_bytes = 6 * n_pad * c * 4                 # x / x1 / x2 / h1 / h2 / tmp
    w_bytes = 2 * ((K + 1) * c * c + c) * 4
    need = int(1.5 * (adj_bytes + feat_bytes + w_bytes)) + (4 << 20)
    vmem_limit = int(max(32 << 20,
                         min(need, int(0.85 * _physical_vmem_bytes()))))

    out_rows = 1 if pool else n_pad
    kernel = functools.partial(_encoder_kernel, c=c, n_real=n, n_pad=n_pad,
                               pool=pool)
    out = pl.pallas_call(
        kernel,
        out_shape=jax.ShapeDtypeStruct((out_rows, c), jnp.float32),
        in_specs=[_VMEM] * 6,
        out_specs=_VMEM,
        compiler_params=pltpu.CompilerParams(vmem_limit_bytes=vmem_limit),
    )(adj_p, h_p, w1_p, b1_p, w2_p, b2_p)

    if pool:
        return out[:, :out_dim]
    return out[:n, :out_dim]


def init_encoder_params(key, in_dim, hiddens, out_dim):
    k1, k2, k3, k4 = jax.random.split(key, 4)
    w1 = jax.random.normal(k1, ((K + 1) * in_dim, hiddens), jnp.float32) * 0.1
    b1 = jax.random.normal(k2, (1, hiddens), jnp.float32) * 0.1
    w2 = jax.random.normal(k3, ((K + 1) * hiddens, out_dim), jnp.float32) * 0.1
    b2 = jax.random.normal(k4, (1, out_dim), jnp.float32) * 0.1
    return (w1, b1), (w2, b2)


# ---------------------------------------------------------------------------
# pure-JAX reference (materializes A_hat, mirrors the original module)
# ---------------------------------------------------------------------------
def _normalized_adjacency(adj):
    in_deg = jnp.maximum(jnp.sum(adj, axis=0), 1.0)   # in-degree, clamped >= 1
    norm = in_deg ** -0.5
    return norm[:, None] * adj.T * norm[None, :]


def _reference_forward(adj, h, params, pool=False):
    (w1, b1), (w2, b2) = params
    a_hat = _normalized_adjacency(adj)

    def layer(x, w, b):
        x1 = a_hat @ x
        x2 = a_hat @ x1
        cat = jnp.concatenate([x, x1, x2], axis=-1)
        return jnp.maximum(cat @ w + b, 0.0)

    x = layer(h, w1, b1)
    x = layer(x, w2, b2)
    if pool:
        x = jnp.max(x, axis=0, keepdims=True)
    return x


if __name__ == "__main__":
    key = jax.random.PRNGKey(0)
    k_adj, k_dir, k_feat, k_par = jax.random.split(key, 4)

    N, in_dim, hiddens, out_dim = 16, 8, 16, 8

    # undirected graph (symmetric, no self loops)
    upper = (jax.random.uniform(k_adj, (N, N)) > 0.6).astype(jnp.float32)
    adj_sym = jnp.triu(upper, k=1)
    adj_sym = adj_sym + adj_sym.T

    # directed graph (asymmetric, no self loops) -- exercises the in-degree /
    # transposed-contraction convention
    adj_dir = (jax.random.uniform(k_dir, (N, N)) > 0.7).astype(jnp.float32)
    adj_dir = adj_dir * (1.0 - jnp.eye(N, dtype=jnp.float32))

    h = jax.random.normal(k_feat, (N, in_dim), jnp.float32)
    params = init_encoder_params(k_par, in_dim, hiddens, out_dim)

    for adj in (adj_sym, adj_dir):
        ref = _reference_forward(adj, h, params, pool=False)
        ref_pooled = _reference_forward(adj, h, params, pool=True)

        # exact (f32 propagation) path
        out = encoder_forward(adj, h, params, pool=False)
        pooled = encoder_forward(adj, h, params, pool=True)
        jax.block_until_ready(out)
        jax.block_until_ready(pooled)
        assert out.shape == (N, out_dim)
        assert pooled.shape == (1, out_dim)
        assert jnp.allclose(out, ref, atol=1e-4, rtol=1e-4)
        assert jnp.allclose(pooled, ref_pooled, atol=1e-4, rtol=1e-4)

        # bf16-propagation fast path (0/1 adjacency exact; feature operand
        # loses mantissa over 4 hops -> relaxed tolerance)
        out_bf = encoder_forward(adj, h, params, pool=False,
                                 propagate_in_bf16=True)
        pooled_bf = encoder_forward(adj, h, params, pool=True,
                                    propagate_in_bf16=True)
        jax.block_until_ready(out_bf)
        jax.block_until_ready(pooled_bf)
        assert jnp.allclose(out_bf, ref, atol=5e-2, rtol=5e-2)
        assert jnp.allclose(pooled_bf, ref_pooled, atol=5e-2, rtol=5e-2)

    # non-multiple-of-8 node count: exercises row padding + masked max-pool
    N2 = 13
    adj2 = adj_dir[:N2, :N2]
    h2 = h[:N2]
    ref2 = _reference_forward(adj2, h2, params, pool=False)
    ref2_pooled = _reference_forward(adj2, h2, params, pool=True)
    out2 = encoder_forward(adj2, h2, params, pool=False)
    pooled2 = encoder_forward(adj2, h2, params, pool=True)
    jax.block_until_ready(out2)
    jax.block_until_ready(pooled2)
    assert out2.shape == (N2, out_dim)
    assert pooled2.shape == (1, out_dim)
    assert jnp.allclose(out2, ref2, atol=1e-4, rtol=1e-4)
    assert jnp.allclose(pooled2, ref2_pooled, atol=1e-4, rtol=1e-4)

    print("KERNEL_OK")
</pallas_src>

<mosaic_0001>
module attributes {stable_mosaic.version = 11 : i64} {
  func.func @_encoder_kernel(%arg0: memref<16x16xf32, #tpu.memory_space<vmem>>, %arg1: memref<16x128xf32, #tpu.memory_space<vmem>>, %arg2: memref<384x128xf32, #tpu.memory_space<vmem>>, %arg3: memref<1x128xf32, #tpu.memory_space<vmem>>, %arg4: memref<384x128xf32, #tpu.memory_space<vmem>>, %arg5: memref<1x128xf32, #tpu.memory_space<vmem>>, %arg6: memref<16x128xf32, #tpu.memory_space<vmem>>) attributes {dimension_semantics = [], scalar_prefetch = 0 : i64, scratch_operands = 0 : i64, tpu.core_type = #tpu.core_type<tc>} {
    %c0 = arith.constant 0 : index
    %c0_0 = arith.constant 0 : index
    %0 = vector.load %arg0[%c0, %c0_0] : memref<16x16xf32, #tpu.memory_space<vmem>>, vector<16x16xf32>
    %cst = arith.constant 1.000000e+00 : f32
    %1 = vector.broadcast %cst : f32 to vector<16x1xf32>
    %cst_1 = arith.constant dense<0.000000e+00> : vector<16x1xf32>
    %2 = tpu.matmul %0, %1, %cst_1 {dimension_numbers = #tpu.dot_dimension_numbers<[0], [0], [1], [1], [0, 1, 1, 1], [], []>, precision = #tpu.contract_precision<fp32>} : vector<16x16xf32>, vector<16x1xf32>, vector<16x1xf32> -> vector<16x1xf32>
    %cst_2 = arith.constant 1.000000e+00 : f32
    %3 = vector.broadcast %cst_2 : f32 to vector<16x1xf32>
    %4 = arith.maximumf %2, %3 : vector<16x1xf32>
    %5 = math.rsqrt %4 : vector<16x1xf32>
    %c0_3 = arith.constant 0 : index
    %c0_4 = arith.constant 0 : index
    %6 = vector.load %arg1[%c0_3, %c0_4] : memref<16x128xf32, #tpu.memory_space<vmem>>, vector<16x128xf32>
    %7 = vector.broadcast %5 : vector<16x1xf32> to vector<16x128xf32>
    %8 = arith.mulf %7, %6 : vector<16x128xf32>
    %cst_5 = arith.constant dense<0.000000e+00> : vector<16x128xf32>
    %9 = tpu.matmul %0, %8, %cst_5 {dimension_numbers = #tpu.dot_dimension_numbers<[0], [0], [1], [1], [0, 1, 1, 1], [], []>, precision = #tpu.contract_precision<fp32>} : vector<16x16xf32>, vector<16x128xf32>, vector<16x128xf32> -> vector<16x128xf32>
    %10 = vector.broadcast %5 : vector<16x1xf32> to vector<16x128xf32>
    %11 = arith.mulf %10, %9 : vector<16x128xf32>
    %12 = vector.broadcast %5 : vector<16x1xf32> to vector<16x128xf32>
    %13 = arith.mulf %12, %11 : vector<16x128xf32>
    %cst_6 = arith.constant dense<0.000000e+00> : vector<16x128xf32>
    %14 = tpu.matmul %0, %13, %cst_6 {dimension_numbers = #tpu.dot_dimension_numbers<[0], [0], [1], [1], [0, 1, 1, 1], [], []>, precision = #tpu.contract_precision<fp32>} : vector<16x16xf32>, vector<16x128xf32>, vector<16x128xf32> -> vector<16x128xf32>
    %15 = vector.broadcast %5 : vector<16x1xf32> to vector<16x128xf32>
    %16 = arith.mulf %15, %14 : vector<16x128xf32>
    %c0_7 = arith.constant 0 : index
    %c0_8 = arith.constant 0 : index
    %17 = vector.load %arg2[%c0_7, %c0_8] : memref<384x128xf32, #tpu.memory_space<vmem>>, vector<128x128xf32>
    %cst_9 = arith.constant dense<0.000000e+00> : vector<16x128xf32>
    %18 = tpu.matmul %6, %17, %cst_9 {dimension_numbers = #tpu.dot_dimension_numbers<[1], [0], [0], [1], [0, 0, 1, 1], [], []>, precision = #tpu.contract_precision<fp32>} : vector<16x128xf32>, vector<128x128xf32>, vector<16x128xf32> -> vector<16x128xf32>
    %c128 = arith.constant 128 : index
    %c0_10 = arith.constant 0 : index
    %19 = vector.load %arg2[%c128, %c0_10] : memref<384x128xf32, #tpu.memory_space<vmem>>, vector<128x128xf32>
    %cst_11 = arith.constant dense<0.000000e+00> : vector<16x128xf32>
    %20 = tpu.matmul %11, %19, %cst_11 {dimension_numbers = #tpu.dot_dimension_numbers<[1], [0], [0], [1], [0, 0, 1, 1], [], []>, precision = #tpu.contract_precision<fp32>} : vector<16x128xf32>, vector<128x128xf32>, vector<16x128xf32> -> vector<16x128xf32>
    %21 = arith.addf %18, %20 : vector<16x128xf32>
    %c256 = arith.constant 256 : index
    %c0_12 = arith.constant 0 : index
    %22 = vector.load %arg2[%c256, %c0_12] : memref<384x128xf32, #tpu.memory_space<vmem>>, vector<128x128xf32>
    %cst_13 = arith.constant dense<0.000000e+00> : vector<16x128xf32>
    %23 = tpu.matmul %16, %22, %cst_13 {dimension_numbers = #tpu.dot_dimension_numbers<[1], [0], [0], [1], [0, 0, 1, 1], [], []>, precision = #tpu.contract_precision<fp32>} : vector<16x128xf32>, vector<128x128xf32>, vector<16x128xf32> -> vector<16x128xf32>
    %24 = arith.addf %21, %23 : vector<16x128xf32>
    %c0_14 = arith.constant 0 : index
    %c0_15 = arith.constant 0 : index
    %25 = vector.load %arg3[%c0_14, %c0_15] : memref<1x128xf32, #tpu.memory_space<vmem>>, vector<1x128xf32>
    %26 = vector.broadcast %25 : vector<1x128xf32> to vector<16x128xf32>
    %27 = arith.addf %24, %26 : vector<16x128xf32>
    %cst_16 = arith.constant 0.000000e+00 : f32
    %28 = vector.broadcast %cst_16 : f32 to vector<16x128xf32>
    %29 = arith.maximumf %27, %28 : vector<16x128xf32>
    %30 = vector.broadcast %5 : vector<16x1xf32> to vector<16x128xf32>
    %31 = arith.mulf %30, %29 : vector<16x128xf32>
    %cst_17 = arith.constant dense<0.000000e+00> : vector<16x128xf32>
    %32 = tpu.matmul %0, %31, %cst_17 {dimension_numbers = #tpu.dot_dimension_numbers<[0], [0], [1], [1], [0, 1, 1, 1], [], []>, precision = #tpu.contract_precision<fp32>} : vector<16x16xf32>, vector<16x128xf32>, vector<16x128xf32> -> vector<16x128xf32>
    %33 = vector.broadcast %5 : vector<16x1xf32> to vector<16x128xf32>
    %34 = arith.mulf %33, %32 : vector<16x128xf32>
    %35 = vector.broadcast %5 : vector<16x1xf32> to vector<16x128xf32>
    %36 = arith.mulf %35, %34 : vector<16x128xf32>
    %cst_18 = arith.constant dense<0.000000e+00> : vector<16x128xf32>
    %37 = tpu.matmul %0, %36, %cst_18 {dimension_numbers = #tpu.dot_dimension_numbers<[0], [0], [1], [1], [0, 1, 1, 1], [], []>, precision = #tpu.contract_precision<fp32>} : vector<16x16xf32>, vector<16x128xf32>, vector<16x128xf32> -> vector<16x128xf32>
    %38 = vector.broadcast %5 : vector<16x1xf32> to vector<16x128xf32>
    %39 = arith.mulf %38, %37 : vector<16x128xf32>
    %c0_19 = arith.constant 0 : index
    %c0_20 = arith.constant 0 : index
    %40 = vector.load %arg4[%c0_19, %c0_20] : memref<384x128xf32, #tpu.memory_space<vmem>>, vector<128x128xf32>
    %cst_21 = arith.constant dense<0.000000e+00> : vector<16x128xf32>
    %41 = tpu.matmul %29, %40, %cst_21 {dimension_numbers = #tpu.dot_dimension_numbers<[1], [0], [0], [1], [0, 0, 1, 1], [], []>, precision = #tpu.contract_precision<fp32>} : vector<16x128xf32>, vector<128x128xf32>, vector<16x128xf32> -> vector<16x128xf32>
    %c128_22 = arith.constant 128 : index
    %c0_23 = arith.constant 0 : index
    %42 = vector.load %arg4[%c128_22, %c0_23] : memref<384x128xf32, #tpu.memory_space<vmem>>, vector<128x128xf32>
    %cst_24 = arith.constant dense<0.000000e+00> : vector<16x128xf32>
    %43 = tpu.matmul %34, %42, %cst_24 {dimension_numbers = #tpu.dot_dimension_numbers<[1], [0], [0], [1], [0, 0, 1, 1], [], []>, precision = #tpu.contract_precision<fp32>} : vector<16x128xf32>, vector<128x128xf32>, vector<16x128xf32> -> vector<16x128xf32>
    %44 = arith.addf %41, %43 : vector<16x128xf32>
    %c256_25 = arith.constant 256 : index
    %c0_26 = arith.constant 0 : index
    %45 = vector.load %arg4[%c256_25, %c0_26] : memref<384x128xf32, #tpu.memory_space<vmem>>, vector<128x128xf32>
    %cst_27 = arith.constant dense<0.000000e+00> : vector<16x128xf32>
    %46 = tpu.matmul %39, %45, %cst_27 {dimension_numbers = #tpu.dot_dimension_numbers<[1], [0], [0], [1], [0, 0, 1, 1], [], []>, precision = #tpu.contract_precision<fp32>} : vector<16x128xf32>, vector<128x128xf32>, vector<16x128xf32> -> vector<16x128xf32>
    %47 = arith.addf %44, %46 : vector<16x128xf32>
    %c0_28 = arith.constant 0 : index
    %c0_29 = arith.constant 0 : index
    %48 = vector.load %arg5[%c0_28, %c0_29] : memref<1x128xf32, #tpu.memory_space<vmem>>, vector<1x128xf32>
    %49 = vector.broadcast %48 : vector<1x128xf32> to vector<16x128xf32>
    %50 = arith.addf %47, %49 : vector<16x128xf32>
    %cst_30 = arith.constant 0.000000e+00 : f32
    %51 = vector.broadcast %cst_30 : f32 to vector<16x128xf32>
    %52 = arith.maximumf %50, %51 : vector<16x128xf32>
    %c0_31 = arith.constant 0 : index
    %c0_32 = arith.constant 0 : index
    %53 = vector.load %arg6[%c0_31, %c0_32] : memref<16x128xf32, #tpu.memory_space<vmem>>, vector<16x128xf32>
    tpu.vector_store %arg6[%c0_31, %c0_32], %52 {strides = array<i32>} : memref<16x128xf32, #tpu.memory_space<vmem>>, vector<16x128xf32>,
    return
  }
}

</mosaic_0001>

<llo_original>
// kernel: tpu_custom_call.1
$region0: #{tpu_custom_call.1}
  #allocation0 [shape = 'u32[]', space=smem, size = 0x4, offset = 0x4, fixed_abs, tag = 'smem constant byte address 0x4 - core index']
  #allocation1 [shape = 'u32[144,128]{1,0:T(1,128)}', space=vmem, size = 0x12000, scoped, tag = 'internal scratch']
  %s0 = inlined_call_operand.hbm [shape: f32[16,16], index: 0, kind: input, shape index: {}]
  %s1 = inlined_call_operand.hbm [shape: f32[16,128], index: 1, kind: input, shape index: {}]
  %s2 = inlined_call_operand.hbm [shape: f32[384,128], index: 2, kind: input, shape index: {}]
  %s3 = inlined_call_operand.vmem [shape: f32[1,128], index: 3, kind: input, shape index: {}]
  %s4 = inlined_call_operand.hbm [shape: f32[384,128], index: 4, kind: input, shape index: {}]
  %s5 = inlined_call_operand.vmem [shape: f32[1,128], index: 5, kind: input, shape index: {}]
  %s6 = inlined_call_operand.hbm [shape: f32[16,128], index: 6, kind: output, shape index: {}]
  %s7 = sld [smem:[#allocation0]]
  $region50: #{tpu_custom_call.1} parent=0
    _
  %s9 = ssub.s32 1, %s7
  %s10 = scalar_select 0, %s9, %s7
  $region1: #{tpu_custom_call.1} parent=0
    #allocation2 [shape = 'u8[8192]{0}', space=vmem, size = 0x2000, scoped, tag = 'input window, operand 0, single buffered']
    #allocation3 [shape = 's32[1]{0}', space=sflag, size = 0x4, scoped, tag = 'scoped memory for tpu_custom_call.1']
    #allocation4 [shape = 's32[1]{0}', space=sflag, size = 0x4, scoped, tag = 'scoped memory for tpu_custom_call.1']
    #allocation5 [shape = 'u8[8192]{0}', space=vmem, size = 0x2000, scoped, tag = 'input window, operand 1, single buffered']
    #allocation6 [shape = 's32[1]{0}', space=sflag, size = 0x4, scoped, tag = 'scoped memory for tpu_custom_call.1']
    #allocation7 [shape = 'u8[196608]{0}', space=vmem, size = 0x30000, scoped, tag = 'input window, operand 2, single buffered']
    #allocation8 [shape = 'u8[196608]{0}', space=vmem, size = 0x30000, scoped, tag = 'input window, operand 4, single buffered']
    #allocation9 [shape = 's32[1]{0}', space=sflag, size = 0x4, scoped, tag = 'scoped memory for tpu_custom_call.1']
    #allocation10 [shape = 'u8[8192]{0}', space=vmem, size = 0x2000, scoped, tag = 'output window, operand 0, single buffered']
    %11 = vsyncpa [#allocation3], 0
    %12 = vsyncpa [#allocation6], 0
    %13 = vsyncpa [#allocation9], 0
    %14 = vsyncpa [#allocation4], 0
    // Predicated region
    $region2: #{tpu_custom_call.1} parent=1 // pred_check
      _
    $region3: #{tpu_custom_call.1} parent=1 // pred_check_branch
      %16 = sbr.rel (0) target = $region5
    $region4: #{tpu_custom_call.1} parent=1 // pred_region
      %s18 = ssub.s32 256, 256
      %19 = vsyncadd [#allocation3], %s18
      %s20 = sshll.u32 [#allocation2], 4
      %s21 = int_to_ptr.vmem [resolvable:$true] %s20
      %26 = dma.hbm_to_vmem [thread:$0]  %s0, 256, %s21, [#allocation3], 128, 128, 8
    $region5: #{tpu_custom_call.1} parent=1 // pred_fallthru
      _
    // Predicated region
    $region6: #{tpu_custom_call.1} parent=1 // pred_check
      _
    $region7: #{tpu_custom_call.1} parent=1 // pred_check_branch
      %28 = sbr.rel (0) target = $region9
    $region8: #{tpu_custom_call.1} parent=1 // pred_region
      %s30 = ssub.s32 256, 256
      %31 = vsyncadd [#allocation6], %s30
      %s32 = sshll.u32 [#allocation5], 4
      %s33 = int_to_ptr.vmem [resolvable:$true] %s32
      %38 = dma.hbm_to_vmem [thread:$0]  %s1, 256, %s33, [#allocation6], 128, 128, 8
    $region9: #{tpu_custom_call.1} parent=1 // pred_fallthru
      _
    // Predicated region
    $region10: #{tpu_custom_call.1} parent=1 // pred_check
      _
    $region11: #{tpu_custom_call.1} parent=1 // pred_check_branch
      %40 = sbr.rel (0) target = $region13
    $region12: #{tpu_custom_call.1} parent=1 // pred_region
      %s42 = ssub.s32 6144, 6144
      %43 = vsyncadd [#allocation6], %s42
      %s44 = sshll.u32 [#allocation7], 4
      %s45 = int_to_ptr.vmem [resolvable:$true] %s44
      %50 = dma.hbm_to_vmem [thread:$0]  %s2, 6144, %s45, [#allocation6], 128, 128, 8
    $region13: #{tpu_custom_call.1} parent=1 // pred_fallthru
      _
    // Predicated region
    $region14: #{tpu_custom_call.1} parent=1 // pred_check
      _
    $region15: #{tpu_custom_call.1} parent=1 // pred_check_branch
      %52 = sbr.rel (0) target = $region17
    $region16: #{tpu_custom_call.1} parent=1 // pred_region
      _
    $region17: #{tpu_custom_call.1} parent=1 // pred_fallthru
      _
    // Predicated region
    $region18: #{tpu_custom_call.1} parent=1 // pred_check
      _
    $region19: #{tpu_custom_call.1} parent=1 // pred_check_branch
      %54 = sbr.rel (0) target = $region21
    $region20: #{tpu_custom_call.1} parent=1 // pred_region
      %s56 = ssub.s32 6144, 6144
      %57 = vsyncadd [#allocation9], %s56
      %s58 = sshll.u32 [#allocation8], 4
      %s59 = int_to_ptr.vmem [resolvable:$true] %s58
      %64 = dma.hbm_to_vmem [thread:$0]  %s4, 6144, %s59, [#allocation9], 128, 128, 8
    $region21: #{tpu_custom_call.1} parent=1 // pred_fallthru
      _
    // Predicated region
    $region22: #{tpu_custom_call.1} parent=1 // pred_check
      _
    $region23: #{tpu_custom_call.1} parent=1 // pred_check_branch
      %66 = sbr.rel (0) target = $region25
    $region24: #{tpu_custom_call.1} parent=1 // pred_region
      _
    $region25: #{tpu_custom_call.1} parent=1 // pred_fallthru
      _
    // Predicated region
    $region26: #{tpu_custom_call.1} parent=1 // pred_check
      _
    $region27: #{tpu_custom_call.1} parent=1 // pred_check_branch
      %68 = sbr.rel (0) target = $region29
    $region28: #{tpu_custom_call.1} parent=1 // pred_region
      %69 = dma.done [#allocation3], 256
    $region29: #{tpu_custom_call.1} parent=1 // pred_fallthru
      _
    // Predicated region
    $region30: #{tpu_custom_call.1} parent=1 // pred_check
      _
    $region31: #{tpu_custom_call.1} parent=1 // pred_check_branch
      %71 = sbr.rel (0) target = $region33
    $region32: #{tpu_custom_call.1} parent=1 // pred_region
      %72 = dma.done [#allocation6], 256
    $region33: #{tpu_custom_call.1} parent=1 // pred_fallthru
      _
    // Predicated region
    $region34: #{tpu_custom_call.1} parent=1 // pred_check
      _
    $region35: #{tpu_custom_call.1} parent=1 // pred_check_branch
      %74 = sbr.rel (0) target = $region37
    $region36: #{tpu_custom_call.1} parent=1 // pred_region
      %75 = dma.done [#allocation6], 6144
    $region37: #{tpu_custom_call.1} parent=1 // pred_fallthru
      _
    // Predicated region
    $region38: #{tpu_custom_call.1} parent=1 // pred_check
      _
    $region39: #{tpu_custom_call.1} parent=1 // pred_check_branch
      %77 = sbr.rel (0) target = $region41
    $region40: #{tpu_custom_call.1} parent=1 // pred_region
      %78 = dma.done [#allocation9], 6144
    $region41: #{tpu_custom_call.1} parent=1 // pred_fallthru
      _
    %v79 = vld [vmem:[#allocation2] sm:$0xff]
    %v80 = vld [vmem:[#allocation2 + $0x8] sm:$0xff]
    %81 = vxpose.xlu0.b32.start [1/16] %v79, 128
    %82 = vxpose.xlu0.b32.cont [2/16] %v80, 128
    %83 = vxpose.xlu0.b32.cont [3/16] 0.0, 128
    %84 = vxpose.xlu0.b32.cont [4/16] 0.0, 128
    %85 = vxpose.xlu0.b32.cont [5/16] 0.0, 128
    %86 = vxpose.xlu0.b32.cont [6/16] 0.0, 128
    %87 = vxpose.xlu0.b32.cont [7/16] 0.0, 128
    %88 = vxpose.xlu0.b32.cont [8/16] 0.0, 128
    %89 = vxpose.xlu0.b32.cont [9/16] 0.0, 128
    %90 = vxpose.xlu0.b32.cont [10/16] 0.0, 128
    %91 = vxpose.xlu0.b32.cont [11/16] 0.0, 128
    %92 = vxpose.xlu0.b32.cont [12/16] 0.0, 128
    %93 = vxpose.xlu0.b32.cont [13/16] 0.0, 128
    %94 = vxpose.xlu0.b32.cont [14/16] 0.0, 128
    %95 = vxpose.xlu0.b32.cont [15/16] 0.0, 128
    %96 = vxpose.xlu0.b32.end [16/16] 0.0, 128
    %v97 = vpop.trf.xlu0
    %v98 = vpop.trf.xlu0
    %v99 = vpop.trf.xlu0
    %v100 = vpop.trf.xlu0
    %v101 = vpop.trf.xlu0
    %v102 = vpop.trf.xlu0
    %v103 = vpop.trf.xlu0
    %v104 = vpop.trf.xlu0
    %v105 = vpop.trf.xlu0
    %v106 = vpop.trf.xlu0
    %v107 = vpop.trf.xlu0
    %v108 = vpop.trf.xlu0
    %v109 = vpop.trf.xlu0
    %v110 = vpop.trf.xlu0
    %v111 = vpop.trf.xlu0
    %v112 = vpop.trf.xlu0
    %vm113 = vcmask 130048
    %v115 = vsel %vm113, %v97, 0
    %v118 = vsel %vm113, %v98, 0
    %120 = vmatprep.subr.mxu0 0.0
    %121 = vmatpush1.msra.mxu0 1.0
    %122 = vmatprep.subr.mxu0 0.0
    %123 = vmatpush1.msra.mxu0 1.0
    %124 = vmatprep.subr.mxu0 0.0
    %125 = vmatpush1.msra.mxu0 0.0
    %126 = vmatprep.subr.mxu0 0.0
    %127 = vmatpush1.msra.mxu0 0.0
    %128 = vmatprep.subr.mxu0 0.0
    %129 = vmatpush1.msra.mxu0 0.0
    %130 = vmatprep.subr.mxu0 0.0
    %131 = vmatpush1.msra.mxu0 0.0
    %132 = vmatprep.subr.mxu0 0.0
    %133 = vmatpush1.msra.mxu0 0.0
    %134 = vmatprep.subr.mxu0 0.0
    %135 = vmatpush1.msra.mxu0 0.0
    %136 = vmatprep.subr.mxu0 0.0
    %137 = vmatpush1.msra.mxu0 0.0
    %138 = vmatprep.subr.mxu0 0.0
    %139 = vmatpush1.msra.mxu0 0.0
    %140 = vmatprep.subr.mxu0 0.0
    %141 = vmatpush1.msra.mxu0 0.0
    %142 = vmatprep.subr.mxu0 0.0
    %143 = vmatpush1.msra.mxu0 0.0
    %144 = vmatprep.subr.mxu0 0.0
    %145 = vmatpush1.msra.mxu0 0.0
    %146 = vmatprep.subr.mxu0 0.0
    %147 = vmatpush1.msra.mxu0 0.0
    %148 = vmatprep.subr.mxu0 0.0
    %149 = vmatpush1.msra.mxu0 0.0
    %150 = vmatprep.subr.mxu0 0.0
    %151 = vmatpush1.msra.mxu0 0.0
    %152 = vmatprep.subr.mxu0 0.0
    %153 = vmatpush1.msra.mxu0 0.0
    %154 = vmatprep.subr.mxu0 0.0
    %155 = vmatpush1.msra.mxu0 0.0
    %156 = vmatprep.subr.mxu0 0.0
    %157 = vmatpush1.msra.mxu0 0.0
    %158 = vmatprep.subr.mxu0 0.0
    %159 = vmatpush1.msra.mxu0 0.0
    %160 = vmatprep.subr.mxu0 0.0
    %161 = vmatpush1.msra.mxu0 0.0
    %162 = vmatprep.subr.mxu0 0.0
    %163 = vmatpush1.msra.mxu0 0.0
    %164 = vmatprep.subr.mxu0 0.0
    %165 = vmatpush1.msra.mxu0 0.0
    %166 = vmatprep.subr.mxu0 0.0
    %167 = vmatpush1.msra.mxu0 0.0
    %168 = vmatprep.subr.mxu0 0.0
    %169 = vmatpush1.msra.mxu0 0.0
    %170 = vmatprep.subr.mxu0 0.0
    %171 = vmatpush1.msra.mxu0 0.0
    %172 = vmatprep.subr.mxu0 0.0
    %173 = vmatpush1.msra.mxu0 0.0
    %174 = vmatprep.subr.mxu0 0.0
    %175 = vmatpush1.msra.mxu0 0.0
    %176 = vmatprep.subr.mxu0 0.0
    %177 = vmatpush1.msra.mxu0 0.0
    %178 = vmatprep.subr.mxu0 0.0
    %179 = vmatpush1.msra.mxu0 0.0
    %180 = vmatprep.subr.mxu0 0.0
    %181 = vmatpush1.msra.mxu0 0.0
    %182 = vmatprep.subr.mxu0 0.0
    %183 = vmatpush1.msra.mxu0 0.0
    %184 = vmatprep.mubr.f32.mxu0 0.0
    %v185 = vand.u32 %v115, 4294901760
    %v186 = vsub.f32 %v115, %v185
    %v187 = vand.u32 %v186, 4294901760
    %v188 = vsub.f32 %v186, %v187
    %v189 = vand.u32 %v188, 4294901760
    %190 = vmatmul.mubr.f32.gmra.mrb[0].mxu0 %v189
    %v191 = vpop.f32.mrb[0].mxu0
    %v192 = vadd.f32 0.0, %v191
    %v193 = vpop.f32.mrb[0].mxu0
    %194 = vmatprep.mubr.f32.mxu0 0.0
    %v195 = vand.u32 %v118, 4294901760
    %v196 = vsub.f32 %v118, %v195
    %v197 = vand.u32 %v196, 4294901760
    %v198 = vsub.f32 %v196, %v197
    %v199 = vand.u32 %v198, 4294901760
    %200 = vmatmul.mubr.f32.gmra.mrb[0].mxu0 %v199
    %v201 = vpop.f32.mrb[0].mxu0
    %v202 = vadd.f32 0.0, %v201
    %v203 = vpop.f32.mrb[0].mxu0
    %204 = vdwg.mxu0
    %205 = vmatprep.subr.mxu0 0.0
    %206 = vmatpush1.msra.mxu0 0.0
    %207 = vmatprep.subr.mxu0 0.0
    %208 = vmatpush1.msra.mxu0 0.0
    %209 = vmatprep.subr.mxu0 0.0
    %210 = vmatpush1.msra.mxu0 0.0
    %211 = vmatprep.subr.mxu0 0.0
    %212 = vmatpush1.msra.mxu0 0.0
    %213 = vmatprep.subr.mxu0 0.0
    %214 = vmatpush1.msra.mxu0 0.0
    %215 = vmatprep.subr.mxu0 0.0
    %216 = vmatpush1.msra.mxu0 0.0
    %217 = vmatprep.subr.mxu0 0.0
    %218 = vmatpush1.msra.mxu0 0.0
    %219 = vmatprep.subr.mxu0 0.0
    %220 = vmatpush1.msra.mxu0 0.0
    %221 = vmatprep.subr.mxu0 0.0
    %222 = vmatpush1.msra.mxu0 0.0
    %223 = vmatprep.subr.mxu0 0.0
    %224 = vmatpush1.msra.mxu0 0.0
    %225 = vmatprep.subr.mxu0 0.0
    %226 = vmatpush1.msra.mxu0 0.0
    %227 = vmatprep.subr.mxu0 0.0
    %228 = vmatpush1.msra.mxu0 0.0
    %229 = vmatprep.subr.mxu0 0.0
    %230 = vmatpush1.msra.mxu0 0.0
    %231 = vmatprep.subr.mxu0 0.0
    %232 = vmatpush1.msra.mxu0 0.0
    %233 = vmatprep.subr.mxu0 0.0
    %234 = vmatpush1.msra.mxu0 0.0
    %235 = vmatprep.subr.mxu0 0.0
    %236 = vmatpush1.msra.mxu0 0.0
    %237 = vmatprep.subr.mxu0 0.0
    %238 = vmatpush1.msra.mxu0 0.0
    %239 = vmatprep.subr.mxu0 0.0
    %240 = vmatpush1.msra.mxu0 0.0
    %241 = vmatprep.subr.mxu0 0.0
    %242 = vmatpush1.msra.mxu0 0.0
    %243 = vmatprep.subr.mxu0 0.0
    %244 = vmatpush1.msra.mxu0 0.0
    %245 = vmatprep.subr.mxu0 0.0
    %246 = vmatpush1.msra.mxu0 0.0
    %247 = vmatprep.subr.mxu0 0.0
    %248 = vmatpush1.msra.mxu0 0.0
    %249 = vmatprep.subr.mxu0 0.0
    %250 = vmatpush1.msra.mxu0 0.0
    %251 = vmatprep.subr.mxu0 0.0
    %252 = vmatpush1.msra.mxu0 0.0
    %253 = vmatprep.subr.mxu0 0.0
    %254 = vmatpush1.msra.mxu0 0.0
    %255 = vmatprep.subr.mxu0 0.0
    %256 = vmatpush1.msra.mxu0 0.0
    %257 = vmatprep.subr.mxu0 0.0
    %258 = vmatpush1.msra.mxu0 0.0
    %259 = vmatprep.subr.mxu0 0.0
    %260 = vmatpush1.msra.mxu0 0.0
    %261 = vmatprep.subr.mxu0 0.0
    %262 = vmatpush1.msra.mxu0 0.0
    %263 = vmatprep.subr.mxu0 0.0
    %264 = vmatpush1.msra.mxu0 0.0
    %265 = vmatprep.subr.mxu0 0.0
    %266 = vmatpush1.msra.mxu0 0.0
    %267 = vmatprep.subr.mxu0 0.0
    %268 = vmatpush1.msra.mxu0 0.0
    %269 = vmatprep.mubr.f32.mxu0 0.0
    %v270 = vand.u32 %v115, 4294901760
    %271 = vmatmul.mubr.f32.gmra.mrb[0].mxu0 %v270
    %v272 = vpop.f32.mrb[0].mxu0
    %v273 = vadd.f32 %v192, %v272
    %v274 = vpop.f32.mrb[0].mxu0
    %275 = vmatprep.mubr.f32.mxu0 0.0
    %v276 = vand.u32 %v118, 4294901760
    %277 = vmatmul.mubr.f32.gmra.mrb[0].mxu0 %v276
    %v278 = vpop.f32.mrb[0].mxu0
    %v279 = vadd.f32 %v202, %v278
    %v280 = vpop.f32.mrb[0].mxu0
    %281 = vdwg.mxu0
    %282 = vmatprep.subr.mxu0 0.0
    %283 = vmatpush1.msra.mxu0 0.0
    %284 = vmatprep.subr.mxu0 0.0
    %285 = vmatpush1.msra.mxu0 0.0
    %286 = vmatprep.subr.mxu0 0.0
    %287 = vmatpush1.msra.mxu0 0.0
    %288 = vmatprep.subr.mxu0 0.0
    %289 = vmatpush1.msra.mxu0 0.0
    %290 = vmatprep.subr.mxu0 0.0
    %291 = vmatpush1.msra.mxu0 0.0
    %292 = vmatprep.subr.mxu0 0.0
    %293 = vmatpush1.msra.mxu0 0.0
    %294 = vmatprep.subr.mxu0 0.0
    %295 = vmatpush1.msra.mxu0 0.0
    %296 = vmatprep.subr.mxu0 0.0
    %297 = vmatpush1.msra.mxu0 0.0
    %298 = vmatprep.subr.mxu0 0.0
    %299 = vmatpush1.msra.mxu0 0.0
    %300 = vmatprep.subr.mxu0 0.0
    %301 = vmatpush1.msra.mxu0 0.0
    %302 = vmatprep.subr.mxu0 0.0
    %303 = vmatpush1.msra.mxu0 0.0
    %304 = vmatprep.subr.mxu0 0.0
    %305 = vmatpush1.msra.mxu0 0.0
    %306 = vmatprep.subr.mxu0 0.0
    %307 = vmatpush1.msra.mxu0 0.0
    %308 = vmatprep.subr.mxu0 0.0
    %309 = vmatpush1.msra.mxu0 0.0
    %310 = vmatprep.subr.mxu0 0.0
    %311 = vmatpush1.msra.mxu0 0.0
    %312 = vmatprep.subr.mxu0 0.0
    %313 = vmatpush1.msra.mxu0 0.0
    %314 = vmatprep.subr.mxu0 0.0
    %315 = vmatpush1.msra.mxu0 0.0
    %316 = vmatprep.subr.mxu0 0.0
    %317 = vmatpush1.msra.mxu0 0.0
    %318 = vmatprep.subr.mxu0 0.0
    %319 = vmatpush1.msra.mxu0 0.0
    %320 = vmatprep.subr.mxu0 0.0
    %321 = vmatpush1.msra.mxu0 0.0
    %322 = vmatprep.subr.mxu0 0.0
    %323 = vmatpush1.msra.mxu0 0.0
    %324 = vmatprep.subr.mxu0 0.0
    %325 = vmatpush1.msra.mxu0 0.0
    %326 = vmatprep.subr.mxu0 0.0
    %327 = vmatpush1.msra.mxu0 0.0
    %328 = vmatprep.subr.mxu0 0.0
    %329 = vmatpush1.msra.mxu0 0.0
    %330 = vmatprep.subr.mxu0 0.0
    %331 = vmatpush1.msra.mxu0 0.0
    %332 = vmatprep.subr.mxu0 0.0
    %333 = vmatpush1.msra.mxu0 0.0
    %334 = vmatprep.subr.mxu0 0.0
    %335 = vmatpush1.msra.mxu0 0.0
    %336 = vmatprep.subr.mxu0 0.0
    %337 = vmatpush1.msra.mxu0 0.0
    %338 = vmatprep.subr.mxu0 0.0
    %339 = vmatpush1.msra.mxu0 0.0
    %340 = vmatprep.subr.mxu0 0.0
    %341 = vmatpush1.msra.mxu0 0.0
    %342 = vmatprep.subr.mxu0 0.0
    %343 = vmatpush1.msra.mxu0 0.0
    %344 = vmatprep.subr.mxu0 0.0
    %345 = vmatpush1.msra.mxu0 0.0
    %346 = vmatprep.mubr.f32.mxu0 0.0
    %v347 = vand.u32 %v115, 4294901760
    %v348 = vsub.f32 %v115, %v347
    %349 = vmatmul.mubr.f32.gmra.mrb[0].mxu0 %v348
    %v350 = vpop.f32.mrb[0].mxu0
    %v351 = vadd.f32 %v273, %v350
    %v352 = vpop.f32.mrb[0].mxu0
    %353 = vmatprep.mubr.f32.mxu0 0.0
    %v354 = vand.u32 %v118, 4294901760
    %v355 = vsub.f32 %v118, %v354
    %356 = vmatmul.mubr.f32.gmra.mrb[0].mxu0 %v355
    %v357 = vpop.f32.mrb[0].mxu0
    %v358 = vadd.f32 %v279, %v357
    %v359 = vpop.f32.mrb[0].mxu0
    %360 = vdwg.mxu0
    %361 = vmatprep.subr.mxu0 0.0
    %362 = vmatpush1.msra.mxu0 1.0
    %363 = vmatprep.subr.mxu0 0.0
    %364 = vmatpush1.msra.mxu0 1.0
    %365 = vmatprep.subr.mxu0 0.0
    %366 = vmatpush1.msra.mxu0 0.0
    %367 = vmatprep.subr.mxu0 0.0
    %368 = vmatpush1.msra.mxu0 0.0
    %369 = vmatprep.subr.mxu0 0.0
    %370 = vmatpush1.msra.mxu0 0.0
    %371 = vmatprep.subr.mxu0 0.0
    %372 = vmatpush1.msra.mxu0 0.0
    %373 = vmatprep.subr.mxu0 0.0
    %374 = vmatpush1.msra.mxu0 0.0
    %375 = vmatprep.subr.mxu0 0.0
    %376 = vmatpush1.msra.mxu0 0.0
    %377 = vmatprep.subr.mxu0 0.0
    %378 = vmatpush1.msra.mxu0 0.0
    %379 = vmatprep.subr.mxu0 0.0
    %380 = vmatpush1.msra.mxu0 0.0
    %381 = vmatprep.subr.mxu0 0.0
    %382 = vmatpush1.msra.mxu0 0.0
    %383 = vmatprep.subr.mxu0 0.0
    %384 = vmatpush1.msra.mxu0 0.0
    %385 = vmatprep.subr.mxu0 0.0
    %386 = vmatpush1.msra.mxu0 0.0
    %387 = vmatprep.subr.mxu0 0.0
    %388 = vmatpush1.msra.mxu0 0.0
    %389 = vmatprep.subr.mxu0 0.0
    %390 = vmatpush1.msra.mxu0 0.0
    %391 = vmatprep.subr.mxu0 0.0
    %392 = vmatpush1.msra.mxu0 0.0
    %393 = vmatprep.subr.mxu0 0.0
    %394 = vmatpush1.msra.mxu0 0.0
    %395 = vmatprep.subr.mxu0 0.0
    %396 = vmatpush1.msra.mxu0 0.0
    %397 = vmatprep.subr.mxu0 0.0
    %398 = vmatpush1.msra.mxu0 0.0
    %399 = vmatprep.subr.mxu0 0.0
    %400 = vmatpush1.msra.mxu0 0.0
    %401 = vmatprep.subr.mxu0 0.0
    %402 = vmatpush1.msra.mxu0 0.0
    %403 = vmatprep.subr.mxu0 0.0
    %404 = vmatpush1.msra.mxu0 0.0
    %405 = vmatprep.subr.mxu0 0.0
    %406 = vmatpush1.msra.mxu0 0.0
    %407 = vmatprep.subr.mxu0 0.0
    %408 = vmatpush1.msra.mxu0 0.0
    %409 = vmatprep.subr.mxu0 0.0
    %410 = vmatpush1.msra.mxu0 0.0
    %411 = vmatprep.subr.mxu0 0.0
    %412 = vmatpush1.msra.mxu0 0.0
    %413 = vmatprep.subr.mxu0 0.0
    %414 = vmatpush1.msra.mxu0 0.0
    %415 = vmatprep.subr.mxu0 0.0
    %416 = vmatpush1.msra.mxu0 0.0
    %417 = vmatprep.subr.mxu0 0.0
    %418 = vmatpush1.msra.mxu0 0.0
    %419 = vmatprep.subr.mxu0 0.0
    %420 = vmatpush1.msra.mxu0 0.0
    %421 = vmatprep.subr.mxu0 0.0
    %422 = vmatpush1.msra.mxu0 0.0
    %423 = vmatprep.subr.mxu0 0.0
    %424 = vmatpush1.msra.mxu0 0.0
    %425 = vmatprep.mubr.f32.mxu0 0.0
    %v426 = vand.u32 %v115, 4294901760
    %v427 = vsub.f32 %v115, %v426
    %v428 = vand.u32 %v427, 4294901760
    %429 = vmatmul.mubr.f32.gmra.mrb[0].mxu0 %v428
    %v430 = vpop.f32.mrb[0].mxu0
    %v431 = vadd.f32 %v351, %v430
    %v432 = vpop.f32.mrb[0].mxu0
    %433 = vmatprep.mubr.f32.mxu0 0.0
    %v434 = vand.u32 %v118, 4294901760
    %v435 = vsub.f32 %v118, %v434
    %v436 = vand.u32 %v435, 4294901760
    %437 = vmatmul.mubr.f32.gmra.mrb[0].mxu0 %v436
    %v438 = vpop.f32.mrb[0].mxu0
    %v439 = vadd.f32 %v358, %v438
    %v440 = vpop.f32.mrb[0].mxu0
    %441 = vdwg.mxu0
    %442 = vmatprep.subr.mxu0 0.0
    %443 = vmatpush1.msra.mxu0 0.0
    %444 = vmatprep.subr.mxu0 0.0
    %445 = vmatpush1.msra.mxu0 0.0
    %446 = vmatprep.subr.mxu0 0.0
    %447 = vmatpush1.msra.mxu0 0.0
    %448 = vmatprep.subr.mxu0 0.0
    %449 = vmatpush1.msra.mxu0 0.0
    %450 = vmatprep.subr.mxu0 0.0
    %451 = vmatpush1.msra.mxu0 0.0
    %452 = vmatprep.subr.mxu0 0.0
    %453 = vmatpush1.msra.mxu0 0.0
    %454 = vmatprep.subr.mxu0 0.0
    %455 = vmatpush1.msra.mxu0 0.0
    %456 = vmatprep.subr.mxu0 0.0
    %457 = vmatpush1.msra.mxu0 0.0
    %458 = vmatprep.subr.mxu0 0.0
    %459 = vmatpush1.msra.mxu0 0.0
    %460 = vmatprep.subr.mxu0 0.0
    %461 = vmatpush1.msra.mxu0 0.0
    %462 = vmatprep.subr.mxu0 0.0
    %463 = vmatpush1.msra.mxu0 0.0
    %464 = vmatprep.subr.mxu0 0.0
    %465 = vmatpush1.msra.mxu0 0.0
    %466 = vmatprep.subr.mxu0 0.0
    %467 = vmatpush1.msra.mxu0 0.0
    %468 = vmatprep.subr.mxu0 0.0
    %469 = vmatpush1.msra.mxu0 0.0
    %470 = vmatprep.subr.mxu0 0.0
    %471 = vmatpush1.msra.mxu0 0.0
    %472 = vmatprep.subr.mxu0 0.0
    %473 = vmatpush1.msra.mxu0 0.0
    %474 = vmatprep.subr.mxu0 0.0
    %475 = vmatpush1.msra.mxu0 0.0
    %476 = vmatprep.subr.mxu0 0.0
    %477 = vmatpush1.msra.mxu0 0.0
    %478 = vmatprep.subr.mxu0 0.0
    %479 = vmatpush1.msra.mxu0 0.0
    %480 = vmatprep.subr.mxu0 0.0
    %481 = vmatpush1.msra.mxu0 0.0
    %482 = vmatprep.subr.mxu0 0.0
    %483 = vmatpush1.msra.mxu0 0.0
    %484 = vmatprep.subr.mxu0 0.0
    %485 = vmatpush1.msra.mxu0 0.0
    %486 = vmatprep.subr.mxu0 0.0
    %487 = vmatpush1.msra.mxu0 0.0
    %488 = vmatprep.subr.mxu0 0.0
    %489 = vmatpush1.msra.mxu0 0.0
    %490 = vmatprep.subr.mxu0 0.0
    %491 = vmatpush1.msra.mxu0 0.0
    %492 = vmatprep.subr.mxu0 0.0
    %493 = vmatpush1.msra.mxu0 0.0
    %494 = vmatprep.subr.mxu0 0.0
    %495 = vmatpush1.msra.mxu0 0.0
    %496 = vmatprep.subr.mxu0 0.0
    %497 = vmatpush1.msra.mxu0 0.0
    %498 = vmatprep.subr.mxu0 0.0
    %499 = vmatpush1.msra.mxu0 0.0
    %500 = vmatprep.subr.mxu0 0.0
    %501 = vmatpush1.msra.mxu0 0.0
    %502 = vmatprep.subr.mxu0 0.0
    %503 = vmatpush1.msra.mxu0 0.0
    %504 = vmatprep.subr.mxu0 0.0
    %505 = vmatpush1.msra.mxu0 0.0
    %506 = vmatprep.mubr.f32.mxu0 0.0
    %v507 = vand.u32 %v115, 4294901760
    %508 = vmatmul.mubr.f32.gmra.mrb[0].mxu0 %v507
    %v509 = vpop.f32.mrb[0].mxu0
    %v510 = vadd.f32 %v431, %v509
    %v511 = vpop.f32.mrb[0].mxu0
    %512 = vmatprep.mubr.f32.mxu0 0.0
    %v513 = vand.u32 %v118, 4294901760
    %514 = vmatmul.mubr.f32.gmra.mrb[0].mxu0 %v513
    %v515 = vpop.f32.mrb[0].mxu0
    %v516 = vadd.f32 %v439, %v515
    %v517 = vpop.f32.mrb[0].mxu0
    %518 = vdwg.mxu0
    %519 = vmatprep.subr.mxu0 0.0
    %520 = vmatpush1.msra.mxu0 1.0
    %521 = vmatprep.subr.mxu0 0.0
    %522 = vmatpush1.msra.mxu0 1.0
    %523 = vmatprep.subr.mxu0 0.0
    %524 = vmatpush1.msra.mxu0 0.0
    %525 = vmatprep.subr.mxu0 0.0
    %526 = vmatpush1.msra.mxu0 0.0
    %527 = vmatprep.subr.mxu0 0.0
    %528 = vmatpush1.msra.mxu0 0.0
    %529 = vmatprep.subr.mxu0 0.0
    %530 = vmatpush1.msra.mxu0 0.0
    %531 = vmatprep.subr.mxu0 0.0
    %532 = vmatpush1.msra.mxu0 0.0
    %533 = vmatprep.subr.mxu0 0.0
    %534 = vmatpush1.msra.mxu0 0.0
    %535 = vmatprep.subr.mxu0 0.0
    %536 = vmatpush1.msra.mxu0 0.0
    %537 = vmatprep.subr.mxu0 0.0
    %538 = vmatpush1.msra.mxu0 0.0
    %539 = vmatprep.subr.mxu0 0.0
    %540 = vmatpush1.msra.mxu0 0.0
    %541 = vmatprep.subr.mxu0 0.0
    %542 = vmatpush1.msra.mxu0 0.0
    %543 = vmatprep.subr.mxu0 0.0
    %544 = vmatpush1.msra.mxu0 0.0
    %545 = vmatprep.subr.mxu0 0.0
    %546 = vmatpush1.msra.mxu0 0.0
    %547 = vmatprep.subr.mxu0 0.0
    %548 = vmatpush1.msra.mxu0 0.0
    %549 = vmatprep.subr.mxu0 0.0
    %550 = vmatpush1.msra.mxu0 0.0
    %551 = vmatprep.subr.mxu0 0.0
    %552 = vmatpush1.msra.mxu0 0.0
    %553 = vmatprep.subr.mxu0 0.0
    %554 = vmatpush1.msra.mxu0 0.0
    %555 = vmatprep.subr.mxu0 0.0
    %556 = vmatpush1.msra.mxu0 0.0
    %557 = vmatprep.subr.mxu0 0.0
    %558 = vmatpush1.msra.mxu0 0.0
    %559 = vmatprep.subr.mxu0 0.0
    %560 = vmatpush1.msra.mxu0 0.0
    %561 = vmatprep.subr.mxu0 0.0
    %562 = vmatpush1.msra.mxu0 0.0
    %563 = vmatprep.subr.mxu0 0.0
    %564 = vmatpush1.msra.mxu0 0.0
    %565 = vmatprep.subr.mxu0 0.0
    %566 = vmatpush1.msra.mxu0 0.0
    %567 = vmatprep.subr.mxu0 0.0
    %568 = vmatpush1.msra.mxu0 0.0
    %569 = vmatprep.subr.mxu0 0.0
    %570 = vmatpush1.msra.mxu0 0.0
    %571 = vmatprep.subr.mxu0 0.0
    %572 = vmatpush1.msra.mxu0 0.0
    %573 = vmatprep.subr.mxu0 0.0
    %574 = vmatpush1.msra.mxu0 0.0
    %575 = vmatprep.subr.mxu0 0.0
    %576 = vmatpush1.msra.mxu0 0.0
    %577 = vmatprep.subr.mxu0 0.0
    %578 = vmatpush1.msra.mxu0 0.0
    %579 = vmatprep.subr.mxu0 0.0
    %580 = vmatpush1.msra.mxu0 0.0
    %581 = vmatprep.subr.mxu0 0.0
    %582 = vmatpush1.msra.mxu0 0.0
    %583 = vmatprep.mubr.f32.mxu0 0.0
    %v584 = vand.u32 %v115, 4294901760
    %585 = vmatmul.mubr.f32.gmra.mrb[0].mxu0 %v584
    %v586 = vpop.f32.mrb[0].mxu0
    %v587 = vadd.f32 %v510, %v586
    %v588 = vpop.f32.mrb[0].mxu0
    %589 = vmatprep.mubr.f32.mxu0 0.0
    %v590 = vand.u32 %v118, 4294901760
    %591 = vmatmul.mubr.f32.gmra.mrb[0].mxu0 %v590
    %v592 = vpop.f32.mrb[0].mxu0
    %v593 = vadd.f32 %v516, %v592
    %v594 = vpop.f32.mrb[0].mxu0
    %595 = vdwg.mxu0
    %v596 = vmax.f32 %v587, 1.0
    %v597 = vmax.f32 %v593, 1.0
    %v598 = vrsqrt.pop %v596
    %v599 = vrsqrt.pop %v597
    %v600 = vld [vmem:[#allocation5] sm:$0xff]
    %v601 = vld [vmem:[#allocation5 + $0x8] sm:$0xff]
    %603 = vset.pattern.permute.xlu0 0
    %604 = vperm.xlu0 %603, %v598
    %v605 = vpop.permute.xlu0 %604
    %608 = vset.pattern.permute.xlu0 0
    %609 = vperm.xlu0 %608, %v599
    %v610 = vpop.permute.xlu0 %609
    %v612 = vmul.f32 %v605, %v600
    %v613 = vmul.f32 %v610, %v601
    %614 = vmatprep.subr.mxu0 0.0
    %v615 = vand.u32 %v612, 4294901760
    %616 = vmatpush1.msra.mxu0 %v615
    %617 = vmatprep.subr.mxu0 0.0
    %v618 = vand.u32 %v613, 4294901760
    %619 = vmatpush1.msra.mxu0 %v618
    %620 = vmatprep.subr.mxu0 0.0
    %621 = vmatpush1.msra.mxu0 0.0
    %622 = vmatprep.subr.mxu0 0.0
    %623 = vmatpush1.msra.mxu0 0.0
    %624 = vmatprep.subr.mxu0 0.0
    %625 = vmatpush1.msra.mxu0 0.0
    %626 = vmatprep.subr.mxu0 0.0
    %627 = vmatpush1.msra.mxu0 0.0
    %628 = vmatprep.subr.mxu0 0.0
    %629 = vmatpush1.msra.mxu0 0.0
    %630 = vmatprep.subr.mxu0 0.0
    %631 = vmatpush1.msra.mxu0 0.0
    %632 = vmatprep.subr.mxu0 0.0
    %633 = vmatpush1.msra.mxu0 0.0
    %634 = vmatprep.subr.mxu0 0.0
    %635 = vmatpush1.msra.mxu0 0.0
    %636 = vmatprep.subr.mxu0 0.0
    %637 = vmatpush1.msra.mxu0 0.0
    %638 = vmatprep.subr.mxu0 0.0
    %639 = vmatpush1.msra.mxu0 0.0
    %640 = vmatprep.subr.mxu0 0.0
    %641 = vmatpush1.msra.mxu0 0.0
    %642 = vmatprep.subr.mxu0 0.0
    %643 = vmatpush1.msra.mxu0 0.0
    %644 = vmatprep.subr.mxu0 0.0
    %645 = vmatpush1.msra.mxu0 0.0
    %646 = vmatprep.subr.mxu0 0.0
    %647 = vmatpush1.msra.mxu0 0.0
    %648 = vmatprep.subr.mxu0 0.0
    %649 = vmatpush1.msra.mxu0 0.0
    %650 = vmatprep.subr.mxu0 0.0
    %651 = vmatpush1.msra.mxu0 0.0
    %652 = vmatprep.subr.mxu0 0.0
    %653 = vmatpush1.msra.mxu0 0.0
    %654 = vmatprep.subr.mxu0 0.0
    %655 = vmatpush1.msra.mxu0 0.0
    %656 = vmatprep.subr.mxu0 0.0
    %657 = vmatpush1.msra.mxu0 0.0
    %658 = vmatprep.subr.mxu0 0.0
    %659 = vmatpush1.msra.mxu0 0.0
    %660 = vmatprep.subr.mxu0 0.0
    %661 = vmatpush1.msra.mxu0 0.0
    %662 = vmatprep.subr.mxu0 0.0
    %663 = vmatpush1.msra.mxu0 0.0
    %664 = vmatprep.subr.mxu0 0.0
    %665 = vmatpush1.msra.mxu0 0.0
    %666 = vmatprep.subr.mxu0 0.0
    %667 = vmatpush1.msra.mxu0 0.0
    %668 = vmatprep.subr.mxu0 0.0
    %669 = vmatpush1.msra.mxu0 0.0
    %670 = vmatprep.subr.mxu0 0.0
    %671 = vmatpush1.msra.mxu0 0.0
    %672 = vmatprep.subr.mxu0 0.0
    %673 = vmatpush1.msra.mxu0 0.0
    %674 = vmatprep.subr.mxu0 0.0
    %675 = vmatpush1.msra.mxu0 0.0
    %676 = vmatprep.subr.mxu0 0.0
    %677 = vmatpush1.msra.mxu0 0.0
    %678 = vmatprep.subr.mxu0 0.0
    %679 = vmatpush1.msra.mxu0 0.0
    %680 = vmatprep.mubr.f32.mxu0 0.0
    %v681 = vand.u32 %v115, 4294901760
    %v682 = vsub.f32 %v115, %v681
    %v683 = vand.u32 %v682, 4294901760
    %v684 = vsub.f32 %v682, %v683
    %v685 = vand.u32 %v684, 4294901760
    %686 = vmatmul.mubr.f32.gmra.mrb[0].mxu0 %v685
    %v687 = vpop.f32.mrb[0].mxu0
    %v688 = vadd.f32 0.0, %v687
    %v689 = vpop.f32.mrb[0].mxu0
    %690 = vmatprep.mubr.f32.mxu0 0.0
    %v691 = vand.u32 %v118, 4294901760
    %v692 = vsub.f32 %v118, %v691
    %v693 = vand.u32 %v692, 4294901760
    %v694 = vsub.f32 %v692, %v693
    %v695 = vand.u32 %v694, 4294901760
    %696 = vmatmul.mubr.f32.gmra.mrb[0].mxu0 %v695
    %v697 = vpop.f32.mrb[0].mxu0
    %v698 = vadd.f32 0.0, %v697
    %v699 = vpop.f32.mrb[0].mxu0
    %700 = vdwg.mxu0
    %701 = vmatprep.subr.mxu0 0.0
    %v702 = vand.u32 %v612, 4294901760
    %v703 = vsub.f32 %v612, %v702
    %v704 = vand.u32 %v703, 4294901760
    %v705 = vsub.f32 %v703, %v704
    %v706 = vand.u32 %v705, 4294901760
    %707 = vmatpush1.msra.mxu0 %v706
    %708 = vmatprep.subr.mxu0 0.0
    %v709 = vand.u32 %v613, 4294901760
    %v710 = vsub.f32 %v613, %v709
    %v711 = vand.u32 %v710, 4294901760
    %v712 = vsub.f32 %v710, %v711
    %v713 = vand.u32 %v712, 4294901760
    %714 = vmatpush1.msra.mxu0 %v713
    %715 = vmatprep.subr.mxu0 0.0
    %716 = vmatpush1.msra.mxu0 0.0
    %717 = vmatprep.subr.mxu0 0.0
    %718 = vmatpush1.msra.mxu0 0.0
    %719 = vmatprep.subr.mxu0 0.0
    %720 = vmatpush1.msra.mxu0 0.0
    %721 = vmatprep.subr.mxu0 0.0
    %722 = vmatpush1.msra.mxu0 0.0
    %723 = vmatprep.subr.mxu0 0.0
    %724 = vmatpush1.msra.mxu0 0.0
    %725 = vmatprep.subr.mxu0 0.0
    %726 = vmatpush1.msra.mxu0 0.0
    %727 = vmatprep.subr.mxu0 0.0
    %728 = vmatpush1.msra.mxu0 0.0
    %729 = vmatprep.subr.mxu0 0.0
    %730 = vmatpush1.msra.mxu0 0.0
    %731 = vmatprep.subr.mxu0 0.0
    %732 = vmatpush1.msra.mxu0 0.0
    %733 = vmatprep.subr.mxu0 0.0
    %734 = vmatpush1.msra.mxu0 0.0
    %735 = vmatprep.subr.mxu0 0.0
    %736 = vmatpush1.msra.mxu0 0.0
    %737 = vmatprep.subr.mxu0 0.0
    %738 = vmatpush1.msra.mxu0 0.0
    %739 = vmatprep.subr.mxu0 0.0
    %740 = vmatpush1.msra.mxu0 0.0
    %741 = vmatprep.subr.mxu0 0.0
    %742 = vmatpush1.msra.mxu0 0.0
    %743 = vmatprep.subr.mxu0 0.0
    %744 = vmatpush1.msra.mxu0 0.0
    %745 = vmatprep.subr.mxu0 0.0
    %746 = vmatpush1.msra.mxu0 0.0
    %747 = vmatprep.subr.mxu0 0.0
    %748 = vmatpush1.msra.mxu0 0.0
    %749 = vmatprep.subr.mxu0 0.0
    %750 = vmatpush1.msra.mxu0 0.0
    %751 = vmatprep.subr.mxu0 0.0
    %752 = vmatpush1.msra.mxu0 0.0
    %753 = vmatprep.subr.mxu0 0.0
    %754 = vmatpush1.msra.mxu0 0.0
    %755 = vmatprep.subr.mxu0 0.0
    %756 = vmatpush1.msra.mxu0 0.0
    %757 = vmatprep.subr.mxu0 0.0
    %758 = vmatpush1.msra.mxu0 0.0
    %759 = vmatprep.subr.mxu0 0.0
    %760 = vmatpush1.msra.mxu0 0.0
    %761 = vmatprep.subr.mxu0 0.0
    %762 = vmatpush1.msra.mxu0 0.0
    %763 = vmatprep.subr.mxu0 0.0
    %764 = vmatpush1.msra.mxu0 0.0
    %765 = vmatprep.subr.mxu0 0.0
    %766 = vmatpush1.msra.mxu0 0.0
    %767 = vmatprep.subr.mxu0 0.0
    %768 = vmatpush1.msra.mxu0 0.0
    %769 = vmatprep.subr.mxu0 0.0
    %770 = vmatpush1.msra.mxu0 0.0
    %771 = vmatprep.subr.mxu0 0.0
    %772 = vmatpush1.msra.mxu0 0.0
    %773 = vmatprep.subr.mxu0 0.0
    %774 = vmatpush1.msra.mxu0 0.0
    %775 = vmatprep.mubr.f32.mxu0 0.0
    %v776 = vand.u32 %v115, 4294901760
    %777 = vmatmul.mubr.f32.gmra.mrb[0].mxu0 %v776
    %v778 = vpop.f32.mrb[0].mxu0
    %v779 = vadd.f32 %v688, %v778
    %v780 = vpop.f32.mrb[0].mxu0
    %781 = vmatprep.mubr.f32.mxu0 0.0
    %v782 = vand.u32 %v118, 4294901760
    %783 = vmatmul.mubr.f32.gmra.mrb[0].mxu0 %v782
    %v784 = vpop.f32.mrb[0].mxu0
    %v785 = vadd.f32 %v698, %v784
    %v786 = vpop.f32.mrb[0].mxu0
    %787 = vdwg.mxu0
    %788 = vmatprep.subr.mxu0 0.0
    %v789 = vand.u32 %v612, 4294901760
    %v790 = vsub.f32 %v612, %v789
    %791 = vmatpush1.msra.mxu0 %v790
    %792 = vmatprep.subr.mxu0 0.0
    %v793 = vand.u32 %v613, 4294901760
    %v794 = vsub.f32 %v613, %v793
    %795 = vmatpush1.msra.mxu0 %v794
    %796 = vmatprep.subr.mxu0 0.0
    %797 = vmatpush1.msra.mxu0 0.0
    %798 = vmatprep.subr.mxu0 0.0
    %799 = vmatpush1.msra.mxu0 0.0
    %800 = vmatprep.subr.mxu0 0.0
    %801 = vmatpush1.msra.mxu0 0.0
    %802 = vmatprep.subr.mxu0 0.0
    %803 = vmatpush1.msra.mxu0 0.0
    %804 = vmatprep.subr.mxu0 0.0
    %805 = vmatpush1.msra.mxu0 0.0
    %806 = vmatprep.subr.mxu0 0.0
    %807 = vmatpush1.msra.mxu0 0.0
    %808 = vmatprep.subr.mxu0 0.0
    %809 = vmatpush1.msra.mxu0 0.0
    %810 = vmatprep.subr.mxu0 0.0
    %811 = vmatpush1.msra.mxu0 0.0
    %812 = vmatprep.subr.mxu0 0.0
    %813 = vmatpush1.msra.mxu0 0.0
    %814 = vmatprep.subr.mxu0 0.0
    %815 = vmatpush1.msra.mxu0 0.0
    %816 = vmatprep.subr.mxu0 0.0
    %817 = vmatpush1.msra.mxu0 0.0
    %818 = vmatprep.subr.mxu0 0.0
    %819 = vmatpush1.msra.mxu0 0.0
    %820 = vmatprep.subr.mxu0 0.0
    %821 = vmatpush1.msra.mxu0 0.0
    %822 = vmatprep.subr.mxu0 0.0
    %823 = vmatpush1.msra.mxu0 0.0
    %824 = vmatprep.subr.mxu0 0.0
    %825 = vmatpush1.msra.mxu0 0.0
    %826 = vmatprep.subr.mxu0 0.0
    %827 = vmatpush1.msra.mxu0 0.0
    %828 = vmatprep.subr.mxu0 0.0
    %829 = vmatpush1.msra.mxu0 0.0
    %830 = vmatprep.subr.mxu0 0.0
    %831 = vmatpush1.msra.mxu0 0.0
    %832 = vmatprep.subr.mxu0 0.0
    %833 = vmatpush1.msra.mxu0 0.0
    %834 = vmatprep.subr.mxu0 0.0
    %835 = vmatpush1.msra.mxu0 0.0
    %836 = vmatprep.subr.mxu0 0.0
    %837 = vmatpush1.msra.mxu0 0.0
    %838 = vmatprep.subr.mxu0 0.0
    %839 = vmatpush1.msra.mxu0 0.0
    %840 = vmatprep.subr.mxu0 0.0
    %841 = vmatpush1.msra.mxu0 0.0
    %842 = vmatprep.subr.mxu0 0.0
    %843 = vmatpush1.msra.mxu0 0.0
    %844 = vmatprep.subr.mxu0 0.0
    %845 = vmatpush1.msra.mxu0 0.0
    %846 = vmatprep.subr.mxu0 0.0
    %847 = vmatpush1.msra.mxu0 0.0
    %848 = vmatprep.subr.mxu0 0.0
    %849 = vmatpush1.msra.mxu0 0.0
    %850 = vmatprep.subr.mxu0 0.0
    %851 = vmatpush1.msra.mxu0 0.0
    %852 = vmatprep.subr.mxu0 0.0
    %853 = vmatpush1.msra.mxu0 0.0
    %854 = vmatprep.subr.mxu0 0.0
    %855 = vmatpush1.msra.mxu0 0.0
    %856 = vmatprep.mubr.f32.mxu0 0.0
    %v857 = vand.u32 %v115, 4294901760
    %v858 = vsub.f32 %v115, %v857
    %859 = vmatmul.mubr.f32.gmra.mrb[0].mxu0 %v858
    %v860 = vpop.f32.mrb[0].mxu0
    %v861 = vadd.f32 %v779, %v860
    %v862 = vpop.f32.mrb[0].mxu0
    %863 = vmatprep.mubr.f32.mxu0 0.0
    %v864 = vand.u32 %v118, 4294901760
    %v865 = vsub.f32 %v118, %v864
    %866 = vmatmul.mubr.f32.gmra.mrb[0].mxu0 %v865
    %v867 = vpop.f32.mrb[0].mxu0
    %v868 = vadd.f32 %v785, %v867
    %v869 = vpop.f32.mrb[0].mxu0
    %870 = vdwg.mxu0
    %871 = vmatprep.subr.mxu0 0.0
    %v872 = vand.u32 %v612, 4294901760
    %873 = vmatpush1.msra.mxu0 %v872
    %874 = vmatprep.subr.mxu0 0.0
    %v875 = vand.u32 %v613, 4294901760
    %876 = vmatpush1.msra.mxu0 %v875
    %877 = vmatprep.subr.mxu0 0.0
    %878 = vmatpush1.msra.mxu0 0.0
    %879 = vmatprep.subr.mxu0 0.0
    %880 = vmatpush1.msra.mxu0 0.0
    %881 = vmatprep.subr.mxu0 0.0
    %882 = vmatpush1.msra.mxu0 0.0
    %883 = vmatprep.subr.mxu0 0.0
    %884 = vmatpush1.msra.mxu0 0.0
    %885 = vmatprep.subr.mxu0 0.0
    %886 = vmatpush1.msra.mxu0 0.0
    %887 = vmatprep.subr.mxu0 0.0
    %888 = vmatpush1.msra.mxu0 0.0
    %889 = vmatprep.subr.mxu0 0.0
    %890 = vmatpush1.msra.mxu0 0.0
    %891 = vmatprep.subr.mxu0 0.0
    %892 = vmatpush1.msra.mxu0 0.0
    %893 = vmatprep.subr.mxu0 0.0
    %894 = vmatpush1.msra.mxu0 0.0
    %895 = vmatprep.subr.mxu0 0.0
    %896 = vmatpush1.msra.mxu0 0.0
    %897 = vmatprep.subr.mxu0 0.0
    %898 = vmatpush1.msra.mxu0 0.0
    %899 = vmatprep.subr.mxu0 0.0
    %900 = vmatpush1.msra.mxu0 0.0
    %901 = vmatprep.subr.mxu0 0.0
    %902 = vmatpush1.msra.mxu0 0.0
    %903 = vmatprep.subr.mxu0 0.0
    %904 = vmatpush1.msra.mxu0 0.0
    %905 = vmatprep.subr.mxu0 0.0
    %906 = vmatpush1.msra.mxu0 0.0
    %907 = vmatprep.subr.mxu0 0.0
    %908 = vmatpush1.msra.mxu0 0.0
    %909 = vmatprep.subr.mxu0 0.0
    %910 = vmatpush1.msra.mxu0 0.0
    %911 = vmatprep.subr.mxu0 0.0
    %912 = vmatpush1.msra.mxu0 0.0
    %913 = vmatprep.subr.mxu0 0.0
    %914 = vmatpush1.msra.mxu0 0.0
    %915 = vmatprep.subr.mxu0 0.0
    %916 = vmatpush1.msra.mxu0 0.0
    %917 = vmatprep.subr.mxu0 0.0
    %918 = vmatpush1.msra.mxu0 0.0
    %919 = vmatprep.subr.mxu0 0.0
    %920 = vmatpush1.msra.mxu0 0.0
    %921 = vmatprep.subr.mxu0 0.0
    %922 = vmatpush1.msra.mxu0 0.0
    %923 = vmatprep.subr.mxu0 0.0
    %924 = vmatpush1.msra.mxu0 0.0
    %925 = vmatprep.subr.mxu0 0.0
    %926 = vmatpush1.msra.mxu0 0.0
    %927 = vmatprep.subr.mxu0 0.0
    %928 = vmatpush1.msra.mxu0 0.0
    %929 = vmatprep.subr.mxu0 0.0
    %930 = vmatpush1.msra.mxu0 0.0
    %931 = vmatprep.subr.mxu0 0.0
    %932 = vmatpush1.msra.mxu0 0.0
    %933 = vmatprep.subr.mxu0 0.0
    %934 = vmatpush1.msra.mxu0 0.0
    %935 = vmatprep.subr.mxu0 0.0
    %936 = vmatpush1.msra.mxu0 0.0
    %937 = vmatprep.mubr.f32.mxu0 0.0
    %v938 = vand.u32 %v115, 4294901760
    %v939 = vsub.f32 %v115, %v938
    %v940 = vand.u32 %v939, 4294901760
    %941 = vmatmul.mubr.f32.gmra.mrb[0].mxu0 %v940
    %v942 = vpop.f32.mrb[0].mxu0
    %v943 = vadd.f32 %v861, %v942
    %v944 = vpop.f32.mrb[0].mxu0
    %945 = vmatprep.mubr.f32.mxu0 0.0
    %v946 = vand.u32 %v118, 4294901760
    %v947 = vsub.f32 %v118, %v946
    %v948 = vand.u32 %v947, 4294901760
    %949 = vmatmul.mubr.f32.gmra.mrb[0].mxu0 %v948
    %v950 = vpop.f32.mrb[0].mxu0
    %v951 = vadd.f32 %v868, %v950
    %v952 = vpop.f32.mrb[0].mxu0
    %953 = vdwg.mxu0
    %954 = vmatprep.subr.mxu0 0.0
    %v955 = vand.u32 %v612, 4294901760
    %v956 = vsub.f32 %v612, %v955
    %v957 = vand.u32 %v956, 4294901760
    %958 = vmatpush1.msra.mxu0 %v957
    %959 = vmatprep.subr.mxu0 0.0
    %v960 = vand.u32 %v613, 4294901760
    %v961 = vsub.f32 %v613, %v960
    %v962 = vand.u32 %v961, 4294901760
    %963 = vmatpush1.msra.mxu0 %v962
    %964 = vmatprep.subr.mxu0 0.0
    %965 = vmatpush1.msra.mxu0 0.0
    %966 = vmatprep.subr.mxu0 0.0
    %967 = vmatpush1.msra.mxu0 0.0
    %968 = vmatprep.subr.mxu0 0.0
    %969 = vmatpush1.msra.mxu0 0.0
    %970 = vmatprep.subr.mxu0 0.0
    %971 = vmatpush1.msra.mxu0 0.0
    %972 = vmatprep.subr.mxu0 0.0
    %973 = vmatpush1.msra.mxu0 0.0
    %974 = vmatprep.subr.mxu0 0.0
    %975 = vmatpush1.msra.mxu0 0.0
    %976 = vmatprep.subr.mxu0 0.0
    %977 = vmatpush1.msra.mxu0 0.0
    %978 = vmatprep.subr.mxu0 0.0
    %979 = vmatpush1.msra.mxu0 0.0
    %980 = vmatprep.subr.mxu0 0.0
    %981 = vmatpush1.msra.mxu0 0.0
    %982 = vmatprep.subr.mxu0 0.0
    %983 = vmatpush1.msra.mxu0 0.0
    %984 = vmatprep.subr.mxu0 0.0
    %985 = vmatpush1.msra.mxu0 0.0
    %986 = vmatprep.subr.mxu0 0.0
    %987 = vmatpush1.msra.mxu0 0.0
    %988 = vmatprep.subr.mxu0 0.0
    %989 = vmatpush1.msra.mxu0 0.0
    %990 = vmatprep.subr.mxu0 0.0
    %991 = vmatpush1.msra.mxu0 0.0
    %992 = vmatprep.subr.mxu0 0.0
    %993 = vmatpush1.msra.mxu0 0.0
    %994 = vmatprep.subr.mxu0 0.0
    %995 = vmatpush1.msra.mxu0 0.0
    %996 = vmatprep.subr.mxu0 0.0
    %997 = vmatpush1.msra.mxu0 0.0
    %998 = vmatprep.subr.mxu0 0.0
    %999 = vmatpush1.msra.mxu0 0.0
    %1000 = vmatprep.subr.mxu0 0.0
    %1001 = vmatpush1.msra.mxu0 0.0
    %1002 = vmatprep.subr.mxu0 0.0
    %1003 = vmatpush1.msra.mxu0 0.0
    %1004 = vmatprep.subr.mxu0 0.0
    %1005 = vmatpush1.msra.mxu0 0.0
    %1006 = vmatprep.subr.mxu0 0.0
    %1007 = vmatpush1.msra.mxu0 0.0
    %1008 = vmatprep.subr.mxu0 0.0
    %1009 = vmatpush1.msra.mxu0 0.0
    %1010 = vmatprep.subr.mxu0 0.0
    %1011 = vmatpush1.msra.mxu0 0.0
    %1012 = vmatprep.subr.mxu0 0.0
    %1013 = vmatpush1.msra.mxu0 0.0
    %1014 = vmatprep.subr.mxu0 0.0
    %1015 = vmatpush1.msra.mxu0 0.0
    %1016 = vmatprep.subr.mxu0 0.0
    %1017 = vmatpush1.msra.mxu0 0.0
    %1018 = vmatprep.subr.mxu0 0.0
    %1019 = vmatpush1.msra.mxu0 0.0
    %1020 = vmatprep.subr.mxu0 0.0
    %1021 = vmatpush1.msra.mxu0 0.0
    %1022 = vmatprep.subr.mxu0 0.0
    %1023 = vmatpush1.msra.mxu0 0.0
    %1024 = vmatprep.mubr.f32.mxu0 0.0
    %v1025 = vand.u32 %v115, 4294901760
    %1026 = vmatmul.mubr.f32.gmra.mrb[0].mxu0 %v1025
    %v1027 = vpop.f32.mrb[0].mxu0
    %v1028 = vadd.f32 %v943, %v1027
    %v1029 = vpop.f32.mrb[0].mxu0
    %1030 = vmatprep.mubr.f32.mxu0 0.0
    %v1031 = vand.u32 %v118, 4294901760
    %1032 = vmatmul.mubr.f32.gmra.mrb[0].mxu0 %v1031
    %v1033 = vpop.f32.mrb[0].mxu0
    %v1034 = vadd.f32 %v951, %v1033
    %v1035 = vpop.f32.mrb[0].mxu0
    %1036 = vdwg.mxu0
    %1037 = vmatprep.subr.mxu0 0.0
    %v1038 = vand.u32 %v612, 4294901760
    %1039 = vmatpush1.msra.mxu0 %v1038
    %1040 = vmatprep.subr.mxu0 0.0
    %v1041 = vand.u32 %v613, 4294901760
    %1042 = vmatpush1.msra.mxu0 %v1041
    %1043 = vmatprep.subr.mxu0 0.0
    %1044 = vmatpush1.msra.mxu0 0.0
    %1045 = vmatprep.subr.mxu0 0.0
    %1046 = vmatpush1.msra.mxu0 0.0
    %1047 = vmatprep.subr.mxu0 0.0
    %1048 = vmatpush1.msra.mxu0 0.0
    %1049 = vmatprep.subr.mxu0 0.0
    %1050 = vmatpush1.msra.mxu0 0.0
    %1051 = vmatprep.subr.mxu0 0.0
    %1052 = vmatpush1.msra.mxu0 0.0
    %1053 = vmatprep.subr.mxu0 0.0
    %1054 = vmatpush1.msra.mxu0 0.0
    %1055 = vmatprep.subr.mxu0 0.0
    %1056 = vmatpush1.msra.mxu0 0.0
    %1057 = vmatprep.subr.mxu0 0.0
    %1058 = vmatpush1.msra.mxu0 0.0
    %1059 = vmatprep.subr.mxu0 0.0
    %1060 = vmatpush1.msra.mxu0 0.0
    %1061 = vmatprep.subr.mxu0 0.0
    %1062 = vmatpush1.msra.mxu0 0.0
    %1063 = vmatprep.subr.mxu0 0.0
    %1064 = vmatpush1.msra.mxu0 0.0
    %1065 = vmatprep.subr.mxu0 0.0
    %1066 = vmatpush1.msra.mxu0 0.0
    %1067 = vmatprep.subr.mxu0 0.0
    %1068 = vmatpush1.msra.mxu0 0.0
    %1069 = vmatprep.subr.mxu0 0.0
    %1070 = vmatpush1.msra.mxu0 0.0
    %1071 = vmatprep.subr.mxu0 0.0
    %1072 = vmatpush1.msra.mxu0 0.0
    %1073 = vmatprep.subr.mxu0 0.0
    %1074 = vmatpush1.msra.mxu0 0.0
    %1075 = vmatprep.subr.mxu0 0.0
    %1076 = vmatpush1.msra.mxu0 0.0
    %1077 = vmatprep.subr.mxu0 0.0
    %1078 = vmatpush1.msra.mxu0 0.0
    %1079 = vmatprep.subr.mxu0 0.0
    %1080 = vmatpush1.msra.mxu0 0.0
    %1081 = vmatprep.subr.mxu0 0.0
    %1082 = vmatpush1.msra.mxu0 0.0
    %1083 = vmatprep.subr.mxu0 0.0
    %1084 = vmatpush1.msra.mxu0 0.0
    %1085 = vmatprep.subr.mxu0 0.0
    %1086 = vmatpush1.msra.mxu0 0.0
    %1087 = vmatprep.subr.mxu0 0.0
    %1088 = vmatpush1.msra.mxu0 0.0
    %1089 = vmatprep.subr.mxu0 0.0
    %1090 = vmatpush1.msra.mxu0 0.0
    %1091 = vmatprep.subr.mxu0 0.0
    %1092 = vmatpush1.msra.mxu0 0.0
    %1093 = vmatprep.subr.mxu0 0.0
    %1094 = vmatpush1.msra.mxu0 0.0
    %1095 = vmatprep.subr.mxu0 0.0
    %1096 = vmatpush1.msra.mxu0 0.0
    %1097 = vmatprep.subr.mxu0 0.0
    %1098 = vmatpush1.msra.mxu0 0.0
    %1099 = vmatprep.subr.mxu0 0.0
    %1100 = vmatpush1.msra.mxu0 0.0
    %1101 = vmatprep.subr.mxu0 0.0
    %1102 = vmatpush1.msra.mxu0 0.0
    %1103 = vmatprep.mubr.f32.mxu0 0.0
    %v1104 = vand.u32 %v115, 4294901760
    %1105 = vmatmul.mubr.f32.gmra.mrb[0].mxu0 %v1104
    %v1106 = vpop.f32.mrb[0].mxu0
    %v1107 = vadd.f32 %v1028, %v1106
    %v1108 = vpop.f32.mrb[0].mxu0
    %1109 = vmatprep.mubr.f32.mxu0 0.0
    %v1110 = vand.u32 %v118, 4294901760
    %1111 = vmatmul.mubr.f32.gmra.mrb[0].mxu0 %v1110
    %v1112 = vpop.f32.mrb[0].mxu0
    %v1113 = vadd.f32 %v1034, %v1112
    %v1114 = vpop.f32.mrb[0].mxu0
    %1115 = vdwg.mxu0
    %v1116 = vmul.f32 %v605, %v1107
    %v1117 = vmul.f32 %v610, %v1113
    %v1118 = vmul.f32 %v605, %v1116
    %v1119 = vmul.f32 %v610, %v1117
    %1120 = vmatprep.subr.mxu0 0.0
    %v1121 = vand.u32 %v1118, 4294901760
    %1122 = vmatpush1.msra.mxu0 %v1121
    %1123 = vmatprep.subr.mxu0 0.0
    %v1124 = vand.u32 %v1119, 4294901760
    %1125 = vmatpush1.msra.mxu0 %v1124
    %1126 = vmatprep.subr.mxu0 0.0
    %1127 = vmatpush1.msra.mxu0 0.0
    %1128 = vmatprep.subr.mxu0 0.0
    %1129 = vmatpush1.msra.mxu0 0.0
    %1130 = vmatprep.subr.mxu0 0.0
    %1131 = vmatpush1.msra.mxu0 0.0
    %1132 = vmatprep.subr.mxu0 0.0
    %1133 = vmatpush1.msra.mxu0 0.0
    %1134 = vmatprep.subr.mxu0 0.0
    %1135 = vmatpush1.msra.mxu0 0.0
    %1136 = vmatprep.subr.mxu0 0.0
    %1137 = vmatpush1.msra.mxu0 0.0
    %1138 = vmatprep.subr.mxu0 0.0
    %1139 = vmatpush1.msra.mxu0 0.0
    %1140 = vmatprep.subr.mxu0 0.0
    %1141 = vmatpush1.msra.mxu0 0.0
    %1142 = vmatprep.subr.mxu0 0.0
    %1143 = vmatpush1.msra.mxu0 0.0
    %1144 = vmatprep.subr.mxu0 0.0
    %1145 = vmatpush1.msra.mxu0 0.0
    %1146 = vmatprep.subr.mxu0 0.0
    %1147 = vmatpush1.msra.mxu0 0.0
    %1148 = vmatprep.subr.mxu0 0.0
    %1149 = vmatpush1.msra.mxu0 0.0
    %1150 = vmatprep.subr.mxu0 0.0
    %1151 = vmatpush1.msra.mxu0 0.0
    %1152 = vmatprep.subr.mxu0 0.0
    %1153 = vmatpush1.msra.mxu0 0.0
    %1154 = vmatprep.subr.mxu0 0.0
    %1155 = vmatpush1.msra.mxu0 0.0
    %1156 = vmatprep.subr.mxu0 0.0
    %1157 = vmatpush1.msra.mxu0 0.0
    %1158 = vmatprep.subr.mxu0 0.0
    %1159 = vmatpush1.msra.mxu0 0.0
    %1160 = vmatprep.subr.mxu0 0.0
    %1161 = vmatpush1.msra.mxu0 0.0
    %1162 = vmatprep.subr.mxu0 0.0
    %1163 = vmatpush1.msra.mxu0 0.0
    %1164 = vmatprep.subr.mxu0 0.0
    %1165 = vmatpush1.msra.mxu0 0.0
    %1166 = vmatprep.subr.mxu0 0.0
    %1167 = vmatpush1.msra.mxu0 0.0
    %1168 = vmatprep.subr.mxu0 0.0
    %1169 = vmatpush1.msra.mxu0 0.0
    %1170 = vmatprep.subr.mxu0 0.0
    %1171 = vmatpush1.msra.mxu0 0.0
    %1172 = vmatprep.subr.mxu0 0.0
    %1173 = vmatpush1.msra.mxu0 0.0
    %1174 = vmatprep.subr.mxu0 0.0
    %1175 = vmatpush1.msra.mxu0 0.0
    %1176 = vmatprep.subr.mxu0 0.0
    %1177 = vmatpush1.msra.mxu0 0.0
    %1178 = vmatprep.subr.mxu0 0.0
    %1179 = vmatpush1.msra.mxu0 0.0
    %1180 = vmatprep.subr.mxu0 0.0
    %1181 = vmatpush1.msra.mxu0 0.0
    %1182 = vmatprep.subr.mxu0 0.0
    %1183 = vmatpush1.msra.mxu0 0.0
    %1184 = vmatprep.subr.mxu0 0.0
    %1185 = vmatpush1.msra.mxu0 0.0
    %1186 = vmatprep.mubr.f32.mxu0 0.0
    %v1187 = vand.u32 %v115, 4294901760
    %v1188 = vsub.f32 %v115, %v1187
    %v1189 = vand.u32 %v1188, 4294901760
    %v1190 = vsub.f32 %v1188, %v1189
    %v1191 = vand.u32 %v1190, 4294901760
    %1192 = vmatmul.mubr.f32.gmra.mrb[0].mxu0 %v1191
    %v1193 = vpop.f32.mrb[0].mxu0
    %v1194 = vadd.f32 0.0, %v1193
    %v1195 = vpop.f32.mrb[0].mxu0
    %1196 = vmatprep.mubr.f32.mxu0 0.0
    %v1197 = vand.u32 %v118, 4294901760
    %v1198 = vsub.f32 %v118, %v1197
    %v1199 = vand.u32 %v1198, 4294901760
    %v1200 = vsub.f32 %v1198, %v1199
    %v1201 = vand.u32 %v1200, 4294901760
    %1202 = vmatmul.mubr.f32.gmra.mrb[0].mxu0 %v1201
    %v1203 = vpop.f32.mrb[0].mxu0
    %v1204 = vadd.f32 0.0, %v1203
    %v1205 = vpop.f32.mrb[0].mxu0
    %1206 = vdwg.mxu0
    %1207 = vmatprep.subr.mxu0 0.0
    %v1208 = vand.u32 %v1118, 4294901760
    %v1209 = vsub.f32 %v1118, %v1208
    %v1210 = vand.u32 %v1209, 4294901760
    %v1211 = vsub.f32 %v1209, %v1210
    %v1212 = vand.u32 %v1211, 4294901760
    %1213 = vmatpush1.msra.mxu0 %v1212
    %1214 = vmatprep.subr.mxu0 0.0
    %v1215 = vand.u32 %v1119, 4294901760
    %v1216 = vsub.f32 %v1119, %v1215
    %v1217 = vand.u32 %v1216, 4294901760
    %v1218 = vsub.f32 %v1216, %v1217
    %v1219 = vand.u32 %v1218, 4294901760
    %1220 = vmatpush1.msra.mxu0 %v1219
    %1221 = vmatprep.subr.mxu0 0.0
    %1222 = vmatpush1.msra.mxu0 0.0
    %1223 = vmatprep.subr.mxu0 0.0
    %1224 = vmatpush1.msra.mxu0 0.0
    %1225 = vmatprep.subr.mxu0 0.0
    %1226 = vmatpush1.msra.mxu0 0.0
    %1227 = vmatprep.subr.mxu0 0.0
    %1228 = vmatpush1.msra.mxu0 0.0
    %1229 = vmatprep.subr.mxu0 0.0
    %1230 = vmatpush1.msra.mxu0 0.0
    %1231 = vmatprep.subr.mxu0 0.0
    %1232 = vmatpush1.msra.mxu0 0.0
    %1233 = vmatprep.subr.mxu0 0.0
    %1234 = vmatpush1.msra.mxu0 0.0
    %1235 = vmatprep.subr.mxu0 0.0
    %1236 = vmatpush1.msra.mxu0 0.0
    %1237 = vmatprep.subr.mxu0 0.0
    %1238 = vmatpush1.msra.mxu0 0.0
    %1239 = vmatprep.subr.mxu0 0.0
    %1240 = vmatpush1.msra.mxu0 0.0
    %1241 = vmatprep.subr.mxu0 0.0
    %1242 = vmatpush1.msra.mxu0 0.0
    %1243 = vmatprep.subr.mxu0 0.0
    %1244 = vmatpush1.msra.mxu0 0.0
    %1245 = vmatprep.subr.mxu0 0.0
    %1246 = vmatpush1.msra.mxu0 0.0
    %1247 = vmatprep.subr.mxu0 0.0
    %1248 = vmatpush1.msra.mxu0 0.0
    %1249 = vmatprep.subr.mxu0 0.0
    %1250 = vmatpush1.msra.mxu0 0.0
    %1251 = vmatprep.subr.mxu0 0.0
    %1252 = vmatpush1.msra.mxu0 0.0
    %1253 = vmatprep.subr.mxu0 0.0
    %1254 = vmatpush1.msra.mxu0 0.0
    %1255 = vmatprep.subr.mxu0 0.0
    %1256 = vmatpush1.msra.mxu0 0.0
    %1257 = vmatprep.subr.mxu0 0.0
    %1258 = vmatpush1.msra.mxu0 0.0
    %1259 = vmatprep.subr.mxu0 0.0
    %1260 = vmatpush1.msra.mxu0 0.0
    %1261 = vmatprep.subr.mxu0 0.0
    %1262 = vmatpush1.msra.mxu0 0.0
    %1263 = vmatprep.subr.mxu0 0.0
    %1264 = vmatpush1.msra.mxu0 0.0
    %1265 = vmatprep.subr.mxu0 0.0
    %1266 = vmatpush1.msra.mxu0 0.0
    %1267 = vmatprep.subr.mxu0 0.0
    %1268 = vmatpush1.msra.mxu0 0.0
    %1269 = vmatprep.subr.mxu0 0.0
    %1270 = vmatpush1.msra.mxu0 0.0
    %1271 = vmatprep.subr.mxu0 0.0
    %1272 = vmatpush1.msra.mxu0 0.0
    %1273 = vmatprep.subr.mxu0 0.0
    %1274 = vmatpush1.msra.mxu0 0.0
    %1275 = vmatprep.subr.mxu0 0.0
    %1276 = vmatpush1.msra.mxu0 0.0
    %1277 = vmatprep.subr.mxu0 0.0
    %1278 = vmatpush1.msra.mxu0 0.0
    %1279 = vmatprep.subr.mxu0 0.0
    %1280 = vmatpush1.msra.mxu0 0.0
    %1281 = vmatprep.mubr.f32.mxu0 0.0
    %v1282 = vand.u32 %v115, 4294901760
    %1283 = vmatmul.mubr.f32.gmra.mrb[0].mxu0 %v1282
    %v1284 = vpop.f32.mrb[0].mxu0
    %v1285 = vadd.f32 %v1194, %v1284
    %v1286 = vpop.f32.mrb[0].mxu0
    %1287 = vmatprep.mubr.f32.mxu0 0.0
    %v1288 = vand.u32 %v118, 4294901760
    %1289 = vmatmul.mubr.f32.gmra.mrb[0].mxu0 %v1288
    %v1290 = vpop.f32.mrb[0].mxu0
    %v1291 = vadd.f32 %v1204, %v1290
    %v1292 = vpop.f32.mrb[0].mxu0
    %1293 = vdwg.mxu0
    %1294 = vmatprep.subr.mxu0 0.0
    %v1295 = vand.u32 %v1118, 4294901760
    %v1296 = vsub.f32 %v1118, %v1295
    %1297 = vmatpush1.msra.mxu0 %v1296
    %1298 = vmatprep.subr.mxu0 0.0
    %v1299 = vand.u32 %v1119, 4294901760
    %v1300 = vsub.f32 %v1119, %v1299
    %1301 = vmatpush1.msra.mxu0 %v1300
    %1302 = vmatprep.subr.mxu0 0.0
    %1303 = vmatpush1.msra.mxu0 0.0
    %1304 = vmatprep.subr.mxu0 0.0
    %1305 = vmatpush1.msra.mxu0 0.0
    %1306 = vmatprep.subr.mxu0 0.0
    %1307 = vmatpush1.msra.mxu0 0.0
    %1308 = vmatprep.subr.mxu0 0.0
    %1309 = vmatpush1.msra.mxu0 0.0
    %1310 = vmatprep.subr.mxu0 0.0
    %1311 = vmatpush1.msra.mxu0 0.0
    %1312 = vmatprep.subr.mxu0 0.0
    %1313 = vmatpush1.msra.mxu0 0.0
    %1314 = vmatprep.subr.mxu0 0.0
    %1315 = vmatpush1.msra.mxu0 0.0
    %1316 = vmatprep.subr.mxu0 0.0
    %1317 = vmatpush1.msra.mxu0 0.0
    %1318 = vmatprep.subr.mxu0 0.0
    %1319 = vmatpush1.msra.mxu0 0.0
    %1320 = vmatprep.subr.mxu0 0.0
    %1321 = vmatpush1.msra.mxu0 0.0
    %1322 = vmatprep.subr.mxu0 0.0
    %1323 = vmatpush1.msra.mxu0 0.0
    %1324 = vmatprep.subr.mxu0 0.0
    %1325 = vmatpush1.msra.mxu0 0.0
    %1326 = vmatprep.subr.mxu0 0.0
    %1327 = vmatpush1.msra.mxu0 0.0
    %1328 = vmatprep.subr.mxu0 0.0
    %1329 = vmatpush1.msra.mxu0 0.0
    %1330 = vmatprep.subr.mxu0 0.0
    %1331 = vmatpush1.msra.mxu0 0.0
    %1332 = vmatprep.subr.mxu0 0.0
    %1333 = vmatpush1.msra.mxu0 0.0
    %1334 = vmatprep.subr.mxu0 0.0
    %1335 = vmatpush1.msra.mxu0 0.0
    %1336 = vmatprep.subr.mxu0 0.0
    %1337 = vmatpush1.msra.mxu0 0.0
    %1338 = vmatprep.subr.mxu0 0.0
    %1339 = vmatpush1.msra.mxu0 0.0
    %1340 = vmatprep.subr.mxu0 0.0
    %1341 = vmatpush1.msra.mxu0 0.0
    %1342 = vmatprep.subr.mxu0 0.0
    %1343 = vmatpush1.msra.mxu0 0.0
    %1344 = vmatprep.subr.mxu0 0.0
    %1345 = vmatpush1.msra.mxu0 0.0
    %1346 = vmatprep.subr.mxu0 0.0
    %1347 = vmatpush1.msra.mxu0 0.0
    %1348 = vmatprep.subr.mxu0 0.0
    %1349 = vmatpush1.msra.mxu0 0.0
    %1350 = vmatprep.subr.mxu0 0.0
    %1351 = vmatpush1.msra.mxu0 0.0
    %1352 = vmatprep.subr.mxu0 0.0
    %1353 = vmatpush1.msra.mxu0 0.0
    %1354 = vmatprep.subr.mxu0 0.0
    %1355 = vmatpush1.msra.mxu0 0.0
    %1356 = vmatprep.subr.mxu0 0.0
    %1357 = vmatpush1.msra.mxu0 0.0
    %1358 = vmatprep.subr.mxu0 0.0
    %1359 = vmatpush1.msra.mxu0 0.0
    %1360 = vmatprep.subr.mxu0 0.0
    %1361 = vmatpush1.msra.mxu0 0.0
    %1362 = vmatprep.mubr.f32.mxu0 0.0
    %v1363 = vand.u32 %v115, 4294901760
    %v1364 = vsub.f32 %v115, %v1363
    %1365 = vmatmul.mubr.f32.gmra.mrb[0].mxu0 %v1364
    %v1366 = vpop.f32.mrb[0].mxu0
    %v1367 = vadd.f32 %v1285, %v1366
    %v1368 = vpop.f32.mrb[0].mxu0
    %1369 = vmatprep.mubr.f32.mxu0 0.0
    %v1370 = vand.u32 %v118, 4294901760
    %v1371 = vsub.f32 %v118, %v1370
    %1372 = vmatmul.mubr.f32.gmra.mrb[0].mxu0 %v1371
    %v1373 = vpop.f32.mrb[0].mxu0
    %v1374 = vadd.f32 %v1291, %v1373
    %v1375 = vpop.f32.mrb[0].mxu0
    %1376 = vdwg.mxu0
    %1377 = vmatprep.subr.mxu0 0.0
    %v1378 = vand.u32 %v1118, 4294901760
    %1379 = vmatpush1.msra.mxu0 %v1378
    %1380 = vmatprep.subr.mxu0 0.0
    %v1381 = vand.u32 %v1119, 4294901760
    %1382 = vmatpush1.msra.mxu0 %v1381
    %1383 = vmatprep.subr.mxu0 0.0
    %1384 = vmatpush1.msra.mxu0 0.0
    %1385 = vmatprep.subr.mxu0 0.0
    %1386 = vmatpush1.msra.mxu0 0.0
    %1387 = vmatprep.subr.mxu0 0.0
    %1388 = vmatpush1.msra.mxu0 0.0
    %1389 = vmatprep.subr.mxu0 0.0
    %1390 = vmatpush1.msra.mxu0 0.0
    %1391 = vmatprep.subr.mxu0 0.0
    %1392 = vmatpush1.msra.mxu0 0.0
    %1393 = vmatprep.subr.mxu0 0.0
    %1394 = vmatpush1.msra.mxu0 0.0
    %1395 = vmatprep.subr.mxu0 0.0
    %1396 = vmatpush1.msra.mxu0 0.0
    %1397 = vmatprep.subr.mxu0 0.0
    %1398 = vmatpush1.msra.mxu0 0.0
    %1399 = vmatprep.subr.mxu0 0.0
    %1400 = vmatpush1.msra.mxu0 0.0
    %1401 = vmatprep.subr.mxu0 0.0
    %1402 = vmatpush1.msra.mxu0 0.0
    %1403 = vmatprep.subr.mxu0 0.0
    %1404 = vmatpush1.msra.mxu0 0.0
    %1405 = vmatprep.subr.mxu0 0.0
    %1406 = vmatpush1.msra.mxu0 0.0
    %1407 = vmatprep.subr.mxu0 0.0
    %1408 = vmatpush1.msra.mxu0 0.0
    %1409 = vmatprep.subr.mxu0 0.0
    %1410 = vmatpush1.msra.mxu0 0.0
    %1411 = vmatprep.subr.mxu0 0.0
    %1412 = vmatpush1.msra.mxu0 0.0
    %1413 = vmatprep.subr.mxu0 0.0
    %1414 = vmatpush1.msra.mxu0 0.0
    %1415 = vmatprep.subr.mxu0 0.0
    %1416 = vmatpush1.msra.mxu0 0.0
    %1417 = vmatprep.subr.mxu0 0.0
    %1418 = vmatpush1.msra.mxu0 0.0
    %1419 = vmatprep.subr.mxu0 0.0
    %1420 = vmatpush1.msra.mxu0 0.0
    %1421 = vmatprep.subr.mxu0 0.0
    %1422 = vmatpush1.msra.mxu0 0.0
    %1423 = vmatprep.subr.mxu0 0.0
    %1424 = vmatpush1.msra.mxu0 0.0
    %1425 = vmatprep.subr.mxu0 0.0
    %1426 = vmatpush1.msra.mxu0 0.0
    %1427 = vmatprep.subr.mxu0 0.0
    %1428 = vmatpush1.msra.mxu0 0.0
    %1429 = vmatprep.subr.mxu0 0.0
    %1430 = vmatpush1.msra.mxu0 0.0
    %1431 = vmatprep.subr.mxu0 0.0
    %1432 = vmatpush1.msra.mxu0 0.0
    %1433 = vmatprep.subr.mxu0 0.0
    %1434 = vmatpush1.msra.mxu0 0.0
    %1435 = vmatprep.subr.mxu0 0.0
    %1436 = vmatpush1.msra.mxu0 0.0
    %1437 = vmatprep.subr.mxu0 0.0
    %1438 = vmatpush1.msra.mxu0 0.0
    %1439 = vmatprep.subr.mxu0 0.0
    %1440 = vmatpush1.msra.mxu0 0.0
    %1441 = vmatprep.subr.mxu0 0.0
    %1442 = vmatpush1.msra.mxu0 0.0
    %1443 = vmatprep.mubr.f32.mxu0 0.0
    %v1444 = vand.u32 %v115, 4294901760
    %v1445 = vsub.f32 %v115, %v1444
    %v1446 = vand.u32 %v1445, 4294901760
    %1447 = vmatmul.mubr.f32.gmra.mrb[0].mxu0 %v1446
    %v1448 = vpop.f32.mrb[0].mxu0
    %v1449 = vadd.f32 %v1367, %v1448
    %v1450 = vpop.f32.mrb[0].mxu0
    %1451 = vmatprep.mubr.f32.mxu0 0.0
    %v1452 = vand.u32 %v118, 4294901760
    %v1453 = vsub.f32 %v118, %v1452
    %v1454 = vand.u32 %v1453, 4294901760
    %1455 = vmatmul.mubr.f32.gmra.mrb[0].mxu0 %v1454
    %v1456 = vpop.f32.mrb[0].mxu0
    %v1457 = vadd.f32 %v1374, %v1456
    %v1458 = vpop.f32.mrb[0].mxu0
    %1459 = vdwg.mxu0
    %1460 = vmatprep.subr.mxu0 0.0
    %v1461 = vand.u32 %v1118, 4294901760
    %v1462 = vsub.f32 %v1118, %v1461
    %v1463 = vand.u32 %v1462, 4294901760
    %1464 = vmatpush1.msra.mxu0 %v1463
    %1465 = vmatprep.subr.mxu0 0.0
    %v1466 = vand.u32 %v1119, 4294901760
    %v1467 = vsub.f32 %v1119, %v1466
    %v1468 = vand.u32 %v1467, 4294901760
    %1469 = vmatpush1.msra.mxu0 %v1468
    %1470 = vmatprep.subr.mxu0 0.0
    %1471 = vmatpush1.msra.mxu0 0.0
    %1472 = vmatprep.subr.mxu0 0.0
    %1473 = vmatpush1.msra.mxu0 0.0
    %1474 = vmatprep.subr.mxu0 0.0
    %1475 = vmatpush1.msra.mxu0 0.0
    %1476 = vmatprep.subr.mxu0 0.0
    %1477 = vmatpush1.msra.mxu0 0.0
    %1478 = vmatprep.subr.mxu0 0.0
    %1479 = vmatpush1.msra.mxu0 0.0
    %1480 = vmatprep.subr.mxu0 0.0
    %1481 = vmatpush1.msra.mxu0 0.0
    %1482 = vmatprep.subr.mxu0 0.0
    %1483 = vmatpush1.msra.mxu0 0.0
    %1484 = vmatprep.subr.mxu0 0.0
    %1485 = vmatpush1.msra.mxu0 0.0
    %1486 = vmatprep.subr.mxu0 0.0
    %1487 = vmatpush1.msra.mxu0 0.0
    %1488 = vmatprep.subr.mxu0 0.0
    %1489 = vmatpush1.msra.mxu0 0.0
    %1490 = vmatprep.subr.mxu0 0.0
    %1491 = vmatpush1.msra.mxu0 0.0
    %1492 = vmatprep.subr.mxu0 0.0
    %1493 = vmatpush1.msra.mxu0 0.0
    %1494 = vmatprep.subr.mxu0 0.0
    %1495 = vmatpush1.msra.mxu0 0.0
    %1496 = vmatprep.subr.mxu0 0.0
    %1497 = vmatpush1.msra.mxu0 0.0
    %1498 = vmatprep.subr.mxu0 0.0
    %1499 = vmatpush1.msra.mxu0 0.0
    %1500 = vmatprep.subr.mxu0 0.0
    %1501 = vmatpush1.msra.mxu0 0.0
    %1502 = vmatprep.subr.mxu0 0.0
    %1503 = vmatpush1.msra.mxu0 0.0
    %1504 = vmatprep.subr.mxu0 0.0
    %1505 = vmatpush1.msra.mxu0 0.0
    %1506 = vmatprep.subr.mxu0 0.0
    %1507 = vmatpush1.msra.mxu0 0.0
    %1508 = vmatprep.subr.mxu0 0.0
    %1509 = vmatpush1.msra.mxu0 0.0
    %1510 = vmatprep.subr.mxu0 0.0
    %1511 = vmatpush1.msra.mxu0 0.0
    %1512 = vmatprep.subr.mxu0 0.0
    %1513 = vmatpush1.msra.mxu0 0.0
    %1514 = vmatprep.subr.mxu0 0.0
    %1515 = vmatpush1.msra.mxu0 0.0
    %1516 = vmatprep.subr.mxu0 0.0
    %1517 = vmatpush1.msra.mxu0 0.0
    %1518 = vmatprep.subr.mxu0 0.0
    %1519 = vmatpush1.msra.mxu0 0.0
    %1520 = vmatprep.subr.mxu0 0.0
    %1521 = vmatpush1.msra.mxu0 0.0
    %1522 = vmatprep.subr.mxu0 0.0
    %1523 = vmatpush1.msra.mxu0 0.0
    %1524 = vmatprep.subr.mxu0 0.0
    %1525 = vmatpush1.msra.mxu0 0.0
    %1526 = vmatprep.subr.mxu0 0.0
    %1527 = vmatpush1.msra.mxu0 0.0
    %1528 = vmatprep.subr.mxu0 0.0
    %1529 = vmatpush1.msra.mxu0 0.0
    %1530 = vmatprep.mubr.f32.mxu0 0.0
    %v1531 = vand.u32 %v115, 4294901760
    %1532 = vmatmul.mubr.f32.gmra.mrb[0].mxu0 %v1531
    %v1533 = vpop.f32.mrb[0].mxu0
    %v1534 = vadd.f32 %v1449, %v1533
    %v1535 = vpop.f32.mrb[0].mxu0
    %1536 = vmatprep.mubr.f32.mxu0 0.0
    %v1537 = vand.u32 %v118, 4294901760
    %1538 = vmatmul.mubr.f32.gmra.mrb[0].mxu0 %v1537
    %v1539 = vpop.f32.mrb[0].mxu0
    %v1540 = vadd.f32 %v1457, %v1539
    %v1541 = vpop.f32.mrb[0].mxu0
    %1542 = vdwg.mxu0
    %1543 = vmatprep.subr.mxu0 0.0
    %v1544 = vand.u32 %v1118, 4294901760
    %1545 = vmatpush1.msra.mxu0 %v1544
    %1546 = vmatprep.subr.mxu0 0.0
    %v1547 = vand.u32 %v1119, 4294901760
    %1548 = vmatpush1.msra.mxu0 %v1547
    %1549 = vmatprep.subr.mxu0 0.0
    %1550 = vmatpush1.msra.mxu0 0.0
    %1551 = vmatprep.subr.mxu0 0.0
    %1552 = vmatpush1.msra.mxu0 0.0
    %1553 = vmatprep.subr.mxu0 0.0
    %1554 = vmatpush1.msra.mxu0 0.0
    %1555 = vmatprep.subr.mxu0 0.0
    %1556 = vmatpush1.msra.mxu0 0.0
    %1557 = vmatprep.subr.mxu0 0.0
    %1558 = vmatpush1.msra.mxu0 0.0
    %1559 = vmatprep.subr.mxu0 0.0
    %1560 = vmatpush1.msra.mxu0 0.0
    %1561 = vmatprep.subr.mxu0 0.0
    %1562 = vmatpush1.msra.mxu0 0.0
    %1563 = vmatprep.subr.mxu0 0.0
    %1564 = vmatpush1.msra.mxu0 0.0
    %1565 = vmatprep.subr.mxu0 0.0
    %1566 = vmatpush1.msra.mxu0 0.0
    %1567 = vmatprep.subr.mxu0 0.0
    %1568 = vmatpush1.msra.mxu0 0.0
    %1569 = vmatprep.subr.mxu0 0.0
    %1570 = vmatpush1.msra.mxu0 0.0
    %1571 = vmatprep.subr.mxu0 0.0
    %1572 = vmatpush1.msra.mxu0 0.0
    %1573 = vmatprep.subr.mxu0 0.0
    %1574 = vmatpush1.msra.mxu0 0.0
    %1575 = vmatprep.subr.mxu0 0.0
    %1576 = vmatpush1.msra.mxu0 0.0
    %1577 = vmatprep.subr.mxu0 0.0
    %1578 = vmatpush1.msra.mxu0 0.0
    %1579 = vmatprep.subr.mxu0 0.0
    %1580 = vmatpush1.msra.mxu0 0.0
    %1581 = vmatprep.subr.mxu0 0.0
    %1582 = vmatpush1.msra.mxu0 0.0
    %1583 = vmatprep.subr.mxu0 0.0
    %1584 = vmatpush1.msra.mxu0 0.0
    %1585 = vmatprep.subr.mxu0 0.0
    %1586 = vmatpush1.msra.mxu0 0.0
    %1587 = vmatprep.subr.mxu0 0.0
    %1588 = vmatpush1.msra.mxu0 0.0
    %1589 = vmatprep.subr.mxu0 0.0
    %1590 = vmatpush1.msra.mxu0 0.0
    %1591 = vmatprep.subr.mxu0 0.0
    %1592 = vmatpush1.msra.mxu0 0.0
    %1593 = vmatprep.subr.mxu0 0.0
    %1594 = vmatpush1.msra.mxu0 0.0
    %1595 = vmatprep.subr.mxu0 0.0
    %1596 = vmatpush1.msra.mxu0 0.0
    %1597 = vmatprep.subr.mxu0 0.0
    %1598 = vmatpush1.msra.mxu0 0.0
    %1599 = vmatprep.subr.mxu0 0.0
    %1600 = vmatpush1.msra.mxu0 0.0
    %1601 = vmatprep.subr.mxu0 0.0
    %1602 = vmatpush1.msra.mxu0 0.0
    %1603 = vmatprep.subr.mxu0 0.0
    %1604 = vmatpush1.msra.mxu0 0.0
    %1605 = vmatprep.subr.mxu0 0.0
    %1606 = vmatpush1.msra.mxu0 0.0
    %1607 = vmatprep.subr.mxu0 0.0
    %1608 = vmatpush1.msra.mxu0 0.0
    %1609 = vmatprep.mubr.f32.mxu0 0.0
    %v1610 = vand.u32 %v115, 4294901760
    %1611 = vmatmul.mubr.f32.gmra.mrb[0].mxu0 %v1610
    %v1612 = vpop.f32.mrb[0].mxu0
    %v1613 = vadd.f32 %v1534, %v1612
    %v1614 = vpop.f32.mrb[0].mxu0
    %1615 = vmatprep.mubr.f32.mxu0 0.0
    %v1616 = vand.u32 %v118, 4294901760
    %1617 = vmatmul.mubr.f32.gmra.mrb[0].mxu0 %v1616
    %v1618 = vpop.f32.mrb[0].mxu0
    %v1619 = vadd.f32 %v1540, %v1618
    %v1620 = vpop.f32.mrb[0].mxu0
    %1621 = vdwg.mxu0
    %v1622 = vmul.f32 %v605, %v1613
    %v1623 = vmul.f32 %v610, %v1619
    %v1624 = vld [vmem:[#allocation7] sm:$0xff]
    %v1625 = vld [vmem:[#allocation7 + $0x8] sm:$0xff]
    %v1626 = vld [vmem:[#allocation7 + $0x10] sm:$0xff]
    %v1627 = vld [vmem:[#allocation7 + $0x18] sm:$0xff]
    %v1628 = vld [vmem:[#allocation7 + $0x20] sm:$0xff]
    %v1629 = vld [vmem:[#allocation7 + $0x28] sm:$0xff]
    %v1630 = vld [vmem:[#allocation7 + $0x30] sm:$0xff]
    %v1631 = vld [vmem:[#allocation7 + $0x38] sm:$0xff]
    %v1632 = vld [vmem:[#allocation7 + $0x40] sm:$0xff]
    %v1633 = vld [vmem:[#allocation7 + $0x48] sm:$0xff]
    %v1634 = vld [vmem:[#allocation7 + $0x50] sm:$0xff]
    %v1635 = vld [vmem:[#allocation7 + $0x58] sm:$0xff]
    %v1636 = vld [vmem:[#allocation7 + $0x60] sm:$0xff]
    %v1637 = vld [vmem:[#allocation7 + $0x68] sm:$0xff]
    %v1638 = vld [vmem:[#allocation7 + $0x70] sm:$0xff]
    %v1639 = vld [vmem:[#allocation7 + $0x78] sm:$0xff]
    %v1640 = vld [vmem:[#allocation7 + $0x80] sm:$0xff]
    %v1641 = vld [vmem:[#allocation7 + $0x88] sm:$0xff]
    %v1642 = vld [vmem:[#allocation7 + $0x90] sm:$0xff]
    %v1643 = vld [vmem:[#allocation7 + $0x98] sm:$0xff]
    %v1644 = vld [vmem:[#allocation7 + $0xa0] sm:$0xff]
    %v1645 = vld [vmem:[#allocation7 + $0xa8] sm:$0xff]
    %v1646 = vld [vmem:[#allocation7 + $0xb0] sm:$0xff]
    %v1647 = vld [vmem:[#allocation7 + $0xb8] sm:$0xff]
    %v1648 = vld [vmem:[#allocation7 + $0xc0] sm:$0xff]
    %v1649 = vld [vmem:[#allocation7 + $0xc8] sm:$0xff]
    %v1650 = vld [vmem:[#allocation7 + $0xd0] sm:$0xff]
    %v1651 = vld [vmem:[#allocation7 + $0xd8] sm:$0xff]
    %v1652 = vld [vmem:[#allocation7 + $0xe0] sm:$0xff]
    %v1653 = vld [vmem:[#allocation7 + $0xe8] sm:$0xff]
    %v1654 = vld [vmem:[#allocation7 + $0xf0] sm:$0xff]
    %v1655 = vld [vmem:[#allocation7 + $0xf8] sm:$0xff]
    %1656 = vmatprep.subr.mxu0 0.0
    %v1657 = vand.u32 %v1640, 4294901760
    %1658 = vmatpush1.msra.mxu0 %v1657
    %1659 = vmatprep.subr.mxu0 0.0
    %v1660 = vand.u32 %v1641, 4294901760
    %1661 = vmatpush1.msra.mxu0 %v1660
    %1662 = vmatprep.subr.mxu0 0.0
    %v1663 = vand.u32 %v1642, 4294901760
    %1664 = vmatpush1.msra.mxu0 %v1663
    %1665 = vmatprep.subr.mxu0 0.0
    %v1666 = vand.u32 %v1643, 4294901760
    %1667 = vmatpush1.msra.mxu0 %v1666
    %1668 = vmatprep.subr.mxu0 0.0
    %v1669 = vand.u32 %v1644, 4294901760
    %1670 = vmatpush1.msra.mxu0 %v1669
    %1671 = vmatprep.subr.mxu0 0.0
    %v1672 = vand.u32 %v1645, 4294901760
    %1673 = vmatpush1.msra.mxu0 %v1672
    %1674 = vmatprep.subr.mxu0 0.0
    %v1675 = vand.u32 %v1646, 4294901760
    %1676 = vmatpush1.msra.mxu0 %v1675
    %1677 = vmatprep.subr.mxu0 0.0
    %v1678 = vand.u32 %v1647, 4294901760
    %1679 = vmatpush1.msra.mxu0 %v1678
    %1680 = vmatprep.subr.mxu0 0.0
    %v1681 = vand.u32 %v1648, 4294901760
    %1682 = vmatpush1.msra.mxu0 %v1681
    %1683 = vmatprep.subr.mxu0 0.0
    %v1684 = vand.u32 %v1649, 4294901760
    %1685 = vmatpush1.msra.mxu0 %v1684
    %1686 = vmatprep.subr.mxu0 0.0
    %v1687 = vand.u32 %v1650, 4294901760
    %1688 = vmatpush1.msra.mxu0 %v1687
    %1689 = vmatprep.subr.mxu0 0.0
    %v1690 = vand.u32 %v1651, 4294901760
    %1691 = vmatpush1.msra.mxu0 %v1690
    %1692 = vmatprep.subr.mxu0 0.0
    %v1693 = vand.u32 %v1652, 4294901760
    %1694 = vmatpush1.msra.mxu0 %v1693
    %1695 = vmatprep.subr.mxu0 0.0
    %v1696 = vand.u32 %v1653, 4294901760
    %1697 = vmatpush1.msra.mxu0 %v1696
    %1698 = vmatprep.subr.mxu0 0.0
    %v1699 = vand.u32 %v1654, 4294901760
    %1700 = vmatpush1.msra.mxu0 %v1699
    %1701 = vmatprep.subr.mxu0 0.0
    %v1702 = vand.u32 %v1655, 4294901760
    %1703 = vmatpush1.msra.mxu0 %v1702
    %1704 = vmatprep.subr.mxu0 0.0
    %1705 = vmatpush1.msra.mxu0 0.0
    %1706 = vmatprep.subr.mxu0 0.0
    %1707 = vmatpush1.msra.mxu0 0.0
    %1708 = vmatprep.subr.mxu0 0.0
    %1709 = vmatpush1.msra.mxu0 0.0
    %1710 = vmatprep.subr.mxu0 0.0
    %1711 = vmatpush1.msra.mxu0 0.0
    %1712 = vmatprep.subr.mxu0 0.0
    %1713 = vmatpush1.msra.mxu0 0.0
    %1714 = vmatprep.subr.mxu0 0.0
    %1715 = vmatpush1.msra.mxu0 0.0
    %1716 = vmatprep.subr.mxu0 0.0
    %1717 = vmatpush1.msra.mxu0 0.0
    %1718 = vmatprep.subr.mxu0 0.0
    %1719 = vmatpush1.msra.mxu0 0.0
    %1720 = vmatprep.subr.mxu0 0.0
    %1721 = vmatpush1.msra.mxu0 0.0
    %1722 = vmatprep.subr.mxu0 0.0
    %1723 = vmatpush1.msra.mxu0 0.0
    %1724 = vmatprep.subr.mxu0 0.0
    %1725 = vmatpush1.msra.mxu0 0.0
    %1726 = vmatprep.subr.mxu0 0.0
    %1727 = vmatpush1.msra.mxu0 0.0
    %1728 = vmatprep.subr.mxu0 0.0
    %1729 = vmatpush1.msra.mxu0 0.0
    %1730 = vmatprep.subr.mxu0 0.0
    %1731 = vmatpush1.msra.mxu0 0.0
    %1732 = vmatprep.subr.mxu0 0.0
    %1733 = vmatpush1.msra.mxu0 0.0
    %1734 = vmatprep.subr.mxu0 0.0
    %1735 = vmatpush1.msra.mxu0 0.0
    %1736 = vmatprep.mubr.f32.mxu0 0.0
    %v1737 = vand.u32 %v1116, 4294901760
    %v1738 = vsub.f32 %v1116, %v1737
    %v1739 = vand.u32 %v1738, 4294901760
    %v1740 = vsub.f32 %v1738, %v1739
    %v1741 = vand.u32 %v1740, 4294901760
    %1742 = vmatmul.mubr.f32.gmra.mrb[0].mxu0 %v1741
    %v1743 = vpop.f32.mrb[0].mxu0
    %v1744 = vadd.f32 0.0, %v1743
    %v1745 = vpop.f32.mrb[0].mxu0
    %1746 = vmatprep.mubr.f32.mxu0 0.0
    %v1747 = vand.u32 %v1117, 4294901760
    %v1748 = vsub.f32 %v1117, %v1747
    %v1749 = vand.u32 %v1748, 4294901760
    %v1750 = vsub.f32 %v1748, %v1749
    %v1751 = vand.u32 %v1750, 4294901760
    %1752 = vmatmul.mubr.f32.gmra.mrb[0].mxu0 %v1751
    %v1753 = vpop.f32.mrb[0].mxu0
    %v1754 = vadd.f32 0.0, %v1753
    %v1755 = vpop.f32.mrb[0].mxu0
    %1756 = vdwg.mxu0
    %1757 = vmatprep.subr.mxu0 0.0
    %v1758 = vand.u32 %v1640, 4294901760
    %v1759 = vsub.f32 %v1640, %v1758
    %v1760 = vand.u32 %v1759, 4294901760
    %v1761 = vsub.f32 %v1759, %v1760
    %v1762 = vand.u32 %v1761, 4294901760
    %1763 = vmatpush1.msra.mxu0 %v1762
    %1764 = vmatprep.subr.mxu0 0.0
    %v1765 = vand.u32 %v1641, 4294901760
    %v1766 = vsub.f32 %v1641, %v1765
    %v1767 = vand.u32 %v1766, 4294901760
    %v1768 = vsub.f32 %v1766, %v1767
    %v1769 = vand.u32 %v1768, 4294901760
    %1770 = vmatpush1.msra.mxu0 %v1769
    %1771 = vmatprep.subr.mxu0 0.0
    %v1772 = vand.u32 %v1642, 4294901760
    %v1773 = vsub.f32 %v1642, %v1772
    %v1774 = vand.u32 %v1773, 4294901760
    %v1775 = vsub.f32 %v1773, %v1774
    %v1776 = vand.u32 %v1775, 4294901760
    %1777 = vmatpush1.msra.mxu0 %v1776
    %1778 = vmatprep.subr.mxu0 0.0
    %v1779 = vand.u32 %v1643, 4294901760
    %v1780 = vsub.f32 %v1643, %v1779
    %v1781 = vand.u32 %v1780, 4294901760
    %v1782 = vsub.f32 %v1780, %v1781
    %v1783 = vand.u32 %v1782, 4294901760
    %1784 = vmatpush1.msra.mxu0 %v1783
    %1785 = vmatprep.subr.mxu0 0.0
    %v1786 = vand.u32 %v1644, 4294901760
    %v1787 = vsub.f32 %v1644, %v1786
    %v1788 = vand.u32 %v1787, 4294901760
    %v1789 = vsub.f32 %v1787, %v1788
    %v1790 = vand.u32 %v1789, 4294901760
    %1791 = vmatpush1.msra.mxu0 %v1790
    %1792 = vmatprep.subr.mxu0 0.0
    %v1793 = vand.u32 %v1645, 4294901760
    %v1794 = vsub.f32 %v1645, %v1793
    %v1795 = vand.u32 %v1794, 4294901760
    %v1796 = vsub.f32 %v1794, %v1795
    %v1797 = vand.u32 %v1796, 4294901760
    %1798 = vmatpush1.msra.mxu0 %v1797
    %1799 = vmatprep.subr.mxu0 0.0
    %v1800 = vand.u32 %v1646, 4294901760
    %v1801 = vsub.f32 %v1646, %v1800
    %v1802 = vand.u32 %v1801, 4294901760
    %v1803 = vsub.f32 %v1801, %v1802
    %v1804 = vand.u32 %v1803, 4294901760
    %1805 = vmatpush1.msra.mxu0 %v1804
    %1806 = vmatprep.subr.mxu0 0.0
    %v1807 = vand.u32 %v1647, 4294901760
    %v1808 = vsub.f32 %v1647, %v1807
    %v1809 = vand.u32 %v1808, 4294901760
    %v1810 = vsub.f32 %v1808, %v1809
    %v1811 = vand.u32 %v1810, 4294901760
    %1812 = vmatpush1.msra.mxu0 %v1811
    %1813 = vmatprep.subr.mxu0 0.0
    %v1814 = vand.u32 %v1648, 4294901760
    %v1815 = vsub.f32 %v1648, %v1814
    %v1816 = vand.u32 %v1815, 4294901760
    %v1817 = vsub.f32 %v1815, %v1816
    %v1818 = vand.u32 %v1817, 4294901760
    %1819 = vmatpush1.msra.mxu0 %v1818
    %1820 = vmatprep.subr.mxu0 0.0
    %v1821 = vand.u32 %v1649, 4294901760
    %v1822 = vsub.f32 %v1649, %v1821
    %v1823 = vand.u32 %v1822, 4294901760
    %v1824 = vsub.f32 %v1822, %v1823
    %v1825 = vand.u32 %v1824, 4294901760
    %1826 = vmatpush1.msra.mxu0 %v1825
    %1827 = vmatprep.subr.mxu0 0.0
    %v1828 = vand.u32 %v1650, 4294901760
    %v1829 = vsub.f32 %v1650, %v1828
    %v1830 = vand.u32 %v1829, 4294901760
    %v1831 = vsub.f32 %v1829, %v1830
    %v1832 = vand.u32 %v1831, 4294901760
    %1833 = vmatpush1.msra.mxu0 %v1832
    %1834 = vmatprep.subr.mxu0 0.0
    %v1835 = vand.u32 %v1651, 4294901760
    %v1836 = vsub.f32 %v1651, %v1835
    %v1837 = vand.u32 %v1836, 4294901760
    %v1838 = vsub.f32 %v1836, %v1837
    %v1839 = vand.u32 %v1838, 4294901760
    %1840 = vmatpush1.msra.mxu0 %v1839
    %1841 = vmatprep.subr.mxu0 0.0
    %v1842 = vand.u32 %v1652, 4294901760
    %v1843 = vsub.f32 %v1652, %v1842
    %v1844 = vand.u32 %v1843, 4294901760
    %v1845 = vsub.f32 %v1843, %v1844
    %v1846 = vand.u32 %v1845, 4294901760
    %1847 = vmatpush1.msra.mxu0 %v1846
    %1848 = vmatprep.subr.mxu0 0.0
    %v1849 = vand.u32 %v1653, 4294901760
    %v1850 = vsub.f32 %v1653, %v1849
    %v1851 = vand.u32 %v1850, 4294901760
    %v1852 = vsub.f32 %v1850, %v1851
    %v1853 = vand.u32 %v1852, 4294901760
    %1854 = vmatpush1.msra.mxu0 %v1853
    %1855 = vmatprep.subr.mxu0 0.0
    %v1856 = vand.u32 %v1654, 4294901760
    %v1857 = vsub.f32 %v1654, %v1856
    %v1858 = vand.u32 %v1857, 4294901760
    %v1859 = vsub.f32 %v1857, %v1858
    %v1860 = vand.u32 %v1859, 4294901760
    %1861 = vmatpush1.msra.mxu0 %v1860
    %1862 = vmatprep.subr.mxu0 0.0
    %v1863 = vand.u32 %v1655, 4294901760
    %v1864 = vsub.f32 %v1655, %v1863
    %v1865 = vand.u32 %v1864, 4294901760
    %v1866 = vsub.f32 %v1864, %v1865
    %v1867 = vand.u32 %v1866, 4294901760
    %1868 = vmatpush1.msra.mxu0 %v1867
    %1869 = vmatprep.subr.mxu0 0.0
    %1870 = vmatpush1.msra.mxu0 0.0
    %1871 = vmatprep.subr.mxu0 0.0
    %1872 = vmatpush1.msra.mxu0 0.0
    %1873 = vmatprep.subr.mxu0 0.0
    %1874 = vmatpush1.msra.mxu0 0.0
    %1875 = vmatprep.subr.mxu0 0.0
    %1876 = vmatpush1.msra.mxu0 0.0
    %1877 = vmatprep.subr.mxu0 0.0
    %1878 = vmatpush1.msra.mxu0 0.0
    %1879 = vmatprep.subr.mxu0 0.0
    %1880 = vmatpush1.msra.mxu0 0.0
    %1881 = vmatprep.subr.mxu0 0.0
    %1882 = vmatpush1.msra.mxu0 0.0
    %1883 = vmatprep.subr.mxu0 0.0
    %1884 = vmatpush1.msra.mxu0 0.0
    %1885 = vmatprep.subr.mxu0 0.0
    %1886 = vmatpush1.msra.mxu0 0.0
    %1887 = vmatprep.subr.mxu0 0.0
    %1888 = vmatpush1.msra.mxu0 0.0
    %1889 = vmatprep.subr.mxu0 0.0
    %1890 = vmatpush1.msra.mxu0 0.0
    %1891 = vmatprep.subr.mxu0 0.0
    %1892 = vmatpush1.msra.mxu0 0.0
    %1893 = vmatprep.subr.mxu0 0.0
    %1894 = vmatpush1.msra.mxu0 0.0
    %1895 = vmatprep.subr.mxu0 0.0
    %1896 = vmatpush1.msra.mxu0 0.0
    %1897 = vmatprep.subr.mxu0 0.0
    %1898 = vmatpush1.msra.mxu0 0.0
    %1899 = vmatprep.subr.mxu0 0.0
    %1900 = vmatpush1.msra.mxu0 0.0
    %1901 = vmatprep.mubr.f32.mxu0 0.0
    %v1902 = vand.u32 %v1116, 4294901760
    %1903 = vmatmul.mubr.f32.gmra.mrb[0].mxu0 %v1902
    %v1904 = vpop.f32.mrb[0].mxu0
    %v1905 = vadd.f32 %v1744, %v1904
    %v1906 = vpop.f32.mrb[0].mxu0
    %1907 = vmatprep.mubr.f32.mxu0 0.0
    %v1908 = vand.u32 %v1117, 4294901760
    %1909 = vmatmul.mubr.f32.gmra.mrb[0].mxu0 %v1908
    %v1910 = vpop.f32.mrb[0].mxu0
    %v1911 = vadd.f32 %v1754, %v1910
    %v1912 = vpop.f32.mrb[0].mxu0
    %1913 = vdwg.mxu0
    %1914 = vmatprep.subr.mxu0 0.0
    %v1915 = vand.u32 %v1640, 4294901760
    %v1916 = vsub.f32 %v1640, %v1915
    %1917 = vmatpush1.msra.mxu0 %v1916
    %1918 = vmatprep.subr.mxu0 0.0
    %v1919 = vand.u32 %v1641, 4294901760
    %v1920 = vsub.f32 %v1641, %v1919
    %1921 = vmatpush1.msra.mxu0 %v1920
    %1922 = vmatprep.subr.mxu0 0.0
    %v1923 = vand.u32 %v1642, 4294901760
    %v1924 = vsub.f32 %v1642, %v1923
    %1925 = vmatpush1.msra.mxu0 %v1924
    %1926 = vmatprep.subr.mxu0 0.0
    %v1927 = vand.u32 %v1643, 4294901760
    %v1928 = vsub.f32 %v1643, %v1927
    %1929 = vmatpush1.msra.mxu0 %v1928
    %1930 = vmatprep.subr.mxu0 0.0
    %v1931 = vand.u32 %v1644, 4294901760
    %v1932 = vsub.f32 %v1644, %v1931
    %1933 = vmatpush1.msra.mxu0 %v1932
    %1934 = vmatprep.subr.mxu0 0.0
    %v1935 = vand.u32 %v1645, 4294901760
    %v1936 = vsub.f32 %v1645, %v1935
    %1937 = vmatpush1.msra.mxu0 %v1936
    %1938 = vmatprep.subr.mxu0 0.0
    %v1939 = vand.u32 %v1646, 4294901760
    %v1940 = vsub.f32 %v1646, %v1939
    %1941 = vmatpush1.msra.mxu0 %v1940
    %1942 = vmatprep.subr.mxu0 0.0
    %v1943 = vand.u32 %v1647, 4294901760
    %v1944 = vsub.f32 %v1647, %v1943
    %1945 = vmatpush1.msra.mxu0 %v1944
    %1946 = vmatprep.subr.mxu0 0.0
    %v1947 = vand.u32 %v1648, 4294901760
    %v1948 = vsub.f32 %v1648, %v1947
    %1949 = vmatpush1.msra.mxu0 %v1948
    %1950 = vmatprep.subr.mxu0 0.0
    %v1951 = vand.u32 %v1649, 4294901760
    %v1952 = vsub.f32 %v1649, %v1951
    %1953 = vmatpush1.msra.mxu0 %v1952
    %1954 = vmatprep.subr.mxu0 0.0
    %v1955 = vand.u32 %v1650, 4294901760
    %v1956 = vsub.f32 %v1650, %v1955
    %1957 = vmatpush1.msra.mxu0 %v1956
    %1958 = vmatprep.subr.mxu0 0.0
    %v1959 = vand.u32 %v1651, 4294901760
    %v1960 = vsub.f32 %v1651, %v1959
    %1961 = vmatpush1.msra.mxu0 %v1960
    %1962 = vmatprep.subr.mxu0 0.0
    %v1963 = vand.u32 %v1652, 4294901760
    %v1964 = vsub.f32 %v1652, %v1963
    %1965 = vmatpush1.msra.mxu0 %v1964
    %1966 = vmatprep.subr.mxu0 0.0
    %v1967 = vand.u32 %v1653, 4294901760
    %v1968 = vsub.f32 %v1653, %v1967
    %1969 = vmatpush1.msra.mxu0 %v1968
    %1970 = vmatprep.subr.mxu0 0.0
    %v1971 = vand.u32 %v1654, 4294901760
    %v1972 = vsub.f32 %v1654, %v1971
    %1973 = vmatpush1.msra.mxu0 %v1972
    %1974 = vmatprep.subr.mxu0 0.0
    %v1975 = vand.u32 %v1655, 4294901760
    %v1976 = vsub.f32 %v1655, %v1975
    %1977 = vmatpush1.msra.mxu0 %v1976
    %1978 = vmatprep.subr.mxu0 0.0
    %1979 = vmatpush1.msra.mxu0 0.0
    %1980 = vmatprep.subr.mxu0 0.0
    %1981 = vmatpush1.msra.mxu0 0.0
    %1982 = vmatprep.subr.mxu0 0.0
    %1983 = vmatpush1.msra.mxu0 0.0
    %1984 = vmatprep.subr.mxu0 0.0
    %1985 = vmatpush1.msra.mxu0 0.0
    %1986 = vmatprep.subr.mxu0 0.0
    %1987 = vmatpush1.msra.mxu0 0.0
    %1988 = vmatprep.subr.mxu0 0.0
    %1989 = vmatpush1.msra.mxu0 0.0
    %1990 = vmatprep.subr.mxu0 0.0
    %1991 = vmatpush1.msra.mxu0 0.0
    %1992 = vmatprep.subr.mxu0 0.0
    %1993 = vmatpush1.msra.mxu0 0.0
    %1994 = vmatprep.subr.mxu0 0.0
    %1995 = vmatpush1.msra.mxu0 0.0
    %1996 = vmatprep.subr.mxu0 0.0
    %1997 = vmatpush1.msra.mxu0 0.0
    %1998 = vmatprep.subr.mxu0 0.0
    %1999 = vmatpush1.msra.mxu0 0.0
    %2000 = vmatprep.subr.mxu0 0.0
    %2001 = vmatpush1.msra.mxu0 0.0
    %2002 = vmatprep.subr.mxu0 0.0
    %2003 = vmatpush1.msra.mxu0 0.0
    %2004 = vmatprep.subr.mxu0 0.0
    %2005 = vmatpush1.msra.mxu0 0.0
    %2006 = vmatprep.subr.mxu0 0.0
    %2007 = vmatpush1.msra.mxu0 0.0
    %2008 = vmatprep.subr.mxu0 0.0
    %2009 = vmatpush1.msra.mxu0 0.0
    %2010 = vmatprep.mubr.f32.mxu0 0.0
    %v2011 = vand.u32 %v1116, 4294901760
    %v2012 = vsub.f32 %v1116, %v2011
    %2013 = vmatmul.mubr.f32.gmra.mrb[0].mxu0 %v2012
    %v2014 = vpop.f32.mrb[0].mxu0
    %v2015 = vadd.f32 %v1905, %v2014
    %v2016 = vpop.f32.mrb[0].mxu0
    %2017 = vmatprep.mubr.f32.mxu0 0.0
    %v2018 = vand.u32 %v1117, 4294901760
    %v2019 = vsub.f32 %v1117, %v2018
    %2020 = vmatmul.mubr.f32.gmra.mrb[0].mxu0 %v2019
    %v2021 = vpop.f32.mrb[0].mxu0
    %v2022 = vadd.f32 %v1911, %v2021
    %v2023 = vpop.f32.mrb[0].mxu0
    %2024 = vdwg.mxu0
    %2025 = vmatprep.subr.mxu0 0.0
    %v2026 = vand.u32 %v1640, 4294901760
    %2027 = vmatpush1.msra.mxu0 %v2026
    %2028 = vmatprep.subr.mxu0 0.0
    %v2029 = vand.u32 %v1641, 4294901760
    %2030 = vmatpush1.msra.mxu0 %v2029
    %2031 = vmatprep.subr.mxu0 0.0
    %v2032 = vand.u32 %v1642, 4294901760
    %2033 = vmatpush1.msra.mxu0 %v2032
    %2034 = vmatprep.subr.mxu0 0.0
    %v2035 = vand.u32 %v1643, 4294901760
    %2036 = vmatpush1.msra.mxu0 %v2035
    %2037 = vmatprep.subr.mxu0 0.0
    %v2038 = vand.u32 %v1644, 4294901760
    %2039 = vmatpush1.msra.mxu0 %v2038
    %2040 = vmatprep.subr.mxu0 0.0
    %v2041 = vand.u32 %v1645, 4294901760
    %2042 = vmatpush1.msra.mxu0 %v2041
    %2043 = vmatprep.subr.mxu0 0.0
    %v2044 = vand.u32 %v1646, 4294901760
    %2045 = vmatpush1.msra.mxu0 %v2044
    %2046 = vmatprep.subr.mxu0 0.0
    %v2047 = vand.u32 %v1647, 4294901760
    %2048 = vmatpush1.msra.mxu0 %v2047
    %2049 = vmatprep.subr.mxu0 0.0
    %v2050 = vand.u32 %v1648, 4294901760
    %2051 = vmatpush1.msra.mxu0 %v2050
    %2052 = vmatprep.subr.mxu0 0.0
    %v2053 = vand.u32 %v1649, 4294901760
    %2054 = vmatpush1.msra.mxu0 %v2053
    %2055 = vmatprep.subr.mxu0 0.0
    %v2056 = vand.u32 %v1650, 4294901760
    %2057 = vmatpush1.msra.mxu0 %v2056
    %2058 = vmatprep.subr.mxu0 0.0
    %v2059 = vand.u32 %v1651, 4294901760
    %2060 = vmatpush1.msra.mxu0 %v2059
    %2061 = vmatprep.subr.mxu0 0.0
    %v2062 = vand.u32 %v1652, 4294901760
    %2063 = vmatpush1.msra.mxu0 %v2062
    %2064 = vmatprep.subr.mxu0 0.0
    %v2065 = vand.u32 %v1653, 4294901760
    %2066 = vmatpush1.msra.mxu0 %v2065
    %2067 = vmatprep.subr.mxu0 0.0
    %v2068 = vand.u32 %v1654, 4294901760
    %2069 = vmatpush1.msra.mxu0 %v2068
    %2070 = vmatprep.subr.mxu0 0.0
    %v2071 = vand.u32 %v1655, 4294901760
    %2072 = vmatpush1.msra.mxu0 %v2071
    %2073 = vmatprep.subr.mxu0 0.0
    %2074 = vmatpush1.msra.mxu0 0.0
    %2075 = vmatprep.subr.mxu0 0.0
    %2076 = vmatpush1.msra.mxu0 0.0
    %2077 = vmatprep.subr.mxu0 0.0
    %2078 = vmatpush1.msra.mxu0 0.0
    %2079 = vmatprep.subr.mxu0 0.0
    %2080 = vmatpush1.msra.mxu0 0.0
    %2081 = vmatprep.subr.mxu0 0.0
    %2082 = vmatpush1.msra.mxu0 0.0
    %2083 = vmatprep.subr.mxu0 0.0
    %2084 = vmatpush1.msra.mxu0 0.0
    %2085 = vmatprep.subr.mxu0 0.0
    %2086 = vmatpush1.msra.mxu0 0.0
    %2087 = vmatprep.subr.mxu0 0.0
    %2088 = vmatpush1.msra.mxu0 0.0
    %2089 = vmatprep.subr.mxu0 0.0
    %2090 = vmatpush1.msra.mxu0 0.0
    %2091 = vmatprep.subr.mxu0 0.0
    %2092 = vmatpush1.msra.mxu0 0.0
    %2093 = vmatprep.subr.mxu0 0.0
    %2094 = vmatpush1.msra.mxu0 0.0
    %2095 = vmatprep.subr.mxu0 0.0
    %2096 = vmatpush1.msra.mxu0 0.0
    %2097 = vmatprep.subr.mxu0 0.0
    %2098 = vmatpush1.msra.mxu0 0.0
    %2099 = vmatprep.subr.mxu0 0.0
    %2100 = vmatpush1.msra.mxu0 0.0
    %2101 = vmatprep.subr.mxu0 0.0
    %2102 = vmatpush1.msra.mxu0 0.0
    %2103 = vmatprep.subr.mxu0 0.0
    %2104 = vmatpush1.msra.mxu0 0.0
    %2105 = vmatprep.mubr.f32.mxu0 0.0
    %v2106 = vand.u32 %v1116, 4294901760
    %v2107 = vsub.f32 %v1116, %v2106
    %v2108 = vand.u32 %v2107, 4294901760
    %2109 = vmatmul.mubr.f32.gmra.mrb[0].mxu0 %v2108
    %v2110 = vpop.f32.mrb[0].mxu0
    %v2111 = vadd.f32 %v2015, %v2110
    %v2112 = vpop.f32.mrb[0].mxu0
    %2113 = vmatprep.mubr.f32.mxu0 0.0
    %v2114 = vand.u32 %v1117, 4294901760
    %v2115 = vsub.f32 %v1117, %v2114
    %v2116 = vand.u32 %v2115, 4294901760
    %2117 = vmatmul.mubr.f32.gmra.mrb[0].mxu0 %v2116
    %v2118 = vpop.f32.mrb[0].mxu0
    %v2119 = vadd.f32 %v2022, %v2118
    %v2120 = vpop.f32.mrb[0].mxu0
    %2121 = vdwg.mxu0
    %2122 = vmatprep.subr.mxu0 0.0
    %v2123 = vand.u32 %v1640, 4294901760
    %v2124 = vsub.f32 %v1640, %v2123
    %v2125 = vand.u32 %v2124, 4294901760
    %2126 = vmatpush1.msra.mxu0 %v2125
    %2127 = vmatprep.subr.mxu0 0.0
    %v2128 = vand.u32 %v1641, 4294901760
    %v2129 = vsub.f32 %v1641, %v2128
    %v2130 = vand.u32 %v2129, 4294901760
    %2131 = vmatpush1.msra.mxu0 %v2130
    %2132 = vmatprep.subr.mxu0 0.0
    %v2133 = vand.u32 %v1642, 4294901760
    %v2134 = vsub.f32 %v1642, %v2133
    %v2135 = vand.u32 %v2134, 4294901760
    %2136 = vmatpush1.msra.mxu0 %v2135
    %2137 = vmatprep.subr.mxu0 0.0
    %v2138 = vand.u32 %v1643, 4294901760
    %v2139 = vsub.f32 %v1643, %v2138
    %v2140 = vand.u32 %v2139, 4294901760
    %2141 = vmatpush1.msra.mxu0 %v2140
    %2142 = vmatprep.subr.mxu0 0.0
    %v2143 = vand.u32 %v1644, 4294901760
    %v2144 = vsub.f32 %v1644, %v2143
    %v2145 = vand.u32 %v2144, 4294901760
    %2146 = vmatpush1.msra.mxu0 %v2145
    %2147 = vmatprep.subr.mxu0 0.0
    %v2148 = vand.u32 %v1645, 4294901760
    %v2149 = vsub.f32 %v1645, %v2148
    %v2150 = vand.u32 %v2149, 4294901760
    %2151 = vmatpush1.msra.mxu0 %v2150
    %2152 = vmatprep.subr.mxu0 0.0
    %v2153 = vand.u32 %v1646, 4294901760
    %v2154 = vsub.f32 %v1646, %v2153
    %v2155 = vand.u32 %v2154, 4294901760
    %2156 = vmatpush1.msra.mxu0 %v2155
    %2157 = vmatprep.subr.mxu0 0.0
    %v2158 = vand.u32 %v1647, 4294901760
    %v2159 = vsub.f32 %v1647, %v2158
    %v2160 = vand.u32 %v2159, 4294901760
    %2161 = vmatpush1.msra.mxu0 %v2160
    %2162 = vmatprep.subr.mxu0 0.0
    %v2163 = vand.u32 %v1648, 4294901760
    %v2164 = vsub.f32 %v1648, %v2163
    %v2165 = vand.u32 %v2164, 4294901760
    %2166 = vmatpush1.msra.mxu0 %v2165
    %2167 = vmatprep.subr.mxu0 0.0
    %v2168 = vand.u32 %v1649, 4294901760
    %v2169 = vsub.f32 %v1649, %v2168
    %v2170 = vand.u32 %v2169, 4294901760
    %2171 = vmatpush1.msra.mxu0 %v2170
    %2172 = vmatprep.subr.mxu0 0.0
    %v2173 = vand.u32 %v1650, 4294901760
    %v2174 = vsub.f32 %v1650, %v2173
    %v2175 = vand.u32 %v2174, 4294901760
    %2176 = vmatpush1.msra.mxu0 %v2175
    %2177 = vmatprep.subr.mxu0 0.0
    %v2178 = vand.u32 %v1651, 4294901760
    %v2179 = vsub.f32 %v1651, %v2178
    %v2180 = vand.u32 %v2179, 4294901760
    %2181 = vmatpush1.msra.mxu0 %v2180
    %2182 = vmatprep.subr.mxu0 0.0
    %v2183 = vand.u32 %v1652, 4294901760
    %v2184 = vsub.f32 %v1652, %v2183
    %v2185 = vand.u32 %v2184, 4294901760
    %2186 = vmatpush1.msra.mxu0 %v2185
    %2187 = vmatprep.subr.mxu0 0.0
    %v2188 = vand.u32 %v1653, 4294901760
    %v2189 = vsub.f32 %v1653, %v2188
    %v2190 = vand.u32 %v2189, 4294901760
    %2191 = vmatpush1.msra.mxu0 %v2190
    %2192 = vmatprep.subr.mxu0 0.0
    %v2193 = vand.u32 %v1654, 4294901760
    %v2194 = vsub.f32 %v1654, %v2193
    %v2195 = vand.u32 %v2194, 4294901760
    %2196 = vmatpush1.msra.mxu0 %v2195
    %2197 = vmatprep.subr.mxu0 0.0
    %v2198 = vand.u32 %v1655, 4294901760
    %v2199 = vsub.f32 %v1655, %v2198
    %v2200 = vand.u32 %v2199, 4294901760
    %2201 = vmatpush1.msra.mxu0 %v2200
    %2202 = vmatprep.subr.mxu0 0.0
    %2203 = vmatpush1.msra.mxu0 0.0
    %2204 = vmatprep.subr.mxu0 0.0
    %2205 = vmatpush1.msra.mxu0 0.0
    %2206 = vmatprep.subr.mxu0 0.0
    %2207 = vmatpush1.msra.mxu0 0.0
    %2208 = vmatprep.subr.mxu0 0.0
    %2209 = vmatpush1.msra.mxu0 0.0
    %2210 = vmatprep.subr.mxu0 0.0
    %2211 = vmatpush1.msra.mxu0 0.0
    %2212 = vmatprep.subr.mxu0 0.0
    %2213 = vmatpush1.msra.mxu0 0.0
    %2214 = vmatprep.subr.mxu0 0.0
    %2215 = vmatpush1.msra.mxu0 0.0
    %2216 = vmatprep.subr.mxu0 0.0
    %2217 = vmatpush1.msra.mxu0 0.0
    %2218 = vmatprep.subr.mxu0 0.0
    %2219 = vmatpush1.msra.mxu0 0.0
    %2220 = vmatprep.subr.mxu0 0.0
    %2221 = vmatpush1.msra.mxu0 0.0
    %2222 = vmatprep.subr.mxu0 0.0
    %2223 = vmatpush1.msra.mxu0 0.0
    %2224 = vmatprep.subr.mxu0 0.0
    %2225 = vmatpush1.msra.mxu0 0.0
    %2226 = vmatprep.subr.mxu0 0.0
    %2227 = vmatpush1.msra.mxu0 0.0
    %2228 = vmatprep.subr.mxu0 0.0
    %2229 = vmatpush1.msra.mxu0 0.0
    %2230 = vmatprep.subr.mxu0 0.0
    %2231 = vmatpush1.msra.mxu0 0.0
    %2232 = vmatprep.subr.mxu0 0.0
    %2233 = vmatpush1.msra.mxu0 0.0
    %2234 = vmatprep.mubr.f32.mxu0 0.0
    %v2235 = vand.u32 %v1116, 4294901760
    %2236 = vmatmul.mubr.f32.gmra.mrb[0].mxu0 %v2235
    %v2237 = vpop.f32.mrb[0].mxu0
    %v2238 = vadd.f32 %v2111, %v2237
    %v2239 = vpop.f32.mrb[0].mxu0
    %2240 = vmatprep.mubr.f32.mxu0 0.0
    %v2241 = vand.u32 %v1117, 4294901760
    %2242 = vmatmul.mubr.f32.gmra.mrb[0].mxu0 %v2241
    %v2243 = vpop.f32.mrb[0].mxu0
    %v2244 = vadd.f32 %v2119, %v2243
    %v2245 = vpop.f32.mrb[0].mxu0
    %2246 = vdwg.mxu0
    %2247 = vmatprep.subr.mxu0 0.0
    %v2248 = vand.u32 %v1640, 4294901760
    %2249 = vmatpush1.msra.mxu0 %v2248
    %2250 = vmatprep.subr.mxu0 0.0
    %v2251 = vand.u32 %v1641, 4294901760
    %2252 = vmatpush1.msra.mxu0 %v2251
    %2253 = vmatprep.subr.mxu0 0.0
    %v2254 = vand.u32 %v1642, 4294901760
    %2255 = vmatpush1.msra.mxu0 %v2254
    %2256 = vmatprep.subr.mxu0 0.0
    %v2257 = vand.u32 %v1643, 4294901760
    %2258 = vmatpush1.msra.mxu0 %v2257
    %2259 = vmatprep.subr.mxu0 0.0
    %v2260 = vand.u32 %v1644, 4294901760
    %2261 = vmatpush1.msra.mxu0 %v2260
    %2262 = vmatprep.subr.mxu0 0.0
    %v2263 = vand.u32 %v1645, 4294901760
    %2264 = vmatpush1.msra.mxu0 %v2263
    %2265 = vmatprep.subr.mxu0 0.0
    %v2266 = vand.u32 %v1646, 4294901760
    %2267 = vmatpush1.msra.mxu0 %v2266
    %2268 = vmatprep.subr.mxu0 0.0
    %v2269 = vand.u32 %v1647, 4294901760
    %2270 = vmatpush1.msra.mxu0 %v2269
    %2271 = vmatprep.subr.mxu0 0.0
    %v2272 = vand.u32 %v1648, 4294901760
    %2273 = vmatpush1.msra.mxu0 %v2272
    %2274 = vmatprep.subr.mxu0 0.0
    %v2275 = vand.u32 %v1649, 4294901760
    %2276 = vmatpush1.msra.mxu0 %v2275
    %2277 = vmatprep.subr.mxu0 0.0
    %v2278 = vand.u32 %v1650, 4294901760
    %2279 = vmatpush1.msra.mxu0 %v2278
    %2280 = vmatprep.subr.mxu0 0.0
    %v2281 = vand.u32 %v1651, 4294901760
    %2282 = vmatpush1.msra.mxu0 %v2281
    %2283 = vmatprep.subr.mxu0 0.0
    %v2284 = vand.u32 %v1652, 4294901760
    %2285 = vmatpush1.msra.mxu0 %v2284
    %2286 = vmatprep.subr.mxu0 0.0
    %v2287 = vand.u32 %v1653, 4294901760
    %2288 = vmatpush1.msra.mxu0 %v2287
    %2289 = vmatprep.subr.mxu0 0.0
    %v2290 = vand.u32 %v1654, 4294901760
    %2291 = vmatpush1.msra.mxu0 %v2290
    %2292 = vmatprep.subr.mxu0 0.0
    %v2293 = vand.u32 %v1655, 4294901760
    %2294 = vmatpush1.msra.mxu0 %v2293
    %2295 = vmatprep.subr.mxu0 0.0
    %2296 = vmatpush1.msra.mxu0 0.0
    %2297 = vmatprep.subr.mxu0 0.0
    %2298 = vmatpush1.msra.mxu0 0.0
    %2299 = vmatprep.subr.mxu0 0.0
    %2300 = vmatpush1.msra.mxu0 0.0
    %2301 = vmatprep.subr.mxu0 0.0
    %2302 = vmatpush1.msra.mxu0 0.0
    %2303 = vmatprep.subr.mxu0 0.0
    %2304 = vmatpush1.msra.mxu0 0.0
    %2305 = vmatprep.subr.mxu0 0.0
    %2306 = vmatpush1.msra.mxu0 0.0
    %2307 = vmatprep.subr.mxu0 0.0
    %2308 = vmatpush1.msra.mxu0 0.0
    %2309 = vmatprep.subr.mxu0 0.0
    %2310 = vmatpush1.msra.mxu0 0.0
    %2311 = vmatprep.subr.mxu0 0.0
    %2312 = vmatpush1.msra.mxu0 0.0
    %2313 = vmatprep.subr.mxu0 0.0
    %2314 = vmatpush1.msra.mxu0 0.0
    %2315 = vmatprep.subr.mxu0 0.0
    %2316 = vmatpush1.msra.mxu0 0.0
    %2317 = vmatprep.subr.mxu0 0.0
    %2318 = vmatpush1.msra.mxu0 0.0
    %2319 = vmatprep.subr.mxu0 0.0
    %2320 = vmatpush1.msra.mxu0 0.0
    %2321 = vmatprep.subr.mxu0 0.0
    %2322 = vmatpush1.msra.mxu0 0.0
    %2323 = vmatprep.subr.mxu0 0.0
    %2324 = vmatpush1.msra.mxu0 0.0
    %2325 = vmatprep.subr.mxu0 0.0
    %2326 = vmatpush1.msra.mxu0 0.0
    %2327 = vmatprep.mubr.f32.mxu0 0.0
    %v2328 = vand.u32 %v1116, 4294901760
    %2329 = vmatmul.mubr.f32.gmra.mrb[0].mxu0 %v2328
    %v2330 = vpop.f32.mrb[0].mxu0
    %v2331 = vadd.f32 %v2238, %v2330
    %v2332 = vpop.f32.mrb[0].mxu0
    %2333 = vmatprep.mubr.f32.mxu0 0.0
    %v2334 = vand.u32 %v1117, 4294901760
    %2335 = vmatmul.mubr.f32.gmra.mrb[0].mxu0 %v2334
    %v2336 = vpop.f32.mrb[0].mxu0
    %v2337 = vadd.f32 %v2244, %v2336
    %v2338 = vpop.f32.mrb[0].mxu0
    %2339 = vdwg.mxu0
    %2340 = vmatprep.subr.mxu0 0.0
    %v2341 = vand.u32 %v1624, 4294901760
    %2342 = vmatpush1.msra.mxu0 %v2341
    %2343 = vmatprep.subr.mxu0 0.0
    %v2344 = vand.u32 %v1625, 4294901760
    %2345 = vmatpush1.msra.mxu0 %v2344
    %2346 = vmatprep.subr.mxu0 0.0
    %v2347 = vand.u32 %v1626, 4294901760
    %2348 = vmatpush1.msra.mxu0 %v2347
    %2349 = vmatprep.subr.mxu0 0.0
    %v2350 = vand.u32 %v1627, 4294901760
    %2351 = vmatpush1.msra.mxu0 %v2350
    %2352 = vmatprep.subr.mxu0 0.0
    %v2353 = vand.u32 %v1628, 4294901760
    %2354 = vmatpush1.msra.mxu0 %v2353
    %2355 = vmatprep.subr.mxu0 0.0
    %v2356 = vand.u32 %v1629, 4294901760
    %2357 = vmatpush1.msra.mxu0 %v2356
    %2358 = vmatprep.subr.mxu0 0.0
    %v2359 = vand.u32 %v1630, 4294901760
    %2360 = vmatpush1.msra.mxu0 %v2359
    %2361 = vmatprep.subr.mxu0 0.0
    %v2362 = vand.u32 %v1631, 4294901760
    %2363 = vmatpush1.msra.mxu0 %v2362
    %2364 = vmatprep.subr.mxu0 0.0
    %v2365 = vand.u32 %v1632, 4294901760
    %2366 = vmatpush1.msra.mxu0 %v2365
    %2367 = vmatprep.subr.mxu0 0.0
    %v2368 = vand.u32 %v1633, 4294901760
    %2369 = vmatpush1.msra.mxu0 %v2368
    %2370 = vmatprep.subr.mxu0 0.0
    %v2371 = vand.u32 %v1634, 4294901760
    %2372 = vmatpush1.msra.mxu0 %v2371
    %2373 = vmatprep.subr.mxu0 0.0
    %v2374 = vand.u32 %v1635, 4294901760
    %2375 = vmatpush1.msra.mxu0 %v2374
    %2376 = vmatprep.subr.mxu0 0.0
    %v2377 = vand.u32 %v1636, 4294901760
    %2378 = vmatpush1.msra.mxu0 %v2377
    %2379 = vmatprep.subr.mxu0 0.0
    %v2380 = vand.u32 %v1637, 4294901760
    %2381 = vmatpush1.msra.mxu0 %v2380
    %2382 = vmatprep.subr.mxu0 0.0
    %v2383 = vand.u32 %v1638, 4294901760
    %2384 = vmatpush1.msra.mxu0 %v2383
    %2385 = vmatprep.subr.mxu0 0.0
    %v2386 = vand.u32 %v1639, 4294901760
    %2387 = vmatpush1.msra.mxu0 %v2386
    %2388 = vmatprep.subr.mxu0 0.0
    %2389 = vmatpush1.msra.mxu0 0.0
    %2390 = vmatprep.subr.mxu0 0.0
    %2391 = vmatpush1.msra.mxu0 0.0
    %2392 = vmatprep.subr.mxu0 0.0
    %2393 = vmatpush1.msra.mxu0 0.0
    %2394 = vmatprep.subr.mxu0 0.0
    %2395 = vmatpush1.msra.mxu0 0.0
    %2396 = vmatprep.subr.mxu0 0.0
    %2397 = vmatpush1.msra.mxu0 0.0
    %2398 = vmatprep.subr.mxu0 0.0
    %2399 = vmatpush1.msra.mxu0 0.0
    %2400 = vmatprep.subr.mxu0 0.0
    %2401 = vmatpush1.msra.mxu0 0.0
    %2402 = vmatprep.subr.mxu0 0.0
    %2403 = vmatpush1.msra.mxu0 0.0
    %2404 = vmatprep.subr.mxu0 0.0
    %2405 = vmatpush1.msra.mxu0 0.0
    %2406 = vmatprep.subr.mxu0 0.0
    %2407 = vmatpush1.msra.mxu0 0.0
    %2408 = vmatprep.subr.mxu0 0.0
    %2409 = vmatpush1.msra.mxu0 0.0
    %2410 = vmatprep.subr.mxu0 0.0
    %2411 = vmatpush1.msra.mxu0 0.0
    %2412 = vmatprep.subr.mxu0 0.0
    %2413 = vmatpush1.msra.mxu0 0.0
    %2414 = vmatprep.subr.mxu0 0.0
    %2415 = vmatpush1.msra.mxu0 0.0
    %2416 = vmatprep.subr.mxu0 0.0
    %2417 = vmatpush1.msra.mxu0 0.0
    %2418 = vmatprep.subr.mxu0 0.0
    %2419 = vmatpush1.msra.mxu0 0.0
    %2420 = vmatprep.mubr.f32.mxu0 0.0
    %v2421 = vand.u32 %v600, 4294901760
    %v2422 = vsub.f32 %v600, %v2421
    %v2423 = vand.u32 %v2422, 4294901760
    %v2424 = vsub.f32 %v2422, %v2423
    %v2425 = vand.u32 %v2424, 4294901760
    %2426 = vmatmul.mubr.f32.gmra.mrb[0].mxu0 %v2425
    %v2427 = vpop.f32.mrb[0].mxu0
    %v2428 = vadd.f32 %v2331, %v2427
    %v2429 = vpop.f32.mrb[0].mxu0
    %2430 = vmatprep.mubr.f32.mxu0 0.0
    %v2431 = vand.u32 %v601, 4294901760
    %v2432 = vsub.f32 %v601, %v2431
    %v2433 = vand.u32 %v2432, 4294901760
    %v2434 = vsub.f32 %v2432, %v2433
    %v2435 = vand.u32 %v2434, 4294901760
    %2436 = vmatmul.mubr.f32.gmra.mrb[0].mxu0 %v2435
    %v2437 = vpop.f32.mrb[0].mxu0
    %v2438 = vadd.f32 %v2337, %v2437
    %v2439 = vpop.f32.mrb[0].mxu0
    %2440 = vdwg.mxu0
    %2441 = vmatprep.subr.mxu0 0.0
    %v2442 = vand.u32 %v1624, 4294901760
    %v2443 = vsub.f32 %v1624, %v2442
    %v2444 = vand.u32 %v2443, 4294901760
    %v2445 = vsub.f32 %v2443, %v2444
    %v2446 = vand.u32 %v2445, 4294901760
    %2447 = vmatpush1.msra.mxu0 %v2446
    %2448 = vmatprep.subr.mxu0 0.0
    %v2449 = vand.u32 %v1625, 4294901760
    %v2450 = vsub.f32 %v1625, %v2449
    %v2451 = vand.u32 %v2450, 4294901760
    %v2452 = vsub.f32 %v2450, %v2451
    %v2453 = vand.u32 %v2452, 4294901760
    %2454 = vmatpush1.msra.mxu0 %v2453
    %2455 = vmatprep.subr.mxu0 0.0
    %v2456 = vand.u32 %v1626, 4294901760
    %v2457 = vsub.f32 %v1626, %v2456
    %v2458 = vand.u32 %v2457, 4294901760
    %v2459 = vsub.f32 %v2457, %v2458
    %v2460 = vand.u32 %v2459, 4294901760
    %2461 = vmatpush1.msra.mxu0 %v2460
    %2462 = vmatprep.subr.mxu0 0.0
    %v2463 = vand.u32 %v1627, 4294901760
    %v2464 = vsub.f32 %v1627, %v2463
    %v2465 = vand.u32 %v2464, 4294901760
    %v2466 = vsub.f32 %v2464, %v2465
    %v2467 = vand.u32 %v2466, 4294901760
    %2468 = vmatpush1.msra.mxu0 %v2467
    %2469 = vmatprep.subr.mxu0 0.0
    %v2470 = vand.u32 %v1628, 4294901760
    %v2471 = vsub.f32 %v1628, %v2470
    %v2472 = vand.u32 %v2471, 4294901760
    %v2473 = vsub.f32 %v2471, %v2472
    %v2474 = vand.u32 %v2473, 4294901760
    %2475 = vmatpush1.msra.mxu0 %v2474
    %2476 = vmatprep.subr.mxu0 0.0
    %v2477 = vand.u32 %v1629, 4294901760
    %v2478 = vsub.f32 %v1629, %v2477
    %v2479 = vand.u32 %v2478, 4294901760
    %v2480 = vsub.f32 %v2478, %v2479
    %v2481 = vand.u32 %v2480, 4294901760
    %2482 = vmatpush1.msra.mxu0 %v2481
    %2483 = vmatprep.subr.mxu0 0.0
    %v2484 = vand.u32 %v1630, 4294901760
    %v2485 = vsub.f32 %v1630, %v2484
    %v2486 = vand.u32 %v2485, 4294901760
    %v2487 = vsub.f32 %v2485, %v2486
    %v2488 = vand.u32 %v2487, 4294901760
    %2489 = vmatpush1.msra.mxu0 %v2488
    %2490 = vmatprep.subr.mxu0 0.0
    %v2491 = vand.u32 %v1631, 4294901760
    %v2492 = vsub.f32 %v1631, %v2491
    %v2493 = vand.u32 %v2492, 4294901760
    %v2494 = vsub.f32 %v2492, %v2493
    %v2495 = vand.u32 %v2494, 4294901760
    %2496 = vmatpush1.msra.mxu0 %v2495
    %2497 = vmatprep.subr.mxu0 0.0
    %v2498 = vand.u32 %v1632, 4294901760
    %v2499 = vsub.f32 %v1632, %v2498
    %v2500 = vand.u32 %v2499, 4294901760
    %v2501 = vsub.f32 %v2499, %v2500
    %v2502 = vand.u32 %v2501, 4294901760
    %2503 = vmatpush1.msra.mxu0 %v2502
    %2504 = vmatprep.subr.mxu0 0.0
    %v2505 = vand.u32 %v1633, 4294901760
    %v2506 = vsub.f32 %v1633, %v2505
    %v2507 = vand.u32 %v2506, 4294901760
    %v2508 = vsub.f32 %v2506, %v2507
    %v2509 = vand.u32 %v2508, 4294901760
    %2510 = vmatpush1.msra.mxu0 %v2509
    %2511 = vmatprep.subr.mxu0 0.0
    %v2512 = vand.u32 %v1634, 4294901760
    %v2513 = vsub.f32 %v1634, %v2512
    %v2514 = vand.u32 %v2513, 4294901760
    %v2515 = vsub.f32 %v2513, %v2514
    %v2516 = vand.u32 %v2515, 4294901760
    %2517 = vmatpush1.msra.mxu0 %v2516
    %2518 = vmatprep.subr.mxu0 0.0
    %v2519 = vand.u32 %v1635, 4294901760
    %v2520 = vsub.f32 %v1635, %v2519
    %v2521 = vand.u32 %v2520, 4294901760
    %v2522 = vsub.f32 %v2520, %v2521
    %v2523 = vand.u32 %v2522, 4294901760
    %2524 = vmatpush1.msra.mxu0 %v2523
    %2525 = vmatprep.subr.mxu0 0.0
    %v2526 = vand.u32 %v1636, 4294901760
    %v2527 = vsub.f32 %v1636, %v2526
    %v2528 = vand.u32 %v2527, 4294901760
    %v2529 = vsub.f32 %v2527, %v2528
    %v2530 = vand.u32 %v2529, 4294901760
    %2531 = vmatpush1.msra.mxu0 %v2530
    %2532 = vmatprep.subr.mxu0 0.0
    %v2533 = vand.u32 %v1637, 4294901760
    %v2534 = vsub.f32 %v1637, %v2533
    %v2535 = vand.u32 %v2534, 4294901760
    %v2536 = vsub.f32 %v2534, %v2535
    %v2537 = vand.u32 %v2536, 4294901760
    %2538 = vmatpush1.msra.mxu0 %v2537
    %2539 = vmatprep.subr.mxu0 0.0
    %v2540 = vand.u32 %v1638, 4294901760
    %v2541 = vsub.f32 %v1638, %v2540
    %v2542 = vand.u32 %v2541, 4294901760
    %v2543 = vsub.f32 %v2541, %v2542
    %v2544 = vand.u32 %v2543, 4294901760
    %2545 = vmatpush1.msra.mxu0 %v2544
    %2546 = vmatprep.subr.mxu0 0.0
    %v2547 = vand.u32 %v1639, 4294901760
    %v2548 = vsub.f32 %v1639, %v2547
    %v2549 = vand.u32 %v2548, 4294901760
    %v2550 = vsub.f32 %v2548, %v2549
    %v2551 = vand.u32 %v2550, 4294901760
    %2552 = vmatpush1.msra.mxu0 %v2551
    %2553 = vmatprep.subr.mxu0 0.0
    %2554 = vmatpush1.msra.mxu0 0.0
    %2555 = vmatprep.subr.mxu0 0.0
    %2556 = vmatpush1.msra.mxu0 0.0
    %2557 = vmatprep.subr.mxu0 0.0
    %2558 = vmatpush1.msra.mxu0 0.0
    %2559 = vmatprep.subr.mxu0 0.0
    %2560 = vmatpush1.msra.mxu0 0.0
    %2561 = vmatprep.subr.mxu0 0.0
    %2562 = vmatpush1.msra.mxu0 0.0
    %2563 = vmatprep.subr.mxu0 0.0
    %2564 = vmatpush1.msra.mxu0 0.0
    %2565 = vmatprep.subr.mxu0 0.0
    %2566 = vmatpush1.msra.mxu0 0.0
    %2567 = vmatprep.subr.mxu0 0.0
    %2568 = vmatpush1.msra.mxu0 0.0
    %2569 = vmatprep.subr.mxu0 0.0
    %2570 = vmatpush1.msra.mxu0 0.0
    %2571 = vmatprep.subr.mxu0 0.0
    %2572 = vmatpush1.msra.mxu0 0.0
    %2573 = vmatprep.subr.mxu0 0.0
    %2574 = vmatpush1.msra.mxu0 0.0
    %2575 = vmatprep.subr.mxu0 0.0
    %2576 = vmatpush1.msra.mxu0 0.0
    %2577 = vmatprep.subr.mxu0 0.0
    %2578 = vmatpush1.msra.mxu0 0.0
    %2579 = vmatprep.subr.mxu0 0.0
    %2580 = vmatpush1.msra.mxu0 0.0
    %2581 = vmatprep.subr.mxu0 0.0
    %2582 = vmatpush1.msra.mxu0 0.0
    %2583 = vmatprep.subr.mxu0 0.0
    %2584 = vmatpush1.msra.mxu0 0.0
    %2585 = vmatprep.mubr.f32.mxu0 0.0
    %v2586 = vand.u32 %v600, 4294901760
    %2587 = vmatmul.mubr.f32.gmra.mrb[0].mxu0 %v2586
    %v2588 = vpop.f32.mrb[0].mxu0
    %v2589 = vadd.f32 %v2428, %v2588
    %v2590 = vpop.f32.mrb[0].mxu0
    %2591 = vmatprep.mubr.f32.mxu0 0.0
    %v2592 = vand.u32 %v601, 4294901760
    %2593 = vmatmul.mubr.f32.gmra.mrb[0].mxu0 %v2592
    %v2594 = vpop.f32.mrb[0].mxu0
    %v2595 = vadd.f32 %v2438, %v2594
    %v2596 = vpop.f32.mrb[0].mxu0
    %2597 = vdwg.mxu0
    %2598 = vmatprep.subr.mxu0 0.0
    %v2599 = vand.u32 %v1624, 4294901760
    %v2600 = vsub.f32 %v1624, %v2599
    %2601 = vmatpush1.msra.mxu0 %v2600
    %2602 = vmatprep.subr.mxu0 0.0
    %v2603 = vand.u32 %v1625, 4294901760
    %v2604 = vsub.f32 %v1625, %v2603
    %2605 = vmatpush1.msra.mxu0 %v2604
    %2606 = vmatprep.subr.mxu0 0.0
    %v2607 = vand.u32 %v1626, 4294901760
    %v2608 = vsub.f32 %v1626, %v2607
    %2609 = vmatpush1.msra.mxu0 %v2608
    %2610 = vmatprep.subr.mxu0 0.0
    %v2611 = vand.u32 %v1627, 4294901760
    %v2612 = vsub.f32 %v1627, %v2611
    %2613 = vmatpush1.msra.mxu0 %v2612
    %2614 = vmatprep.subr.mxu0 0.0
    %v2615 = vand.u32 %v1628, 4294901760
    %v2616 = vsub.f32 %v1628, %v2615
    %2617 = vmatpush1.msra.mxu0 %v2616
    %2618 = vmatprep.subr.mxu0 0.0
    %v2619 = vand.u32 %v1629, 4294901760
    %v2620 = vsub.f32 %v1629, %v2619
    %2621 = vmatpush1.msra.mxu0 %v2620
    %2622 = vmatprep.subr.mxu0 0.0
    %v2623 = vand.u32 %v1630, 4294901760
    %v2624 = vsub.f32 %v1630, %v2623
    %2625 = vmatpush1.msra.mxu0 %v2624
    %2626 = vmatprep.subr.mxu0 0.0
    %v2627 = vand.u32 %v1631, 4294901760
    %v2628 = vsub.f32 %v1631, %v2627
    %2629 = vmatpush1.msra.mxu0 %v2628
    %2630 = vmatprep.subr.mxu0 0.0
    %v2631 = vand.u32 %v1632, 4294901760
    %v2632 = vsub.f32 %v1632, %v2631
    %2633 = vmatpush1.msra.mxu0 %v2632
    %2634 = vmatprep.subr.mxu0 0.0
    %v2635 = vand.u32 %v1633, 4294901760
    %v2636 = vsub.f32 %v1633, %v2635
    %2637 = vmatpush1.msra.mxu0 %v2636
    %2638 = vmatprep.subr.mxu0 0.0
    %v2639 = vand.u32 %v1634, 4294901760
    %v2640 = vsub.f32 %v1634, %v2639
    %2641 = vmatpush1.msra.mxu0 %v2640
    %2642 = vmatprep.subr.mxu0 0.0
    %v2643 = vand.u32 %v1635, 4294901760
    %v2644 = vsub.f32 %v1635, %v2643
    %2645 = vmatpush1.msra.mxu0 %v2644
    %2646 = vmatprep.subr.mxu0 0.0
    %v2647 = vand.u32 %v1636, 4294901760
    %v2648 = vsub.f32 %v1636, %v2647
    %2649 = vmatpush1.msra.mxu0 %v2648
    %2650 = vmatprep.subr.mxu0 0.0
    %v2651 = vand.u32 %v1637, 4294901760
    %v2652 = vsub.f32 %v1637, %v2651
    %2653 = vmatpush1.msra.mxu0 %v2652
    %2654 = vmatprep.subr.mxu0 0.0
    %v2655 = vand.u32 %v1638, 4294901760
    %v2656 = vsub.f32 %v1638, %v2655
    %2657 = vmatpush1.msra.mxu0 %v2656
    %2658 = vmatprep.subr.mxu0 0.0
    %v2659 = vand.u32 %v1639, 4294901760
    %v2660 = vsub.f32 %v1639, %v2659
    %2661 = vmatpush1.msra.mxu0 %v2660
    %2662 = vmatprep.subr.mxu0 0.0
    %2663 = vmatpush1.msra.mxu0 0.0
    %2664 = vmatprep.subr.mxu0 0.0
    %2665 = vmatpush1.msra.mxu0 0.0
    %2666 = vmatprep.subr.mxu0 0.0
    %2667 = vmatpush1.msra.mxu0 0.0
    %2668 = vmatprep.subr.mxu0 0.0
    %2669 = vmatpush1.msra.mxu0 0.0
    %2670 = vmatprep.subr.mxu0 0.0
    %2671 = vmatpush1.msra.mxu0 0.0
    %2672 = vmatprep.subr.mxu0 0.0
    %2673 = vmatpush1.msra.mxu0 0.0
    %2674 = vmatprep.subr.mxu0 0.0
    %2675 = vmatpush1.msra.mxu0 0.0
    %2676 = vmatprep.subr.mxu0 0.0
    %2677 = vmatpush1.msra.mxu0 0.0
    %2678 = vmatprep.subr.mxu0 0.0
    %2679 = vmatpush1.msra.mxu0 0.0
    %2680 = vmatprep.subr.mxu0 0.0
    %2681 = vmatpush1.msra.mxu0 0.0
    %2682 = vmatprep.subr.mxu0 0.0
    %2683 = vmatpush1.msra.mxu0 0.0
    %2684 = vmatprep.subr.mxu0 0.0
    %2685 = vmatpush1.msra.mxu0 0.0
    %2686 = vmatprep.subr.mxu0 0.0
    %2687 = vmatpush1.msra.mxu0 0.0
    %2688 = vmatprep.subr.mxu0 0.0
    %2689 = vmatpush1.msra.mxu0 0.0
    %2690 = vmatprep.subr.mxu0 0.0
    %2691 = vmatpush1.msra.mxu0 0.0
    %2692 = vmatprep.subr.mxu0 0.0
    %2693 = vmatpush1.msra.mxu0 0.0
    %2694 = vmatprep.mubr.f32.mxu0 0.0
    %v2695 = vand.u32 %v600, 4294901760
    %v2696 = vsub.f32 %v600, %v2695
    %2697 = vmatmul.mubr.f32.gmra.mrb[0].mxu0 %v2696
    %v2698 = vpop.f32.mrb[0].mxu0
    %v2699 = vadd.f32 %v2589, %v2698
    %v2700 = vpop.f32.mrb[0].mxu0
    %2701 = vmatprep.mubr.f32.mxu0 0.0
    %v2702 = vand.u32 %v601, 4294901760
    %v2703 = vsub.f32 %v601, %v2702
    %2704 = vmatmul.mubr.f32.gmra.mrb[0].mxu0 %v2703
    %v2705 = vpop.f32.mrb[0].mxu0
    %v2706 = vadd.f32 %v2595, %v2705
    %v2707 = vpop.f32.mrb[0].mxu0
    %2708 = vdwg.mxu0
    %2709 = vmatprep.subr.mxu0 0.0
    %v2710 = vand.u32 %v1624, 4294901760
    %2711 = vmatpush1.msra.mxu0 %v2710
    %2712 = vmatprep.subr.mxu0 0.0
    %v2713 = vand.u32 %v1625, 4294901760
    %2714 = vmatpush1.msra.mxu0 %v2713
    %2715 = vmatprep.subr.mxu0 0.0
    %v2716 = vand.u32 %v1626, 4294901760
    %2717 = vmatpush1.msra.mxu0 %v2716
    %2718 = vmatprep.subr.mxu0 0.0
    %v2719 = vand.u32 %v1627, 4294901760
    %2720 = vmatpush1.msra.mxu0 %v2719
    %2721 = vmatprep.subr.mxu0 0.0
    %v2722 = vand.u32 %v1628, 4294901760
    %2723 = vmatpush1.msra.mxu0 %v2722
    %2724 = vmatprep.subr.mxu0 0.0
    %v2725 = vand.u32 %v1629, 4294901760
    %2726 = vmatpush1.msra.mxu0 %v2725
    %2727 = vmatprep.subr.mxu0 0.0
    %v2728 = vand.u32 %v1630, 4294901760
    %2729 = vmatpush1.msra.mxu0 %v2728
    %2730 = vmatprep.subr.mxu0 0.0
    %v2731 = vand.u32 %v1631, 4294901760
    %2732 = vmatpush1.msra.mxu0 %v2731
    %2733 = vmatprep.subr.mxu0 0.0
    %v2734 = vand.u32 %v1632, 4294901760
    %2735 = vmatpush1.msra.mxu0 %v2734
    %2736 = vmatprep.subr.mxu0 0.0
    %v2737 = vand.u32 %v1633, 4294901760
    %2738 = vmatpush1.msra.mxu0 %v2737
    %2739 = vmatprep.subr.mxu0 0.0
    %v2740 = vand.u32 %v1634, 4294901760
    %2741 = vmatpush1.msra.mxu0 %v2740
    %2742 = vmatprep.subr.mxu0 0.0
    %v2743 = vand.u32 %v1635, 4294901760
    %2744 = vmatpush1.msra.mxu0 %v2743
    %2745 = vmatprep.subr.mxu0 0.0
    %v2746 = vand.u32 %v1636, 4294901760
    %2747 = vmatpush1.msra.mxu0 %v2746
    %2748 = vmatprep.subr.mxu0 0.0
    %v2749 = vand.u32 %v1637, 4294901760
    %2750 = vmatpush1.msra.mxu0 %v2749
    %2751 = vmatprep.subr.mxu0 0.0
    %v2752 = vand.u32 %v1638, 4294901760
    %2753 = vmatpush1.msra.mxu0 %v2752
    %2754 = vmatprep.subr.mxu0 0.0
    %v2755 = vand.u32 %v1639, 4294901760
    %2756 = vmatpush1.msra.mxu0 %v2755
    %2757 = vmatprep.subr.mxu0 0.0
    %2758 = vmatpush1.msra.mxu0 0.0
    %2759 = vmatprep.subr.mxu0 0.0
    %2760 = vmatpush1.msra.mxu0 0.0
    %2761 = vmatprep.subr.mxu0 0.0
    %2762 = vmatpush1.msra.mxu0 0.0
    %2763 = vmatprep.subr.mxu0 0.0
    %2764 = vmatpush1.msra.mxu0 0.0
    %2765 = vmatprep.subr.mxu0 0.0
    %2766 = vmatpush1.msra.mxu0 0.0
    %2767 = vmatprep.subr.mxu0 0.0
    %2768 = vmatpush1.msra.mxu0 0.0
    %2769 = vmatprep.subr.mxu0 0.0
    %2770 = vmatpush1.msra.mxu0 0.0
    %2771 = vmatprep.subr.mxu0 0.0
    %2772 = vmatpush1.msra.mxu0 0.0
    %2773 = vmatprep.subr.mxu0 0.0
    %2774 = vmatpush1.msra.mxu0 0.0
    %2775 = vmatprep.subr.mxu0 0.0
    %2776 = vmatpush1.msra.mxu0 0.0
    %2777 = vmatprep.subr.mxu0 0.0
    %2778 = vmatpush1.msra.mxu0 0.0
    %2779 = vmatprep.subr.mxu0 0.0
    %2780 = vmatpush1.msra.mxu0 0.0
    %2781 = vmatprep.subr.mxu0 0.0
    %2782 = vmatpush1.msra.mxu0 0.0
    %2783 = vmatprep.subr.mxu0 0.0
    %2784 = vmatpush1.msra.mxu0 0.0
    %2785 = vmatprep.subr.mxu0 0.0
    %2786 = vmatpush1.msra.mxu0 0.0
    %2787 = vmatprep.subr.mxu0 0.0
    %2788 = vmatpush1.msra.mxu0 0.0
    %2789 = vmatprep.mubr.f32.mxu0 0.0
    %v2790 = vand.u32 %v600, 4294901760
    %v2791 = vsub.f32 %v600, %v2790
    %v2792 = vand.u32 %v2791, 4294901760
    %2793 = vmatmul.mubr.f32.gmra.mrb[0].mxu0 %v2792
    %v2794 = vpop.f32.mrb[0].mxu0
    %v2795 = vadd.f32 %v2699, %v2794
    %v2796 = vpop.f32.mrb[0].mxu0
    %2797 = vmatprep.mubr.f32.mxu0 0.0
    %v2798 = vand.u32 %v601, 4294901760
    %v2799 = vsub.f32 %v601, %v2798
    %v2800 = vand.u32 %v2799, 4294901760
    %2801 = vmatmul.mubr.f32.gmra.mrb[0].mxu0 %v2800
    %v2802 = vpop.f32.mrb[0].mxu0
    %v2803 = vadd.f32 %v2706, %v2802
    %v2804 = vpop.f32.mrb[0].mxu0
    %2805 = vdwg.mxu0
    %2806 = vmatprep.subr.mxu0 0.0
    %v2807 = vand.u32 %v1624, 4294901760
    %v2808 = vsub.f32 %v1624, %v2807
    %v2809 = vand.u32 %v2808, 4294901760
    %2810 = vmatpush1.msra.mxu0 %v2809
    %2811 = vmatprep.subr.mxu0 0.0
    %v2812 = vand.u32 %v1625, 4294901760
    %v2813 = vsub.f32 %v1625, %v2812
    %v2814 = vand.u32 %v2813, 4294901760
    %2815 = vmatpush1.msra.mxu0 %v2814
    %2816 = vmatprep.subr.mxu0 0.0
    %v2817 = vand.u32 %v1626, 4294901760
    %v2818 = vsub.f32 %v1626, %v2817
    %v2819 = vand.u32 %v2818, 4294901760
    %2820 = vmatpush1.msra.mxu0 %v2819
    %2821 = vmatprep.subr.mxu0 0.0
    %v2822 = vand.u32 %v1627, 4294901760
    %v2823 = vsub.f32 %v1627, %v2822
    %v2824 = vand.u32 %v2823, 4294901760
    %2825 = vmatpush1.msra.mxu0 %v2824
    %2826 = vmatprep.subr.mxu0 0.0
    %v2827 = vand.u32 %v1628, 4294901760
    %v2828 = vsub.f32 %v1628, %v2827
    %v2829 = vand.u32 %v2828, 4294901760
    %2830 = vmatpush1.msra.mxu0 %v2829
    %2831 = vmatprep.subr.mxu0 0.0
    %v2832 = vand.u32 %v1629, 4294901760
    %v2833 = vsub.f32 %v1629, %v2832
    %v2834 = vand.u32 %v2833, 4294901760
    %2835 = vmatpush1.msra.mxu0 %v2834
    %2836 = vmatprep.subr.mxu0 0.0
    %v2837 = vand.u32 %v1630, 4294901760
    %v2838 = vsub.f32 %v1630, %v2837
    %v2839 = vand.u32 %v2838, 4294901760
    %2840 = vmatpush1.msra.mxu0 %v2839
    %2841 = vmatprep.subr.mxu0 0.0
    %v2842 = vand.u32 %v1631, 4294901760
    %v2843 = vsub.f32 %v1631, %v2842
    %v2844 = vand.u32 %v2843, 4294901760
    %2845 = vmatpush1.msra.mxu0 %v2844
    %2846 = vmatprep.subr.mxu0 0.0
    %v2847 = vand.u32 %v1632, 4294901760
    %v2848 = vsub.f32 %v1632, %v2847
    %v2849 = vand.u32 %v2848, 4294901760
    %2850 = vmatpush1.msra.mxu0 %v2849
    %2851 = vmatprep.subr.mxu0 0.0
    %v2852 = vand.u32 %v1633, 4294901760
    %v2853 = vsub.f32 %v1633, %v2852
    %v2854 = vand.u32 %v2853, 4294901760
    %2855 = vmatpush1.msra.mxu0 %v2854
    %2856 = vmatprep.subr.mxu0 0.0
    %v2857 = vand.u32 %v1634, 4294901760
    %v2858 = vsub.f32 %v1634, %v2857
    %v2859 = vand.u32 %v2858, 4294901760
    %2860 = vmatpush1.msra.mxu0 %v2859
    %2861 = vmatprep.subr.mxu0 0.0
    %v2862 = vand.u32 %v1635, 4294901760
    %v2863 = vsub.f32 %v1635, %v2862
    %v2864 = vand.u32 %v2863, 4294901760
    %2865 = vmatpush1.msra.mxu0 %v2864
    %2866 = vmatprep.subr.mxu0 0.0
    %v2867 = vand.u32 %v1636, 4294901760
    %v2868 = vsub.f32 %v1636, %v2867
    %v2869 = vand.u32 %v2868, 4294901760
    %2870 = vmatpush1.msra.mxu0 %v2869
    %2871 = vmatprep.subr.mxu0 0.0
    %v2872 = vand.u32 %v1637, 4294901760
    %v2873 = vsub.f32 %v1637, %v2872
    %v2874 = vand.u32 %v2873, 4294901760
    %2875 = vmatpush1.msra.mxu0 %v2874
    %2876 = vmatprep.subr.mxu0 0.0
    %v2877 = vand.u32 %v1638, 4294901760
    %v2878 = vsub.f32 %v1638, %v2877
    %v2879 = vand.u32 %v2878, 4294901760
    %2880 = vmatpush1.msra.mxu0 %v2879
    %2881 = vmatprep.subr.mxu0 0.0
    %v2882 = vand.u32 %v1639, 4294901760
    %v2883 = vsub.f32 %v1639, %v2882
    %v2884 = vand.u32 %v2883, 4294901760
    %2885 = vmatpush1.msra.mxu0 %v2884
    %2886 = vmatprep.subr.mxu0 0.0
    %2887 = vmatpush1.msra.mxu0 0.0
    %2888 = vmatprep.subr.mxu0 0.0
    %2889 = vmatpush1.msra.mxu0 0.0
    %2890 = vmatprep.subr.mxu0 0.0
    %2891 = vmatpush1.msra.mxu0 0.0
    %2892 = vmatprep.subr.mxu0 0.0
    %2893 = vmatpush1.msra.mxu0 0.0
    %2894 = vmatprep.subr.mxu0 0.0
    %2895 = vmatpush1.msra.mxu0 0.0
    %2896 = vmatprep.subr.mxu0 0.0
    %2897 = vmatpush1.msra.mxu0 0.0
    %2898 = vmatprep.subr.mxu0 0.0
    %2899 = vmatpush1.msra.mxu0 0.0
    %2900 = vmatprep.subr.mxu0 0.0
    %2901 = vmatpush1.msra.mxu0 0.0
    %2902 = vmatprep.subr.mxu0 0.0
    %2903 = vmatpush1.msra.mxu0 0.0
    %2904 = vmatprep.subr.mxu0 0.0
    %2905 = vmatpush1.msra.mxu0 0.0
    %2906 = vmatprep.subr.mxu0 0.0
    %2907 = vmatpush1.msra.mxu0 0.0
    %2908 = vmatprep.subr.mxu0 0.0
    %2909 = vmatpush1.msra.mxu0 0.0
    %2910 = vmatprep.subr.mxu0 0.0
    %2911 = vmatpush1.msra.mxu0 0.0
    %2912 = vmatprep.subr.mxu0 0.0
    %2913 = vmatpush1.msra.mxu0 0.0
    %2914 = vmatprep.subr.mxu0 0.0
    %2915 = vmatpush1.msra.mxu0 0.0
    %2916 = vmatprep.subr.mxu0 0.0
    %2917 = vmatpush1.msra.mxu0 0.0
    %2918 = vmatprep.mubr.f32.mxu0 0.0
    %v2919 = vand.u32 %v600, 4294901760
    %2920 = vmatmul.mubr.f32.gmra.mrb[0].mxu0 %v2919
    %v2921 = vpop.f32.mrb[0].mxu0
    %v2922 = vadd.f32 %v2795, %v2921
    %v2923 = vpop.f32.mrb[0].mxu0
    %2924 = vmatprep.mubr.f32.mxu0 0.0
    %v2925 = vand.u32 %v601, 4294901760
    %2926 = vmatmul.mubr.f32.gmra.mrb[0].mxu0 %v2925
    %v2927 = vpop.f32.mrb[0].mxu0
    %v2928 = vadd.f32 %v2803, %v2927
    %v2929 = vpop.f32.mrb[0].mxu0
    %2930 = vdwg.mxu0
    %2931 = vmatprep.subr.mxu0 0.0
    %v2932 = vand.u32 %v1624, 4294901760
    %2933 = vmatpush1.msra.mxu0 %v2932
    %2934 = vmatprep.subr.mxu0 0.0
    %v2935 = vand.u32 %v1625, 4294901760
    %2936 = vmatpush1.msra.mxu0 %v2935
    %2937 = vmatprep.subr.mxu0 0.0
    %v2938 = vand.u32 %v1626, 4294901760
    %2939 = vmatpush1.msra.mxu0 %v2938
    %2940 = vmatprep.subr.mxu0 0.0
    %v2941 = vand.u32 %v1627, 4294901760
    %2942 = vmatpush1.msra.mxu0 %v2941
    %2943 = vmatprep.subr.mxu0 0.0
    %v2944 = vand.u32 %v1628, 4294901760
    %2945 = vmatpush1.msra.mxu0 %v2944
    %2946 = vmatprep.subr.mxu0 0.0
    %v2947 = vand.u32 %v1629, 4294901760
    %2948 = vmatpush1.msra.mxu0 %v2947
    %2949 = vmatprep.subr.mxu0 0.0
    %v2950 = vand.u32 %v1630, 4294901760
    %2951 = vmatpush1.msra.mxu0 %v2950
    %2952 = vmatprep.subr.mxu0 0.0
    %v2953 = vand.u32 %v1631, 4294901760
    %2954 = vmatpush1.msra.mxu0 %v2953
    %2955 = vmatprep.subr.mxu0 0.0
    %v2956 = vand.u32 %v1632, 4294901760
    %2957 = vmatpush1.msra.mxu0 %v2956
    %2958 = vmatprep.subr.mxu0 0.0
    %v2959 = vand.u32 %v1633, 4294901760
    %2960 = vmatpush1.msra.mxu0 %v2959
    %2961 = vmatprep.subr.mxu0 0.0
    %v2962 = vand.u32 %v1634, 4294901760
    %2963 = vmatpush1.msra.mxu0 %v2962
    %2964 = vmatprep.subr.mxu0 0.0
    %v2965 = vand.u32 %v1635, 4294901760
    %2966 = vmatpush1.msra.mxu0 %v2965
    %2967 = vmatprep.subr.mxu0 0.0
    %v2968 = vand.u32 %v1636, 4294901760
    %2969 = vmatpush1.msra.mxu0 %v2968
    %2970 = vmatprep.subr.mxu0 0.0
    %v2971 = vand.u32 %v1637, 4294901760
    %2972 = vmatpush1.msra.mxu0 %v2971
    %2973 = vmatprep.subr.mxu0 0.0
    %v2974 = vand.u32 %v1638, 4294901760
    %2975 = vmatpush1.msra.mxu0 %v2974
    %2976 = vmatprep.subr.mxu0 0.0
    %v2977 = vand.u32 %v1639, 4294901760
    %2978 = vmatpush1.msra.mxu0 %v2977
    %2979 = vmatprep.subr.mxu0 0.0
    %2980 = vmatpush1.msra.mxu0 0.0
    %2981 = vmatprep.subr.mxu0 0.0
    %2982 = vmatpush1.msra.mxu0 0.0
    %2983 = vmatprep.subr.mxu0 0.0
    %2984 = vmatpush1.msra.mxu0 0.0
    %2985 = vmatprep.subr.mxu0 0.0
    %2986 = vmatpush1.msra.mxu0 0.0
    %2987 = vmatprep.subr.mxu0 0.0
    %2988 = vmatpush1.msra.mxu0 0.0
    %2989 = vmatprep.subr.mxu0 0.0
    %2990 = vmatpush1.msra.mxu0 0.0
    %2991 = vmatprep.subr.mxu0 0.0
    %2992 = vmatpush1.msra.mxu0 0.0
    %2993 = vmatprep.subr.mxu0 0.0
    %2994 = vmatpush1.msra.mxu0 0.0
    %2995 = vmatprep.subr.mxu0 0.0
    %2996 = vmatpush1.msra.mxu0 0.0
    %2997 = vmatprep.subr.mxu0 0.0
    %2998 = vmatpush1.msra.mxu0 0.0
    %2999 = vmatprep.subr.mxu0 0.0
    %3000 = vmatpush1.msra.mxu0 0.0
    %3001 = vmatprep.subr.mxu0 0.0
    %3002 = vmatpush1.msra.mxu0 0.0
    %3003 = vmatprep.subr.mxu0 0.0
    %3004 = vmatpush1.msra.mxu0 0.0
    %3005 = vmatprep.subr.mxu0 0.0
    %3006 = vmatpush1.msra.mxu0 0.0
    %3007 = vmatprep.subr.mxu0 0.0
    %3008 = vmatpush1.msra.mxu0 0.0
    %3009 = vmatprep.subr.mxu0 0.0
    %3010 = vmatpush1.msra.mxu0 0.0
    %3011 = vmatprep.mubr.f32.mxu0 0.0
    %v3012 = vand.u32 %v600, 4294901760
    %3013 = vmatmul.mubr.f32.gmra.mrb[0].mxu0 %v3012
    %v3014 = vpop.f32.mrb[0].mxu0
    %v3015 = vadd.f32 %v2922, %v3014
    %v3016 = vpop.f32.mrb[0].mxu0
    %3017 = vmatprep.mubr.f32.mxu0 0.0
    %v3018 = vand.u32 %v601, 4294901760
    %3019 = vmatmul.mubr.f32.gmra.mrb[0].mxu0 %v3018
    %v3020 = vpop.f32.mrb[0].mxu0
    %v3021 = vadd.f32 %v2928, %v3020
    %v3022 = vpop.f32.mrb[0].mxu0
    %3023 = vdwg.mxu0
    %v3024 = vld [vmem:[#allocation7 + $0x100] sm:$0xff]
    %v3025 = vld [vmem:[#allocation7 + $0x108] sm:$0xff]
    %v3026 = vld [vmem:[#allocation7 + $0x110] sm:$0xff]
    %v3027 = vld [vmem:[#allocation7 + $0x118] sm:$0xff]
    %v3028 = vld [vmem:[#allocation7 + $0x120] sm:$0xff]
    %v3029 = vld [vmem:[#allocation7 + $0x128] sm:$0xff]
    %v3030 = vld [vmem:[#allocation7 + $0x130] sm:$0xff]
    %v3031 = vld [vmem:[#allocation7 + $0x138] sm:$0xff]
    %v3032 = vld [vmem:[#allocation7 + $0x140] sm:$0xff]
    %v3033 = vld [vmem:[#allocation7 + $0x148] sm:$0xff]
    %v3034 = vld [vmem:[#allocation7 + $0x150] sm:$0xff]
    %v3035 = vld [vmem:[#allocation7 + $0x158] sm:$0xff]
    %v3036 = vld [vmem:[#allocation7 + $0x160] sm:$0xff]
    %v3037 = vld [vmem:[#allocation7 + $0x168] sm:$0xff]
    %v3038 = vld [vmem:[#allocation7 + $0x170] sm:$0xff]
    %v3039 = vld [vmem:[#allocation7 + $0x178] sm:$0xff]
    %3040 = vmatprep.subr.mxu0 0.0
    %v3041 = vand.u32 %v3024, 4294901760
    %3042 = vmatpush1.msra.mxu0 %v3041
    %3043 = vmatprep.subr.mxu0 0.0
    %v3044 = vand.u32 %v3025, 4294901760
    %3045 = vmatpush1.msra.mxu0 %v3044
    %3046 = vmatprep.subr.mxu0 0.0
    %v3047 = vand.u32 %v3026, 4294901760
    %3048 = vmatpush1.msra.mxu0 %v3047
    %3049 = vmatprep.subr.mxu0 0.0
    %v3050 = vand.u32 %v3027, 4294901760
    %3051 = vmatpush1.msra.mxu0 %v3050
    %3052 = vmatprep.subr.mxu0 0.0
    %v3053 = vand.u32 %v3028, 4294901760
    %3054 = vmatpush1.msra.mxu0 %v3053
    %3055 = vmatprep.subr.mxu0 0.0
    %v3056 = vand.u32 %v3029, 4294901760
    %3057 = vmatpush1.msra.mxu0 %v3056
    %3058 = vmatprep.subr.mxu0 0.0
    %v3059 = vand.u32 %v3030, 4294901760
    %3060 = vmatpush1.msra.mxu0 %v3059
    %3061 = vmatprep.subr.mxu0 0.0
    %v3062 = vand.u32 %v3031, 4294901760
    %3063 = vmatpush1.msra.mxu0 %v3062
    %3064 = vmatprep.subr.mxu0 0.0
    %v3065 = vand.u32 %v3032, 4294901760
    %3066 = vmatpush1.msra.mxu0 %v3065
    %3067 = vmatprep.subr.mxu0 0.0
    %v3068 = vand.u32 %v3033, 4294901760
    %3069 = vmatpush1.msra.mxu0 %v3068
    %3070 = vmatprep.subr.mxu0 0.0
    %v3071 = vand.u32 %v3034, 4294901760
    %3072 = vmatpush1.msra.mxu0 %v3071
    %3073 = vmatprep.subr.mxu0 0.0
    %v3074 = vand.u32 %v3035, 4294901760
    %3075 = vmatpush1.msra.mxu0 %v3074
    %3076 = vmatprep.subr.mxu0 0.0
    %v3077 = vand.u32 %v3036, 4294901760
    %3078 = vmatpush1.msra.mxu0 %v3077
    %3079 = vmatprep.subr.mxu0 0.0
    %v3080 = vand.u32 %v3037, 4294901760
    %3081 = vmatpush1.msra.mxu0 %v3080
    %3082 = vmatprep.subr.mxu0 0.0
    %v3083 = vand.u32 %v3038, 4294901760
    %3084 = vmatpush1.msra.mxu0 %v3083
    %3085 = vmatprep.subr.mxu0 0.0
    %v3086 = vand.u32 %v3039, 4294901760
    %3087 = vmatpush1.msra.mxu0 %v3086
    %3088 = vmatprep.subr.mxu0 0.0
    %3089 = vmatpush1.msra.mxu0 0.0
    %3090 = vmatprep.subr.mxu0 0.0
    %3091 = vmatpush1.msra.mxu0 0.0
    %3092 = vmatprep.subr.mxu0 0.0
    %3093 = vmatpush1.msra.mxu0 0.0
    %3094 = vmatprep.subr.mxu0 0.0
    %3095 = vmatpush1.msra.mxu0 0.0
    %3096 = vmatprep.subr.mxu0 0.0
    %3097 = vmatpush1.msra.mxu0 0.0
    %3098 = vmatprep.subr.mxu0 0.0
    %3099 = vmatpush1.msra.mxu0 0.0
    %3100 = vmatprep.subr.mxu0 0.0
    %3101 = vmatpush1.msra.mxu0 0.0
    %3102 = vmatprep.subr.mxu0 0.0
    %3103 = vmatpush1.msra.mxu0 0.0
    %3104 = vmatprep.subr.mxu0 0.0
    %3105 = vmatpush1.msra.mxu0 0.0
    %3106 = vmatprep.subr.mxu0 0.0
    %3107 = vmatpush1.msra.mxu0 0.0
    %3108 = vmatprep.subr.mxu0 0.0
    %3109 = vmatpush1.msra.mxu0 0.0
    %3110 = vmatprep.subr.mxu0 0.0
    %3111 = vmatpush1.msra.mxu0 0.0
    %3112 = vmatprep.subr.mxu0 0.0
    %3113 = vmatpush1.msra.mxu0 0.0
    %3114 = vmatprep.subr.mxu0 0.0
    %3115 = vmatpush1.msra.mxu0 0.0
    %3116 = vmatprep.subr.mxu0 0.0
    %3117 = vmatpush1.msra.mxu0 0.0
    %3118 = vmatprep.subr.mxu0 0.0
    %3119 = vmatpush1.msra.mxu0 0.0
    %3120 = vmatprep.mubr.f32.mxu0 0.0
    %v3121 = vand.u32 %v1622, 4294901760
    %v3122 = vsub.f32 %v1622, %v3121
    %v3123 = vand.u32 %v3122, 4294901760
    %v3124 = vsub.f32 %v3122, %v3123
    %v3125 = vand.u32 %v3124, 4294901760
    %3126 = vmatmul.mubr.f32.gmra.mrb[0].mxu0 %v3125
    %v3127 = vpop.f32.mrb[0].mxu0
    %v3128 = vadd.f32 0.0, %v3127
    %v3129 = vpop.f32.mrb[0].mxu0
    %3130 = vmatprep.mubr.f32.mxu0 0.0
    %v3131 = vand.u32 %v1623, 4294901760
    %v3132 = vsub.f32 %v1623, %v3131
    %v3133 = vand.u32 %v3132, 4294901760
    %v3134 = vsub.f32 %v3132, %v3133
    %v3135 = vand.u32 %v3134, 4294901760
    %3136 = vmatmul.mubr.f32.gmra.mrb[0].mxu0 %v3135
    %v3137 = vpop.f32.mrb[0].mxu0
    %v3138 = vadd.f32 0.0, %v3137
    %v3139 = vpop.f32.mrb[0].mxu0
    %3140 = vdwg.mxu0
    %3141 = vmatprep.subr.mxu0 0.0
    %v3142 = vand.u32 %v3024, 4294901760
    %v3143 = vsub.f32 %v3024, %v3142
    %v3144 = vand.u32 %v3143, 4294901760
    %v3145 = vsub.f32 %v3143, %v3144
    %v3146 = vand.u32 %v3145, 4294901760
    %3147 = vmatpush1.msra.mxu0 %v3146
    %3148 = vmatprep.subr.mxu0 0.0
    %v3149 = vand.u32 %v3025, 4294901760
    %v3150 = vsub.f32 %v3025, %v3149
    %v3151 = vand.u32 %v3150, 4294901760
    %v3152 = vsub.f32 %v3150, %v3151
    %v3153 = vand.u32 %v3152, 4294901760
    %3154 = vmatpush1.msra.mxu0 %v3153
    %3155 = vmatprep.subr.mxu0 0.0
    %v3156 = vand.u32 %v3026, 4294901760
    %v3157 = vsub.f32 %v3026, %v3156
    %v3158 = vand.u32 %v3157, 4294901760
    %v3159 = vsub.f32 %v3157, %v3158
    %v3160 = vand.u32 %v3159, 4294901760
    %3161 = vmatpush1.msra.mxu0 %v3160
    %3162 = vmatprep.subr.mxu0 0.0
    %v3163 = vand.u32 %v3027, 4294901760
    %v3164 = vsub.f32 %v3027, %v3163
    %v3165 = vand.u32 %v3164, 4294901760
    %v3166 = vsub.f32 %v3164, %v3165
    %v3167 = vand.u32 %v3166, 4294901760
    %3168 = vmatpush1.msra.mxu0 %v3167
    %3169 = vmatprep.subr.mxu0 0.0
    %v3170 = vand.u32 %v3028, 4294901760
    %v3171 = vsub.f32 %v3028, %v3170
    %v3172 = vand.u32 %v3171, 4294901760
    %v3173 = vsub.f32 %v3171, %v3172
    %v3174 = vand.u32 %v3173, 4294901760
    %3175 = vmatpush1.msra.mxu0 %v3174
    %3176 = vmatprep.subr.mxu0 0.0
    %v3177 = vand.u32 %v3029, 4294901760
    %v3178 = vsub.f32 %v3029, %v3177
    %v3179 = vand.u32 %v3178, 4294901760
    %v3180 = vsub.f32 %v3178, %v3179
    %v3181 = vand.u32 %v3180, 4294901760
    %3182 = vmatpush1.msra.mxu0 %v3181
    %3183 = vmatprep.subr.mxu0 0.0
    %v3184 = vand.u32 %v3030, 4294901760
    %v3185 = vsub.f32 %v3030, %v3184
    %v3186 = vand.u32 %v3185, 4294901760
    %v3187 = vsub.f32 %v3185, %v3186
    %v3188 = vand.u32 %v3187, 4294901760
    %3189 = vmatpush1.msra.mxu0 %v3188
    %3190 = vmatprep.subr.mxu0 0.0
    %v3191 = vand.u32 %v3031, 4294901760
    %v3192 = vsub.f32 %v3031, %v3191
    %v3193 = vand.u32 %v3192, 4294901760
    %v3194 = vsub.f32 %v3192, %v3193
    %v3195 = vand.u32 %v3194, 4294901760
    %3196 = vmatpush1.msra.mxu0 %v3195
    %3197 = vmatprep.subr.mxu0 0.0
    %v3198 = vand.u32 %v3032, 4294901760
    %v3199 = vsub.f32 %v3032, %v3198
    %v3200 = vand.u32 %v3199, 4294901760
    %v3201 = vsub.f32 %v3199, %v3200
    %v3202 = vand.u32 %v3201, 4294901760
    %3203 = vmatpush1.msra.mxu0 %v3202
    %3204 = vmatprep.subr.mxu0 0.0
    %v3205 = vand.u32 %v3033, 4294901760
    %v3206 = vsub.f32 %v3033, %v3205
    %v3207 = vand.u32 %v3206, 4294901760
    %v3208 = vsub.f32 %v3206, %v3207
    %v3209 = vand.u32 %v3208, 4294901760
    %3210 = vmatpush1.msra.mxu0 %v3209
    %3211 = vmatprep.subr.mxu0 0.0
    %v3212 = vand.u32 %v3034, 4294901760
    %v3213 = vsub.f32 %v3034, %v3212
    %v3214 = vand.u32 %v3213, 4294901760
    %v3215 = vsub.f32 %v3213, %v3214
    %v3216 = vand.u32 %v3215, 4294901760
    %3217 = vmatpush1.msra.mxu0 %v3216
    %3218 = vmatprep.subr.mxu0 0.0
    %v3219 = vand.u32 %v3035, 4294901760
    %v3220 = vsub.f32 %v3035, %v3219
    %v3221 = vand.u32 %v3220, 4294901760
    %v3222 = vsub.f32 %v3220, %v3221
    %v3223 = vand.u32 %v3222, 4294901760
    %3224 = vmatpush1.msra.mxu0 %v3223
    %3225 = vmatprep.subr.mxu0 0.0
    %v3226 = vand.u32 %v3036, 4294901760
    %v3227 = vsub.f32 %v3036, %v3226
    %v3228 = vand.u32 %v3227, 4294901760
    %v3229 = vsub.f32 %v3227, %v3228
    %v3230 = vand.u32 %v3229, 4294901760
    %3231 = vmatpush1.msra.mxu0 %v3230
    %3232 = vmatprep.subr.mxu0 0.0
    %v3233 = vand.u32 %v3037, 4294901760
    %v3234 = vsub.f32 %v3037, %v3233
    %v3235 = vand.u32 %v3234, 4294901760
    %v3236 = vsub.f32 %v3234, %v3235
    %v3237 = vand.u32 %v3236, 4294901760
    %3238 = vmatpush1.msra.mxu0 %v3237
    %3239 = vmatprep.subr.mxu0 0.0
    %v3240 = vand.u32 %v3038, 4294901760
    %v3241 = vsub.f32 %v3038, %v3240
    %v3242 = vand.u32 %v3241, 4294901760
    %v3243 = vsub.f32 %v3241, %v3242
    %v3244 = vand.u32 %v3243, 4294901760
    %3245 = vmatpush1.msra.mxu0 %v3244
    %3246 = vmatprep.subr.mxu0 0.0
    %v3247 = vand.u32 %v3039, 4294901760
    %v3248 = vsub.f32 %v3039, %v3247
    %v3249 = vand.u32 %v3248, 4294901760
    %v3250 = vsub.f32 %v3248, %v3249
    %v3251 = vand.u32 %v3250, 4294901760
    %3252 = vmatpush1.msra.mxu0 %v3251
    %3253 = vmatprep.subr.mxu0 0.0
    %3254 = vmatpush1.msra.mxu0 0.0
    %3255 = vmatprep.subr.mxu0 0.0
    %3256 = vmatpush1.msra.mxu0 0.0
    %3257 = vmatprep.subr.mxu0 0.0
    %3258 = vmatpush1.msra.mxu0 0.0
    %3259 = vmatprep.subr.mxu0 0.0
    %3260 = vmatpush1.msra.mxu0 0.0
    %3261 = vmatprep.subr.mxu0 0.0
    %3262 = vmatpush1.msra.mxu0 0.0
    %3263 = vmatprep.subr.mxu0 0.0
    %3264 = vmatpush1.msra.mxu0 0.0
    %3265 = vmatprep.subr.mxu0 0.0
    %3266 = vmatpush1.msra.mxu0 0.0
    %3267 = vmatprep.subr.mxu0 0.0
    %3268 = vmatpush1.msra.mxu0 0.0
    %3269 = vmatprep.subr.mxu0 0.0
    %3270 = vmatpush1.msra.mxu0 0.0
    %3271 = vmatprep.subr.mxu0 0.0
    %3272 = vmatpush1.msra.mxu0 0.0
    %3273 = vmatprep.subr.mxu0 0.0
    %3274 = vmatpush1.msra.mxu0 0.0
    %3275 = vmatprep.subr.mxu0 0.0
    %3276 = vmatpush1.msra.mxu0 0.0
    %3277 = vmatprep.subr.mxu0 0.0
    %3278 = vmatpush1.msra.mxu0 0.0
    %3279 = vmatprep.subr.mxu0 0.0
    %3280 = vmatpush1.msra.mxu0 0.0
    %3281 = vmatprep.subr.mxu0 0.0
    %3282 = vmatpush1.msra.mxu0 0.0
    %3283 = vmatprep.subr.mxu0 0.0
    %3284 = vmatpush1.msra.mxu0 0.0
    %3285 = vmatprep.mubr.f32.mxu0 0.0
    %v3286 = vand.u32 %v1622, 4294901760
    %3287 = vmatmul.mubr.f32.gmra.mrb[0].mxu0 %v3286
    %v3288 = vpop.f32.mrb[0].mxu0
    %v3289 = vadd.f32 %v3128, %v3288
    %v3290 = vpop.f32.mrb[0].mxu0
    %3291 = vmatprep.mubr.f32.mxu0 0.0
    %v3292 = vand.u32 %v1623, 4294901760
    %3293 = vmatmul.mubr.f32.gmra.mrb[0].mxu0 %v3292
    %v3294 = vpop.f32.mrb[0].mxu0
    %v3295 = vadd.f32 %v3138, %v3294
    %v3296 = vpop.f32.mrb[0].mxu0
    %3297 = vdwg.mxu0
    %3298 = vmatprep.subr.mxu0 0.0
    %v3299 = vand.u32 %v3024, 4294901760
    %v3300 = vsub.f32 %v3024, %v3299
    %3301 = vmatpush1.msra.mxu0 %v3300
    %3302 = vmatprep.subr.mxu0 0.0
    %v3303 = vand.u32 %v3025, 4294901760
    %v3304 = vsub.f32 %v3025, %v3303
    %3305 = vmatpush1.msra.mxu0 %v3304
    %3306 = vmatprep.subr.mxu0 0.0
    %v3307 = vand.u32 %v3026, 4294901760
    %v3308 = vsub.f32 %v3026, %v3307
    %3309 = vmatpush1.msra.mxu0 %v3308
    %3310 = vmatprep.subr.mxu0 0.0
    %v3311 = vand.u32 %v3027, 4294901760
    %v3312 = vsub.f32 %v3027, %v3311
    %3313 = vmatpush1.msra.mxu0 %v3312
    %3314 = vmatprep.subr.mxu0 0.0
    %v3315 = vand.u32 %v3028, 4294901760
    %v3316 = vsub.f32 %v3028, %v3315
    %3317 = vmatpush1.msra.mxu0 %v3316
    %3318 = vmatprep.subr.mxu0 0.0
    %v3319 = vand.u32 %v3029, 4294901760
    %v3320 = vsub.f32 %v3029, %v3319
    %3321 = vmatpush1.msra.mxu0 %v3320
    %3322 = vmatprep.subr.mxu0 0.0
    %v3323 = vand.u32 %v3030, 4294901760
    %v3324 = vsub.f32 %v3030, %v3323
    %3325 = vmatpush1.msra.mxu0 %v3324
    %3326 = vmatprep.subr.mxu0 0.0
    %v3327 = vand.u32 %v3031, 4294901760
    %v3328 = vsub.f32 %v3031, %v3327
    %3329 = vmatpush1.msra.mxu0 %v3328
    %3330 = vmatprep.subr.mxu0 0.0
    %v3331 = vand.u32 %v3032, 4294901760
    %v3332 = vsub.f32 %v3032, %v3331
    %3333 = vmatpush1.msra.mxu0 %v3332
    %3334 = vmatprep.subr.mxu0 0.0
    %v3335 = vand.u32 %v3033, 4294901760
    %v3336 = vsub.f32 %v3033, %v3335
    %3337 = vmatpush1.msra.mxu0 %v3336
    %3338 = vmatprep.subr.mxu0 0.0
    %v3339 = vand.u32 %v3034, 4294901760
    %v3340 = vsub.f32 %v3034, %v3339
    %3341 = vmatpush1.msra.mxu0 %v3340
    %3342 = vmatprep.subr.mxu0 0.0
    %v3343 = vand.u32 %v3035, 4294901760
    %v3344 = vsub.f32 %v3035, %v3343
    %3345 = vmatpush1.msra.mxu0 %v3344
    %3346 = vmatprep.subr.mxu0 0.0
    %v3347 = vand.u32 %v3036, 4294901760
    %v3348 = vsub.f32 %v3036, %v3347
    %3349 = vmatpush1.msra.mxu0 %v3348
    %3350 = vmatprep.subr.mxu0 0.0
    %v3351 = vand.u32 %v3037, 4294901760
    %v3352 = vsub.f32 %v3037, %v3351
    %3353 = vmatpush1.msra.mxu0 %v3352
    %3354 = vmatprep.subr.mxu0 0.0
    %v3355 = vand.u32 %v3038, 4294901760
    %v3356 = vsub.f32 %v3038, %v3355
    %3357 = vmatpush1.msra.mxu0 %v3356
    %3358 = vmatprep.subr.mxu0 0.0
    %v3359 = vand.u32 %v3039, 4294901760
    %v3360 = vsub.f32 %v3039, %v3359
    %3361 = vmatpush1.msra.mxu0 %v3360
    %3362 = vmatprep.subr.mxu0 0.0
    %3363 = vmatpush1.msra.mxu0 0.0
    %3364 = vmatprep.subr.mxu0 0.0
    %3365 = vmatpush1.msra.mxu0 0.0
    %3366 = vmatprep.subr.mxu0 0.0
    %3367 = vmatpush1.msra.mxu0 0.0
    %3368 = vmatprep.subr.mxu0 0.0
    %3369 = vmatpush1.msra.mxu0 0.0
    %3370 = vmatprep.subr.mxu0 0.0
    %3371 = vmatpush1.msra.mxu0 0.0
    %3372 = vmatprep.subr.mxu0 0.0
    %3373 = vmatpush1.msra.mxu0 0.0
    %3374 = vmatprep.subr.mxu0 0.0
    %3375 = vmatpush1.msra.mxu0 0.0
    %3376 = vmatprep.subr.mxu0 0.0
    %3377 = vmatpush1.msra.mxu0 0.0
    %3378 = vmatprep.subr.mxu0 0.0
    %3379 = vmatpush1.msra.mxu0 0.0
    %3380 = vmatprep.subr.mxu0 0.0
    %3381 = vmatpush1.msra.mxu0 0.0
    %3382 = vmatprep.subr.mxu0 0.0
    %3383 = vmatpush1.msra.mxu0 0.0
    %3384 = vmatprep.subr.mxu0 0.0
    %3385 = vmatpush1.msra.mxu0 0.0
    %3386 = vmatprep.subr.mxu0 0.0
    %3387 = vmatpush1.msra.mxu0 0.0
    %3388 = vmatprep.subr.mxu0 0.0
    %3389 = vmatpush1.msra.mxu0 0.0
    %3390 = vmatprep.subr.mxu0 0.0
    %3391 = vmatpush1.msra.mxu0 0.0
    %3392 = vmatprep.subr.mxu0 0.0
    %3393 = vmatpush1.msra.mxu0 0.0
    %3394 = vmatprep.mubr.f32.mxu0 0.0
    %v3395 = vand.u32 %v1622, 4294901760
    %v3396 = vsub.f32 %v1622, %v3395
    %3397 = vmatmul.mubr.f32.gmra.mrb[0].mxu0 %v3396
    %v3398 = vpop.f32.mrb[0].mxu0
    %v3399 = vadd.f32 %v3289, %v3398
    %v3400 = vpop.f32.mrb[0].mxu0
    %3401 = vmatprep.mubr.f32.mxu0 0.0
    %v3402 = vand.u32 %v1623, 4294901760
    %v3403 = vsub.f32 %v1623, %v3402
    %3404 = vmatmul.mubr.f32.gmra.mrb[0].mxu0 %v3403
    %v3405 = vpop.f32.mrb[0].mxu0
    %v3406 = vadd.f32 %v3295, %v3405
    %v3407 = vpop.f32.mrb[0].mxu0
    %3408 = vdwg.mxu0
    %3409 = vmatprep.subr.mxu0 0.0
    %v3410 = vand.u32 %v3024, 4294901760
    %3411 = vmatpush1.msra.mxu0 %v3410
    %3412 = vmatprep.subr.mxu0 0.0
    %v3413 = vand.u32 %v3025, 4294901760
    %3414 = vmatpush1.msra.mxu0 %v3413
    %3415 = vmatprep.subr.mxu0 0.0
    %v3416 = vand.u32 %v3026, 4294901760
    %3417 = vmatpush1.msra.mxu0 %v3416
    %3418 = vmatprep.subr.mxu0 0.0
    %v3419 = vand.u32 %v3027, 4294901760
    %3420 = vmatpush1.msra.mxu0 %v3419
    %3421 = vmatprep.subr.mxu0 0.0
    %v3422 = vand.u32 %v3028, 4294901760
    %3423 = vmatpush1.msra.mxu0 %v3422
    %3424 = vmatprep.subr.mxu0 0.0
    %v3425 = vand.u32 %v3029, 4294901760
    %3426 = vmatpush1.msra.mxu0 %v3425
    %3427 = vmatprep.subr.mxu0 0.0
    %v3428 = vand.u32 %v3030, 4294901760
    %3429 = vmatpush1.msra.mxu0 %v3428
    %3430 = vmatprep.subr.mxu0 0.0
    %v3431 = vand.u32 %v3031, 4294901760
    %3432 = vmatpush1.msra.mxu0 %v3431
    %3433 = vmatprep.subr.mxu0 0.0
    %v3434 = vand.u32 %v3032, 4294901760
    %3435 = vmatpush1.msra.mxu0 %v3434
    %3436 = vmatprep.subr.mxu0 0.0
    %v3437 = vand.u32 %v3033, 4294901760
    %3438 = vmatpush1.msra.mxu0 %v3437
    %3439 = vmatprep.subr.mxu0 0.0
    %v3440 = vand.u32 %v3034, 4294901760
    %3441 = vmatpush1.msra.mxu0 %v3440
    %3442 = vmatprep.subr.mxu0 0.0
    %v3443 = vand.u32 %v3035, 4294901760
    %3444 = vmatpush1.msra.mxu0 %v3443
    %3445 = vmatprep.subr.mxu0 0.0
    %v3446 = vand.u32 %v3036, 4294901760
    %3447 = vmatpush1.msra.mxu0 %v3446
    %3448 = vmatprep.subr.mxu0 0.0
    %v3449 = vand.u32 %v3037, 4294901760
    %3450 = vmatpush1.msra.mxu0 %v3449
    %3451 = vmatprep.subr.mxu0 0.0
    %v3452 = vand.u32 %v3038, 4294901760
    %3453 = vmatpush1.msra.mxu0 %v3452
    %3454 = vmatprep.subr.mxu0 0.0
    %v3455 = vand.u32 %v3039, 4294901760
    %3456 = vmatpush1.msra.mxu0 %v3455
    %3457 = vmatprep.subr.mxu0 0.0
    %3458 = vmatpush1.msra.mxu0 0.0
    %3459 = vmatprep.subr.mxu0 0.0
    %3460 = vmatpush1.msra.mxu0 0.0
    %3461 = vmatprep.subr.mxu0 0.0
    %3462 = vmatpush1.msra.mxu0 0.0
    %3463 = vmatprep.subr.mxu0 0.0
    %3464 = vmatpush1.msra.mxu0 0.0
    %3465 = vmatprep.subr.mxu0 0.0
    %3466 = vmatpush1.msra.mxu0 0.0
    %3467 = vmatprep.subr.mxu0 0.0
    %3468 = vmatpush1.msra.mxu0 0.0
    %3469 = vmatprep.subr.mxu0 0.0
    %3470 = vmatpush1.msra.mxu0 0.0
    %3471 = vmatprep.subr.mxu0 0.0
    %3472 = vmatpush1.msra.mxu0 0.0
    %3473 = vmatprep.subr.mxu0 0.0
    %3474 = vmatpush1.msra.mxu0 0.0
    %3475 = vmatprep.subr.mxu0 0.0
    %3476 = vmatpush1.msra.mxu0 0.0
    %3477 = vmatprep.subr.mxu0 0.0
    %3478 = vmatpush1.msra.mxu0 0.0
    %3479 = vmatprep.subr.mxu0 0.0
    %3480 = vmatpush1.msra.mxu0 0.0
    %3481 = vmatprep.subr.mxu0 0.0
    %3482 = vmatpush1.msra.mxu0 0.0
    %3483 = vmatprep.subr.mxu0 0.0
    %3484 = vmatpush1.msra.mxu0 0.0
    %3485 = vmatprep.subr.mxu0 0.0
    %3486 = vmatpush1.msra.mxu0 0.0
    %3487 = vmatprep.subr.mxu0 0.0
    %3488 = vmatpush1.msra.mxu0 0.0
    %3489 = vmatprep.mubr.f32.mxu0 0.0
    %v3490 = vand.u32 %v1622, 4294901760
    %v3491 = vsub.f32 %v1622, %v3490
    %v3492 = vand.u32 %v3491, 4294901760
    %3493 = vmatmul.mubr.f32.gmra.mrb[0].mxu0 %v3492
    %v3494 = vpop.f32.mrb[0].mxu0
    %v3495 = vadd.f32 %v3399, %v3494
    %v3496 = vpop.f32.mrb[0].mxu0
    %3497 = vmatprep.mubr.f32.mxu0 0.0
    %v3498 = vand.u32 %v1623, 4294901760
    %v3499 = vsub.f32 %v1623, %v3498
    %v3500 = vand.u32 %v3499, 4294901760
    %3501 = vmatmul.mubr.f32.gmra.mrb[0].mxu0 %v3500
    %v3502 = vpop.f32.mrb[0].mxu0
    %v3503 = vadd.f32 %v3406, %v3502
    %v3504 = vpop.f32.mrb[0].mxu0
    %3505 = vdwg.mxu0
    %3506 = vmatprep.subr.mxu0 0.0
    %v3507 = vand.u32 %v3024, 4294901760
    %v3508 = vsub.f32 %v3024, %v3507
    %v3509 = vand.u32 %v3508, 4294901760
    %3510 = vmatpush1.msra.mxu0 %v3509
    %3511 = vmatprep.subr.mxu0 0.0
    %v3512 = vand.u32 %v3025, 4294901760
    %v3513 = vsub.f32 %v3025, %v3512
    %v3514 = vand.u32 %v3513, 4294901760
    %3515 = vmatpush1.msra.mxu0 %v3514
    %3516 = vmatprep.subr.mxu0 0.0
    %v3517 = vand.u32 %v3026, 4294901760
    %v3518 = vsub.f32 %v3026, %v3517
    %v3519 = vand.u32 %v3518, 4294901760
    %3520 = vmatpush1.msra.mxu0 %v3519
    %3521 = vmatprep.subr.mxu0 0.0
    %v3522 = vand.u32 %v3027, 4294901760
    %v3523 = vsub.f32 %v3027, %v3522
    %v3524 = vand.u32 %v3523, 4294901760
    %3525 = vmatpush1.msra.mxu0 %v3524
    %3526 = vmatprep.subr.mxu0 0.0
    %v3527 = vand.u32 %v3028, 4294901760
    %v3528 = vsub.f32 %v3028, %v3527
    %v3529 = vand.u32 %v3528, 4294901760
    %3530 = vmatpush1.msra.mxu0 %v3529
    %3531 = vmatprep.subr.mxu0 0.0
    %v3532 = vand.u32 %v3029, 4294901760
    %v3533 = vsub.f32 %v3029, %v3532
    %v3534 = vand.u32 %v3533, 4294901760
    %3535 = vmatpush1.msra.mxu0 %v3534
    %3536 = vmatprep.subr.mxu0 0.0
    %v3537 = vand.u32 %v3030, 4294901760
    %v3538 = vsub.f32 %v3030, %v3537
    %v3539 = vand.u32 %v3538, 4294901760
    %3540 = vmatpush1.msra.mxu0 %v3539
    %3541 = vmatprep.subr.mxu0 0.0
    %v3542 = vand.u32 %v3031, 4294901760
    %v3543 = vsub.f32 %v3031, %v3542
    %v3544 = vand.u32 %v3543, 4294901760
    %3545 = vmatpush1.msra.mxu0 %v3544
    %3546 = vmatprep.subr.mxu0 0.0
    %v3547 = vand.u32 %v3032, 4294901760
    %v3548 = vsub.f32 %v3032, %v3547
    %v3549 = vand.u32 %v3548, 4294901760
    %3550 = vmatpush1.msra.mxu0 %v3549
    %3551 = vmatprep.subr.mxu0 0.0
    %v3552 = vand.u32 %v3033, 4294901760
    %v3553 = vsub.f32 %v3033, %v3552
    %v3554 = vand.u32 %v3553, 4294901760
    %3555 = vmatpush1.msra.mxu0 %v3554
    %3556 = vmatprep.subr.mxu0 0.0
    %v3557 = vand.u32 %v3034, 4294901760
    %v3558 = vsub.f32 %v3034, %v3557
    %v3559 = vand.u32 %v3558, 4294901760
    %3560 = vmatpush1.msra.mxu0 %v3559
    %3561 = vmatprep.subr.mxu0 0.0
    %v3562 = vand.u32 %v3035, 4294901760
    %v3563 = vsub.f32 %v3035, %v3562
    %v3564 = vand.u32 %v3563, 4294901760
    %3565 = vmatpush1.msra.mxu0 %v3564
    %3566 = vmatprep.subr.mxu0 0.0
    %v3567 = vand.u32 %v3036, 4294901760
    %v3568 = vsub.f32 %v3036, %v3567
    %v3569 = vand.u32 %v3568, 4294901760
    %3570 = vmatpush1.msra.mxu0 %v3569
    %3571 = vmatprep.subr.mxu0 0.0
    %v3572 = vand.u32 %v3037, 4294901760
    %v3573 = vsub.f32 %v3037, %v3572
    %v3574 = vand.u32 %v3573, 4294901760
    %3575 = vmatpush1.msra.mxu0 %v3574
    %3576 = vmatprep.subr.mxu0 0.0
    %v3577 = vand.u32 %v3038, 4294901760
    %v3578 = vsub.f32 %v3038, %v3577
    %v3579 = vand.u32 %v3578, 4294901760
    %3580 = vmatpush1.msra.mxu0 %v3579
    %3581 = vmatprep.subr.mxu0 0.0
    %v3582 = vand.u32 %v3039, 4294901760
    %v3583 = vsub.f32 %v3039, %v3582
    %v3584 = vand.u32 %v3583, 4294901760
    %3585 = vmatpush1.msra.mxu0 %v3584
    %3586 = vmatprep.subr.mxu0 0.0
    %3587 = vmatpush1.msra.mxu0 0.0
    %3588 = vmatprep.subr.mxu0 0.0
    %3589 = vmatpush1.msra.mxu0 0.0
    %3590 = vmatprep.subr.mxu0 0.0
    %3591 = vmatpush1.msra.mxu0 0.0
    %3592 = vmatprep.subr.mxu0 0.0
    %3593 = vmatpush1.msra.mxu0 0.0
    %3594 = vmatprep.subr.mxu0 0.0
    %3595 = vmatpush1.msra.mxu0 0.0
    %3596 = vmatprep.subr.mxu0 0.0
    %3597 = vmatpush1.msra.mxu0 0.0
    %3598 = vmatprep.subr.mxu0 0.0
    %3599 = vmatpush1.msra.mxu0 0.0
    %3600 = vmatprep.subr.mxu0 0.0
    %3601 = vmatpush1.msra.mxu0 0.0
    %3602 = vmatprep.subr.mxu0 0.0
    %3603 = vmatpush1.msra.mxu0 0.0
    %3604 = vmatprep.subr.mxu0 0.0
    %3605 = vmatpush1.msra.mxu0 0.0
    %3606 = vmatprep.subr.mxu0 0.0
    %3607 = vmatpush1.msra.mxu0 0.0
    %3608 = vmatprep.subr.mxu0 0.0
    %3609 = vmatpush1.msra.mxu0 0.0
    %3610 = vmatprep.subr.mxu0 0.0
    %3611 = vmatpush1.msra.mxu0 0.0
    %3612 = vmatprep.subr.mxu0 0.0
    %3613 = vmatpush1.msra.mxu0 0.0
    %3614 = vmatprep.subr.mxu0 0.0
    %3615 = vmatpush1.msra.mxu0 0.0
    %3616 = vmatprep.subr.mxu0 0.0
    %3617 = vmatpush1.msra.mxu0 0.0
    %3618 = vmatprep.mubr.f32.mxu0 0.0
    %v3619 = vand.u32 %v1622, 4294901760
    %3620 = vmatmul.mubr.f32.gmra.mrb[0].mxu0 %v3619
    %v3621 = vpop.f32.mrb[0].mxu0
    %v3622 = vadd.f32 %v3495, %v3621
    %v3623 = vpop.f32.mrb[0].mxu0
    %3624 = vmatprep.mubr.f32.mxu0 0.0
    %v3625 = vand.u32 %v1623, 4294901760
    %3626 = vmatmul.mubr.f32.gmra.mrb[0].mxu0 %v3625
    %v3627 = vpop.f32.mrb[0].mxu0
    %v3628 = vadd.f32 %v3503, %v3627
    %v3629 = vpop.f32.mrb[0].mxu0
    %3630 = vdwg.mxu0
    %3631 = vmatprep.subr.mxu0 0.0
    %v3632 = vand.u32 %v3024, 4294901760
    %3633 = vmatpush1.msra.mxu0 %v3632
    %3634 = vmatprep.subr.mxu0 0.0
    %v3635 = vand.u32 %v3025, 4294901760
    %3636 = vmatpush1.msra.mxu0 %v3635
    %3637 = vmatprep.subr.mxu0 0.0
    %v3638 = vand.u32 %v3026, 4294901760
    %3639 = vmatpush1.msra.mxu0 %v3638
    %3640 = vmatprep.subr.mxu0 0.0
    %v3641 = vand.u32 %v3027, 4294901760
    %3642 = vmatpush1.msra.mxu0 %v3641
    %3643 = vmatprep.subr.mxu0 0.0
    %v3644 = vand.u32 %v3028, 4294901760
    %3645 = vmatpush1.msra.mxu0 %v3644
    %3646 = vmatprep.subr.mxu0 0.0
    %v3647 = vand.u32 %v3029, 4294901760
    %3648 = vmatpush1.msra.mxu0 %v3647
    %3649 = vmatprep.subr.mxu0 0.0
    %v3650 = vand.u32 %v3030, 4294901760
    %3651 = vmatpush1.msra.mxu0 %v3650
    %3652 = vmatprep.subr.mxu0 0.0
    %v3653 = vand.u32 %v3031, 4294901760
    %3654 = vmatpush1.msra.mxu0 %v3653
    %3655 = vmatprep.subr.mxu0 0.0
    %v3656 = vand.u32 %v3032, 4294901760
    %3657 = vmatpush1.msra.mxu0 %v3656
    %3658 = vmatprep.subr.mxu0 0.0
    %v3659 = vand.u32 %v3033, 4294901760
    %3660 = vmatpush1.msra.mxu0 %v3659
    %3661 = vmatprep.subr.mxu0 0.0
    %v3662 = vand.u32 %v3034, 4294901760
    %3663 = vmatpush1.msra.mxu0 %v3662
    %3664 = vmatprep.subr.mxu0 0.0
    %v3665 = vand.u32 %v3035, 4294901760
    %3666 = vmatpush1.msra.mxu0 %v3665
    %3667 = vmatprep.subr.mxu0 0.0
    %v3668 = vand.u32 %v3036, 4294901760
    %3669 = vmatpush1.msra.mxu0 %v3668
    %3670 = vmatprep.subr.mxu0 0.0
    %v3671 = vand.u32 %v3037, 4294901760
    %3672 = vmatpush1.msra.mxu0 %v3671
    %3673 = vmatprep.subr.mxu0 0.0
    %v3674 = vand.u32 %v3038, 4294901760
    %3675 = vmatpush1.msra.mxu0 %v3674
    %3676 = vmatprep.subr.mxu0 0.0
    %v3677 = vand.u32 %v3039, 4294901760
    %3678 = vmatpush1.msra.mxu0 %v3677
    %3679 = vmatprep.subr.mxu0 0.0
    %3680 = vmatpush1.msra.mxu0 0.0
    %3681 = vmatprep.subr.mxu0 0.0
    %3682 = vmatpush1.msra.mxu0 0.0
    %3683 = vmatprep.subr.mxu0 0.0
    %3684 = vmatpush1.msra.mxu0 0.0
    %3685 = vmatprep.subr.mxu0 0.0
    %3686 = vmatpush1.msra.mxu0 0.0
    %3687 = vmatprep.subr.mxu0 0.0
    %3688 = vmatpush1.msra.mxu0 0.0
    %3689 = vmatprep.subr.mxu0 0.0
    %3690 = vmatpush1.msra.mxu0 0.0
    %3691 = vmatprep.subr.mxu0 0.0
    %3692 = vmatpush1.msra.mxu0 0.0
    %3693 = vmatprep.subr.mxu0 0.0
    %3694 = vmatpush1.msra.mxu0 0.0
    %3695 = vmatprep.subr.mxu0 0.0
    %3696 = vmatpush1.msra.mxu0 0.0
    %3697 = vmatprep.subr.mxu0 0.0
    %3698 = vmatpush1.msra.mxu0 0.0
    %3699 = vmatprep.subr.mxu0 0.0
    %3700 = vmatpush1.msra.mxu0 0.0
    %3701 = vmatprep.subr.mxu0 0.0
    %3702 = vmatpush1.msra.mxu0 0.0
    %3703 = vmatprep.subr.mxu0 0.0
    %3704 = vmatpush1.msra.mxu0 0.0
    %3705 = vmatprep.subr.mxu0 0.0
    %3706 = vmatpush1.msra.mxu0 0.0
    %3707 = vmatprep.subr.mxu0 0.0
    %3708 = vmatpush1.msra.mxu0 0.0
    %3709 = vmatprep.subr.mxu0 0.0
    %3710 = vmatpush1.msra.mxu0 0.0
    %3711 = vmatprep.mubr.f32.mxu0 0.0
    %v3712 = vand.u32 %v1622, 4294901760
    %3713 = vmatmul.mubr.f32.gmra.mrb[0].mxu0 %v3712
    %v3714 = vpop.f32.mrb[0].mxu0
    %v3715 = vadd.f32 %v3622, %v3714
    %v3716 = vpop.f32.mrb[0].mxu0
    %3717 = vmatprep.mubr.f32.mxu0 0.0
    %v3718 = vand.u32 %v1623, 4294901760
    %3719 = vmatmul.mubr.f32.gmra.mrb[0].mxu0 %v3718
    %v3720 = vpop.f32.mrb[0].mxu0
    %v3721 = vadd.f32 %v3628, %v3720
    %v3722 = vpop.f32.mrb[0].mxu0
    %3723 = vdwg.mxu0
    %v3724 = vadd.f32 %v3015, %v3715
    %v3725 = vadd.f32 %v3021, %v3721
    %v3726 = vld [vmem:[%s3] sm:$0x1]
    %v3728 = vlaneseq
    %v3729 = vshrl.u32 %v3728, 7
    %v3730 = vsub.s32 0, %v3729
    %v3731 = vrot.slane %v3726, %v3730
    %v3733 = vadd.f32 %v3724, %v3731
    %v3734 = vadd.f32 %v3725, %v3731
    %v3735 = vmax.f32 %v3733, 0.0
    %v3736 = vmax.f32 %v3734, 0.0
    %v3737 = vmul.f32 %v605, %v3735
    %v3738 = vmul.f32 %v610, %v3736
    %3739 = vmatprep.subr.mxu0 0.0
    %v3740 = vand.u32 %v3737, 4294901760
    %3741 = vmatpush1.msra.mxu0 %v3740
    %3742 = vmatprep.subr.mxu0 0.0
    %v3743 = vand.u32 %v3738, 4294901760
    %3744 = vmatpush1.msra.mxu0 %v3743
    %3745 = vmatprep.subr.mxu0 0.0
    %3746 = vmatpush1.msra.mxu0 0.0
    %3747 = vmatprep.subr.mxu0 0.0
    %3748 = vmatpush1.msra.mxu0 0.0
    %3749 = vmatprep.subr.mxu0 0.0
    %3750 = vmatpush1.msra.mxu0 0.0
    %3751 = vmatprep.subr.mxu0 0.0
    %3752 = vmatpush1.msra.mxu0 0.0
    %3753 = vmatprep.subr.mxu0 0.0
    %3754 = vmatpush1.msra.mxu0 0.0
    %3755 = vmatprep.subr.mxu0 0.0
    %3756 = vmatpush1.msra.mxu0 0.0
    %3757 = vmatprep.subr.mxu0 0.0
    %3758 = vmatpush1.msra.mxu0 0.0
    %3759 = vmatprep.subr.mxu0 0.0
    %3760 = vmatpush1.msra.mxu0 0.0
    %3761 = vmatprep.subr.mxu0 0.0
    %3762 = vmatpush1.msra.mxu0 0.0
    %3763 = vmatprep.subr.mxu0 0.0
    %3764 = vmatpush1.msra.mxu0 0.0
    %3765 = vmatprep.subr.mxu0 0.0
    %3766 = vmatpush1.msra.mxu0 0.0
    %3767 = vmatprep.subr.mxu0 0.0
    %3768 = vmatpush1.msra.mxu0 0.0
    %3769 = vmatprep.subr.mxu0 0.0
    %3770 = vmatpush1.msra.mxu0 0.0
    %3771 = vmatprep.subr.mxu0 0.0
    %3772 = vmatpush1.msra.mxu0 0.0
    %3773 = vmatprep.subr.mxu0 0.0
    %3774 = vmatpush1.msra.mxu0 0.0
    %3775 = vmatprep.subr.mxu0 0.0
    %3776 = vmatpush1.msra.mxu0 0.0
    %3777 = vmatprep.subr.mxu0 0.0
    %3778 = vmatpush1.msra.mxu0 0.0
    %3779 = vmatprep.subr.mxu0 0.0
    %3780 = vmatpush1.msra.mxu0 0.0
    %3781 = vmatprep.subr.mxu0 0.0
    %3782 = vmatpush1.msra.mxu0 0.0
    %3783 = vmatprep.subr.mxu0 0.0
    %3784 = vmatpush1.msra.mxu0 0.0
    %3785 = vmatprep.subr.mxu0 0.0
    %3786 = vmatpush1.msra.mxu0 0.0
    %3787 = vmatprep.subr.mxu0 0.0
    %3788 = vmatpush1.msra.mxu0 0.0
    %3789 = vmatprep.subr.mxu0 0.0
    %3790 = vmatpush1.msra.mxu0 0.0
    %3791 = vmatprep.subr.mxu0 0.0
    %3792 = vmatpush1.msra.mxu0 0.0
    %3793 = vmatprep.subr.mxu0 0.0
    %3794 = vmatpush1.msra.mxu0 0.0
    %3795 = vmatprep.subr.mxu0 0.0
    %3796 = vmatpush1.msra.mxu0 0.0
    %3797 = vmatprep.subr.mxu0 0.0
    %3798 = vmatpush1.msra.mxu0 0.0
    %3799 = vmatprep.subr.mxu0 0.0
    %3800 = vmatpush1.msra.mxu0 0.0
    %3801 = vmatprep.subr.mxu0 0.0
    %3802 = vmatpush1.msra.mxu0 0.0
    %3803 = vmatprep.subr.mxu0 0.0
    %3804 = vmatpush1.msra.mxu0 0.0
    %3805 = vmatprep.mubr.f32.mxu0 0.0
    %v3806 = vand.u32 %v115, 4294901760
    %v3807 = vsub.f32 %v115, %v3806
    %v3808 = vand.u32 %v3807, 4294901760
    %v3809 = vsub.f32 %v3807, %v3808
    %v3810 = vand.u32 %v3809, 4294901760
    %3811 = vmatmul.mubr.f32.gmra.mrb[0].mxu0 %v3810
    %v3812 = vpop.f32.mrb[0].mxu0
    %v3813 = vadd.f32 0.0, %v3812
    %v3814 = vpop.f32.mrb[0].mxu0
    %3815 = vmatprep.mubr.f32.mxu0 0.0
    %v3816 = vand.u32 %v118, 4294901760
    %v3817 = vsub.f32 %v118, %v3816
    %v3818 = vand.u32 %v3817, 4294901760
    %v3819 = vsub.f32 %v3817, %v3818
    %v3820 = vand.u32 %v3819, 4294901760
    %3821 = vmatmul.mubr.f32.gmra.mrb[0].mxu0 %v3820
    %v3822 = vpop.f32.mrb[0].mxu0
    %v3823 = vadd.f32 0.0, %v3822
    %v3824 = vpop.f32.mrb[0].mxu0
    %3825 = vdwg.mxu0
    %3826 = vmatprep.subr.mxu0 0.0
    %v3827 = vand.u32 %v3737, 4294901760
    %v3828 = vsub.f32 %v3737, %v3827
    %v3829 = vand.u32 %v3828, 4294901760
    %v3830 = vsub.f32 %v3828, %v3829
    %v3831 = vand.u32 %v3830, 4294901760
    %3832 = vmatpush1.msra.mxu0 %v3831
    %3833 = vmatprep.subr.mxu0 0.0
    %v3834 = vand.u32 %v3738, 4294901760
    %v3835 = vsub.f32 %v3738, %v3834
    %v3836 = vand.u32 %v3835, 4294901760
    %v3837 = vsub.f32 %v3835, %v3836
    %v3838 = vand.u32 %v3837, 4294901760
    %3839 = vmatpush1.msra.mxu0 %v3838
    %3840 = vmatprep.subr.mxu0 0.0
    %3841 = vmatpush1.msra.mxu0 0.0
    %3842 = vmatprep.subr.mxu0 0.0
    %3843 = vmatpush1.msra.mxu0 0.0
    %3844 = vmatprep.subr.mxu0 0.0
    %3845 = vmatpush1.msra.mxu0 0.0
    %3846 = vmatprep.subr.mxu0 0.0
    %3847 = vmatpush1.msra.mxu0 0.0
    %3848 = vmatprep.subr.mxu0 0.0
    %3849 = vmatpush1.msra.mxu0 0.0
    %3850 = vmatprep.subr.mxu0 0.0
    %3851 = vmatpush1.msra.mxu0 0.0
    %3852 = vmatprep.subr.mxu0 0.0
    %3853 = vmatpush1.msra.mxu0 0.0
    %3854 = vmatprep.subr.mxu0 0.0
    %3855 = vmatpush1.msra.mxu0 0.0
    %3856 = vmatprep.subr.mxu0 0.0
    %3857 = vmatpush1.msra.mxu0 0.0
    %3858 = vmatprep.subr.mxu0 0.0
    %3859 = vmatpush1.msra.mxu0 0.0
    %3860 = vmatprep.subr.mxu0 0.0
    %3861 = vmatpush1.msra.mxu0 0.0
    %3862 = vmatprep.subr.mxu0 0.0
    %3863 = vmatpush1.msra.mxu0 0.0
    %3864 = vmatprep.subr.mxu0 0.0
    %3865 = vmatpush1.msra.mxu0 0.0
    %3866 = vmatprep.subr.mxu0 0.0
    %3867 = vmatpush1.msra.mxu0 0.0
    %3868 = vmatprep.subr.mxu0 0.0
    %3869 = vmatpush1.msra.mxu0 0.0
    %3870 = vmatprep.subr.mxu0 0.0
    %3871 = vmatpush1.msra.mxu0 0.0
    %3872 = vmatprep.subr.mxu0 0.0
    %3873 = vmatpush1.msra.mxu0 0.0
    %3874 = vmatprep.subr.mxu0 0.0
    %3875 = vmatpush1.msra.mxu0 0.0
    %3876 = vmatprep.subr.mxu0 0.0
    %3877 = vmatpush1.msra.mxu0 0.0
    %3878 = vmatprep.subr.mxu0 0.0
    %3879 = vmatpush1.msra.mxu0 0.0
    %3880 = vmatprep.subr.mxu0 0.0
    %3881 = vmatpush1.msra.mxu0 0.0
    %3882 = vmatprep.subr.mxu0 0.0
    %3883 = vmatpush1.msra.mxu0 0.0
    %3884 = vmatprep.subr.mxu0 0.0
    %3885 = vmatpush1.msra.mxu0 0.0
    %3886 = vmatprep.subr.mxu0 0.0
    %3887 = vmatpush1.msra.mxu0 0.0
    %3888 = vmatprep.subr.mxu0 0.0
    %3889 = vmatpush1.msra.mxu0 0.0
    %3890 = vmatprep.subr.mxu0 0.0
    %3891 = vmatpush1.msra.mxu0 0.0
    %3892 = vmatprep.subr.mxu0 0.0
    %3893 = vmatpush1.msra.mxu0 0.0
    %3894 = vmatprep.subr.mxu0 0.0
    %3895 = vmatpush1.msra.mxu0 0.0
    %3896 = vmatprep.subr.mxu0 0.0
    %3897 = vmatpush1.msra.mxu0 0.0
    %3898 = vmatprep.subr.mxu0 0.0
    %3899 = vmatpush1.msra.mxu0 0.0
    %3900 = vmatprep.mubr.f32.mxu0 0.0
    %v3901 = vand.u32 %v115, 4294901760
    %3902 = vmatmul.mubr.f32.gmra.mrb[0].mxu0 %v3901
    %v3903 = vpop.f32.mrb[0].mxu0
    %v3904 = vadd.f32 %v3813, %v3903
    %v3905 = vpop.f32.mrb[0].mxu0
    %3906 = vmatprep.mubr.f32.mxu0 0.0
    %v3907 = vand.u32 %v118, 4294901760
    %3908 = vmatmul.mubr.f32.gmra.mrb[0].mxu0 %v3907
    %v3909 = vpop.f32.mrb[0].mxu0
    %v3910 = vadd.f32 %v3823, %v3909
    %v3911 = vpop.f32.mrb[0].mxu0
    %3912 = vdwg.mxu0
    %3913 = vmatprep.subr.mxu0 0.0
    %v3914 = vand.u32 %v3737, 4294901760
    %v3915 = vsub.f32 %v3737, %v3914
    %3916 = vmatpush1.msra.mxu0 %v3915
    %3917 = vmatprep.subr.mxu0 0.0
    %v3918 = vand.u32 %v3738, 4294901760
    %v3919 = vsub.f32 %v3738, %v3918
    %3920 = vmatpush1.msra.mxu0 %v3919
    %3921 = vmatprep.subr.mxu0 0.0
    %3922 = vmatpush1.msra.mxu0 0.0
    %3923 = vmatprep.subr.mxu0 0.0
    %3924 = vmatpush1.msra.mxu0 0.0
    %3925 = vmatprep.subr.mxu0 0.0
    %3926 = vmatpush1.msra.mxu0 0.0
    %3927 = vmatprep.subr.mxu0 0.0
    %3928 = vmatpush1.msra.mxu0 0.0
    %3929 = vmatprep.subr.mxu0 0.0
    %3930 = vmatpush1.msra.mxu0 0.0
    %3931 = vmatprep.subr.mxu0 0.0
    %3932 = vmatpush1.msra.mxu0 0.0
    %3933 = vmatprep.subr.mxu0 0.0
    %3934 = vmatpush1.msra.mxu0 0.0
    %3935 = vmatprep.subr.mxu0 0.0
    %3936 = vmatpush1.msra.mxu0 0.0
    %3937 = vmatprep.subr.mxu0 0.0
    %3938 = vmatpush1.msra.mxu0 0.0
    %3939 = vmatprep.subr.mxu0 0.0
    %3940 = vmatpush1.msra.mxu0 0.0
    %3941 = vmatprep.subr.mxu0 0.0
    %3942 = vmatpush1.msra.mxu0 0.0
    %3943 = vmatprep.subr.mxu0 0.0
    %3944 = vmatpush1.msra.mxu0 0.0
    %3945 = vmatprep.subr.mxu0 0.0
    %3946 = vmatpush1.msra.mxu0 0.0
    %3947 = vmatprep.subr.mxu0 0.0
    %3948 = vmatpush1.msra.mxu0 0.0
    %3949 = vmatprep.subr.mxu0 0.0
    %3950 = vmatpush1.msra.mxu0 0.0
    %3951 = vmatprep.subr.mxu0 0.0
    %3952 = vmatpush1.msra.mxu0 0.0
    %3953 = vmatprep.subr.mxu0 0.0
    %3954 = vmatpush1.msra.mxu0 0.0
    %3955 = vmatprep.subr.mxu0 0.0
    %3956 = vmatpush1.msra.mxu0 0.0
    %3957 = vmatprep.subr.mxu0 0.0
    %3958 = vmatpush1.msra.mxu0 0.0
    %3959 = vmatprep.subr.mxu0 0.0
    %3960 = vmatpush1.msra.mxu0 0.0
    %3961 = vmatprep.subr.mxu0 0.0
    %3962 = vmatpush1.msra.mxu0 0.0
    %3963 = vmatprep.subr.mxu0 0.0
    %3964 = vmatpush1.msra.mxu0 0.0
    %3965 = vmatprep.subr.mxu0 0.0
    %3966 = vmatpush1.msra.mxu0 0.0
    %3967 = vmatprep.subr.mxu0 0.0
    %3968 = vmatpush1.msra.mxu0 0.0
    %3969 = vmatprep.subr.mxu0 0.0
    %3970 = vmatpush1.msra.mxu0 0.0
    %3971 = vmatprep.subr.mxu0 0.0
    %3972 = vmatpush1.msra.mxu0 0.0
    %3973 = vmatprep.subr.mxu0 0.0
    %3974 = vmatpush1.msra.mxu0 0.0
    %3975 = vmatprep.subr.mxu0 0.0
    %3976 = vmatpush1.msra.mxu0 0.0
    %3977 = vmatprep.subr.mxu0 0.0
    %3978 = vmatpush1.msra.mxu0 0.0
    %3979 = vmatprep.subr.mxu0 0.0
    %3980 = vmatpush1.msra.mxu0 0.0
    %3981 = vmatprep.mubr.f32.mxu0 0.0
    %v3982 = vand.u32 %v115, 4294901760
    %v3983 = vsub.f32 %v115, %v3982
    %3984 = vmatmul.mubr.f32.gmra.mrb[0].mxu0 %v3983
    %v3985 = vpop.f32.mrb[0].mxu0
    %v3986 = vadd.f32 %v3904, %v3985
    %v3987 = vpop.f32.mrb[0].mxu0
    %3988 = vmatprep.mubr.f32.mxu0 0.0
    %v3989 = vand.u32 %v118, 4294901760
    %v3990 = vsub.f32 %v118, %v3989
    %3991 = vmatmul.mubr.f32.gmra.mrb[0].mxu0 %v3990
    %v3992 = vpop.f32.mrb[0].mxu0
    %v3993 = vadd.f32 %v3910, %v3992
    %v3994 = vpop.f32.mrb[0].mxu0
    %3995 = vdwg.mxu0
    %3996 = vmatprep.subr.mxu0 0.0
    %v3997 = vand.u32 %v3737, 4294901760
    %3998 = vmatpush1.msra.mxu0 %v3997
    %3999 = vmatprep.subr.mxu0 0.0
    %v4000 = vand.u32 %v3738, 4294901760
    %4001 = vmatpush1.msra.mxu0 %v4000
    %4002 = vmatprep.subr.mxu0 0.0
    %4003 = vmatpush1.msra.mxu0 0.0
    %4004 = vmatprep.subr.mxu0 0.0
    %4005 = vmatpush1.msra.mxu0 0.0
    %4006 = vmatprep.subr.mxu0 0.0
    %4007 = vmatpush1.msra.mxu0 0.0
    %4008 = vmatprep.subr.mxu0 0.0
    %4009 = vmatpush1.msra.mxu0 0.0
    %4010 = vmatprep.subr.mxu0 0.0
    %4011 = vmatpush1.msra.mxu0 0.0
    %4012 = vmatprep.subr.mxu0 0.0
    %4013 = vmatpush1.msra.mxu0 0.0
    %4014 = vmatprep.subr.mxu0 0.0
    %4015 = vmatpush1.msra.mxu0 0.0
    %4016 = vmatprep.subr.mxu0 0.0
    %4017 = vmatpush1.msra.mxu0 0.0
    %4018 = vmatprep.subr.mxu0 0.0
    %4019 = vmatpush1.msra.mxu0 0.0
    %4020 = vmatprep.subr.mxu0 0.0
    %4021 = vmatpush1.msra.mxu0 0.0
    %4022 = vmatprep.subr.mxu0 0.0
    %4023 = vmatpush1.msra.mxu0 0.0
    %4024 = vmatprep.subr.mxu0 0.0
    %4025 = vmatpush1.msra.mxu0 0.0
    %4026 = vmatprep.subr.mxu0 0.0
    %4027 = vmatpush1.msra.mxu0 0.0
    %4028 = vmatprep.subr.mxu0 0.0
    %4029 = vmatpush1.msra.mxu0 0.0
    %4030 = vmatprep.subr.mxu0 0.0
    %4031 = vmatpush1.msra.mxu0 0.0
    %4032 = vmatprep.subr.mxu0 0.0
    %4033 = vmatpush1.msra.mxu0 0.0
    %4034 = vmatprep.subr.mxu0 0.0
    %4035 = vmatpush1.msra.mxu0 0.0
    %4036 = vmatprep.subr.mxu0 0.0
    %4037 = vmatpush1.msra.mxu0 0.0
    %4038 = vmatprep.subr.mxu0 0.0
    %4039 = vmatpush1.msra.mxu0 0.0
    %4040 = vmatprep.subr.mxu0 0.0
    %4041 = vmatpush1.msra.mxu0 0.0
    %4042 = vmatprep.subr.mxu0 0.0
    %4043 = vmatpush1.msra.mxu0 0.0
    %4044 = vmatprep.subr.mxu0 0.0
    %4045 = vmatpush1.msra.mxu0 0.0
    %4046 = vmatprep.subr.mxu0 0.0
    %4047 = vmatpush1.msra.mxu0 0.0
    %4048 = vmatprep.subr.mxu0 0.0
    %4049 = vmatpush1.msra.mxu0 0.0
    %4050 = vmatprep.subr.mxu0 0.0
    %4051 = vmatpush1.msra.mxu0 0.0
    %4052 = vmatprep.subr.mxu0 0.0
    %4053 = vmatpush1.msra.mxu0 0.0
    %4054 = vmatprep.subr.mxu0 0.0
    %4055 = vmatpush1.msra.mxu0 0.0
    %4056 = vmatprep.subr.mxu0 0.0
    %4057 = vmatpush1.msra.mxu0 0.0
    %4058 = vmatprep.subr.mxu0 0.0
    %4059 = vmatpush1.msra.mxu0 0.0
    %4060 = vmatprep.subr.mxu0 0.0
    %4061 = vmatpush1.msra.mxu0 0.0
    %4062 = vmatprep.mubr.f32.mxu0 0.0
    %v4063 = vand.u32 %v115, 4294901760
    %v4064 = vsub.f32 %v115, %v4063
    %v4065 = vand.u32 %v4064, 4294901760
    %4066 = vmatmul.mubr.f32.gmra.mrb[0].mxu0 %v4065
    %v4067 = vpop.f32.mrb[0].mxu0
    %v4068 = vadd.f32 %v3986, %v4067
    %v4069 = vpop.f32.mrb[0].mxu0
    %4070 = vmatprep.mubr.f32.mxu0 0.0
    %v4071 = vand.u32 %v118, 4294901760
    %v4072 = vsub.f32 %v118, %v4071
    %v4073 = vand.u32 %v4072, 4294901760
    %4074 = vmatmul.mubr.f32.gmra.mrb[0].mxu0 %v4073
    %v4075 = vpop.f32.mrb[0].mxu0
    %v4076 = vadd.f32 %v3993, %v4075
    %v4077 = vpop.f32.mrb[0].mxu0
    %4078 = vdwg.mxu0
    %4079 = vmatprep.subr.mxu0 0.0
    %v4080 = vand.u32 %v3737, 4294901760
    %v4081 = vsub.f32 %v3737, %v4080
    %v4082 = vand.u32 %v4081, 4294901760
    %4083 = vmatpush1.msra.mxu0 %v4082
    %4084 = vmatprep.subr.mxu0 0.0
    %v4085 = vand.u32 %v3738, 4294901760
    %v4086 = vsub.f32 %v3738, %v4085
    %v4087 = vand.u32 %v4086, 4294901760
    %4088 = vmatpush1.msra.mxu0 %v4087
    %4089 = vmatprep.subr.mxu0 0.0
    %4090 = vmatpush1.msra.mxu0 0.0
    %4091 = vmatprep.subr.mxu0 0.0
    %4092 = vmatpush1.msra.mxu0 0.0
    %4093 = vmatprep.subr.mxu0 0.0
    %4094 = vmatpush1.msra.mxu0 0.0
    %4095 = vmatprep.subr.mxu0 0.0
    %4096 = vmatpush1.msra.mxu0 0.0
    %4097 = vmatprep.subr.mxu0 0.0
    %4098 = vmatpush1.msra.mxu0 0.0
    %4099 = vmatprep.subr.mxu0 0.0
    %4100 = vmatpush1.msra.mxu0 0.0
    %4101 = vmatprep.subr.mxu0 0.0
    %4102 = vmatpush1.msra.mxu0 0.0
    %4103 = vmatprep.subr.mxu0 0.0
    %4104 = vmatpush1.msra.mxu0 0.0
    %4105 = vmatprep.subr.mxu0 0.0
    %4106 = vmatpush1.msra.mxu0 0.0
    %4107 = vmatprep.subr.mxu0 0.0
    %4108 = vmatpush1.msra.mxu0 0.0
    %4109 = vmatprep.subr.mxu0 0.0
    %4110 = vmatpush1.msra.mxu0 0.0
    %4111 = vmatprep.subr.mxu0 0.0
    %4112 = vmatpush1.msra.mxu0 0.0
    %4113 = vmatprep.subr.mxu0 0.0
    %4114 = vmatpush1.msra.mxu0 0.0
    %4115 = vmatprep.subr.mxu0 0.0
    %4116 = vmatpush1.msra.mxu0 0.0
    %4117 = vmatprep.subr.mxu0 0.0
    %4118 = vmatpush1.msra.mxu0 0.0
    %4119 = vmatprep.subr.mxu0 0.0
    %4120 = vmatpush1.msra.mxu0 0.0
    %4121 = vmatprep.subr.mxu0 0.0
    %4122 = vmatpush1.msra.mxu0 0.0
    %4123 = vmatprep.subr.mxu0 0.0
    %4124 = vmatpush1.msra.mxu0 0.0
    %4125 = vmatprep.subr.mxu0 0.0
    %4126 = vmatpush1.msra.mxu0 0.0
    %4127 = vmatprep.subr.mxu0 0.0
    %4128 = vmatpush1.msra.mxu0 0.0
    %4129 = vmatprep.subr.mxu0 0.0
    %4130 = vmatpush1.msra.mxu0 0.0
    %4131 = vmatprep.subr.mxu0 0.0
    %4132 = vmatpush1.msra.mxu0 0.0
    %4133 = vmatprep.subr.mxu0 0.0
    %4134 = vmatpush1.msra.mxu0 0.0
    %4135 = vmatprep.subr.mxu0 0.0
    %4136 = vmatpush1.msra.mxu0 0.0
    %4137 = vmatprep.subr.mxu0 0.0
    %4138 = vmatpush1.msra.mxu0 0.0
    %4139 = vmatprep.subr.mxu0 0.0
    %4140 = vmatpush1.msra.mxu0 0.0
    %4141 = vmatprep.subr.mxu0 0.0
    %4142 = vmatpush1.msra.mxu0 0.0
    %4143 = vmatprep.subr.mxu0 0.0
    %4144 = vmatpush1.msra.mxu0 0.0
    %4145 = vmatprep.subr.mxu0 0.0
    %4146 = vmatpush1.msra.mxu0 0.0
    %4147 = vmatprep.subr.mxu0 0.0
    %4148 = vmatpush1.msra.mxu0 0.0
    %4149 = vmatprep.mubr.f32.mxu0 0.0
    %v4150 = vand.u32 %v115, 4294901760
    %4151 = vmatmul.mubr.f32.gmra.mrb[0].mxu0 %v4150
    %v4152 = vpop.f32.mrb[0].mxu0
    %v4153 = vadd.f32 %v4068, %v4152
    %v4154 = vpop.f32.mrb[0].mxu0
    %4155 = vmatprep.mubr.f32.mxu0 0.0
    %v4156 = vand.u32 %v118, 4294901760
    %4157 = vmatmul.mubr.f32.gmra.mrb[0].mxu0 %v4156
    %v4158 = vpop.f32.mrb[0].mxu0
    %v4159 = vadd.f32 %v4076, %v4158
    %v4160 = vpop.f32.mrb[0].mxu0
    %4161 = vdwg.mxu0
    %4162 = vmatprep.subr.mxu0 0.0
    %v4163 = vand.u32 %v3737, 4294901760
    %4164 = vmatpush1.msra.mxu0 %v4163
    %4165 = vmatprep.subr.mxu0 0.0
    %v4166 = vand.u32 %v3738, 4294901760
    %4167 = vmatpush1.msra.mxu0 %v4166
    %4168 = vmatprep.subr.mxu0 0.0
    %4169 = vmatpush1.msra.mxu0 0.0
    %4170 = vmatprep.subr.mxu0 0.0
    %4171 = vmatpush1.msra.mxu0 0.0
    %4172 = vmatprep.subr.mxu0 0.0
    %4173 = vmatpush1.msra.mxu0 0.0
    %4174 = vmatprep.subr.mxu0 0.0
    %4175 = vmatpush1.msra.mxu0 0.0
    %4176 = vmatprep.subr.mxu0 0.0
    %4177 = vmatpush1.msra.mxu0 0.0
    %4178 = vmatprep.subr.mxu0 0.0
    %4179 = vmatpush1.msra.mxu0 0.0
    %4180 = vmatprep.subr.mxu0 0.0
    %4181 = vmatpush1.msra.mxu0 0.0
    %4182 = vmatprep.subr.mxu0 0.0
    %4183 = vmatpush1.msra.mxu0 0.0
    %4184 = vmatprep.subr.mxu0 0.0
    %4185 = vmatpush1.msra.mxu0 0.0
    %4186 = vmatprep.subr.mxu0 0.0
    %4187 = vmatpush1.msra.mxu0 0.0
    %4188 = vmatprep.subr.mxu0 0.0
    %4189 = vmatpush1.msra.mxu0 0.0
    %4190 = vmatprep.subr.mxu0 0.0
    %4191 = vmatpush1.msra.mxu0 0.0
    %4192 = vmatprep.subr.mxu0 0.0
    %4193 = vmatpush1.msra.mxu0 0.0
    %4194 = vmatprep.subr.mxu0 0.0
    %4195 = vmatpush1.msra.mxu0 0.0
    %4196 = vmatprep.subr.mxu0 0.0
    %4197 = vmatpush1.msra.mxu0 0.0
    %4198 = vmatprep.subr.mxu0 0.0
    %4199 = vmatpush1.msra.mxu0 0.0
    %4200 = vmatprep.subr.mxu0 0.0
    %4201 = vmatpush1.msra.mxu0 0.0
    %4202 = vmatprep.subr.mxu0 0.0
    %4203 = vmatpush1.msra.mxu0 0.0
    %4204 = vmatprep.subr.mxu0 0.0
    %4205 = vmatpush1.msra.mxu0 0.0
    %4206 = vmatprep.subr.mxu0 0.0
    %4207 = vmatpush1.msra.mxu0 0.0
    %4208 = vmatprep.subr.mxu0 0.0
    %4209 = vmatpush1.msra.mxu0 0.0
    %4210 = vmatprep.subr.mxu0 0.0
    %4211 = vmatpush1.msra.mxu0 0.0
    %4212 = vmatprep.subr.mxu0 0.0
    %4213 = vmatpush1.msra.mxu0 0.0
    %4214 = vmatprep.subr.mxu0 0.0
    %4215 = vmatpush1.msra.mxu0 0.0
    %4216 = vmatprep.subr.mxu0 0.0
    %4217 = vmatpush1.msra.mxu0 0.0
    %4218 = vmatprep.subr.mxu0 0.0
    %4219 = vmatpush1.msra.mxu0 0.0
    %4220 = vmatprep.subr.mxu0 0.0
    %4221 = vmatpush1.msra.mxu0 0.0
    %4222 = vmatprep.subr.mxu0 0.0
    %4223 = vmatpush1.msra.mxu0 0.0
    %4224 = vmatprep.subr.mxu0 0.0
    %4225 = vmatpush1.msra.mxu0 0.0
    %4226 = vmatprep.subr.mxu0 0.0
    %4227 = vmatpush1.msra.mxu0 0.0
    %4228 = vmatprep.mubr.f32.mxu0 0.0
    %v4229 = vand.u32 %v115, 4294901760
    %4230 = vmatmul.mubr.f32.gmra.mrb[0].mxu0 %v4229
    %v4231 = vpop.f32.mrb[0].mxu0
    %v4232 = vadd.f32 %v4153, %v4231
    %v4233 = vpop.f32.mrb[0].mxu0
    %4234 = vmatprep.mubr.f32.mxu0 0.0
    %v4235 = vand.u32 %v118, 4294901760
    %4236 = vmatmul.mubr.f32.gmra.mrb[0].mxu0 %v4235
    %v4237 = vpop.f32.mrb[0].mxu0
    %v4238 = vadd.f32 %v4159, %v4237
    %v4239 = vpop.f32.mrb[0].mxu0
    %4240 = vdwg.mxu0
    %v4241 = vmul.f32 %v605, %v4232
    %v4242 = vmul.f32 %v610, %v4238
    %v4243 = vmul.f32 %v605, %v4241
    %v4244 = vmul.f32 %v610, %v4242
    %4245 = vmatprep.subr.mxu0 0.0
    %v4246 = vand.u32 %v4243, 4294901760
    %4247 = vmatpush1.msra.mxu0 %v4246
    %4248 = vmatprep.subr.mxu0 0.0
    %v4249 = vand.u32 %v4244, 4294901760
    %4250 = vmatpush1.msra.mxu0 %v4249
    %4251 = vmatprep.subr.mxu0 0.0
    %4252 = vmatpush1.msra.mxu0 0.0
    %4253 = vmatprep.subr.mxu0 0.0
    %4254 = vmatpush1.msra.mxu0 0.0
    %4255 = vmatprep.subr.mxu0 0.0
    %4256 = vmatpush1.msra.mxu0 0.0
    %4257 = vmatprep.subr.mxu0 0.0
    %4258 = vmatpush1.msra.mxu0 0.0
    %4259 = vmatprep.subr.mxu0 0.0
    %4260 = vmatpush1.msra.mxu0 0.0
    %4261 = vmatprep.subr.mxu0 0.0
    %4262 = vmatpush1.msra.mxu0 0.0
    %4263 = vmatprep.subr.mxu0 0.0
    %4264 = vmatpush1.msra.mxu0 0.0
    %4265 = vmatprep.subr.mxu0 0.0
    %4266 = vmatpush1.msra.mxu0 0.0
    %4267 = vmatprep.subr.mxu0 0.0
    %4268 = vmatpush1.msra.mxu0 0.0
    %4269 = vmatprep.subr.mxu0 0.0
    %4270 = vmatpush1.msra.mxu0 0.0
    %4271 = vmatprep.subr.mxu0 0.0
    %4272 = vmatpush1.msra.mxu0 0.0
    %4273 = vmatprep.subr.mxu0 0.0
    %4274 = vmatpush1.msra.mxu0 0.0
    %4275 = vmatprep.subr.mxu0 0.0
    %4276 = vmatpush1.msra.mxu0 0.0
    %4277 = vmatprep.subr.mxu0 0.0
    %4278 = vmatpush1.msra.mxu0 0.0
    %4279 = vmatprep.subr.mxu0 0.0
    %4280 = vmatpush1.msra.mxu0 0.0
    %4281 = vmatprep.subr.mxu0 0.0
    %4282 = vmatpush1.msra.mxu0 0.0
    %4283 = vmatprep.subr.mxu0 0.0
    %4284 = vmatpush1.msra.mxu0 0.0
    %4285 = vmatprep.subr.mxu0 0.0
    %4286 = vmatpush1.msra.mxu0 0.0
    %4287 = vmatprep.subr.mxu0 0.0
    %4288 = vmatpush1.msra.mxu0 0.0
    %4289 = vmatprep.subr.mxu0 0.0
    %4290 = vmatpush1.msra.mxu0 0.0
    %4291 = vmatprep.subr.mxu0 0.0
    %4292 = vmatpush1.msra.mxu0 0.0
    %4293 = vmatprep.subr.mxu0 0.0
    %4294 = vmatpush1.msra.mxu0 0.0
    %4295 = vmatprep.subr.mxu0 0.0
    %4296 = vmatpush1.msra.mxu0 0.0
    %4297 = vmatprep.subr.mxu0 0.0
    %4298 = vmatpush1.msra.mxu0 0.0
    %4299 = vmatprep.subr.mxu0 0.0
    %4300 = vmatpush1.msra.mxu0 0.0
    %4301 = vmatprep.subr.mxu0 0.0
    %4302 = vmatpush1.msra.mxu0 0.0
    %4303 = vmatprep.subr.mxu0 0.0
    %4304 = vmatpush1.msra.mxu0 0.0
    %4305 = vmatprep.subr.mxu0 0.0
    %4306 = vmatpush1.msra.mxu0 0.0
    %4307 = vmatprep.subr.mxu0 0.0
    %4308 = vmatpush1.msra.mxu0 0.0
    %4309 = vmatprep.subr.mxu0 0.0
    %4310 = vmatpush1.msra.mxu0 0.0
    %4311 = vmatprep.mubr.f32.mxu0 0.0
    %v4312 = vand.u32 %v115, 4294901760
    %v4313 = vsub.f32 %v115, %v4312
    %v4314 = vand.u32 %v4313, 4294901760
    %v4315 = vsub.f32 %v4313, %v4314
    %v4316 = vand.u32 %v4315, 4294901760
    %4317 = vmatmul.mubr.f32.gmra.mrb[0].mxu0 %v4316
    %v4318 = vpop.f32.mrb[0].mxu0
    %v4319 = vadd.f32 0.0, %v4318
    %v4320 = vpop.f32.mrb[0].mxu0
    %4321 = vmatprep.mubr.f32.mxu0 0.0
    %v4322 = vand.u32 %v118, 4294901760
    %v4323 = vsub.f32 %v118, %v4322
    %v4324 = vand.u32 %v4323, 4294901760
    %v4325 = vsub.f32 %v4323, %v4324
    %v4326 = vand.u32 %v4325, 4294901760
    %4327 = vmatmul.mubr.f32.gmra.mrb[0].mxu0 %v4326
    %v4328 = vpop.f32.mrb[0].mxu0
    %v4329 = vadd.f32 0.0, %v4328
    %v4330 = vpop.f32.mrb[0].mxu0
    %4331 = vdwg.mxu0
    %4332 = vmatprep.subr.mxu0 0.0
    %v4333 = vand.u32 %v4243, 4294901760
    %v4334 = vsub.f32 %v4243, %v4333
    %v4335 = vand.u32 %v4334, 4294901760
    %v4336 = vsub.f32 %v4334, %v4335
    %v4337 = vand.u32 %v4336, 4294901760
    %4338 = vmatpush1.msra.mxu0 %v4337
    %4339 = vmatprep.subr.mxu0 0.0
    %v4340 = vand.u32 %v4244, 4294901760
    %v4341 = vsub.f32 %v4244, %v4340
    %v4342 = vand.u32 %v4341, 4294901760
    %v4343 = vsub.f32 %v4341, %v4342
    %v4344 = vand.u32 %v4343, 4294901760
    %4345 = vmatpush1.msra.mxu0 %v4344
    %4346 = vmatprep.subr.mxu0 0.0
    %4347 = vmatpush1.msra.mxu0 0.0
    %4348 = vmatprep.subr.mxu0 0.0
    %4349 = vmatpush1.msra.mxu0 0.0
    %4350 = vmatprep.subr.mxu0 0.0
    %4351 = vmatpush1.msra.mxu0 0.0
    %4352 = vmatprep.subr.mxu0 0.0
    %4353 = vmatpush1.msra.mxu0 0.0
    %4354 = vmatprep.subr.mxu0 0.0
    %4355 = vmatpush1.msra.mxu0 0.0
    %4356 = vmatprep.subr.mxu0 0.0
    %4357 = vmatpush1.msra.mxu0 0.0
    %4358 = vmatprep.subr.mxu0 0.0
    %4359 = vmatpush1.msra.mxu0 0.0
    %4360 = vmatprep.subr.mxu0 0.0
    %4361 = vmatpush1.msra.mxu0 0.0
    %4362 = vmatprep.subr.mxu0 0.0
    %4363 = vmatpush1.msra.mxu0 0.0
    %4364 = vmatprep.subr.mxu0 0.0
    %4365 = vmatpush1.msra.mxu0 0.0
    %4366 = vmatprep.subr.mxu0 0.0
    %4367 = vmatpush1.msra.mxu0 0.0
    %4368 = vmatprep.subr.mxu0 0.0
    %4369 = vmatpush1.msra.mxu0 0.0
    %4370 = vmatprep.subr.mxu0 0.0
    %4371 = vmatpush1.msra.mxu0 0.0
    %4372 = vmatprep.subr.mxu0 0.0
    %4373 = vmatpush1.msra.mxu0 0.0
    %4374 = vmatprep.subr.mxu0 0.0
    %4375 = vmatpush1.msra.mxu0 0.0
    %4376 = vmatprep.subr.mxu0 0.0
    %4377 = vmatpush1.msra.mxu0 0.0
    %4378 = vmatprep.subr.mxu0 0.0
    %4379 = vmatpush1.msra.mxu0 0.0
    %4380 = vmatprep.subr.mxu0 0.0
    %4381 = vmatpush1.msra.mxu0 0.0
    %4382 = vmatprep.subr.mxu0 0.0
    %4383 = vmatpush1.msra.mxu0 0.0
    %4384 = vmatprep.subr.mxu0 0.0
    %4385 = vmatpush1.msra.mxu0 0.0
    %4386 = vmatprep.subr.mxu0 0.0
    %4387 = vmatpush1.msra.mxu0 0.0
    %4388 = vmatprep.subr.mxu0 0.0
    %4389 = vmatpush1.msra.mxu0 0.0
    %4390 = vmatprep.subr.mxu0 0.0
    %4391 = vmatpush1.msra.mxu0 0.0
    %4392 = vmatprep.subr.mxu0 0.0
    %4393 = vmatpush1.msra.mxu0 0.0
    %4394 = vmatprep.subr.mxu0 0.0
    %4395 = vmatpush1.msra.mxu0 0.0
    %4396 = vmatprep.subr.mxu0 0.0
    %4397 = vmatpush1.msra.mxu0 0.0
    %4398 = vmatprep.subr.mxu0 0.0
    %4399 = vmatpush1.msra.mxu0 0.0
    %4400 = vmatprep.subr.mxu0 0.0
    %4401 = vmatpush1.msra.mxu0 0.0
    %4402 = vmatprep.subr.mxu0 0.0
    %4403 = vmatpush1.msra.mxu0 0.0
    %4404 = vmatprep.subr.mxu0 0.0
    %4405 = vmatpush1.msra.mxu0 0.0
    %4406 = vmatprep.mubr.f32.mxu0 0.0
    %v4407 = vand.u32 %v115, 4294901760
    %4408 = vmatmul.mubr.f32.gmra.mrb[0].mxu0 %v4407
    %v4409 = vpop.f32.mrb[0].mxu0
    %v4410 = vadd.f32 %v4319, %v4409
    %v4411 = vpop.f32.mrb[0].mxu0
    %4412 = vmatprep.mubr.f32.mxu0 0.0
    %v4413 = vand.u32 %v118, 4294901760
    %4414 = vmatmul.mubr.f32.gmra.mrb[0].mxu0 %v4413
    %v4415 = vpop.f32.mrb[0].mxu0
    %v4416 = vadd.f32 %v4329, %v4415
    %v4417 = vpop.f32.mrb[0].mxu0
    %4418 = vdwg.mxu0
    %4419 = vmatprep.subr.mxu0 0.0
    %v4420 = vand.u32 %v4243, 4294901760
    %v4421 = vsub.f32 %v4243, %v4420
    %4422 = vmatpush1.msra.mxu0 %v4421
    %4423 = vmatprep.subr.mxu0 0.0
    %v4424 = vand.u32 %v4244, 4294901760
    %v4425 = vsub.f32 %v4244, %v4424
    %4426 = vmatpush1.msra.mxu0 %v4425
    %4427 = vmatprep.subr.mxu0 0.0
    %4428 = vmatpush1.msra.mxu0 0.0
    %4429 = vmatprep.subr.mxu0 0.0
    %4430 = vmatpush1.msra.mxu0 0.0
    %4431 = vmatprep.subr.mxu0 0.0
    %4432 = vmatpush1.msra.mxu0 0.0
    %4433 = vmatprep.subr.mxu0 0.0
    %4434 = vmatpush1.msra.mxu0 0.0
    %4435 = vmatprep.subr.mxu0 0.0
    %4436 = vmatpush1.msra.mxu0 0.0
    %4437 = vmatprep.subr.mxu0 0.0
    %4438 = vmatpush1.msra.mxu0 0.0
    %4439 = vmatprep.subr.mxu0 0.0
    %4440 = vmatpush1.msra.mxu0 0.0
    %4441 = vmatprep.subr.mxu0 0.0
    %4442 = vmatpush1.msra.mxu0 0.0
    %4443 = vmatprep.subr.mxu0 0.0
    %4444 = vmatpush1.msra.mxu0 0.0
    %4445 = vmatprep.subr.mxu0 0.0
    %4446 = vmatpush1.msra.mxu0 0.0
    %4447 = vmatprep.subr.mxu0 0.0
    %4448 = vmatpush1.msra.mxu0 0.0
    %4449 = vmatprep.subr.mxu0 0.0
    %4450 = vmatpush1.msra.mxu0 0.0
    %4451 = vmatprep.subr.mxu0 0.0
    %4452 = vmatpush1.msra.mxu0 0.0
    %4453 = vmatprep.subr.mxu0 0.0
    %4454 = vmatpush1.msra.mxu0 0.0
    %4455 = vmatprep.subr.mxu0 0.0
    %4456 = vmatpush1.msra.mxu0 0.0
    %4457 = vmatprep.subr.mxu0 0.0
    %4458 = vmatpush1.msra.mxu0 0.0
    %4459 = vmatprep.subr.mxu0 0.0
    %4460 = vmatpush1.msra.mxu0 0.0
    %4461 = vmatprep.subr.mxu0 0.0
    %4462 = vmatpush1.msra.mxu0 0.0
    %4463 = vmatprep.subr.mxu0 0.0
    %4464 = vmatpush1.msra.mxu0 0.0
    %4465 = vmatprep.subr.mxu0 0.0
    %4466 = vmatpush1.msra.mxu0 0.0
    %4467 = vmatprep.subr.mxu0 0.0
    %4468 = vmatpush1.msra.mxu0 0.0
    %4469 = vmatprep.subr.mxu0 0.0
    %4470 = vmatpush1.msra.mxu0 0.0
    %4471 = vmatprep.subr.mxu0 0.0
    %4472 = vmatpush1.msra.mxu0 0.0
    %4473 = vmatprep.subr.mxu0 0.0
    %4474 = vmatpush1.msra.mxu0 0.0
    %4475 = vmatprep.subr.mxu0 0.0
    %4476 = vmatpush1.msra.mxu0 0.0
    %4477 = vmatprep.subr.mxu0 0.0
    %4478 = vmatpush1.msra.mxu0 0.0
    %4479 = vmatprep.subr.mxu0 0.0
    %4480 = vmatpush1.msra.mxu0 0.0
    %4481 = vmatprep.subr.mxu0 0.0
    %4482 = vmatpush1.msra.mxu0 0.0
    %4483 = vmatprep.subr.mxu0 0.0
    %4484 = vmatpush1.msra.mxu0 0.0
    %4485 = vmatprep.subr.mxu0 0.0
    %4486 = vmatpush1.msra.mxu0 0.0
    %4487 = vmatprep.mubr.f32.mxu0 0.0
    %v4488 = vand.u32 %v115, 4294901760
    %v4489 = vsub.f32 %v115, %v4488
    %4490 = vmatmul.mubr.f32.gmra.mrb[0].mxu0 %v4489
    %v4491 = vpop.f32.mrb[0].mxu0
    %v4492 = vadd.f32 %v4410, %v4491
    %v4493 = vpop.f32.mrb[0].mxu0
    %4494 = vmatprep.mubr.f32.mxu0 0.0
    %v4495 = vand.u32 %v118, 4294901760
    %v4496 = vsub.f32 %v118, %v4495
    %4497 = vmatmul.mubr.f32.gmra.mrb[0].mxu0 %v4496
    %v4498 = vpop.f32.mrb[0].mxu0
    %v4499 = vadd.f32 %v4416, %v4498
    %v4500 = vpop.f32.mrb[0].mxu0
    %4501 = vdwg.mxu0
    %4502 = vmatprep.subr.mxu0 0.0
    %v4503 = vand.u32 %v4243, 4294901760
    %4504 = vmatpush1.msra.mxu0 %v4503
    %4505 = vmatprep.subr.mxu0 0.0
    %v4506 = vand.u32 %v4244, 4294901760
    %4507 = vmatpush1.msra.mxu0 %v4506
    %4508 = vmatprep.subr.mxu0 0.0
    %4509 = vmatpush1.msra.mxu0 0.0
    %4510 = vmatprep.subr.mxu0 0.0
    %4511 = vmatpush1.msra.mxu0 0.0
    %4512 = vmatprep.subr.mxu0 0.0
    %4513 = vmatpush1.msra.mxu0 0.0
    %4514 = vmatprep.subr.mxu0 0.0
    %4515 = vmatpush1.msra.mxu0 0.0
    %4516 = vmatprep.subr.mxu0 0.0
    %4517 = vmatpush1.msra.mxu0 0.0
    %4518 = vmatprep.subr.mxu0 0.0
    %4519 = vmatpush1.msra.mxu0 0.0
    %4520 = vmatprep.subr.mxu0 0.0
    %4521 = vmatpush1.msra.mxu0 0.0
    %4522 = vmatprep.subr.mxu0 0.0
    %4523 = vmatpush1.msra.mxu0 0.0
    %4524 = vmatprep.subr.mxu0 0.0
    %4525 = vmatpush1.msra.mxu0 0.0
    %4526 = vmatprep.subr.mxu0 0.0
    %4527 = vmatpush1.msra.mxu0 0.0
    %4528 = vmatprep.subr.mxu0 0.0
    %4529 = vmatpush1.msra.mxu0 0.0
    %4530 = vmatprep.subr.mxu0 0.0
    %4531 = vmatpush1.msra.mxu0 0.0
    %4532 = vmatprep.subr.mxu0 0.0
    %4533 = vmatpush1.msra.mxu0 0.0
    %4534 = vmatprep.subr.mxu0 0.0
    %4535 = vmatpush1.msra.mxu0 0.0
    %4536 = vmatprep.subr.mxu0 0.0
    %4537 = vmatpush1.msra.mxu0 0.0
    %4538 = vmatprep.subr.mxu0 0.0
    %4539 = vmatpush1.msra.mxu0 0.0
    %4540 = vmatprep.subr.mxu0 0.0
    %4541 = vmatpush1.msra.mxu0 0.0
    %4542 = vmatprep.subr.mxu0 0.0
    %4543 = vmatpush1.msra.mxu0 0.0
    %4544 = vmatprep.subr.mxu0 0.0
    %4545 = vmatpush1.msra.mxu0 0.0
    %4546 = vmatprep.subr.mxu0 0.0
    %4547 = vmatpush1.msra.mxu0 0.0
    %4548 = vmatprep.subr.mxu0 0.0
    %4549 = vmatpush1.msra.mxu0 0.0
    %4550 = vmatprep.subr.mxu0 0.0
    %4551 = vmatpush1.msra.mxu0 0.0
    %4552 = vmatprep.subr.mxu0 0.0
    %4553 = vmatpush1.msra.mxu0 0.0
    %4554 = vmatprep.subr.mxu0 0.0
    %4555 = vmatpush1.msra.mxu0 0.0
    %4556 = vmatprep.subr.mxu0 0.0
    %4557 = vmatpush1.msra.mxu0 0.0
    %4558 = vmatprep.subr.mxu0 0.0
    %4559 = vmatpush1.msra.mxu0 0.0
    %4560 = vmatprep.subr.mxu0 0.0
    %4561 = vmatpush1.msra.mxu0 0.0
    %4562 = vmatprep.subr.mxu0 0.0
    %4563 = vmatpush1.msra.mxu0 0.0
    %4564 = vmatprep.subr.mxu0 0.0
    %4565 = vmatpush1.msra.mxu0 0.0
    %4566 = vmatprep.subr.mxu0 0.0
    %4567 = vmatpush1.msra.mxu0 0.0
    %4568 = vmatprep.mubr.f32.mxu0 0.0
    %v4569 = vand.u32 %v115, 4294901760
    %v4570 = vsub.f32 %v115, %v4569
    %v4571 = vand.u32 %v4570, 4294901760
    %4572 = vmatmul.mubr.f32.gmra.mrb[0].mxu0 %v4571
    %v4573 = vpop.f32.mrb[0].mxu0
    %v4574 = vadd.f32 %v4492, %v4573
    %v4575 = vpop.f32.mrb[0].mxu0
    %4576 = vmatprep.mubr.f32.mxu0 0.0
    %v4577 = vand.u32 %v118, 4294901760
    %v4578 = vsub.f32 %v118, %v4577
    %v4579 = vand.u32 %v4578, 4294901760
    %4580 = vmatmul.mubr.f32.gmra.mrb[0].mxu0 %v4579
    %v4581 = vpop.f32.mrb[0].mxu0
    %v4582 = vadd.f32 %v4499, %v4581
    %v4583 = vpop.f32.mrb[0].mxu0
    %4584 = vdwg.mxu0
    %4585 = vmatprep.subr.mxu0 0.0
    %v4586 = vand.u32 %v4243, 4294901760
    %v4587 = vsub.f32 %v4243, %v4586
    %v4588 = vand.u32 %v4587, 4294901760
    %4589 = vmatpush1.msra.mxu0 %v4588
    %4590 = vmatprep.subr.mxu0 0.0
    %v4591 = vand.u32 %v4244, 4294901760
    %v4592 = vsub.f32 %v4244, %v4591
    %v4593 = vand.u32 %v4592, 4294901760
    %4594 = vmatpush1.msra.mxu0 %v4593
    %4595 = vmatprep.subr.mxu0 0.0
    %4596 = vmatpush1.msra.mxu0 0.0
    %4597 = vmatprep.subr.mxu0 0.0
    %4598 = vmatpush1.msra.mxu0 0.0
    %4599 = vmatprep.subr.mxu0 0.0
    %4600 = vmatpush1.msra.mxu0 0.0
    %4601 = vmatprep.subr.mxu0 0.0
    %4602 = vmatpush1.msra.mxu0 0.0
    %4603 = vmatprep.subr.mxu0 0.0
    %4604 = vmatpush1.msra.mxu0 0.0
    %4605 = vmatprep.subr.mxu0 0.0
    %4606 = vmatpush1.msra.mxu0 0.0
    %4607 = vmatprep.subr.mxu0 0.0
    %4608 = vmatpush1.msra.mxu0 0.0
    %4609 = vmatprep.subr.mxu0 0.0
    %4610 = vmatpush1.msra.mxu0 0.0
    %4611 = vmatprep.subr.mxu0 0.0
    %4612 = vmatpush1.msra.mxu0 0.0
    %4613 = vmatprep.subr.mxu0 0.0
    %4614 = vmatpush1.msra.mxu0 0.0
    %4615 = vmatprep.subr.mxu0 0.0
    %4616 = vmatpush1.msra.mxu0 0.0
    %4617 = vmatprep.subr.mxu0 0.0
    %4618 = vmatpush1.msra.mxu0 0.0
    %4619 = vmatprep.subr.mxu0 0.0
    %4620 = vmatpush1.msra.mxu0 0.0
    %4621 = vmatprep.subr.mxu0 0.0
    %4622 = vmatpush1.msra.mxu0 0.0
    %4623 = vmatprep.subr.mxu0 0.0
    %4624 = vmatpush1.msra.mxu0 0.0
    %4625 = vmatprep.subr.mxu0 0.0
    %4626 = vmatpush1.msra.mxu0 0.0
    %4627 = vmatprep.subr.mxu0 0.0
    %4628 = vmatpush1.msra.mxu0 0.0
    %4629 = vmatprep.subr.mxu0 0.0
    %4630 = vmatpush1.msra.mxu0 0.0
    %4631 = vmatprep.subr.mxu0 0.0
    %4632 = vmatpush1.msra.mxu0 0.0
    %4633 = vmatprep.subr.mxu0 0.0
    %4634 = vmatpush1.msra.mxu0 0.0
    %4635 = vmatprep.subr.mxu0 0.0
    %4636 = vmatpush1.msra.mxu0 0.0
    %4637 = vmatprep.subr.mxu0 0.0
    %4638 = vmatpush1.msra.mxu0 0.0
    %4639 = vmatprep.subr.mxu0 0.0
    %4640 = vmatpush1.msra.mxu0 0.0
    %4641 = vmatprep.subr.mxu0 0.0
    %4642 = vmatpush1.msra.mxu0 0.0
    %4643 = vmatprep.subr.mxu0 0.0
    %4644 = vmatpush1.msra.mxu0 0.0
    %4645 = vmatprep.subr.mxu0 0.0
    %4646 = vmatpush1.msra.mxu0 0.0
    %4647 = vmatprep.subr.mxu0 0.0
    %4648 = vmatpush1.msra.mxu0 0.0
    %4649 = vmatprep.subr.mxu0 0.0
    %4650 = vmatpush1.msra.mxu0 0.0
    %4651 = vmatprep.subr.mxu0 0.0
    %4652 = vmatpush1.msra.mxu0 0.0
    %4653 = vmatprep.subr.mxu0 0.0
    %4654 = vmatpush1.msra.mxu0 0.0
    %4655 = vmatprep.mubr.f32.mxu0 0.0
    %v4656 = vand.u32 %v115, 4294901760
    %4657 = vmatmul.mubr.f32.gmra.mrb[0].mxu0 %v4656
    %v4658 = vpop.f32.mrb[0].mxu0
    %v4659 = vadd.f32 %v4574, %v4658
    %v4660 = vpop.f32.mrb[0].mxu0
    %4661 = vmatprep.mubr.f32.mxu0 0.0
    %v4662 = vand.u32 %v118, 4294901760
    %4663 = vmatmul.mubr.f32.gmra.mrb[0].mxu0 %v4662
    %v4664 = vpop.f32.mrb[0].mxu0
    %v4665 = vadd.f32 %v4582, %v4664
    %v4666 = vpop.f32.mrb[0].mxu0
    %4667 = vdwg.mxu0
    %4668 = vmatprep.subr.mxu0 0.0
    %v4669 = vand.u32 %v4243, 4294901760
    %4670 = vmatpush1.msra.mxu0 %v4669
    %4671 = vmatprep.subr.mxu0 0.0
    %v4672 = vand.u32 %v4244, 4294901760
    %4673 = vmatpush1.msra.mxu0 %v4672
    %4674 = vmatprep.subr.mxu0 0.0
    %4675 = vmatpush1.msra.mxu0 0.0
    %4676 = vmatprep.subr.mxu0 0.0
    %4677 = vmatpush1.msra.mxu0 0.0
    %4678 = vmatprep.subr.mxu0 0.0
    %4679 = vmatpush1.msra.mxu0 0.0
    %4680 = vmatprep.subr.mxu0 0.0
    %4681 = vmatpush1.msra.mxu0 0.0
    %4682 = vmatprep.subr.mxu0 0.0
    %4683 = vmatpush1.msra.mxu0 0.0
    %4684 = vmatprep.subr.mxu0 0.0
    %4685 = vmatpush1.msra.mxu0 0.0
    %4686 = vmatprep.subr.mxu0 0.0
    %4687 = vmatpush1.msra.mxu0 0.0
    %4688 = vmatprep.subr.mxu0 0.0
    %4689 = vmatpush1.msra.mxu0 0.0
    %4690 = vmatprep.subr.mxu0 0.0
    %4691 = vmatpush1.msra.mxu0 0.0
    %4692 = vmatprep.subr.mxu0 0.0
    %4693 = vmatpush1.msra.mxu0 0.0
    %4694 = vmatprep.subr.mxu0 0.0
    %4695 = vmatpush1.msra.mxu0 0.0
    %4696 = vmatprep.subr.mxu0 0.0
    %4697 = vmatpush1.msra.mxu0 0.0
    %4698 = vmatprep.subr.mxu0 0.0
    %4699 = vmatpush1.msra.mxu0 0.0
    %4700 = vmatprep.subr.mxu0 0.0
    %4701 = vmatpush1.msra.mxu0 0.0
    %4702 = vmatprep.subr.mxu0 0.0
    %4703 = vmatpush1.msra.mxu0 0.0
    %4704 = vmatprep.subr.mxu0 0.0
    %4705 = vmatpush1.msra.mxu0 0.0
    %4706 = vmatprep.subr.mxu0 0.0
    %4707 = vmatpush1.msra.mxu0 0.0
    %4708 = vmatprep.subr.mxu0 0.0
    %4709 = vmatpush1.msra.mxu0 0.0
    %4710 = vmatprep.subr.mxu0 0.0
    %4711 = vmatpush1.msra.mxu0 0.0
    %4712 = vmatprep.subr.mxu0 0.0
    %4713 = vmatpush1.msra.mxu0 0.0
    %4714 = vmatprep.subr.mxu0 0.0
    %4715 = vmatpush1.msra.mxu0 0.0
    %4716 = vmatprep.subr.mxu0 0.0
    %4717 = vmatpush1.msra.mxu0 0.0
    %4718 = vmatprep.subr.mxu0 0.0
    %4719 = vmatpush1.msra.mxu0 0.0
    %4720 = vmatprep.subr.mxu0 0.0
    %4721 = vmatpush1.msra.mxu0 0.0
    %4722 = vmatprep.subr.mxu0 0.0
    %4723 = vmatpush1.msra.mxu0 0.0
    %4724 = vmatprep.subr.mxu0 0.0
    %4725 = vmatpush1.msra.mxu0 0.0
    %4726 = vmatprep.subr.mxu0 0.0
    %4727 = vmatpush1.msra.mxu0 0.0
    %4728 = vmatprep.subr.mxu0 0.0
    %4729 = vmatpush1.msra.mxu0 0.0
    %4730 = vmatprep.subr.mxu0 0.0
    %4731 = vmatpush1.msra.mxu0 0.0
    %4732 = vmatprep.subr.mxu0 0.0
    %4733 = vmatpush1.msra.mxu0 0.0
    %4734 = vmatprep.mubr.f32.mxu0 0.0
    %v4735 = vand.u32 %v115, 4294901760
    %4736 = vmatmul.mubr.f32.gmra.mrb[0].mxu0 %v4735
    %v4737 = vpop.f32.mrb[0].mxu0
    %v4738 = vadd.f32 %v4659, %v4737
    %v4739 = vpop.f32.mrb[0].mxu0
    %4740 = vmatprep.mubr.f32.mxu0 0.0
    %v4741 = vand.u32 %v118, 4294901760
    %4742 = vmatmul.mubr.f32.gmra.mrb[0].mxu0 %v4741
    %v4743 = vpop.f32.mrb[0].mxu0
    %v4744 = vadd.f32 %v4665, %v4743
    %v4745 = vpop.f32.mrb[0].mxu0
    %4746 = vdwg.mxu0
    %v4747 = vmul.f32 %v605, %v4738
    %v4748 = vmul.f32 %v610, %v4744
    %v4749 = vld [vmem:[#allocation8] sm:$0xff]
    %v4750 = vld [vmem:[#allocation8 + $0x8] sm:$0xff]
    %v4751 = vld [vmem:[#allocation8 + $0x10] sm:$0xff]
    %v4752 = vld [vmem:[#allocation8 + $0x18] sm:$0xff]
    %v4753 = vld [vmem:[#allocation8 + $0x20] sm:$0xff]
    %v4754 = vld [vmem:[#allocation8 + $0x28] sm:$0xff]
    %v4755 = vld [vmem:[#allocation8 + $0x30] sm:$0xff]
    %v4756 = vld [vmem:[#allocation8 + $0x38] sm:$0xff]
    %v4757 = vld [vmem:[#allocation8 + $0x40] sm:$0xff]
    %v4758 = vld [vmem:[#allocation8 + $0x48] sm:$0xff]
    %v4759 = vld [vmem:[#allocation8 + $0x50] sm:$0xff]
    %v4760 = vld [vmem:[#allocation8 + $0x58] sm:$0xff]
    %v4761 = vld [vmem:[#allocation8 + $0x60] sm:$0xff]
    %v4762 = vld [vmem:[#allocation8 + $0x68] sm:$0xff]
    %v4763 = vld [vmem:[#allocation8 + $0x70] sm:$0xff]
    %v4764 = vld [vmem:[#allocation8 + $0x78] sm:$0xff]
    %v4765 = vld [vmem:[#allocation8 + $0x80] sm:$0xff]
    %v4766 = vld [vmem:[#allocation8 + $0x88] sm:$0xff]
    %v4767 = vld [vmem:[#allocation8 + $0x90] sm:$0xff]
    %v4768 = vld [vmem:[#allocation8 + $0x98] sm:$0xff]
    %v4769 = vld [vmem:[#allocation8 + $0xa0] sm:$0xff]
    %v4770 = vld [vmem:[#allocation8 + $0xa8] sm:$0xff]
    %v4771 = vld [vmem:[#allocation8 + $0xb0] sm:$0xff]
    %v4772 = vld [vmem:[#allocation8 + $0xb8] sm:$0xff]
    %v4773 = vld [vmem:[#allocation8 + $0xc0] sm:$0xff]
    %v4774 = vld [vmem:[#allocation8 + $0xc8] sm:$0xff]
    %v4775 = vld [vmem:[#allocation8 + $0xd0] sm:$0xff]
    %v4776 = vld [vmem:[#allocation8 + $0xd8] sm:$0xff]
    %v4777 = vld [vmem:[#allocation8 + $0xe0] sm:$0xff]
    %v4778 = vld [vmem:[#allocation8 + $0xe8] sm:$0xff]
    %v4779 = vld [vmem:[#allocation8 + $0xf0] sm:$0xff]
    %v4780 = vld [vmem:[#allocation8 + $0xf8] sm:$0xff]
    %4781 = vmatprep.subr.mxu0 0.0
    %v4782 = vand.u32 %v4765, 4294901760
    %4783 = vmatpush1.msra.mxu0 %v4782
    %4784 = vmatprep.subr.mxu0 0.0
    %v4785 = vand.u32 %v4766, 4294901760
    %4786 = vmatpush1.msra.mxu0 %v4785
    %4787 = vmatprep.subr.mxu0 0.0
    %v4788 = vand.u32 %v4767, 4294901760
    %4789 = vmatpush1.msra.mxu0 %v4788
    %4790 = vmatprep.subr.mxu0 0.0
    %v4791 = vand.u32 %v4768, 4294901760
    %4792 = vmatpush1.msra.mxu0 %v4791
    %4793 = vmatprep.subr.mxu0 0.0
    %v4794 = vand.u32 %v4769, 4294901760
    %4795 = vmatpush1.msra.mxu0 %v4794
    %4796 = vmatprep.subr.mxu0 0.0
    %v4797 = vand.u32 %v4770, 4294901760
    %4798 = vmatpush1.msra.mxu0 %v4797
    %4799 = vmatprep.subr.mxu0 0.0
    %v4800 = vand.u32 %v4771, 4294901760
    %4801 = vmatpush1.msra.mxu0 %v4800
    %4802 = vmatprep.subr.mxu0 0.0
    %v4803 = vand.u32 %v4772, 4294901760
    %4804 = vmatpush1.msra.mxu0 %v4803
    %4805 = vmatprep.subr.mxu0 0.0
    %v4806 = vand.u32 %v4773, 4294901760
    %4807 = vmatpush1.msra.mxu0 %v4806
    %4808 = vmatprep.subr.mxu0 0.0
    %v4809 = vand.u32 %v4774, 4294901760
    %4810 = vmatpush1.msra.mxu0 %v4809
    %4811 = vmatprep.subr.mxu0 0.0
    %v4812 = vand.u32 %v4775, 4294901760
    %4813 = vmatpush1.msra.mxu0 %v4812
    %4814 = vmatprep.subr.mxu0 0.0
    %v4815 = vand.u32 %v4776, 4294901760
    %4816 = vmatpush1.msra.mxu0 %v4815
    %4817 = vmatprep.subr.mxu0 0.0
    %v4818 = vand.u32 %v4777, 4294901760
    %4819 = vmatpush1.msra.mxu0 %v4818
    %4820 = vmatprep.subr.mxu0 0.0
    %v4821 = vand.u32 %v4778, 4294901760
    %4822 = vmatpush1.msra.mxu0 %v4821
    %4823 = vmatprep.subr.mxu0 0.0
    %v4824 = vand.u32 %v4779, 4294901760
    %4825 = vmatpush1.msra.mxu0 %v4824
    %4826 = vmatprep.subr.mxu0 0.0
    %v4827 = vand.u32 %v4780, 4294901760
    %4828 = vmatpush1.msra.mxu0 %v4827
    %4829 = vmatprep.subr.mxu0 0.0
    %4830 = vmatpush1.msra.mxu0 0.0
    %4831 = vmatprep.subr.mxu0 0.0
    %4832 = vmatpush1.msra.mxu0 0.0
    %4833 = vmatprep.subr.mxu0 0.0
    %4834 = vmatpush1.msra.mxu0 0.0
    %4835 = vmatprep.subr.mxu0 0.0
    %4836 = vmatpush1.msra.mxu0 0.0
    %4837 = vmatprep.subr.mxu0 0.0
    %4838 = vmatpush1.msra.mxu0 0.0
    %4839 = vmatprep.subr.mxu0 0.0
    %4840 = vmatpush1.msra.mxu0 0.0
    %4841 = vmatprep.subr.mxu0 0.0
    %4842 = vmatpush1.msra.mxu0 0.0
    %4843 = vmatprep.subr.mxu0 0.0
    %4844 = vmatpush1.msra.mxu0 0.0
    %4845 = vmatprep.subr.mxu0 0.0
    %4846 = vmatpush1.msra.mxu0 0.0
    %4847 = vmatprep.subr.mxu0 0.0
    %4848 = vmatpush1.msra.mxu0 0.0
    %4849 = vmatprep.subr.mxu0 0.0
    %4850 = vmatpush1.msra.mxu0 0.0
    %4851 = vmatprep.subr.mxu0 0.0
    %4852 = vmatpush1.msra.mxu0 0.0
    %4853 = vmatprep.subr.mxu0 0.0
    %4854 = vmatpush1.msra.mxu0 0.0
    %4855 = vmatprep.subr.mxu0 0.0
    %4856 = vmatpush1.msra.mxu0 0.0
    %4857 = vmatprep.subr.mxu0 0.0
    %4858 = vmatpush1.msra.mxu0 0.0
    %4859 = vmatprep.subr.mxu0 0.0
    %4860 = vmatpush1.msra.mxu0 0.0
    %4861 = vmatprep.mubr.f32.mxu0 0.0
    %v4862 = vand.u32 %v4241, 4294901760
    %v4863 = vsub.f32 %v4241, %v4862
    %v4864 = vand.u32 %v4863, 4294901760
    %v4865 = vsub.f32 %v4863, %v4864
    %v4866 = vand.u32 %v4865, 4294901760
    %4867 = vmatmul.mubr.f32.gmra.mrb[0].mxu0 %v4866
    %v4868 = vpop.f32.mrb[0].mxu0
    %v4869 = vadd.f32 0.0, %v4868
    %v4870 = vpop.f32.mrb[0].mxu0
    %4871 = vmatprep.mubr.f32.mxu0 0.0
    %v4872 = vand.u32 %v4242, 4294901760
    %v4873 = vsub.f32 %v4242, %v4872
    %v4874 = vand.u32 %v4873, 4294901760
    %v4875 = vsub.f32 %v4873, %v4874
    %v4876 = vand.u32 %v4875, 4294901760
    %4877 = vmatmul.mubr.f32.gmra.mrb[0].mxu0 %v4876
    %v4878 = vpop.f32.mrb[0].mxu0
    %v4879 = vadd.f32 0.0, %v4878
    %v4880 = vpop.f32.mrb[0].mxu0
    %4881 = vdwg.mxu0
    %4882 = vmatprep.subr.mxu0 0.0
    %v4883 = vand.u32 %v4765, 4294901760
    %v4884 = vsub.f32 %v4765, %v4883
    %v4885 = vand.u32 %v4884, 4294901760
    %v4886 = vsub.f32 %v4884, %v4885
    %v4887 = vand.u32 %v4886, 4294901760
    %4888 = vmatpush1.msra.mxu0 %v4887
    %4889 = vmatprep.subr.mxu0 0.0
    %v4890 = vand.u32 %v4766, 4294901760
    %v4891 = vsub.f32 %v4766, %v4890
    %v4892 = vand.u32 %v4891, 4294901760
    %v4893 = vsub.f32 %v4891, %v4892
    %v4894 = vand.u32 %v4893, 4294901760
    %4895 = vmatpush1.msra.mxu0 %v4894
    %4896 = vmatprep.subr.mxu0 0.0
    %v4897 = vand.u32 %v4767, 4294901760
    %v4898 = vsub.f32 %v4767, %v4897
    %v4899 = vand.u32 %v4898, 4294901760
    %v4900 = vsub.f32 %v4898, %v4899
    %v4901 = vand.u32 %v4900, 4294901760
    %4902 = vmatpush1.msra.mxu0 %v4901
    %4903 = vmatprep.subr.mxu0 0.0
    %v4904 = vand.u32 %v4768, 4294901760
    %v4905 = vsub.f32 %v4768, %v4904
    %v4906 = vand.u32 %v4905, 4294901760
    %v4907 = vsub.f32 %v4905, %v4906
    %v4908 = vand.u32 %v4907, 4294901760
    %4909 = vmatpush1.msra.mxu0 %v4908
    %4910 = vmatprep.subr.mxu0 0.0
    %v4911 = vand.u32 %v4769, 4294901760
    %v4912 = vsub.f32 %v4769, %v4911
    %v4913 = vand.u32 %v4912, 4294901760
    %v4914 = vsub.f32 %v4912, %v4913
    %v4915 = vand.u32 %v4914, 4294901760
    %4916 = vmatpush1.msra.mxu0 %v4915
    %4917 = vmatprep.subr.mxu0 0.0
    %v4918 = vand.u32 %v4770, 4294901760
    %v4919 = vsub.f32 %v4770, %v4918
    %v4920 = vand.u32 %v4919, 4294901760
    %v4921 = vsub.f32 %v4919, %v4920
    %v4922 = vand.u32 %v4921, 4294901760
    %4923 = vmatpush1.msra.mxu0 %v4922
    %4924 = vmatprep.subr.mxu0 0.0
    %v4925 = vand.u32 %v4771, 4294901760
    %v4926 = vsub.f32 %v4771, %v4925
    %v4927 = vand.u32 %v4926, 4294901760
    %v4928 = vsub.f32 %v4926, %v4927
    %v4929 = vand.u32 %v4928, 4294901760
    %4930 = vmatpush1.msra.mxu0 %v4929
    %4931 = vmatprep.subr.mxu0 0.0
    %v4932 = vand.u32 %v4772, 4294901760
    %v4933 = vsub.f32 %v4772, %v4932
    %v4934 = vand.u32 %v4933, 4294901760
    %v4935 = vsub.f32 %v4933, %v4934
    %v4936 = vand.u32 %v4935, 4294901760
    %4937 = vmatpush1.msra.mxu0 %v4936
    %4938 = vmatprep.subr.mxu0 0.0
    %v4939 = vand.u32 %v4773, 4294901760
    %v4940 = vsub.f32 %v4773, %v4939
    %v4941 = vand.u32 %v4940, 4294901760
    %v4942 = vsub.f32 %v4940, %v4941
    %v4943 = vand.u32 %v4942, 4294901760
    %4944 = vmatpush1.msra.mxu0 %v4943
    %4945 = vmatprep.subr.mxu0 0.0
    %v4946 = vand.u32 %v4774, 4294901760
    %v4947 = vsub.f32 %v4774, %v4946
    %v4948 = vand.u32 %v4947, 4294901760
    %v4949 = vsub.f32 %v4947, %v4948
    %v4950 = vand.u32 %v4949, 4294901760
    %4951 = vmatpush1.msra.mxu0 %v4950
    %4952 = vmatprep.subr.mxu0 0.0
    %v4953 = vand.u32 %v4775, 4294901760
    %v4954 = vsub.f32 %v4775, %v4953
    %v4955 = vand.u32 %v4954, 4294901760
    %v4956 = vsub.f32 %v4954, %v4955
    %v4957 = vand.u32 %v4956, 4294901760
    %4958 = vmatpush1.msra.mxu0 %v4957
    %4959 = vmatprep.subr.mxu0 0.0
    %v4960 = vand.u32 %v4776, 4294901760
    %v4961 = vsub.f32 %v4776, %v4960
    %v4962 = vand.u32 %v4961, 4294901760
    %v4963 = vsub.f32 %v4961, %v4962
    %v4964 = vand.u32 %v4963, 4294901760
    %4965 = vmatpush1.msra.mxu0 %v4964
    %4966 = vmatprep.subr.mxu0 0.0
    %v4967 = vand.u32 %v4777, 4294901760
    %v4968 = vsub.f32 %v4777, %v4967
    %v4969 = vand.u32 %v4968, 4294901760
    %v4970 = vsub.f32 %v4968, %v4969
    %v4971 = vand.u32 %v4970, 4294901760
    %4972 = vmatpush1.msra.mxu0 %v4971
    %4973 = vmatprep.subr.mxu0 0.0
    %v4974 = vand.u32 %v4778, 4294901760
    %v4975 = vsub.f32 %v4778, %v4974
    %v4976 = vand.u32 %v4975, 4294901760
    %v4977 = vsub.f32 %v4975, %v4976
    %v4978 = vand.u32 %v4977, 4294901760
    %4979 = vmatpush1.msra.mxu0 %v4978
    %4980 = vmatprep.subr.mxu0 0.0
    %v4981 = vand.u32 %v4779, 4294901760
    %v4982 = vsub.f32 %v4779, %v4981
    %v4983 = vand.u32 %v4982, 4294901760
    %v4984 = vsub.f32 %v4982, %v4983
    %v4985 = vand.u32 %v4984, 4294901760
    %4986 = vmatpush1.msra.mxu0 %v4985
    %4987 = vmatprep.subr.mxu0 0.0
    %v4988 = vand.u32 %v4780, 4294901760
    %v4989 = vsub.f32 %v4780, %v4988
    %v4990 = vand.u32 %v4989, 4294901760
    %v4991 = vsub.f32 %v4989, %v4990
    %v4992 = vand.u32 %v4991, 4294901760
    %4993 = vmatpush1.msra.mxu0 %v4992
    %4994 = vmatprep.subr.mxu0 0.0
    %4995 = vmatpush1.msra.mxu0 0.0
    %4996 = vmatprep.subr.mxu0 0.0
    %4997 = vmatpush1.msra.mxu0 0.0
    %4998 = vmatprep.subr.mxu0 0.0
    %4999 = vmatpush1.msra.mxu0 0.0
    %5000 = vmatprep.subr.mxu0 0.0
    %5001 = vmatpush1.msra.mxu0 0.0
    %5002 = vmatprep.subr.mxu0 0.0
    %5003 = vmatpush1.msra.mxu0 0.0
    %5004 = vmatprep.subr.mxu0 0.0
    %5005 = vmatpush1.msra.mxu0 0.0
    %5006 = vmatprep.subr.mxu0 0.0
    %5007 = vmatpush1.msra.mxu0 0.0
    %5008 = vmatprep.subr.mxu0 0.0
    %5009 = vmatpush1.msra.mxu0 0.0
    %5010 = vmatprep.subr.mxu0 0.0
    %5011 = vmatpush1.msra.mxu0 0.0
    %5012 = vmatprep.subr.mxu0 0.0
    %5013 = vmatpush1.msra.mxu0 0.0
    %5014 = vmatprep.subr.mxu0 0.0
    %5015 = vmatpush1.msra.mxu0 0.0
    %5016 = vmatprep.subr.mxu0 0.0
    %5017 = vmatpush1.msra.mxu0 0.0
    %5018 = vmatprep.subr.mxu0 0.0
    %5019 = vmatpush1.msra.mxu0 0.0
    %5020 = vmatprep.subr.mxu0 0.0
    %5021 = vmatpush1.msra.mxu0 0.0
    %5022 = vmatprep.subr.mxu0 0.0
    %5023 = vmatpush1.msra.mxu0 0.0
    %5024 = vmatprep.subr.mxu0 0.0
    %5025 = vmatpush1.msra.mxu0 0.0
    %5026 = vmatprep.mubr.f32.mxu0 0.0
    %v5027 = vand.u32 %v4241, 4294901760
    %5028 = vmatmul.mubr.f32.gmra.mrb[0].mxu0 %v5027
    %v5029 = vpop.f32.mrb[0].mxu0
    %v5030 = vadd.f32 %v4869, %v5029
    %v5031 = vpop.f32.mrb[0].mxu0
    %5032 = vmatprep.mubr.f32.mxu0 0.0
    %v5033 = vand.u32 %v4242, 4294901760
    %5034 = vmatmul.mubr.f32.gmra.mrb[0].mxu0 %v5033
    %v5035 = vpop.f32.mrb[0].mxu0
    %v5036 = vadd.f32 %v4879, %v5035
    %v5037 = vpop.f32.mrb[0].mxu0
    %5038 = vdwg.mxu0
    %5039 = vmatprep.subr.mxu0 0.0
    %v5040 = vand.u32 %v4765, 4294901760
    %v5041 = vsub.f32 %v4765, %v5040
    %5042 = vmatpush1.msra.mxu0 %v5041
    %5043 = vmatprep.subr.mxu0 0.0
    %v5044 = vand.u32 %v4766, 4294901760
    %v5045 = vsub.f32 %v4766, %v5044
    %5046 = vmatpush1.msra.mxu0 %v5045
    %5047 = vmatprep.subr.mxu0 0.0
    %v5048 = vand.u32 %v4767, 4294901760
    %v5049 = vsub.f32 %v4767, %v5048
    %5050 = vmatpush1.msra.mxu0 %v5049
    %5051 = vmatprep.subr.mxu0 0.0
    %v5052 = vand.u32 %v4768, 4294901760
    %v5053 = vsub.f32 %v4768, %v5052
    %5054 = vmatpush1.msra.mxu0 %v5053
    %5055 = vmatprep.subr.mxu0 0.0
    %v5056 = vand.u32 %v4769, 4294901760
    %v5057 = vsub.f32 %v4769, %v5056
    %5058 = vmatpush1.msra.mxu0 %v5057
    %5059 = vmatprep.subr.mxu0 0.0
    %v5060 = vand.u32 %v4770, 4294901760
    %v5061 = vsub.f32 %v4770, %v5060
    %5062 = vmatpush1.msra.mxu0 %v5061
    %5063 = vmatprep.subr.mxu0 0.0
    %v5064 = vand.u32 %v4771, 4294901760
    %v5065 = vsub.f32 %v4771, %v5064
    %5066 = vmatpush1.msra.mxu0 %v5065
    %5067 = vmatprep.subr.mxu0 0.0
    %v5068 = vand.u32 %v4772, 4294901760
    %v5069 = vsub.f32 %v4772, %v5068
    %5070 = vmatpush1.msra.mxu0 %v5069
    %5071 = vmatprep.subr.mxu0 0.0
    %v5072 = vand.u32 %v4773, 4294901760
    %v5073 = vsub.f32 %v4773, %v5072
    %5074 = vmatpush1.msra.mxu0 %v5073
    %5075 = vmatprep.subr.mxu0 0.0
    %v5076 = vand.u32 %v4774, 4294901760
    %v5077 = vsub.f32 %v4774, %v5076
    %5078 = vmatpush1.msra.mxu0 %v5077
    %5079 = vmatprep.subr.mxu0 0.0
    %v5080 = vand.u32 %v4775, 4294901760
    %v5081 = vsub.f32 %v4775, %v5080
    %5082 = vmatpush1.msra.mxu0 %v5081
    %5083 = vmatprep.subr.mxu0 0.0
    %v5084 = vand.u32 %v4776, 4294901760
    %v5085 = vsub.f32 %v4776, %v5084
    %5086 = vmatpush1.msra.mxu0 %v5085
    %5087 = vmatprep.subr.mxu0 0.0
    %v5088 = vand.u32 %v4777, 4294901760
    %v5089 = vsub.f32 %v4777, %v5088
    %5090 = vmatpush1.msra.mxu0 %v5089
    %5091 = vmatprep.subr.mxu0 0.0
    %v5092 = vand.u32 %v4778, 4294901760
    %v5093 = vsub.f32 %v4778, %v5092
    %5094 = vmatpush1.msra.mxu0 %v5093
    %5095 = vmatprep.subr.mxu0 0.0
    %v5096 = vand.u32 %v4779, 4294901760
    %v5097 = vsub.f32 %v4779, %v5096
    %5098 = vmatpush1.msra.mxu0 %v5097
    %5099 = vmatprep.subr.mxu0 0.0
    %v5100 = vand.u32 %v4780, 4294901760
    %v5101 = vsub.f32 %v4780, %v5100
    %5102 = vmatpush1.msra.mxu0 %v5101
    %5103 = vmatprep.subr.mxu0 0.0
    %5104 = vmatpush1.msra.mxu0 0.0
    %5105 = vmatprep.subr.mxu0 0.0
    %5106 = vmatpush1.msra.mxu0 0.0
    %5107 = vmatprep.subr.mxu0 0.0
    %5108 = vmatpush1.msra.mxu0 0.0
    %5109 = vmatprep.subr.mxu0 0.0
    %5110 = vmatpush1.msra.mxu0 0.0
    %5111 = vmatprep.subr.mxu0 0.0
    %5112 = vmatpush1.msra.mxu0 0.0
    %5113 = vmatprep.subr.mxu0 0.0
    %5114 = vmatpush1.msra.mxu0 0.0
    %5115 = vmatprep.subr.mxu0 0.0
    %5116 = vmatpush1.msra.mxu0 0.0
    %5117 = vmatprep.subr.mxu0 0.0
    %5118 = vmatpush1.msra.mxu0 0.0
    %5119 = vmatprep.subr.mxu0 0.0
    %5120 = vmatpush1.msra.mxu0 0.0
    %5121 = vmatprep.subr.mxu0 0.0
    %5122 = vmatpush1.msra.mxu0 0.0
    %5123 = vmatprep.subr.mxu0 0.0
    %5124 = vmatpush1.msra.mxu0 0.0
    %5125 = vmatprep.subr.mxu0 0.0
    %5126 = vmatpush1.msra.mxu0 0.0
    %5127 = vmatprep.subr.mxu0 0.0
    %5128 = vmatpush1.msra.mxu0 0.0
    %5129 = vmatprep.subr.mxu0 0.0
    %5130 = vmatpush1.msra.mxu0 0.0
    %5131 = vmatprep.subr.mxu0 0.0
    %5132 = vmatpush1.msra.mxu0 0.0
    %5133 = vmatprep.subr.mxu0 0.0
    %5134 = vmatpush1.msra.mxu0 0.0
    %5135 = vmatprep.mubr.f32.mxu0 0.0
    %v5136 = vand.u32 %v4241, 4294901760
    %v5137 = vsub.f32 %v4241, %v5136
    %5138 = vmatmul.mubr.f32.gmra.mrb[0].mxu0 %v5137
    %v5139 = vpop.f32.mrb[0].mxu0
    %v5140 = vadd.f32 %v5030, %v5139
    %v5141 = vpop.f32.mrb[0].mxu0
    %5142 = vmatprep.mubr.f32.mxu0 0.0
    %v5143 = vand.u32 %v4242, 4294901760
    %v5144 = vsub.f32 %v4242, %v5143
    %5145 = vmatmul.mubr.f32.gmra.mrb[0].mxu0 %v5144
    %v5146 = vpop.f32.mrb[0].mxu0
    %v5147 = vadd.f32 %v5036, %v5146
    %v5148 = vpop.f32.mrb[0].mxu0
    %5149 = vdwg.mxu0
    %5150 = vmatprep.subr.mxu0 0.0
    %v5151 = vand.u32 %v4765, 4294901760
    %5152 = vmatpush1.msra.mxu0 %v5151
    %5153 = vmatprep.subr.mxu0 0.0
    %v5154 = vand.u32 %v4766, 4294901760
    %5155 = vmatpush1.msra.mxu0 %v5154
    %5156 = vmatprep.subr.mxu0 0.0
    %v5157 = vand.u32 %v4767, 4294901760
    %5158 = vmatpush1.msra.mxu0 %v5157
    %5159 = vmatprep.subr.mxu0 0.0
    %v5160 = vand.u32 %v4768, 4294901760
    %5161 = vmatpush1.msra.mxu0 %v5160
    %5162 = vmatprep.subr.mxu0 0.0
    %v5163 = vand.u32 %v4769, 4294901760
    %5164 = vmatpush1.msra.mxu0 %v5163
    %5165 = vmatprep.subr.mxu0 0.0
    %v5166 = vand.u32 %v4770, 4294901760
    %5167 = vmatpush1.msra.mxu0 %v5166
    %5168 = vmatprep.subr.mxu0 0.0
    %v5169 = vand.u32 %v4771, 4294901760
    %5170 = vmatpush1.msra.mxu0 %v5169
    %5171 = vmatprep.subr.mxu0 0.0
    %v5172 = vand.u32 %v4772, 4294901760
    %5173 = vmatpush1.msra.mxu0 %v5172
    %5174 = vmatprep.subr.mxu0 0.0
    %v5175 = vand.u32 %v4773, 4294901760
    %5176 = vmatpush1.msra.mxu0 %v5175
    %5177 = vmatprep.subr.mxu0 0.0
    %v5178 = vand.u32 %v4774, 4294901760
    %5179 = vmatpush1.msra.mxu0 %v5178
    %5180 = vmatprep.subr.mxu0 0.0
    %v5181 = vand.u32 %v4775, 4294901760
    %5182 = vmatpush1.msra.mxu0 %v5181
    %5183 = vmatprep.subr.mxu0 0.0
    %v5184 = vand.u32 %v4776, 4294901760
    %5185 = vmatpush1.msra.mxu0 %v5184
    %5186 = vmatprep.subr.mxu0 0.0
    %v5187 = vand.u32 %v4777, 4294901760
    %5188 = vmatpush1.msra.mxu0 %v5187
    %5189 = vmatprep.subr.mxu0 0.0
    %v5190 = vand.u32 %v4778, 4294901760
    %5191 = vmatpush1.msra.mxu0 %v5190
    %5192 = vmatprep.subr.mxu0 0.0
    %v5193 = vand.u32 %v4779, 4294901760
    %5194 = vmatpush1.msra.mxu0 %v5193
    %5195 = vmatprep.subr.mxu0 0.0
    %v5196 = vand.u32 %v4780, 4294901760
    %5197 = vmatpush1.msra.mxu0 %v5196
    %5198 = vmatprep.subr.mxu0 0.0
    %5199 = vmatpush1.msra.mxu0 0.0
    %5200 = vmatprep.subr.mxu0 0.0
    %5201 = vmatpush1.msra.mxu0 0.0
    %5202 = vmatprep.subr.mxu0 0.0
    %5203 = vmatpush1.msra.mxu0 0.0
    %5204 = vmatprep.subr.mxu0 0.0
    %5205 = vmatpush1.msra.mxu0 0.0
    %5206 = vmatprep.subr.mxu0 0.0
    %5207 = vmatpush1.msra.mxu0 0.0
    %5208 = vmatprep.subr.mxu0 0.0
    %5209 = vmatpush1.msra.mxu0 0.0
    %5210 = vmatprep.subr.mxu0 0.0
    %5211 = vmatpush1.msra.mxu0 0.0
    %5212 = vmatprep.subr.mxu0 0.0
    %5213 = vmatpush1.msra.mxu0 0.0
    %5214 = vmatprep.subr.mxu0 0.0
    %5215 = vmatpush1.msra.mxu0 0.0
    %5216 = vmatprep.subr.mxu0 0.0
    %5217 = vmatpush1.msra.mxu0 0.0
    %5218 = vmatprep.subr.mxu0 0.0
    %5219 = vmatpush1.msra.mxu0 0.0
    %5220 = vmatprep.subr.mxu0 0.0
    %5221 = vmatpush1.msra.mxu0 0.0
    %5222 = vmatprep.subr.mxu0 0.0
    %5223 = vmatpush1.msra.mxu0 0.0
    %5224 = vmatprep.subr.mxu0 0.0
    %5225 = vmatpush1.msra.mxu0 0.0
    %5226 = vmatprep.subr.mxu0 0.0
    %5227 = vmatpush1.msra.mxu0 0.0
    %5228 = vmatprep.subr.mxu0 0.0
    %5229 = vmatpush1.msra.mxu0 0.0
    %5230 = vmatprep.mubr.f32.mxu0 0.0
    %v5231 = vand.u32 %v4241, 4294901760
    %v5232 = vsub.f32 %v4241, %v5231
    %v5233 = vand.u32 %v5232, 4294901760
    %5234 = vmatmul.mubr.f32.gmra.mrb[0].mxu0 %v5233
    %v5235 = vpop.f32.mrb[0].mxu0
    %v5236 = vadd.f32 %v5140, %v5235
    %v5237 = vpop.f32.mrb[0].mxu0
    %5238 = vmatprep.mubr.f32.mxu0 0.0
    %v5239 = vand.u32 %v4242, 4294901760
    %v5240 = vsub.f32 %v4242, %v5239
    %v5241 = vand.u32 %v5240, 4294901760
    %5242 = vmatmul.mubr.f32.gmra.mrb[0].mxu0 %v5241
    %v5243 = vpop.f32.mrb[0].mxu0
    %v5244 = vadd.f32 %v5147, %v5243
    %v5245 = vpop.f32.mrb[0].mxu0
    %5246 = vdwg.mxu0
    %5247 = vmatprep.subr.mxu0 0.0
    %v5248 = vand.u32 %v4765, 4294901760
    %v5249 = vsub.f32 %v4765, %v5248
    %v5250 = vand.u32 %v5249, 4294901760
    %5251 = vmatpush1.msra.mxu0 %v5250
    %5252 = vmatprep.subr.mxu0 0.0
    %v5253 = vand.u32 %v4766, 4294901760
    %v5254 = vsub.f32 %v4766, %v5253
    %v5255 = vand.u32 %v5254, 4294901760
    %5256 = vmatpush1.msra.mxu0 %v5255
    %5257 = vmatprep.subr.mxu0 0.0
    %v5258 = vand.u32 %v4767, 4294901760
    %v5259 = vsub.f32 %v4767, %v5258
    %v5260 = vand.u32 %v5259, 4294901760
    %5261 = vmatpush1.msra.mxu0 %v5260
    %5262 = vmatprep.subr.mxu0 0.0
    %v5263 = vand.u32 %v4768, 4294901760
    %v5264 = vsub.f32 %v4768, %v5263
    %v5265 = vand.u32 %v5264, 4294901760
    %5266 = vmatpush1.msra.mxu0 %v5265
    %5267 = vmatprep.subr.mxu0 0.0
    %v5268 = vand.u32 %v4769, 4294901760
    %v5269 = vsub.f32 %v4769, %v5268
    %v5270 = vand.u32 %v5269, 4294901760
    %5271 = vmatpush1.msra.mxu0 %v5270
    %5272 = vmatprep.subr.mxu0 0.0
    %v5273 = vand.u32 %v4770, 4294901760
    %v5274 = vsub.f32 %v4770, %v5273
    %v5275 = vand.u32 %v5274, 4294901760
    %5276 = vmatpush1.msra.mxu0 %v5275
    %5277 = vmatprep.subr.mxu0 0.0
    %v5278 = vand.u32 %v4771, 4294901760
    %v5279 = vsub.f32 %v4771, %v5278
    %v5280 = vand.u32 %v5279, 4294901760
    %5281 = vmatpush1.msra.mxu0 %v5280
    %5282 = vmatprep.subr.mxu0 0.0
    %v5283 = vand.u32 %v4772, 4294901760
    %v5284 = vsub.f32 %v4772, %v5283
    %v5285 = vand.u32 %v5284, 4294901760
    %5286 = vmatpush1.msra.mxu0 %v5285
    %5287 = vmatprep.subr.mxu0 0.0
    %v5288 = vand.u32 %v4773, 4294901760
    %v5289 = vsub.f32 %v4773, %v5288
    %v5290 = vand.u32 %v5289, 4294901760
    %5291 = vmatpush1.msra.mxu0 %v5290
    %5292 = vmatprep.subr.mxu0 0.0
    %v5293 = vand.u32 %v4774, 4294901760
    %v5294 = vsub.f32 %v4774, %v5293
    %v5295 = vand.u32 %v5294, 4294901760
    %5296 = vmatpush1.msra.mxu0 %v5295
    %5297 = vmatprep.subr.mxu0 0.0
    %v5298 = vand.u32 %v4775, 4294901760
    %v5299 = vsub.f32 %v4775, %v5298
    %v5300 = vand.u32 %v5299, 4294901760
    %5301 = vmatpush1.msra.mxu0 %v5300
    %5302 = vmatprep.subr.mxu0 0.0
    %v5303 = vand.u32 %v4776, 4294901760
    %v5304 = vsub.f32 %v4776, %v5303
    %v5305 = vand.u32 %v5304, 4294901760
    %5306 = vmatpush1.msra.mxu0 %v5305
    %5307 = vmatprep.subr.mxu0 0.0
    %v5308 = vand.u32 %v4777, 4294901760
    %v5309 = vsub.f32 %v4777, %v5308
    %v5310 = vand.u32 %v5309, 4294901760
    %5311 = vmatpush1.msra.mxu0 %v5310
    %5312 = vmatprep.subr.mxu0 0.0
    %v5313 = vand.u32 %v4778, 4294901760
    %v5314 = vsub.f32 %v4778, %v5313
    %v5315 = vand.u32 %v5314, 4294901760
    %5316 = vmatpush1.msra.mxu0 %v5315
    %5317 = vmatprep.subr.mxu0 0.0
    %v5318 = vand.u32 %v4779, 4294901760
    %v5319 = vsub.f32 %v4779, %v5318
    %v5320 = vand.u32 %v5319, 4294901760
    %5321 = vmatpush1.msra.mxu0 %v5320
    %5322 = vmatprep.subr.mxu0 0.0
    %v5323 = vand.u32 %v4780, 4294901760
    %v5324 = vsub.f32 %v4780, %v5323
    %v5325 = vand.u32 %v5324, 4294901760
    %5326 = vmatpush1.msra.mxu0 %v5325
    %5327 = vmatprep.subr.mxu0 0.0
    %5328 = vmatpush1.msra.mxu0 0.0
    %5329 = vmatprep.subr.mxu0 0.0
    %5330 = vmatpush1.msra.mxu0 0.0
    %5331 = vmatprep.subr.mxu0 0.0
    %5332 = vmatpush1.msra.mxu0 0.0
    %5333 = vmatprep.subr.mxu0 0.0
    %5334 = vmatpush1.msra.mxu0 0.0
    %5335 = vmatprep.subr.mxu0 0.0
    %5336 = vmatpush1.msra.mxu0 0.0
    %5337 = vmatprep.subr.mxu0 0.0
    %5338 = vmatpush1.msra.mxu0 0.0
    %5339 = vmatprep.subr.mxu0 0.0
    %5340 = vmatpush1.msra.mxu0 0.0
    %5341 = vmatprep.subr.mxu0 0.0
    %5342 = vmatpush1.msra.mxu0 0.0
    %5343 = vmatprep.subr.mxu0 0.0
    %5344 = vmatpush1.msra.mxu0 0.0
    %5345 = vmatprep.subr.mxu0 0.0
    %5346 = vmatpush1.msra.mxu0 0.0
    %5347 = vmatprep.subr.mxu0 0.0
    %5348 = vmatpush1.msra.mxu0 0.0
    %5349 = vmatprep.subr.mxu0 0.0
    %5350 = vmatpush1.msra.mxu0 0.0
    %5351 = vmatprep.subr.mxu0 0.0
    %5352 = vmatpush1.msra.mxu0 0.0
    %5353 = vmatprep.subr.mxu0 0.0
    %5354 = vmatpush1.msra.mxu0 0.0
    %5355 = vmatprep.subr.mxu0 0.0
    %5356 = vmatpush1.msra.mxu0 0.0
    %5357 = vmatprep.subr.mxu0 0.0
    %5358 = vmatpush1.msra.mxu0 0.0
    %5359 = vmatprep.mubr.f32.mxu0 0.0
    %v5360 = vand.u32 %v4241, 4294901760
    %5361 = vmatmul.mubr.f32.gmra.mrb[0].mxu0 %v5360
    %v5362 = vpop.f32.mrb[0].mxu0
    %v5363 = vadd.f32 %v5236, %v5362
    %v5364 = vpop.f32.mrb[0].mxu0
    %5365 = vmatprep.mubr.f32.mxu0 0.0
    %v5366 = vand.u32 %v4242, 4294901760
    %5367 = vmatmul.mubr.f32.gmra.mrb[0].mxu0 %v5366
    %v5368 = vpop.f32.mrb[0].mxu0
    %v5369 = vadd.f32 %v5244, %v5368
    %v5370 = vpop.f32.mrb[0].mxu0
    %5371 = vdwg.mxu0
    %5372 = vmatprep.subr.mxu0 0.0
    %v5373 = vand.u32 %v4765, 4294901760
    %5374 = vmatpush1.msra.mxu0 %v5373
    %5375 = vmatprep.subr.mxu0 0.0
    %v5376 = vand.u32 %v4766, 4294901760
    %5377 = vmatpush1.msra.mxu0 %v5376
    %5378 = vmatprep.subr.mxu0 0.0
    %v5379 = vand.u32 %v4767, 4294901760
    %5380 = vmatpush1.msra.mxu0 %v5379
    %5381 = vmatprep.subr.mxu0 0.0
    %v5382 = vand.u32 %v4768, 4294901760
    %5383 = vmatpush1.msra.mxu0 %v5382
    %5384 = vmatprep.subr.mxu0 0.0
    %v5385 = vand.u32 %v4769, 4294901760
    %5386 = vmatpush1.msra.mxu0 %v5385
    %5387 = vmatprep.subr.mxu0 0.0
    %v5388 = vand.u32 %v4770, 4294901760
    %5389 = vmatpush1.msra.mxu0 %v5388
    %5390 = vmatprep.subr.mxu0 0.0
    %v5391 = vand.u32 %v4771, 4294901760
    %5392 = vmatpush1.msra.mxu0 %v5391
    %5393 = vmatprep.subr.mxu0 0.0
    %v5394 = vand.u32 %v4772, 4294901760
    %5395 = vmatpush1.msra.mxu0 %v5394
    %5396 = vmatprep.subr.mxu0 0.0
    %v5397 = vand.u32 %v4773, 4294901760
    %5398 = vmatpush1.msra.mxu0 %v5397
    %5399 = vmatprep.subr.mxu0 0.0
    %v5400 = vand.u32 %v4774, 4294901760
    %5401 = vmatpush1.msra.mxu0 %v5400
    %5402 = vmatprep.subr.mxu0 0.0
    %v5403 = vand.u32 %v4775, 4294901760
    %5404 = vmatpush1.msra.mxu0 %v5403
    %5405 = vmatprep.subr.mxu0 0.0
    %v5406 = vand.u32 %v4776, 4294901760
    %5407 = vmatpush1.msra.mxu0 %v5406
    %5408 = vmatprep.subr.mxu0 0.0
    %v5409 = vand.u32 %v4777, 4294901760
    %5410 = vmatpush1.msra.mxu0 %v5409
    %5411 = vmatprep.subr.mxu0 0.0
    %v5412 = vand.u32 %v4778, 4294901760
    %5413 = vmatpush1.msra.mxu0 %v5412
    %5414 = vmatprep.subr.mxu0 0.0
    %v5415 = vand.u32 %v4779, 4294901760
    %5416 = vmatpush1.msra.mxu0 %v5415
    %5417 = vmatprep.subr.mxu0 0.0
    %v5418 = vand.u32 %v4780, 4294901760
    %5419 = vmatpush1.msra.mxu0 %v5418
    %5420 = vmatprep.subr.mxu0 0.0
    %5421 = vmatpush1.msra.mxu0 0.0
    %5422 = vmatprep.subr.mxu0 0.0
    %5423 = vmatpush1.msra.mxu0 0.0
    %5424 = vmatprep.subr.mxu0 0.0
    %5425 = vmatpush1.msra.mxu0 0.0
    %5426 = vmatprep.subr.mxu0 0.0
    %5427 = vmatpush1.msra.mxu0 0.0
    %5428 = vmatprep.subr.mxu0 0.0
    %5429 = vmatpush1.msra.mxu0 0.0
    %5430 = vmatprep.subr.mxu0 0.0
    %5431 = vmatpush1.msra.mxu0 0.0
    %5432 = vmatprep.subr.mxu0 0.0
    %5433 = vmatpush1.msra.mxu0 0.0
    %5434 = vmatprep.subr.mxu0 0.0
    %5435 = vmatpush1.msra.mxu0 0.0
    %5436 = vmatprep.subr.mxu0 0.0
    %5437 = vmatpush1.msra.mxu0 0.0
    %5438 = vmatprep.subr.mxu0 0.0
    %5439 = vmatpush1.msra.mxu0 0.0
    %5440 = vmatprep.subr.mxu0 0.0
    %5441 = vmatpush1.msra.mxu0 0.0
    %5442 = vmatprep.subr.mxu0 0.0
    %5443 = vmatpush1.msra.mxu0 0.0
    %5444 = vmatprep.subr.mxu0 0.0
    %5445 = vmatpush1.msra.mxu0 0.0
    %5446 = vmatprep.subr.mxu0 0.0
    %5447 = vmatpush1.msra.mxu0 0.0
    %5448 = vmatprep.subr.mxu0 0.0
    %5449 = vmatpush1.msra.mxu0 0.0
    %5450 = vmatprep.subr.mxu0 0.0
    %5451 = vmatpush1.msra.mxu0 0.0
    %5452 = vmatprep.mubr.f32.mxu0 0.0
    %v5453 = vand.u32 %v4241, 4294901760
    %5454 = vmatmul.mubr.f32.gmra.mrb[0].mxu0 %v5453
    %v5455 = vpop.f32.mrb[0].mxu0
    %v5456 = vadd.f32 %v5363, %v5455
    %v5457 = vpop.f32.mrb[0].mxu0
    %5458 = vmatprep.mubr.f32.mxu0 0.0
    %v5459 = vand.u32 %v4242, 4294901760
    %5460 = vmatmul.mubr.f32.gmra.mrb[0].mxu0 %v5459
    %v5461 = vpop.f32.mrb[0].mxu0
    %v5462 = vadd.f32 %v5369, %v5461
    %v5463 = vpop.f32.mrb[0].mxu0
    %5464 = vdwg.mxu0
    %5465 = vmatprep.subr.mxu0 0.0
    %v5466 = vand.u32 %v4749, 4294901760
    %5467 = vmatpush1.msra.mxu0 %v5466
    %5468 = vmatprep.subr.mxu0 0.0
    %v5469 = vand.u32 %v4750, 4294901760
    %5470 = vmatpush1.msra.mxu0 %v5469
    %5471 = vmatprep.subr.mxu0 0.0
    %v5472 = vand.u32 %v4751, 4294901760
    %5473 = vmatpush1.msra.mxu0 %v5472
    %5474 = vmatprep.subr.mxu0 0.0
    %v5475 = vand.u32 %v4752, 4294901760
    %5476 = vmatpush1.msra.mxu0 %v5475
    %5477 = vmatprep.subr.mxu0 0.0
    %v5478 = vand.u32 %v4753, 4294901760
    %5479 = vmatpush1.msra.mxu0 %v5478
    %5480 = vmatprep.subr.mxu0 0.0
    %v5481 = vand.u32 %v4754, 4294901760
    %5482 = vmatpush1.msra.mxu0 %v5481
    %5483 = vmatprep.subr.mxu0 0.0
    %v5484 = vand.u32 %v4755, 4294901760
    %5485 = vmatpush1.msra.mxu0 %v5484
    %5486 = vmatprep.subr.mxu0 0.0
    %v5487 = vand.u32 %v4756, 4294901760
    %5488 = vmatpush1.msra.mxu0 %v5487
    %5489 = vmatprep.subr.mxu0 0.0
    %v5490 = vand.u32 %v4757, 4294901760
    %5491 = vmatpush1.msra.mxu0 %v5490
    %5492 = vmatprep.subr.mxu0 0.0
    %v5493 = vand.u32 %v4758, 4294901760
    %5494 = vmatpush1.msra.mxu0 %v5493
    %5495 = vmatprep.subr.mxu0 0.0
    %v5496 = vand.u32 %v4759, 4294901760
    %5497 = vmatpush1.msra.mxu0 %v5496
    %5498 = vmatprep.subr.mxu0 0.0
    %v5499 = vand.u32 %v4760, 4294901760
    %5500 = vmatpush1.msra.mxu0 %v5499
    %5501 = vmatprep.subr.mxu0 0.0
    %v5502 = vand.u32 %v4761, 4294901760
    %5503 = vmatpush1.msra.mxu0 %v5502
    %5504 = vmatprep.subr.mxu0 0.0
    %v5505 = vand.u32 %v4762, 4294901760
    %5506 = vmatpush1.msra.mxu0 %v5505
    %5507 = vmatprep.subr.mxu0 0.0
    %v5508 = vand.u32 %v4763, 4294901760
    %5509 = vmatpush1.msra.mxu0 %v5508
    %5510 = vmatprep.subr.mxu0 0.0
    %v5511 = vand.u32 %v4764, 4294901760
    %5512 = vmatpush1.msra.mxu0 %v5511
    %5513 = vmatprep.subr.mxu0 0.0
    %5514 = vmatpush1.msra.mxu0 0.0
    %5515 = vmatprep.subr.mxu0 0.0
    %5516 = vmatpush1.msra.mxu0 0.0
    %5517 = vmatprep.subr.mxu0 0.0
    %5518 = vmatpush1.msra.mxu0 0.0
    %5519 = vmatprep.subr.mxu0 0.0
    %5520 = vmatpush1.msra.mxu0 0.0
    %5521 = vmatprep.subr.mxu0 0.0
    %5522 = vmatpush1.msra.mxu0 0.0
    %5523 = vmatprep.subr.mxu0 0.0
    %5524 = vmatpush1.msra.mxu0 0.0
    %5525 = vmatprep.subr.mxu0 0.0
    %5526 = vmatpush1.msra.mxu0 0.0
    %5527 = vmatprep.subr.mxu0 0.0
    %5528 = vmatpush1.msra.mxu0 0.0
    %5529 = vmatprep.subr.mxu0 0.0
    %5530 = vmatpush1.msra.mxu0 0.0
    %5531 = vmatprep.subr.mxu0 0.0
    %5532 = vmatpush1.msra.mxu0 0.0
    %5533 = vmatprep.subr.mxu0 0.0
    %5534 = vmatpush1.msra.mxu0 0.0
    %5535 = vmatprep.subr.mxu0 0.0
    %5536 = vmatpush1.msra.mxu0 0.0
    %5537 = vmatprep.subr.mxu0 0.0
    %5538 = vmatpush1.msra.mxu0 0.0
    %5539 = vmatprep.subr.mxu0 0.0
    %5540 = vmatpush1.msra.mxu0 0.0
    %5541 = vmatprep.subr.mxu0 0.0
    %5542 = vmatpush1.msra.mxu0 0.0
    %5543 = vmatprep.subr.mxu0 0.0
    %5544 = vmatpush1.msra.mxu0 0.0
    %5545 = vmatprep.mubr.f32.mxu0 0.0
    %v5546 = vand.u32 %v3735, 4294901760
    %v5547 = vsub.f32 %v3735, %v5546
    %v5548 = vand.u32 %v5547, 4294901760
    %v5549 = vsub.f32 %v5547, %v5548
    %v5550 = vand.u32 %v5549, 4294901760
    %5551 = vmatmul.mubr.f32.gmra.mrb[0].mxu0 %v5550
    %v5552 = vpop.f32.mrb[0].mxu0
    %v5553 = vadd.f32 %v5456, %v5552
    %v5554 = vpop.f32.mrb[0].mxu0
    %5555 = vmatprep.mubr.f32.mxu0 0.0
    %v5556 = vand.u32 %v3736, 4294901760
    %v5557 = vsub.f32 %v3736, %v5556
    %v5558 = vand.u32 %v5557, 4294901760
    %v5559 = vsub.f32 %v5557, %v5558
    %v5560 = vand.u32 %v5559, 4294901760
    %5561 = vmatmul.mubr.f32.gmra.mrb[0].mxu0 %v5560
    %v5562 = vpop.f32.mrb[0].mxu0
    %v5563 = vadd.f32 %v5462, %v5562
    %v5564 = vpop.f32.mrb[0].mxu0
    %5565 = vdwg.mxu0
    %5566 = vmatprep.subr.mxu0 0.0
    %v5567 = vand.u32 %v4749, 4294901760
    %v5568 = vsub.f32 %v4749, %v5567
    %v5569 = vand.u32 %v5568, 4294901760
    %v5570 = vsub.f32 %v5568, %v5569
    %v5571 = vand.u32 %v5570, 4294901760
    %5572 = vmatpush1.msra.mxu0 %v5571
    %5573 = vmatprep.subr.mxu0 0.0
    %v5574 = vand.u32 %v4750, 4294901760
    %v5575 = vsub.f32 %v4750, %v5574
    %v5576 = vand.u32 %v5575, 4294901760
    %v5577 = vsub.f32 %v5575, %v5576
    %v5578 = vand.u32 %v5577, 4294901760
    %5579 = vmatpush1.msra.mxu0 %v5578
    %5580 = vmatprep.subr.mxu0 0.0
    %v5581 = vand.u32 %v4751, 4294901760
    %v5582 = vsub.f32 %v4751, %v5581
    %v5583 = vand.u32 %v5582, 4294901760
    %v5584 = vsub.f32 %v5582, %v5583
    %v5585 = vand.u32 %v5584, 4294901760
    %5586 = vmatpush1.msra.mxu0 %v5585
    %5587 = vmatprep.subr.mxu0 0.0
    %v5588 = vand.u32 %v4752, 4294901760
    %v5589 = vsub.f32 %v4752, %v5588
    %v5590 = vand.u32 %v5589, 4294901760
    %v5591 = vsub.f32 %v5589, %v5590
    %v5592 = vand.u32 %v5591, 4294901760
    %5593 = vmatpush1.msra.mxu0 %v5592
    %5594 = vmatprep.subr.mxu0 0.0
    %v5595 = vand.u32 %v4753, 4294901760
    %v5596 = vsub.f32 %v4753, %v5595
    %v5597 = vand.u32 %v5596, 4294901760
    %v5598 = vsub.f32 %v5596, %v5597
    %v5599 = vand.u32 %v5598, 4294901760
    %5600 = vmatpush1.msra.mxu0 %v5599
    %5601 = vmatprep.subr.mxu0 0.0
    %v5602 = vand.u32 %v4754, 4294901760
    %v5603 = vsub.f32 %v4754, %v5602
    %v5604 = vand.u32 %v5603, 4294901760
    %v5605 = vsub.f32 %v5603, %v5604
    %v5606 = vand.u32 %v5605, 4294901760
    %5607 = vmatpush1.msra.mxu0 %v5606
    %5608 = vmatprep.subr.mxu0 0.0
    %v5609 = vand.u32 %v4755, 4294901760
    %v5610 = vsub.f32 %v4755, %v5609
    %v5611 = vand.u32 %v5610, 4294901760
    %v5612 = vsub.f32 %v5610, %v5611
    %v5613 = vand.u32 %v5612, 4294901760
    %5614 = vmatpush1.msra.mxu0 %v5613
    %5615 = vmatprep.subr.mxu0 0.0
    %v5616 = vand.u32 %v4756, 4294901760
    %v5617 = vsub.f32 %v4756, %v5616
    %v5618 = vand.u32 %v5617, 4294901760
    %v5619 = vsub.f32 %v5617, %v5618
    %v5620 = vand.u32 %v5619, 4294901760
    %5621 = vmatpush1.msra.mxu0 %v5620
    %5622 = vmatprep.subr.mxu0 0.0
    %v5623 = vand.u32 %v4757, 4294901760
    %v5624 = vsub.f32 %v4757, %v5623
    %v5625 = vand.u32 %v5624, 4294901760
    %v5626 = vsub.f32 %v5624, %v5625
    %v5627 = vand.u32 %v5626, 4294901760
    %5628 = vmatpush1.msra.mxu0 %v5627
    %5629 = vmatprep.subr.mxu0 0.0
    %v5630 = vand.u32 %v4758, 4294901760
    %v5631 = vsub.f32 %v4758, %v5630
    %v5632 = vand.u32 %v5631, 4294901760
    %v5633 = vsub.f32 %v5631, %v5632
    %v5634 = vand.u32 %v5633, 4294901760
    %5635 = vmatpush1.msra.mxu0 %v5634
    %5636 = vmatprep.subr.mxu0 0.0
    %v5637 = vand.u32 %v4759, 4294901760
    %v5638 = vsub.f32 %v4759, %v5637
    %v5639 = vand.u32 %v5638, 4294901760
    %v5640 = vsub.f32 %v5638, %v5639
    %v5641 = vand.u32 %v5640, 4294901760
    %5642 = vmatpush1.msra.mxu0 %v5641
    %5643 = vmatprep.subr.mxu0 0.0
    %v5644 = vand.u32 %v4760, 4294901760
    %v5645 = vsub.f32 %v4760, %v5644
    %v5646 = vand.u32 %v5645, 4294901760
    %v5647 = vsub.f32 %v5645, %v5646
    %v5648 = vand.u32 %v5647, 4294901760
    %5649 = vmatpush1.msra.mxu0 %v5648
    %5650 = vmatprep.subr.mxu0 0.0
    %v5651 = vand.u32 %v4761, 4294901760
    %v5652 = vsub.f32 %v4761, %v5651
    %v5653 = vand.u32 %v5652, 4294901760
    %v5654 = vsub.f32 %v5652, %v5653
    %v5655 = vand.u32 %v5654, 4294901760
    %5656 = vmatpush1.msra.mxu0 %v5655
    %5657 = vmatprep.subr.mxu0 0.0
    %v5658 = vand.u32 %v4762, 4294901760
    %v5659 = vsub.f32 %v4762, %v5658
    %v5660 = vand.u32 %v5659, 4294901760
    %v5661 = vsub.f32 %v5659, %v5660
    %v5662 = vand.u32 %v5661, 4294901760
    %5663 = vmatpush1.msra.mxu0 %v5662
    %5664 = vmatprep.subr.mxu0 0.0
    %v5665 = vand.u32 %v4763, 4294901760
    %v5666 = vsub.f32 %v4763, %v5665
    %v5667 = vand.u32 %v5666, 4294901760
    %v5668 = vsub.f32 %v5666, %v5667
    %v5669 = vand.u32 %v5668, 4294901760
    %5670 = vmatpush1.msra.mxu0 %v5669
    %5671 = vmatprep.subr.mxu0 0.0
    %v5672 = vand.u32 %v4764, 4294901760
    %v5673 = vsub.f32 %v4764, %v5672
    %v5674 = vand.u32 %v5673, 4294901760
    %v5675 = vsub.f32 %v5673, %v5674
    %v5676 = vand.u32 %v5675, 4294901760
    %5677 = vmatpush1.msra.mxu0 %v5676
    %5678 = vmatprep.subr.mxu0 0.0
    %5679 = vmatpush1.msra.mxu0 0.0
    %5680 = vmatprep.subr.mxu0 0.0
    %5681 = vmatpush1.msra.mxu0 0.0
    %5682 = vmatprep.subr.mxu0 0.0
    %5683 = vmatpush1.msra.mxu0 0.0
    %5684 = vmatprep.subr.mxu0 0.0
    %5685 = vmatpush1.msra.mxu0 0.0
    %5686 = vmatprep.subr.mxu0 0.0
    %5687 = vmatpush1.msra.mxu0 0.0
    %5688 = vmatprep.subr.mxu0 0.0
    %5689 = vmatpush1.msra.mxu0 0.0
    %5690 = vmatprep.subr.mxu0 0.0
    %5691 = vmatpush1.msra.mxu0 0.0
    %5692 = vmatprep.subr.mxu0 0.0
    %5693 = vmatpush1.msra.mxu0 0.0
    %5694 = vmatprep.subr.mxu0 0.0
    %5695 = vmatpush1.msra.mxu0 0.0
    %5696 = vmatprep.subr.mxu0 0.0
    %5697 = vmatpush1.msra.mxu0 0.0
    %5698 = vmatprep.subr.mxu0 0.0
    %5699 = vmatpush1.msra.mxu0 0.0
    %5700 = vmatprep.subr.mxu0 0.0
    %5701 = vmatpush1.msra.mxu0 0.0
    %5702 = vmatprep.subr.mxu0 0.0
    %5703 = vmatpush1.msra.mxu0 0.0
    %5704 = vmatprep.subr.mxu0 0.0
    %5705 = vmatpush1.msra.mxu0 0.0
    %5706 = vmatprep.subr.mxu0 0.0
    %5707 = vmatpush1.msra.mxu0 0.0
    %5708 = vmatprep.subr.mxu0 0.0
    %5709 = vmatpush1.msra.mxu0 0.0
    %5710 = vmatprep.mubr.f32.mxu0 0.0
    %v5711 = vand.u32 %v3735, 4294901760
    %5712 = vmatmul.mubr.f32.gmra.mrb[0].mxu0 %v5711
    %v5713 = vpop.f32.mrb[0].mxu0
    %v5714 = vadd.f32 %v5553, %v5713
    %v5715 = vpop.f32.mrb[0].mxu0
    %5716 = vmatprep.mubr.f32.mxu0 0.0
    %v5717 = vand.u32 %v3736, 4294901760
    %5718 = vmatmul.mubr.f32.gmra.mrb[0].mxu0 %v5717
    %v5719 = vpop.f32.mrb[0].mxu0
    %v5720 = vadd.f32 %v5563, %v5719
    %v5721 = vpop.f32.mrb[0].mxu0
    %5722 = vdwg.mxu0
    %5723 = vmatprep.subr.mxu0 0.0
    %v5724 = vand.u32 %v4749, 4294901760
    %v5725 = vsub.f32 %v4749, %v5724
    %5726 = vmatpush1.msra.mxu0 %v5725
    %5727 = vmatprep.subr.mxu0 0.0
    %v5728 = vand.u32 %v4750, 4294901760
    %v5729 = vsub.f32 %v4750, %v5728
    %5730 = vmatpush1.msra.mxu0 %v5729
    %5731 = vmatprep.subr.mxu0 0.0
    %v5732 = vand.u32 %v4751, 4294901760
    %v5733 = vsub.f32 %v4751, %v5732
    %5734 = vmatpush1.msra.mxu0 %v5733
    %5735 = vmatprep.subr.mxu0 0.0
    %v5736 = vand.u32 %v4752, 4294901760
    %v5737 = vsub.f32 %v4752, %v5736
    %5738 = vmatpush1.msra.mxu0 %v5737
    %5739 = vmatprep.subr.mxu0 0.0
    %v5740 = vand.u32 %v4753, 4294901760
    %v5741 = vsub.f32 %v4753, %v5740
    %5742 = vmatpush1.msra.mxu0 %v5741
    %5743 = vmatprep.subr.mxu0 0.0
    %v5744 = vand.u32 %v4754, 4294901760
    %v5745 = vsub.f32 %v4754, %v5744
    %5746 = vmatpush1.msra.mxu0 %v5745
    %5747 = vmatprep.subr.mxu0 0.0
    %v5748 = vand.u32 %v4755, 4294901760
    %v5749 = vsub.f32 %v4755, %v5748
    %5750 = vmatpush1.msra.mxu0 %v5749
    %5751 = vmatprep.subr.mxu0 0.0
    %v5752 = vand.u32 %v4756, 4294901760
    %v5753 = vsub.f32 %v4756, %v5752
    %5754 = vmatpush1.msra.mxu0 %v5753
    %5755 = vmatprep.subr.mxu0 0.0
    %v5756 = vand.u32 %v4757, 4294901760
    %v5757 = vsub.f32 %v4757, %v5756
    %5758 = vmatpush1.msra.mxu0 %v5757
    %5759 = vmatprep.subr.mxu0 0.0
    %v5760 = vand.u32 %v4758, 4294901760
    %v5761 = vsub.f32 %v4758, %v5760
    %5762 = vmatpush1.msra.mxu0 %v5761
    %5763 = vmatprep.subr.mxu0 0.0
    %v5764 = vand.u32 %v4759, 4294901760
    %v5765 = vsub.f32 %v4759, %v5764
    %5766 = vmatpush1.msra.mxu0 %v5765
    %5767 = vmatprep.subr.mxu0 0.0
    %v5768 = vand.u32 %v4760, 4294901760
    %v5769 = vsub.f32 %v4760, %v5768
    %5770 = vmatpush1.msra.mxu0 %v5769
    %5771 = vmatprep.subr.mxu0 0.0
    %v5772 = vand.u32 %v4761, 4294901760
    %v5773 = vsub.f32 %v4761, %v5772
    %5774 = vmatpush1.msra.mxu0 %v5773
    %5775 = vmatprep.subr.mxu0 0.0
    %v5776 = vand.u32 %v4762, 4294901760
    %v5777 = vsub.f32 %v4762, %v5776
    %5778 = vmatpush1.msra.mxu0 %v5777
    %5779 = vmatprep.subr.mxu0 0.0
    %v5780 = vand.u32 %v4763, 4294901760
    %v5781 = vsub.f32 %v4763, %v5780
    %5782 = vmatpush1.msra.mxu0 %v5781
    %5783 = vmatprep.subr.mxu0 0.0
    %v5784 = vand.u32 %v4764, 4294901760
    %v5785 = vsub.f32 %v4764, %v5784
    %5786 = vmatpush1.msra.mxu0 %v5785
    %5787 = vmatprep.subr.mxu0 0.0
    %5788 = vmatpush1.msra.mxu0 0.0
    %5789 = vmatprep.subr.mxu0 0.0
    %5790 = vmatpush1.msra.mxu0 0.0
    %5791 = vmatprep.subr.mxu0 0.0
    %5792 = vmatpush1.msra.mxu0 0.0
    %5793 = vmatprep.subr.mxu0 0.0
    %5794 = vmatpush1.msra.mxu0 0.0
    %5795 = vmatprep.subr.mxu0 0.0
    %5796 = vmatpush1.msra.mxu0 0.0
    %5797 = vmatprep.subr.mxu0 0.0
    %5798 = vmatpush1.msra.mxu0 0.0
    %5799 = vmatprep.subr.mxu0 0.0
    %5800 = vmatpush1.msra.mxu0 0.0
    %5801 = vmatprep.subr.mxu0 0.0
    %5802 = vmatpush1.msra.mxu0 0.0
    %5803 = vmatprep.subr.mxu0 0.0
    %5804 = vmatpush1.msra.mxu0 0.0
    %5805 = vmatprep.subr.mxu0 0.0
    %5806 = vmatpush1.msra.mxu0 0.0
    %5807 = vmatprep.subr.mxu0 0.0
    %5808 = vmatpush1.msra.mxu0 0.0
    %5809 = vmatprep.subr.mxu0 0.0
    %5810 = vmatpush1.msra.mxu0 0.0
    %5811 = vmatprep.subr.mxu0 0.0
    %5812 = vmatpush1.msra.mxu0 0.0
    %5813 = vmatprep.subr.mxu0 0.0
    %5814 = vmatpush1.msra.mxu0 0.0
    %5815 = vmatprep.subr.mxu0 0.0
    %5816 = vmatpush1.msra.mxu0 0.0
    %5817 = vmatprep.subr.mxu0 0.0
    %5818 = vmatpush1.msra.mxu0 0.0
    %5819 = vmatprep.mubr.f32.mxu0 0.0
    %v5820 = vand.u32 %v3735, 4294901760
    %v5821 = vsub.f32 %v3735, %v5820
    %5822 = vmatmul.mubr.f32.gmra.mrb[0].mxu0 %v5821
    %v5823 = vpop.f32.mrb[0].mxu0
    %v5824 = vadd.f32 %v5714, %v5823
    %v5825 = vpop.f32.mrb[0].mxu0
    %5826 = vmatprep.mubr.f32.mxu0 0.0
    %v5827 = vand.u32 %v3736, 4294901760
    %v5828 = vsub.f32 %v3736, %v5827
    %5829 = vmatmul.mubr.f32.gmra.mrb[0].mxu0 %v5828
    %v5830 = vpop.f32.mrb[0].mxu0
    %v5831 = vadd.f32 %v5720, %v5830
    %v5832 = vpop.f32.mrb[0].mxu0
    %5833 = vdwg.mxu0
    %5834 = vmatprep.subr.mxu0 0.0
    %v5835 = vand.u32 %v4749, 4294901760
    %5836 = vmatpush1.msra.mxu0 %v5835
    %5837 = vmatprep.subr.mxu0 0.0
    %v5838 = vand.u32 %v4750, 4294901760
    %5839 = vmatpush1.msra.mxu0 %v5838
    %5840 = vmatprep.subr.mxu0 0.0
    %v5841 = vand.u32 %v4751, 4294901760
    %5842 = vmatpush1.msra.mxu0 %v5841
    %5843 = vmatprep.subr.mxu0 0.0
    %v5844 = vand.u32 %v4752, 4294901760
    %5845 = vmatpush1.msra.mxu0 %v5844
    %5846 = vmatprep.subr.mxu0 0.0
    %v5847 = vand.u32 %v4753, 4294901760
    %5848 = vmatpush1.msra.mxu0 %v5847
    %5849 = vmatprep.subr.mxu0 0.0
    %v5850 = vand.u32 %v4754, 4294901760
    %5851 = vmatpush1.msra.mxu0 %v5850
    %5852 = vmatprep.subr.mxu0 0.0
    %v5853 = vand.u32 %v4755, 4294901760
    %5854 = vmatpush1.msra.mxu0 %v5853
    %5855 = vmatprep.subr.mxu0 0.0
    %v5856 = vand.u32 %v4756, 4294901760
    %5857 = vmatpush1.msra.mxu0 %v5856
    %5858 = vmatprep.subr.mxu0 0.0
    %v5859 = vand.u32 %v4757, 4294901760
    %5860 = vmatpush1.msra.mxu0 %v5859
    %5861 = vmatprep.subr.mxu0 0.0
    %v5862 = vand.u32 %v4758, 4294901760
    %5863 = vmatpush1.msra.mxu0 %v5862
    %5864 = vmatprep.subr.mxu0 0.0
    %v5865 = vand.u32 %v4759, 4294901760
    %5866 = vmatpush1.msra.mxu0 %v5865
    %5867 = vmatprep.subr.mxu0 0.0
    %v5868 = vand.u32 %v4760, 4294901760
    %5869 = vmatpush1.msra.mxu0 %v5868
    %5870 = vmatprep.subr.mxu0 0.0
    %v5871 = vand.u32 %v4761, 4294901760
    %5872 = vmatpush1.msra.mxu0 %v5871
    %5873 = vmatprep.subr.mxu0 0.0
    %v5874 = vand.u32 %v4762, 4294901760
    %5875 = vmatpush1.msra.mxu0 %v5874
    %5876 = vmatprep.subr.mxu0 0.0
    %v5877 = vand.u32 %v4763, 4294901760
    %5878 = vmatpush1.msra.mxu0 %v5877
    %5879 = vmatprep.subr.mxu0 0.0
    %v5880 = vand.u32 %v4764, 4294901760
    %5881 = vmatpush1.msra.mxu0 %v5880
    %5882 = vmatprep.subr.mxu0 0.0
    %5883 = vmatpush1.msra.mxu0 0.0
    %5884 = vmatprep.subr.mxu0 0.0
    %5885 = vmatpush1.msra.mxu0 0.0
    %5886 = vmatprep.subr.mxu0 0.0
    %5887 = vmatpush1.msra.mxu0 0.0
    %5888 = vmatprep.subr.mxu0 0.0
    %5889 = vmatpush1.msra.mxu0 0.0
    %5890 = vmatprep.subr.mxu0 0.0
    %5891 = vmatpush1.msra.mxu0 0.0
    %5892 = vmatprep.subr.mxu0 0.0
    %5893 = vmatpush1.msra.mxu0 0.0
    %5894 = vmatprep.subr.mxu0 0.0
    %5895 = vmatpush1.msra.mxu0 0.0
    %5896 = vmatprep.subr.mxu0 0.0
    %5897 = vmatpush1.msra.mxu0 0.0
    %5898 = vmatprep.subr.mxu0 0.0
    %5899 = vmatpush1.msra.mxu0 0.0
    %5900 = vmatprep.subr.mxu0 0.0
    %5901 = vmatpush1.msra.mxu0 0.0
    %5902 = vmatprep.subr.mxu0 0.0
    %5903 = vmatpush1.msra.mxu0 0.0
    %5904 = vmatprep.subr.mxu0 0.0
    %5905 = vmatpush1.msra.mxu0 0.0
    %5906 = vmatprep.subr.mxu0 0.0
    %5907 = vmatpush1.msra.mxu0 0.0
    %5908 = vmatprep.subr.mxu0 0.0
    %5909 = vmatpush1.msra.mxu0 0.0
    %5910 = vmatprep.subr.mxu0 0.0
    %5911 = vmatpush1.msra.mxu0 0.0
    %5912 = vmatprep.subr.mxu0 0.0
    %5913 = vmatpush1.msra.mxu0 0.0
    %5914 = vmatprep.mubr.f32.mxu0 0.0
    %v5915 = vand.u32 %v3735, 4294901760
    %v5916 = vsub.f32 %v3735, %v5915
    %v5917 = vand.u32 %v5916, 4294901760
    %5918 = vmatmul.mubr.f32.gmra.mrb[0].mxu0 %v5917
    %v5919 = vpop.f32.mrb[0].mxu0
    %v5920 = vadd.f32 %v5824, %v5919
    %v5921 = vpop.f32.mrb[0].mxu0
    %5922 = vmatprep.mubr.f32.mxu0 0.0
    %v5923 = vand.u32 %v3736, 4294901760
    %v5924 = vsub.f32 %v3736, %v5923
    %v5925 = vand.u32 %v5924, 4294901760
    %5926 = vmatmul.mubr.f32.gmra.mrb[0].mxu0 %v5925
    %v5927 = vpop.f32.mrb[0].mxu0
    %v5928 = vadd.f32 %v5831, %v5927
    %v5929 = vpop.f32.mrb[0].mxu0
    %5930 = vdwg.mxu0
    %5931 = vmatprep.subr.mxu0 0.0
    %v5932 = vand.u32 %v4749, 4294901760
    %v5933 = vsub.f32 %v4749, %v5932
    %v5934 = vand.u32 %v5933, 4294901760
    %5935 = vmatpush1.msra.mxu0 %v5934
    %5936 = vmatprep.subr.mxu0 0.0
    %v5937 = vand.u32 %v4750, 4294901760
    %v5938 = vsub.f32 %v4750, %v5937
    %v5939 = vand.u32 %v5938, 4294901760
    %5940 = vmatpush1.msra.mxu0 %v5939
    %5941 = vmatprep.subr.mxu0 0.0
    %v5942 = vand.u32 %v4751, 4294901760
    %v5943 = vsub.f32 %v4751, %v5942
    %v5944 = vand.u32 %v5943, 4294901760
    %5945 = vmatpush1.msra.mxu0 %v5944
    %5946 = vmatprep.subr.mxu0 0.0
    %v5947 = vand.u32 %v4752, 4294901760
    %v5948 = vsub.f32 %v4752, %v5947
    %v5949 = vand.u32 %v5948, 4294901760
    %5950 = vmatpush1.msra.mxu0 %v5949
    %5951 = vmatprep.subr.mxu0 0.0
    %v5952 = vand.u32 %v4753, 4294901760
    %v5953 = vsub.f32 %v4753, %v5952
    %v5954 = vand.u32 %v5953, 4294901760
    %5955 = vmatpush1.msra.mxu0 %v5954
    %5956 = vmatprep.subr.mxu0 0.0
    %v5957 = vand.u32 %v4754, 4294901760
    %v5958 = vsub.f32 %v4754, %v5957
    %v5959 = vand.u32 %v5958, 4294901760
    %5960 = vmatpush1.msra.mxu0 %v5959
    %5961 = vmatprep.subr.mxu0 0.0
    %v5962 = vand.u32 %v4755, 4294901760
    %v5963 = vsub.f32 %v4755, %v5962
    %v5964 = vand.u32 %v5963, 4294901760
    %5965 = vmatpush1.msra.mxu0 %v5964
    %5966 = vmatprep.subr.mxu0 0.0
    %v5967 = vand.u32 %v4756, 4294901760
    %v5968 = vsub.f32 %v4756, %v5967
    %v5969 = vand.u32 %v5968, 4294901760
    %5970 = vmatpush1.msra.mxu0 %v5969
    %5971 = vmatprep.subr.mxu0 0.0
    %v5972 = vand.u32 %v4757, 4294901760
    %v5973 = vsub.f32 %v4757, %v5972
    %v5974 = vand.u32 %v5973, 4294901760
    %5975 = vmatpush1.msra.mxu0 %v5974
    %5976 = vmatprep.subr.mxu0 0.0
    %v5977 = vand.u32 %v4758, 4294901760
    %v5978 = vsub.f32 %v4758, %v5977
    %v5979 = vand.u32 %v5978, 4294901760
    %5980 = vmatpush1.msra.mxu0 %v5979
    %5981 = vmatprep.subr.mxu0 0.0
    %v5982 = vand.u32 %v4759, 4294901760
    %v5983 = vsub.f32 %v4759, %v5982
    %v5984 = vand.u32 %v5983, 4294901760
    %5985 = vmatpush1.msra.mxu0 %v5984
    %5986 = vmatprep.subr.mxu0 0.0
    %v5987 = vand.u32 %v4760, 4294901760
    %v5988 = vsub.f32 %v4760, %v5987
    %v5989 = vand.u32 %v5988, 4294901760
    %5990 = vmatpush1.msra.mxu0 %v5989
    %5991 = vmatprep.subr.mxu0 0.0
    %v5992 = vand.u32 %v4761, 4294901760
    %v5993 = vsub.f32 %v4761, %v5992
    %v5994 = vand.u32 %v5993, 4294901760
    %5995 = vmatpush1.msra.mxu0 %v5994
    %5996 = vmatprep.subr.mxu0 0.0
    %v5997 = vand.u32 %v4762, 4294901760
    %v5998 = vsub.f32 %v4762, %v5997
    %v5999 = vand.u32 %v5998, 4294901760
    %6000 = vmatpush1.msra.mxu0 %v5999
    %6001 = vmatprep.subr.mxu0 0.0
    %v6002 = vand.u32 %v4763, 4294901760
    %v6003 = vsub.f32 %v4763, %v6002
    %v6004 = vand.u32 %v6003, 4294901760
    %6005 = vmatpush1.msra.mxu0 %v6004
    %6006 = vmatprep.subr.mxu0 0.0
    %v6007 = vand.u32 %v4764, 4294901760
    %v6008 = vsub.f32 %v4764, %v6007
    %v6009 = vand.u32 %v6008, 4294901760
    %6010 = vmatpush1.msra.mxu0 %v6009
    %6011 = vmatprep.subr.mxu0 0.0
    %6012 = vmatpush1.msra.mxu0 0.0
    %6013 = vmatprep.subr.mxu0 0.0
    %6014 = vmatpush1.msra.mxu0 0.0
    %6015 = vmatprep.subr.mxu0 0.0
    %6016 = vmatpush1.msra.mxu0 0.0
    %6017 = vmatprep.subr.mxu0 0.0
    %6018 = vmatpush1.msra.mxu0 0.0
    %6019 = vmatprep.subr.mxu0 0.0
    %6020 = vmatpush1.msra.mxu0 0.0
    %6021 = vmatprep.subr.mxu0 0.0
    %6022 = vmatpush1.msra.mxu0 0.0
    %6023 = vmatprep.subr.mxu0 0.0
    %6024 = vmatpush1.msra.mxu0 0.0
    %6025 = vmatprep.subr.mxu0 0.0
    %6026 = vmatpush1.msra.mxu0 0.0
    %6027 = vmatprep.subr.mxu0 0.0
    %6028 = vmatpush1.msra.mxu0 0.0
    %6029 = vmatprep.subr.mxu0 0.0
    %6030 = vmatpush1.msra.mxu0 0.0
    %6031 = vmatprep.subr.mxu0 0.0
    %6032 = vmatpush1.msra.mxu0 0.0
    %6033 = vmatprep.subr.mxu0 0.0
    %6034 = vmatpush1.msra.mxu0 0.0
    %6035 = vmatprep.subr.mxu0 0.0
    %6036 = vmatpush1.msra.mxu0 0.0
    %6037 = vmatprep.subr.mxu0 0.0
    %6038 = vmatpush1.msra.mxu0 0.0
    %6039 = vmatprep.subr.mxu0 0.0
    %6040 = vmatpush1.msra.mxu0 0.0
    %6041 = vmatprep.subr.mxu0 0.0
    %6042 = vmatpush1.msra.mxu0 0.0
    %6043 = vmatprep.mubr.f32.mxu0 0.0
    %v6044 = vand.u32 %v3735, 4294901760
    %6045 = vmatmul.mubr.f32.gmra.mrb[0].mxu0 %v6044
    %v6046 = vpop.f32.mrb[0].mxu0
    %v6047 = vadd.f32 %v5920, %v6046
    %v6048 = vpop.f32.mrb[0].mxu0
    %6049 = vmatprep.mubr.f32.mxu0 0.0
    %v6050 = vand.u32 %v3736, 4294901760
    %6051 = vmatmul.mubr.f32.gmra.mrb[0].mxu0 %v6050
    %v6052 = vpop.f32.mrb[0].mxu0
    %v6053 = vadd.f32 %v5928, %v6052
    %v6054 = vpop.f32.mrb[0].mxu0
    %6055 = vdwg.mxu0
    %6056 = vmatprep.subr.mxu0 0.0
    %v6057 = vand.u32 %v4749, 4294901760
    %6058 = vmatpush1.msra.mxu0 %v6057
    %6059 = vmatprep.subr.mxu0 0.0
    %v6060 = vand.u32 %v4750, 4294901760
    %6061 = vmatpush1.msra.mxu0 %v6060
    %6062 = vmatprep.subr.mxu0 0.0
    %v6063 = vand.u32 %v4751, 4294901760
    %6064 = vmatpush1.msra.mxu0 %v6063
    %6065 = vmatprep.subr.mxu0 0.0
    %v6066 = vand.u32 %v4752, 4294901760
    %6067 = vmatpush1.msra.mxu0 %v6066
    %6068 = vmatprep.subr.mxu0 0.0
    %v6069 = vand.u32 %v4753, 4294901760
    %6070 = vmatpush1.msra.mxu0 %v6069
    %6071 = vmatprep.subr.mxu0 0.0
    %v6072 = vand.u32 %v4754, 4294901760
    %6073 = vmatpush1.msra.mxu0 %v6072
    %6074 = vmatprep.subr.mxu0 0.0
    %v6075 = vand.u32 %v4755, 4294901760
    %6076 = vmatpush1.msra.mxu0 %v6075
    %6077 = vmatprep.subr.mxu0 0.0
    %v6078 = vand.u32 %v4756, 4294901760
    %6079 = vmatpush1.msra.mxu0 %v6078
    %6080 = vmatprep.subr.mxu0 0.0
    %v6081 = vand.u32 %v4757, 4294901760
    %6082 = vmatpush1.msra.mxu0 %v6081
    %6083 = vmatprep.subr.mxu0 0.0
    %v6084 = vand.u32 %v4758, 4294901760
    %6085 = vmatpush1.msra.mxu0 %v6084
    %6086 = vmatprep.subr.mxu0 0.0
    %v6087 = vand.u32 %v4759, 4294901760
    %6088 = vmatpush1.msra.mxu0 %v6087
    %6089 = vmatprep.subr.mxu0 0.0
    %v6090 = vand.u32 %v4760, 4294901760
    %6091 = vmatpush1.msra.mxu0 %v6090
    %6092 = vmatprep.subr.mxu0 0.0
    %v6093 = vand.u32 %v4761, 4294901760
    %6094 = vmatpush1.msra.mxu0 %v6093
    %6095 = vmatprep.subr.mxu0 0.0
    %v6096 = vand.u32 %v4762, 4294901760
    %6097 = vmatpush1.msra.mxu0 %v6096
    %6098 = vmatprep.subr.mxu0 0.0
    %v6099 = vand.u32 %v4763, 4294901760
    %6100 = vmatpush1.msra.mxu0 %v6099
    %6101 = vmatprep.subr.mxu0 0.0
    %v6102 = vand.u32 %v4764, 4294901760
    %6103 = vmatpush1.msra.mxu0 %v6102
    %6104 = vmatprep.subr.mxu0 0.0
    %6105 = vmatpush1.msra.mxu0 0.0
    %6106 = vmatprep.subr.mxu0 0.0
    %6107 = vmatpush1.msra.mxu0 0.0
    %6108 = vmatprep.subr.mxu0 0.0
    %6109 = vmatpush1.msra.mxu0 0.0
    %6110 = vmatprep.subr.mxu0 0.0
    %6111 = vmatpush1.msra.mxu0 0.0
    %6112 = vmatprep.subr.mxu0 0.0
    %6113 = vmatpush1.msra.mxu0 0.0
    %6114 = vmatprep.subr.mxu0 0.0
    %6115 = vmatpush1.msra.mxu0 0.0
    %6116 = vmatprep.subr.mxu0 0.0
    %6117 = vmatpush1.msra.mxu0 0.0
    %6118 = vmatprep.subr.mxu0 0.0
    %6119 = vmatpush1.msra.mxu0 0.0
    %6120 = vmatprep.subr.mxu0 0.0
    %6121 = vmatpush1.msra.mxu0 0.0
    %6122 = vmatprep.subr.mxu0 0.0
    %6123 = vmatpush1.msra.mxu0 0.0
    %6124 = vmatprep.subr.mxu0 0.0
    %6125 = vmatpush1.msra.mxu0 0.0
    %6126 = vmatprep.subr.mxu0 0.0
    %6127 = vmatpush1.msra.mxu0 0.0
    %6128 = vmatprep.subr.mxu0 0.0
    %6129 = vmatpush1.msra.mxu0 0.0
    %6130 = vmatprep.subr.mxu0 0.0
    %6131 = vmatpush1.msra.mxu0 0.0
    %6132 = vmatprep.subr.mxu0 0.0
    %6133 = vmatpush1.msra.mxu0 0.0
    %6134 = vmatprep.subr.mxu0 0.0
    %6135 = vmatpush1.msra.mxu0 0.0
    %6136 = vmatprep.mubr.f32.mxu0 0.0
    %v6137 = vand.u32 %v3735, 4294901760
    %6138 = vmatmul.mubr.f32.gmra.mrb[0].mxu0 %v6137
    %v6139 = vpop.f32.mrb[0].mxu0
    %v6140 = vadd.f32 %v6047, %v6139
    %v6141 = vpop.f32.mrb[0].mxu0
    %6142 = vmatprep.mubr.f32.mxu0 0.0
    %v6143 = vand.u32 %v3736, 4294901760
    %6144 = vmatmul.mubr.f32.gmra.mrb[0].mxu0 %v6143
    %v6145 = vpop.f32.mrb[0].mxu0
    %v6146 = vadd.f32 %v6053, %v6145
    %v6147 = vpop.f32.mrb[0].mxu0
    %6148 = vdwg.mxu0
    %v6149 = vld [vmem:[#allocation8 + $0x100] sm:$0xff]
    %v6150 = vld [vmem:[#allocation8 + $0x108] sm:$0xff]
    %v6151 = vld [vmem:[#allocation8 + $0x110] sm:$0xff]
    %v6152 = vld [vmem:[#allocation8 + $0x118] sm:$0xff]
    %v6153 = vld [vmem:[#allocation8 + $0x120] sm:$0xff]
    %v6154 = vld [vmem:[#allocation8 + $0x128] sm:$0xff]
    %v6155 = vld [vmem:[#allocation8 + $0x130] sm:$0xff]
    %v6156 = vld [vmem:[#allocation8 + $0x138] sm:$0xff]
    %v6157 = vld [vmem:[#allocation8 + $0x140] sm:$0xff]
    %v6158 = vld [vmem:[#allocation8 + $0x148] sm:$0xff]
    %v6159 = vld [vmem:[#allocation8 + $0x150] sm:$0xff]
    %v6160 = vld [vmem:[#allocation8 + $0x158] sm:$0xff]
    %v6161 = vld [vmem:[#allocation8 + $0x160] sm:$0xff]
    %v6162 = vld [vmem:[#allocation8 + $0x168] sm:$0xff]
    %v6163 = vld [vmem:[#allocation8 + $0x170] sm:$0xff]
    %v6164 = vld [vmem:[#allocation8 + $0x178] sm:$0xff]
    %6165 = vmatprep.subr.mxu0 0.0
    %v6166 = vand.u32 %v6149, 4294901760
    %6167 = vmatpush1.msra.mxu0 %v6166
    %6168 = vmatprep.subr.mxu0 0.0
    %v6169 = vand.u32 %v6150, 4294901760
    %6170 = vmatpush1.msra.mxu0 %v6169
    %6171 = vmatprep.subr.mxu0 0.0
    %v6172 = vand.u32 %v6151, 4294901760
    %6173 = vmatpush1.msra.mxu0 %v6172
    %6174 = vmatprep.subr.mxu0 0.0
    %v6175 = vand.u32 %v6152, 4294901760
    %6176 = vmatpush1.msra.mxu0 %v6175
    %6177 = vmatprep.subr.mxu0 0.0
    %v6178 = vand.u32 %v6153, 4294901760
    %6179 = vmatpush1.msra.mxu0 %v6178
    %6180 = vmatprep.subr.mxu0 0.0
    %v6181 = vand.u32 %v6154, 4294901760
    %6182 = vmatpush1.msra.mxu0 %v6181
    %6183 = vmatprep.subr.mxu0 0.0
    %v6184 = vand.u32 %v6155, 4294901760
    %6185 = vmatpush1.msra.mxu0 %v6184
    %6186 = vmatprep.subr.mxu0 0.0
    %v6187 = vand.u32 %v6156, 4294901760
    %6188 = vmatpush1.msra.mxu0 %v6187
    %6189 = vmatprep.subr.mxu0 0.0
    %v6190 = vand.u32 %v6157, 4294901760
    %6191 = vmatpush1.msra.mxu0 %v6190
    %6192 = vmatprep.subr.mxu0 0.0
    %v6193 = vand.u32 %v6158, 4294901760
    %6194 = vmatpush1.msra.mxu0 %v6193
    %6195 = vmatprep.subr.mxu0 0.0
    %v6196 = vand.u32 %v6159, 4294901760
    %6197 = vmatpush1.msra.mxu0 %v6196
    %6198 = vmatprep.subr.mxu0 0.0
    %v6199 = vand.u32 %v6160, 4294901760
    %6200 = vmatpush1.msra.mxu0 %v6199
    %6201 = vmatprep.subr.mxu0 0.0
    %v6202 = vand.u32 %v6161, 4294901760
    %6203 = vmatpush1.msra.mxu0 %v6202
    %6204 = vmatprep.subr.mxu0 0.0
    %v6205 = vand.u32 %v6162, 4294901760
    %6206 = vmatpush1.msra.mxu0 %v6205
    %6207 = vmatprep.subr.mxu0 0.0
    %v6208 = vand.u32 %v6163, 4294901760
    %6209 = vmatpush1.msra.mxu0 %v6208
    %6210 = vmatprep.subr.mxu0 0.0
    %v6211 = vand.u32 %v6164, 4294901760
    %6212 = vmatpush1.msra.mxu0 %v6211
    %6213 = vmatprep.subr.mxu0 0.0
    %6214 = vmatpush1.msra.mxu0 0.0
    %6215 = vmatprep.subr.mxu0 0.0
    %6216 = vmatpush1.msra.mxu0 0.0
    %6217 = vmatprep.subr.mxu0 0.0
    %6218 = vmatpush1.msra.mxu0 0.0
    %6219 = vmatprep.subr.mxu0 0.0
    %6220 = vmatpush1.msra.mxu0 0.0
    %6221 = vmatprep.subr.mxu0 0.0
    %6222 = vmatpush1.msra.mxu0 0.0
    %6223 = vmatprep.subr.mxu0 0.0
    %6224 = vmatpush1.msra.mxu0 0.0
    %6225 = vmatprep.subr.mxu0 0.0
    %6226 = vmatpush1.msra.mxu0 0.0
    %6227 = vmatprep.subr.mxu0 0.0
    %6228 = vmatpush1.msra.mxu0 0.0
    %6229 = vmatprep.subr.mxu0 0.0
    %6230 = vmatpush1.msra.mxu0 0.0
    %6231 = vmatprep.subr.mxu0 0.0
    %6232 = vmatpush1.msra.mxu0 0.0
    %6233 = vmatprep.subr.mxu0 0.0
    %6234 = vmatpush1.msra.mxu0 0.0
    %6235 = vmatprep.subr.mxu0 0.0
    %6236 = vmatpush1.msra.mxu0 0.0
    %6237 = vmatprep.subr.mxu0 0.0
    %6238 = vmatpush1.msra.mxu0 0.0
    %6239 = vmatprep.subr.mxu0 0.0
    %6240 = vmatpush1.msra.mxu0 0.0
    %6241 = vmatprep.subr.mxu0 0.0
    %6242 = vmatpush1.msra.mxu0 0.0
    %6243 = vmatprep.subr.mxu0 0.0
    %6244 = vmatpush1.msra.mxu0 0.0
    %6245 = vmatprep.mubr.f32.mxu0 0.0
    %v6246 = vand.u32 %v4747, 4294901760
    %v6247 = vsub.f32 %v4747, %v6246
    %v6248 = vand.u32 %v6247, 4294901760
    %v6249 = vsub.f32 %v6247, %v6248
    %v6250 = vand.u32 %v6249, 4294901760
    %6251 = vmatmul.mubr.f32.gmra.mrb[0].mxu0 %v6250
    %v6252 = vpop.f32.mrb[0].mxu0
    %v6253 = vadd.f32 0.0, %v6252
    %v6254 = vpop.f32.mrb[0].mxu0
    %6255 = vmatprep.mubr.f32.mxu0 0.0
    %v6256 = vand.u32 %v4748, 4294901760
    %v6257 = vsub.f32 %v4748, %v6256
    %v6258 = vand.u32 %v6257, 4294901760
    %v6259 = vsub.f32 %v6257, %v6258
    %v6260 = vand.u32 %v6259, 4294901760
    %6261 = vmatmul.mubr.f32.gmra.mrb[0].mxu0 %v6260
    %v6262 = vpop.f32.mrb[0].mxu0
    %v6263 = vadd.f32 0.0, %v6262
    %v6264 = vpop.f32.mrb[0].mxu0
    %6265 = vdwg.mxu0
    %6266 = vmatprep.subr.mxu0 0.0
    %v6267 = vand.u32 %v6149, 4294901760
    %v6268 = vsub.f32 %v6149, %v6267
    %v6269 = vand.u32 %v6268, 4294901760
    %v6270 = vsub.f32 %v6268, %v6269
    %v6271 = vand.u32 %v6270, 4294901760
    %6272 = vmatpush1.msra.mxu0 %v6271
    %6273 = vmatprep.subr.mxu0 0.0
    %v6274 = vand.u32 %v6150, 4294901760
    %v6275 = vsub.f32 %v6150, %v6274
    %v6276 = vand.u32 %v6275, 4294901760
    %v6277 = vsub.f32 %v6275, %v6276
    %v6278 = vand.u32 %v6277, 4294901760
    %6279 = vmatpush1.msra.mxu0 %v6278
    %6280 = vmatprep.subr.mxu0 0.0
    %v6281 = vand.u32 %v6151, 4294901760
    %v6282 = vsub.f32 %v6151, %v6281
    %v6283 = vand.u32 %v6282, 4294901760
    %v6284 = vsub.f32 %v6282, %v6283
    %v6285 = vand.u32 %v6284, 4294901760
    %6286 = vmatpush1.msra.mxu0 %v6285
    %6287 = vmatprep.subr.mxu0 0.0
    %v6288 = vand.u32 %v6152, 4294901760
    %v6289 = vsub.f32 %v6152, %v6288
    %v6290 = vand.u32 %v6289, 4294901760
    %v6291 = vsub.f32 %v6289, %v6290
    %v6292 = vand.u32 %v6291, 4294901760
    %6293 = vmatpush1.msra.mxu0 %v6292
    %6294 = vmatprep.subr.mxu0 0.0
    %v6295 = vand.u32 %v6153, 4294901760
    %v6296 = vsub.f32 %v6153, %v6295
    %v6297 = vand.u32 %v6296, 4294901760
    %v6298 = vsub.f32 %v6296, %v6297
    %v6299 = vand.u32 %v6298, 4294901760
    %6300 = vmatpush1.msra.mxu0 %v6299
    %6301 = vmatprep.subr.mxu0 0.0
    %v6302 = vand.u32 %v6154, 4294901760
    %v6303 = vsub.f32 %v6154, %v6302
    %v6304 = vand.u32 %v6303, 4294901760
    %v6305 = vsub.f32 %v6303, %v6304
    %v6306 = vand.u32 %v6305, 4294901760
    %6307 = vmatpush1.msra.mxu0 %v6306
    %6308 = vmatprep.subr.mxu0 0.0
    %v6309 = vand.u32 %v6155, 4294901760
    %v6310 = vsub.f32 %v6155, %v6309
    %v6311 = vand.u32 %v6310, 4294901760
    %v6312 = vsub.f32 %v6310, %v6311
    %v6313 = vand.u32 %v6312, 4294901760
    %6314 = vmatpush1.msra.mxu0 %v6313
    %6315 = vmatprep.subr.mxu0 0.0
    %v6316 = vand.u32 %v6156, 4294901760
    %v6317 = vsub.f32 %v6156, %v6316
    %v6318 = vand.u32 %v6317, 4294901760
    %v6319 = vsub.f32 %v6317, %v6318
    %v6320 = vand.u32 %v6319, 4294901760
    %6321 = vmatpush1.msra.mxu0 %v6320
    %6322 = vmatprep.subr.mxu0 0.0
    %v6323 = vand.u32 %v6157, 4294901760
    %v6324 = vsub.f32 %v6157, %v6323
    %v6325 = vand.u32 %v6324, 4294901760
    %v6326 = vsub.f32 %v6324, %v6325
    %v6327 = vand.u32 %v6326, 4294901760
    %6328 = vmatpush1.msra.mxu0 %v6327
    %6329 = vmatprep.subr.mxu0 0.0
    %v6330 = vand.u32 %v6158, 4294901760
    %v6331 = vsub.f32 %v6158, %v6330
    %v6332 = vand.u32 %v6331, 4294901760
    %v6333 = vsub.f32 %v6331, %v6332
    %v6334 = vand.u32 %v6333, 4294901760
    %6335 = vmatpush1.msra.mxu0 %v6334
    %6336 = vmatprep.subr.mxu0 0.0
    %v6337 = vand.u32 %v6159, 4294901760
    %v6338 = vsub.f32 %v6159, %v6337
    %v6339 = vand.u32 %v6338, 4294901760
    %v6340 = vsub.f32 %v6338, %v6339
    %v6341 = vand.u32 %v6340, 4294901760
    %6342 = vmatpush1.msra.mxu0 %v6341
    %6343 = vmatprep.subr.mxu0 0.0
    %v6344 = vand.u32 %v6160, 4294901760
    %v6345 = vsub.f32 %v6160, %v6344
    %v6346 = vand.u32 %v6345, 4294901760
    %v6347 = vsub.f32 %v6345, %v6346
    %v6348 = vand.u32 %v6347, 4294901760
    %6349 = vmatpush1.msra.mxu0 %v6348
    %6350 = vmatprep.subr.mxu0 0.0
    %v6351 = vand.u32 %v6161, 4294901760
    %v6352 = vsub.f32 %v6161, %v6351
    %v6353 = vand.u32 %v6352, 4294901760
    %v6354 = vsub.f32 %v6352, %v6353
    %v6355 = vand.u32 %v6354, 4294901760
    %6356 = vmatpush1.msra.mxu0 %v6355
    %6357 = vmatprep.subr.mxu0 0.0
    %v6358 = vand.u32 %v6162, 4294901760
    %v6359 = vsub.f32 %v6162, %v6358
    %v6360 = vand.u32 %v6359, 4294901760
    %v6361 = vsub.f32 %v6359, %v6360
    %v6362 = vand.u32 %v6361, 4294901760
    %6363 = vmatpush1.msra.mxu0 %v6362
    %6364 = vmatprep.subr.mxu0 0.0
    %v6365 = vand.u32 %v6163, 4294901760
    %v6366 = vsub.f32 %v6163, %v6365
    %v6367 = vand.u32 %v6366, 4294901760
    %v6368 = vsub.f32 %v6366, %v6367
    %v6369 = vand.u32 %v6368, 4294901760
    %6370 = vmatpush1.msra.mxu0 %v6369
    %6371 = vmatprep.subr.mxu0 0.0
    %v6372 = vand.u32 %v6164, 4294901760
    %v6373 = vsub.f32 %v6164, %v6372
    %v6374 = vand.u32 %v6373, 4294901760
    %v6375 = vsub.f32 %v6373, %v6374
    %v6376 = vand.u32 %v6375, 4294901760
    %6377 = vmatpush1.msra.mxu0 %v6376
    %6378 = vmatprep.subr.mxu0 0.0
    %6379 = vmatpush1.msra.mxu0 0.0
    %6380 = vmatprep.subr.mxu0 0.0
    %6381 = vmatpush1.msra.mxu0 0.0
    %6382 = vmatprep.subr.mxu0 0.0
    %6383 = vmatpush1.msra.mxu0 0.0
    %6384 = vmatprep.subr.mxu0 0.0
    %6385 = vmatpush1.msra.mxu0 0.0
    %6386 = vmatprep.subr.mxu0 0.0
    %6387 = vmatpush1.msra.mxu0 0.0
    %6388 = vmatprep.subr.mxu0 0.0
    %6389 = vmatpush1.msra.mxu0 0.0
    %6390 = vmatprep.subr.mxu0 0.0
    %6391 = vmatpush1.msra.mxu0 0.0
    %6392 = vmatprep.subr.mxu0 0.0
    %6393 = vmatpush1.msra.mxu0 0.0
    %6394 = vmatprep.subr.mxu0 0.0
    %6395 = vmatpush1.msra.mxu0 0.0
    %6396 = vmatprep.subr.mxu0 0.0
    %6397 = vmatpush1.msra.mxu0 0.0
    %6398 = vmatprep.subr.mxu0 0.0
    %6399 = vmatpush1.msra.mxu0 0.0
    %6400 = vmatprep.subr.mxu0 0.0
    %6401 = vmatpush1.msra.mxu0 0.0
    %6402 = vmatprep.subr.mxu0 0.0
    %6403 = vmatpush1.msra.mxu0 0.0
    %6404 = vmatprep.subr.mxu0 0.0
    %6405 = vmatpush1.msra.mxu0 0.0
    %6406 = vmatprep.subr.mxu0 0.0
    %6407 = vmatpush1.msra.mxu0 0.0
    %6408 = vmatprep.subr.mxu0 0.0
    %6409 = vmatpush1.msra.mxu0 0.0
    %6410 = vmatprep.mubr.f32.mxu0 0.0
    %v6411 = vand.u32 %v4747, 4294901760
    %6412 = vmatmul.mubr.f32.gmra.mrb[0].mxu0 %v6411
    %v6413 = vpop.f32.mrb[0].mxu0
    %v6414 = vadd.f32 %v6253, %v6413
    %v6415 = vpop.f32.mrb[0].mxu0
    %6416 = vmatprep.mubr.f32.mxu0 0.0
    %v6417 = vand.u32 %v4748, 4294901760
    %6418 = vmatmul.mubr.f32.gmra.mrb[0].mxu0 %v6417
    %v6419 = vpop.f32.mrb[0].mxu0
    %v6420 = vadd.f32 %v6263, %v6419
    %v6421 = vpop.f32.mrb[0].mxu0
    %6422 = vdwg.mxu0
    %6423 = vmatprep.subr.mxu0 0.0
    %v6424 = vand.u32 %v6149, 4294901760
    %v6425 = vsub.f32 %v6149, %v6424
    %6426 = vmatpush1.msra.mxu0 %v6425
    %6427 = vmatprep.subr.mxu0 0.0
    %v6428 = vand.u32 %v6150, 4294901760
    %v6429 = vsub.f32 %v6150, %v6428
    %6430 = vmatpush1.msra.mxu0 %v6429
    %6431 = vmatprep.subr.mxu0 0.0
    %v6432 = vand.u32 %v6151, 4294901760
    %v6433 = vsub.f32 %v6151, %v6432
    %6434 = vmatpush1.msra.mxu0 %v6433
    %6435 = vmatprep.subr.mxu0 0.0
    %v6436 = vand.u32 %v6152, 4294901760
    %v6437 = vsub.f32 %v6152, %v6436
    %6438 = vmatpush1.msra.mxu0 %v6437
    %6439 = vmatprep.subr.mxu0 0.0
    %v6440 = vand.u32 %v6153, 4294901760
    %v6441 = vsub.f32 %v6153, %v6440
    %6442 = vmatpush1.msra.mxu0 %v6441
    %6443 = vmatprep.subr.mxu0 0.0
    %v6444 = vand.u32 %v6154, 4294901760
    %v6445 = vsub.f32 %v6154, %v6444
    %6446 = vmatpush1.msra.mxu0 %v6445
    %6447 = vmatprep.subr.mxu0 0.0
    %v6448 = vand.u32 %v6155, 4294901760
    %v6449 = vsub.f32 %v6155, %v6448
    %6450 = vmatpush1.msra.mxu0 %v6449
    %6451 = vmatprep.subr.mxu0 0.0
    %v6452 = vand.u32 %v6156, 4294901760
    %v6453 = vsub.f32 %v6156, %v6452
    %6454 = vmatpush1.msra.mxu0 %v6453
    %6455 = vmatprep.subr.mxu0 0.0
    %v6456 = vand.u32 %v6157, 4294901760
    %v6457 = vsub.f32 %v6157, %v6456
    %6458 = vmatpush1.msra.mxu0 %v6457
    %6459 = vmatprep.subr.mxu0 0.0
    %v6460 = vand.u32 %v6158, 4294901760
    %v6461 = vsub.f32 %v6158, %v6460
    %6462 = vmatpush1.msra.mxu0 %v6461
    %6463 = vmatprep.subr.mxu0 0.0
    %v6464 = vand.u32 %v6159, 4294901760
    %v6465 = vsub.f32 %v6159, %v6464
    %6466 = vmatpush1.msra.mxu0 %v6465
    %6467 = vmatprep.subr.mxu0 0.0
    %v6468 = vand.u32 %v6160, 4294901760
    %v6469 = vsub.f32 %v6160, %v6468
    %6470 = vmatpush1.msra.mxu0 %v6469
    %6471 = vmatprep.subr.mxu0 0.0
    %v6472 = vand.u32 %v6161, 4294901760
    %v6473 = vsub.f32 %v6161, %v6472
    %6474 = vmatpush1.msra.mxu0 %v6473
    %6475 = vmatprep.subr.mxu0 0.0
    %v6476 = vand.u32 %v6162, 4294901760
    %v6477 = vsub.f32 %v6162, %v6476
    %6478 = vmatpush1.msra.mxu0 %v6477
    %6479 = vmatprep.subr.mxu0 0.0
    %v6480 = vand.u32 %v6163, 4294901760
    %v6481 = vsub.f32 %v6163, %v6480
    %6482 = vmatpush1.msra.mxu0 %v6481
    %6483 = vmatprep.subr.mxu0 0.0
    %v6484 = vand.u32 %v6164, 4294901760
    %v6485 = vsub.f32 %v6164, %v6484
    %6486 = vmatpush1.msra.mxu0 %v6485
    %6487 = vmatprep.subr.mxu0 0.0
    %6488 = vmatpush1.msra.mxu0 0.0
    %6489 = vmatprep.subr.mxu0 0.0
    %6490 = vmatpush1.msra.mxu0 0.0
    %6491 = vmatprep.subr.mxu0 0.0
    %6492 = vmatpush1.msra.mxu0 0.0
    %6493 = vmatprep.subr.mxu0 0.0
    %6494 = vmatpush1.msra.mxu0 0.0
    %6495 = vmatprep.subr.mxu0 0.0
    %6496 = vmatpush1.msra.mxu0 0.0
    %6497 = vmatprep.subr.mxu0 0.0
    %6498 = vmatpush1.msra.mxu0 0.0
    %6499 = vmatprep.subr.mxu0 0.0
    %6500 = vmatpush1.msra.mxu0 0.0
    %6501 = vmatprep.subr.mxu0 0.0
    %6502 = vmatpush1.msra.mxu0 0.0
    %6503 = vmatprep.subr.mxu0 0.0
    %6504 = vmatpush1.msra.mxu0 0.0
    %6505 = vmatprep.subr.mxu0 0.0
    %6506 = vmatpush1.msra.mxu0 0.0
    %6507 = vmatprep.subr.mxu0 0.0
    %6508 = vmatpush1.msra.mxu0 0.0
    %6509 = vmatprep.subr.mxu0 0.0
    %6510 = vmatpush1.msra.mxu0 0.0
    %6511 = vmatprep.subr.mxu0 0.0
    %6512 = vmatpush1.msra.mxu0 0.0
    %6513 = vmatprep.subr.mxu0 0.0
    %6514 = vmatpush1.msra.mxu0 0.0
    %6515 = vmatprep.subr.mxu0 0.0
    %6516 = vmatpush1.msra.mxu0 0.0
    %6517 = vmatprep.subr.mxu0 0.0
    %6518 = vmatpush1.msra.mxu0 0.0
    %6519 = vmatprep.mubr.f32.mxu0 0.0
    %v6520 = vand.u32 %v4747, 4294901760
    %v6521 = vsub.f32 %v4747, %v6520
    %6522 = vmatmul.mubr.f32.gmra.mrb[0].mxu0 %v6521
    %v6523 = vpop.f32.mrb[0].mxu0
    %v6524 = vadd.f32 %v6414, %v6523
    %v6525 = vpop.f32.mrb[0].mxu0
    %6526 = vmatprep.mubr.f32.mxu0 0.0
    %v6527 = vand.u32 %v4748, 4294901760
    %v6528 = vsub.f32 %v4748, %v6527
    %6529 = vmatmul.mubr.f32.gmra.mrb[0].mxu0 %v6528
    %v6530 = vpop.f32.mrb[0].mxu0
    %v6531 = vadd.f32 %v6420, %v6530
    %v6532 = vpop.f32.mrb[0].mxu0
    %6533 = vdwg.mxu0
    %6534 = vmatprep.subr.mxu0 0.0
    %v6535 = vand.u32 %v6149, 4294901760
    %6536 = vmatpush1.msra.mxu0 %v6535
    %6537 = vmatprep.subr.mxu0 0.0
    %v6538 = vand.u32 %v6150, 4294901760
    %6539 = vmatpush1.msra.mxu0 %v6538
    %6540 = vmatprep.subr.mxu0 0.0
    %v6541 = vand.u32 %v6151, 4294901760
    %6542 = vmatpush1.msra.mxu0 %v6541
    %6543 = vmatprep.subr.mxu0 0.0
    %v6544 = vand.u32 %v6152, 4294901760
    %6545 = vmatpush1.msra.mxu0 %v6544
    %6546 = vmatprep.subr.mxu0 0.0
    %v6547 = vand.u32 %v6153, 4294901760
    %6548 = vmatpush1.msra.mxu0 %v6547
    %6549 = vmatprep.subr.mxu0 0.0
    %v6550 = vand.u32 %v6154, 4294901760
    %6551 = vmatpush1.msra.mxu0 %v6550
    %6552 = vmatprep.subr.mxu0 0.0
    %v6553 = vand.u32 %v6155, 4294901760
    %6554 = vmatpush1.msra.mxu0 %v6553
    %6555 = vmatprep.subr.mxu0 0.0
    %v6556 = vand.u32 %v6156, 4294901760
    %6557 = vmatpush1.msra.mxu0 %v6556
    %6558 = vmatprep.subr.mxu0 0.0
    %v6559 = vand.u32 %v6157, 4294901760
    %6560 = vmatpush1.msra.mxu0 %v6559
    %6561 = vmatprep.subr.mxu0 0.0
    %v6562 = vand.u32 %v6158, 4294901760
    %6563 = vmatpush1.msra.mxu0 %v6562
    %6564 = vmatprep.subr.mxu0 0.0
    %v6565 = vand.u32 %v6159, 4294901760
    %6566 = vmatpush1.msra.mxu0 %v6565
    %6567 = vmatprep.subr.mxu0 0.0
    %v6568 = vand.u32 %v6160, 4294901760
    %6569 = vmatpush1.msra.mxu0 %v6568
    %6570 = vmatprep.subr.mxu0 0.0
    %v6571 = vand.u32 %v6161, 4294901760
    %6572 = vmatpush1.msra.mxu0 %v6571
    %6573 = vmatprep.subr.mxu0 0.0
    %v6574 = vand.u32 %v6162, 4294901760
    %6575 = vmatpush1.msra.mxu0 %v6574
    %6576 = vmatprep.subr.mxu0 0.0
    %v6577 = vand.u32 %v6163, 4294901760
    %6578 = vmatpush1.msra.mxu0 %v6577
    %6579 = vmatprep.subr.mxu0 0.0
    %v6580 = vand.u32 %v6164, 4294901760
    %6581 = vmatpush1.msra.mxu0 %v6580
    %6582 = vmatprep.subr.mxu0 0.0
    %6583 = vmatpush1.msra.mxu0 0.0
    %6584 = vmatprep.subr.mxu0 0.0
    %6585 = vmatpush1.msra.mxu0 0.0
    %6586 = vmatprep.subr.mxu0 0.0
    %6587 = vmatpush1.msra.mxu0 0.0
    %6588 = vmatprep.subr.mxu0 0.0
    %6589 = vmatpush1.msra.mxu0 0.0
    %6590 = vmatprep.subr.mxu0 0.0
    %6591 = vmatpush1.msra.mxu0 0.0
    %6592 = vmatprep.subr.mxu0 0.0
    %6593 = vmatpush1.msra.mxu0 0.0
    %6594 = vmatprep.subr.mxu0 0.0
    %6595 = vmatpush1.msra.mxu0 0.0
    %6596 = vmatprep.subr.mxu0 0.0
    %6597 = vmatpush1.msra.mxu0 0.0
    %6598 = vmatprep.subr.mxu0 0.0
    %6599 = vmatpush1.msra.mxu0 0.0
    %6600 = vmatprep.subr.mxu0 0.0
    %6601 = vmatpush1.msra.mxu0 0.0
    %6602 = vmatprep.subr.mxu0 0.0
    %6603 = vmatpush1.msra.mxu0 0.0
    %6604 = vmatprep.subr.mxu0 0.0
    %6605 = vmatpush1.msra.mxu0 0.0
    %6606 = vmatprep.subr.mxu0 0.0
    %6607 = vmatpush1.msra.mxu0 0.0
    %6608 = vmatprep.subr.mxu0 0.0
    %6609 = vmatpush1.msra.mxu0 0.0
    %6610 = vmatprep.subr.mxu0 0.0
    %6611 = vmatpush1.msra.mxu0 0.0
    %6612 = vmatprep.subr.mxu0 0.0
    %6613 = vmatpush1.msra.mxu0 0.0
    %6614 = vmatprep.mubr.f32.mxu0 0.0
    %v6615 = vand.u32 %v4747, 4294901760
    %v6616 = vsub.f32 %v4747, %v6615
    %v6617 = vand.u32 %v6616, 4294901760
    %6618 = vmatmul.mubr.f32.gmra.mrb[0].mxu0 %v6617
    %v6619 = vpop.f32.mrb[0].mxu0
    %v6620 = vadd.f32 %v6524, %v6619
    %v6621 = vpop.f32.mrb[0].mxu0
    %6622 = vmatprep.mubr.f32.mxu0 0.0
    %v6623 = vand.u32 %v4748, 4294901760
    %v6624 = vsub.f32 %v4748, %v6623
    %v6625 = vand.u32 %v6624, 4294901760
    %6626 = vmatmul.mubr.f32.gmra.mrb[0].mxu0 %v6625
    %v6627 = vpop.f32.mrb[0].mxu0
    %v6628 = vadd.f32 %v6531, %v6627
    %v6629 = vpop.f32.mrb[0].mxu0
    %6630 = vdwg.mxu0
    %6631 = vmatprep.subr.mxu0 0.0
    %v6632 = vand.u32 %v6149, 4294901760
    %v6633 = vsub.f32 %v6149, %v6632
    %v6634 = vand.u32 %v6633, 4294901760
    %6635 = vmatpush1.msra.mxu0 %v6634
    %6636 = vmatprep.subr.mxu0 0.0
    %v6637 = vand.u32 %v6150, 4294901760
    %v6638 = vsub.f32 %v6150, %v6637
    %v6639 = vand.u32 %v6638, 4294901760
    %6640 = vmatpush1.msra.mxu0 %v6639
    %6641 = vmatprep.subr.mxu0 0.0
    %v6642 = vand.u32 %v6151, 4294901760
    %v6643 = vsub.f32 %v6151, %v6642
    %v6644 = vand.u32 %v6643, 4294901760
    %6645 = vmatpush1.msra.mxu0 %v6644
    %6646 = vmatprep.subr.mxu0 0.0
    %v6647 = vand.u32 %v6152, 4294901760
    %v6648 = vsub.f32 %v6152, %v6647
    %v6649 = vand.u32 %v6648, 4294901760
    %6650 = vmatpush1.msra.mxu0 %v6649
    %6651 = vmatprep.subr.mxu0 0.0
    %v6652 = vand.u32 %v6153, 4294901760
    %v6653 = vsub.f32 %v6153, %v6652
    %v6654 = vand.u32 %v6653, 4294901760
    %6655 = vmatpush1.msra.mxu0 %v6654
    %6656 = vmatprep.subr.mxu0 0.0
    %v6657 = vand.u32 %v6154, 4294901760
    %v6658 = vsub.f32 %v6154, %v6657
    %v6659 = vand.u32 %v6658, 4294901760
    %6660 = vmatpush1.msra.mxu0 %v6659
    %6661 = vmatprep.subr.mxu0 0.0
    %v6662 = vand.u32 %v6155, 4294901760
    %v6663 = vsub.f32 %v6155, %v6662
    %v6664 = vand.u32 %v6663, 4294901760
    %6665 = vmatpush1.msra.mxu0 %v6664
    %6666 = vmatprep.subr.mxu0 0.0
    %v6667 = vand.u32 %v6156, 4294901760
    %v6668 = vsub.f32 %v6156, %v6667
    %v6669 = vand.u32 %v6668, 4294901760
    %6670 = vmatpush1.msra.mxu0 %v6669
    %6671 = vmatprep.subr.mxu0 0.0
    %v6672 = vand.u32 %v6157, 4294901760
    %v6673 = vsub.f32 %v6157, %v6672
    %v6674 = vand.u32 %v6673, 4294901760
    %6675 = vmatpush1.msra.mxu0 %v6674
    %6676 = vmatprep.subr.mxu0 0.0
    %v6677 = vand.u32 %v6158, 4294901760
    %v6678 = vsub.f32 %v6158, %v6677
    %v6679 = vand.u32 %v6678, 4294901760
    %6680 = vmatpush1.msra.mxu0 %v6679
    %6681 = vmatprep.subr.mxu0 0.0
    %v6682 = vand.u32 %v6159, 4294901760
    %v6683 = vsub.f32 %v6159, %v6682
    %v6684 = vand.u32 %v6683, 4294901760
    %6685 = vmatpush1.msra.mxu0 %v6684
    %6686 = vmatprep.subr.mxu0 0.0
    %v6687 = vand.u32 %v6160, 4294901760
    %v6688 = vsub.f32 %v6160, %v6687
    %v6689 = vand.u32 %v6688, 4294901760
    %6690 = vmatpush1.msra.mxu0 %v6689
    %6691 = vmatprep.subr.mxu0 0.0
    %v6692 = vand.u32 %v6161, 4294901760
    %v6693 = vsub.f32 %v6161, %v6692
    %v6694 = vand.u32 %v6693, 4294901760
    %6695 = vmatpush1.msra.mxu0 %v6694
    %6696 = vmatprep.subr.mxu0 0.0
    %v6697 = vand.u32 %v6162, 4294901760
    %v6698 = vsub.f32 %v6162, %v6697
    %v6699 = vand.u32 %v6698, 4294901760
    %6700 = vmatpush1.msra.mxu0 %v6699
    %6701 = vmatprep.subr.mxu0 0.0
    %v6702 = vand.u32 %v6163, 4294901760
    %v6703 = vsub.f32 %v6163, %v6702
    %v6704 = vand.u32 %v6703, 4294901760
    %6705 = vmatpush1.msra.mxu0 %v6704
    %6706 = vmatprep.subr.mxu0 0.0
    %v6707 = vand.u32 %v6164, 4294901760
    %v6708 = vsub.f32 %v6164, %v6707
    %v6709 = vand.u32 %v6708, 4294901760
    %6710 = vmatpush1.msra.mxu0 %v6709
    %6711 = vmatprep.subr.mxu0 0.0
    %6712 = vmatpush1.msra.mxu0 0.0
    %6713 = vmatprep.subr.mxu0 0.0
    %6714 = vmatpush1.msra.mxu0 0.0
    %6715 = vmatprep.subr.mxu0 0.0
    %6716 = vmatpush1.msra.mxu0 0.0
    %6717 = vmatprep.subr.mxu0 0.0
    %6718 = vmatpush1.msra.mxu0 0.0
    %6719 = vmatprep.subr.mxu0 0.0
    %6720 = vmatpush1.msra.mxu0 0.0
    %6721 = vmatprep.subr.mxu0 0.0
    %6722 = vmatpush1.msra.mxu0 0.0
    %6723 = vmatprep.subr.mxu0 0.0
    %6724 = vmatpush1.msra.mxu0 0.0
    %6725 = vmatprep.subr.mxu0 0.0
    %6726 = vmatpush1.msra.mxu0 0.0
    %6727 = vmatprep.subr.mxu0 0.0
    %6728 = vmatpush1.msra.mxu0 0.0
    %6729 = vmatprep.subr.mxu0 0.0
    %6730 = vmatpush1.msra.mxu0 0.0
    %6731 = vmatprep.subr.mxu0 0.0
    %6732 = vmatpush1.msra.mxu0 0.0
    %6733 = vmatprep.subr.mxu0 0.0
    %6734 = vmatpush1.msra.mxu0 0.0
    %6735 = vmatprep.subr.mxu0 0.0
    %6736 = vmatpush1.msra.mxu0 0.0
    %6737 = vmatprep.subr.mxu0 0.0
    %6738 = vmatpush1.msra.mxu0 0.0
    %6739 = vmatprep.subr.mxu0 0.0
    %6740 = vmatpush1.msra.mxu0 0.0
    %6741 = vmatprep.subr.mxu0 0.0
    %6742 = vmatpush1.msra.mxu0 0.0
    %6743 = vmatprep.mubr.f32.mxu0 0.0
    %v6744 = vand.u32 %v4747, 4294901760
    %6745 = vmatmul.mubr.f32.gmra.mrb[0].mxu0 %v6744
    %v6746 = vpop.f32.mrb[0].mxu0
    %v6747 = vadd.f32 %v6620, %v6746
    %v6748 = vpop.f32.mrb[0].mxu0
    %6749 = vmatprep.mubr.f32.mxu0 0.0
    %v6750 = vand.u32 %v4748, 4294901760
    %6751 = vmatmul.mubr.f32.gmra.mrb[0].mxu0 %v6750
    %v6752 = vpop.f32.mrb[0].mxu0
    %v6753 = vadd.f32 %v6628, %v6752
    %v6754 = vpop.f32.mrb[0].mxu0
    %6755 = vdwg.mxu0
    %6756 = vmatprep.subr.mxu0 0.0
    %v6757 = vand.u32 %v6149, 4294901760
    %6758 = vmatpush1.msra.mxu0 %v6757
    %6759 = vmatprep.subr.mxu0 0.0
    %v6760 = vand.u32 %v6150, 4294901760
    %6761 = vmatpush1.msra.mxu0 %v6760
    %6762 = vmatprep.subr.mxu0 0.0
    %v6763 = vand.u32 %v6151, 4294901760
    %6764 = vmatpush1.msra.mxu0 %v6763
    %6765 = vmatprep.subr.mxu0 0.0
    %v6766 = vand.u32 %v6152, 4294901760
    %6767 = vmatpush1.msra.mxu0 %v6766
    %6768 = vmatprep.subr.mxu0 0.0
    %v6769 = vand.u32 %v6153, 4294901760
    %6770 = vmatpush1.msra.mxu0 %v6769
    %6771 = vmatprep.subr.mxu0 0.0
    %v6772 = vand.u32 %v6154, 4294901760
    %6773 = vmatpush1.msra.mxu0 %v6772
    %6774 = vmatprep.subr.mxu0 0.0
    %v6775 = vand.u32 %v6155, 4294901760
    %6776 = vmatpush1.msra.mxu0 %v6775
    %6777 = vmatprep.subr.mxu0 0.0
    %v6778 = vand.u32 %v6156, 4294901760
    %6779 = vmatpush1.msra.mxu0 %v6778
    %6780 = vmatprep.subr.mxu0 0.0
    %v6781 = vand.u32 %v6157, 4294901760
    %6782 = vmatpush1.msra.mxu0 %v6781
    %6783 = vmatprep.subr.mxu0 0.0
    %v6784 = vand.u32 %v6158, 4294901760
    %6785 = vmatpush1.msra.mxu0 %v6784
    %6786 = vmatprep.subr.mxu0 0.0
    %v6787 = vand.u32 %v6159, 4294901760
    %6788 = vmatpush1.msra.mxu0 %v6787
    %6789 = vmatprep.subr.mxu0 0.0
    %v6790 = vand.u32 %v6160, 4294901760
    %6791 = vmatpush1.msra.mxu0 %v6790
    %6792 = vmatprep.subr.mxu0 0.0
    %v6793 = vand.u32 %v6161, 4294901760
    %6794 = vmatpush1.msra.mxu0 %v6793
    %6795 = vmatprep.subr.mxu0 0.0
    %v6796 = vand.u32 %v6162, 4294901760
    %6797 = vmatpush1.msra.mxu0 %v6796
    %6798 = vmatprep.subr.mxu0 0.0
    %v6799 = vand.u32 %v6163, 4294901760
    %6800 = vmatpush1.msra.mxu0 %v6799
    %6801 = vmatprep.subr.mxu0 0.0
    %v6802 = vand.u32 %v6164, 4294901760
    %6803 = vmatpush1.msra.mxu0 %v6802
    %6804 = vmatprep.subr.mxu0 0.0
    %6805 = vmatpush1.msra.mxu0 0.0
    %6806 = vmatprep.subr.mxu0 0.0
    %6807 = vmatpush1.msra.mxu0 0.0
    %6808 = vmatprep.subr.mxu0 0.0
    %6809 = vmatpush1.msra.mxu0 0.0
    %6810 = vmatprep.subr.mxu0 0.0
    %6811 = vmatpush1.msra.mxu0 0.0
    %6812 = vmatprep.subr.mxu0 0.0
    %6813 = vmatpush1.msra.mxu0 0.0
    %6814 = vmatprep.subr.mxu0 0.0
    %6815 = vmatpush1.msra.mxu0 0.0
    %6816 = vmatprep.subr.mxu0 0.0
    %6817 = vmatpush1.msra.mxu0 0.0
    %6818 = vmatprep.subr.mxu0 0.0
    %6819 = vmatpush1.msra.mxu0 0.0
    %6820 = vmatprep.subr.mxu0 0.0
    %6821 = vmatpush1.msra.mxu0 0.0
    %6822 = vmatprep.subr.mxu0 0.0
    %6823 = vmatpush1.msra.mxu0 0.0
    %6824 = vmatprep.subr.mxu0 0.0
    %6825 = vmatpush1.msra.mxu0 0.0
    %6826 = vmatprep.subr.mxu0 0.0
    %6827 = vmatpush1.msra.mxu0 0.0
    %6828 = vmatprep.subr.mxu0 0.0
    %6829 = vmatpush1.msra.mxu0 0.0
    %6830 = vmatprep.subr.mxu0 0.0
    %6831 = vmatpush1.msra.mxu0 0.0
    %6832 = vmatprep.subr.mxu0 0.0
    %6833 = vmatpush1.msra.mxu0 0.0
    %6834 = vmatprep.subr.mxu0 0.0
    %6835 = vmatpush1.msra.mxu0 0.0
    %6836 = vmatprep.mubr.f32.mxu0 0.0
    %v6837 = vand.u32 %v4747, 4294901760
    %6838 = vmatmul.mubr.f32.gmra.mrb[0].mxu0 %v6837
    %v6839 = vpop.f32.mrb[0].mxu0
    %v6840 = vadd.f32 %v6747, %v6839
    %v6841 = vpop.f32.mrb[0].mxu0
    %6842 = vmatprep.mubr.f32.mxu0 0.0
    %v6843 = vand.u32 %v4748, 4294901760
    %6844 = vmatmul.mubr.f32.gmra.mrb[0].mxu0 %v6843
    %v6845 = vpop.f32.mrb[0].mxu0
    %v6846 = vadd.f32 %v6753, %v6845
    %v6847 = vpop.f32.mrb[0].mxu0
    %6848 = vdwg.mxu0
    %v6849 = vadd.f32 %v6140, %v6840
    %v6850 = vadd.f32 %v6146, %v6846
    %v6851 = vld [vmem:[%s5] sm:$0x1]
    %v6853 = vlaneseq
    %v6854 = vshrl.u32 %v6853, 7
    %v6855 = vsub.s32 0, %v6854
    %v6856 = vrot.slane %v6851, %v6855
    %v6858 = vadd.f32 %v6849, %v6856
    %v6859 = vadd.f32 %v6850, %v6856
    %v6860 = vmax.f32 %v6858, 0.0
    %v6861 = vmax.f32 %v6859, 0.0
    %6862 = vst [vmem:[#allocation10] sm:$0xff] %v6860
    %6863 = vst [vmem:[#allocation10 + $0x8] sm:$0xff] %v6861
    // Predicated region
    $region42: #{tpu_custom_call.1} parent=1 // pred_check
      _
    $region43: #{tpu_custom_call.1} parent=1 // pred_check_branch
      %6865 = sbr.rel (0) target = $region45
    $region44: #{tpu_custom_call.1} parent=1 // pred_region
      %s6867 = ssub.s32 256, 256
      %6868 = vsyncadd [#allocation4], %s6867
      %s6869 = sshll.u32 [#allocation10], 4
      %s6870 = int_to_ptr.vmem [resolvable:$true] %s6869
      %6875 = dma.vmem_to_hbm [thread:$0]  %s6870, 256, %s6, [#allocation4], 128, 128, 8
    $region45: #{tpu_custom_call.1} parent=1 // pred_fallthru
      _
    // Predicated region
    $region46: #{tpu_custom_call.1} parent=1 // pred_check
      _
    $region47: #{tpu_custom_call.1} parent=1 // pred_check_branch
      %6877 = sbr.rel (0) target = $region49
    $region48: #{tpu_custom_call.1} parent=1 // pred_region
      %6878 = dma.done [#allocation4], 256
    $region49: #{tpu_custom_call.1} parent=1 // pred_fallthru
      _
    %6879 = vsyncpa [#allocation3], 1
    %6880 = vsyncpa [#allocation6], 1
    %6881 = vsyncpa [#allocation9], 1
    %6882 = vsyncpa [#allocation4], 1

</llo_original>
